<compile_context>
chip_gen: v7x
topology: tpu7x:2x2x1
jax: 0.10.0
libtpu: 0.0.40
codegen_flags: <defaults>
</compile_context>

<pallas_src>
import functools

import jax
import jax.numpy as jnp
from jax.experimental import pallas as pl
from jax.experimental.pallas import tpu as pltpu

IN_DIM = 100
HID_DIM = 784

# Lane-aligned padded dims.
IN_PAD = 128          # 100 -> 128: one clean K pass on the MXU, aligned loads
HID_PAD = 896         # 784 -> 896 = 7*128: lane-dense intermediates/outputs
MAX_TB = 512          # largest batch tile (review: 512 on v6e/v7x)
VMEM_LIMIT_BYTES = 48 << 20   # <= ~48 MiB per review (v7x: 64 MiB/TC physical)

# Resolved lazily on the first forward call: True if pl.Buffered(1) weight
# specs compile on this jax/libtpu, else False (fall back to default buffering).
_SINGLE_BUFFERED_WEIGHTS = None


def _mlp_kernel(x_ref, w1_ref, b1_ref, w2_ref, b2_ref, w3_ref, b3_ref, o_ref):
    # Layer 1: Linear(128 -> 896) + ReLU   (zero-padded 100 -> 784)
    h = jnp.dot(x_ref[...], w1_ref[...], preferred_element_type=jnp.float32)
    h = jnp.maximum(h + b1_ref[...], 0.0)
    # Layer 2: Linear(896 -> 896) + ReLU   (zero-padded 784 -> 784)
    h = jnp.dot(h, w2_ref[...], preferred_element_type=jnp.float32)
    h = jnp.maximum(h + b2_ref[...], 0.0)
    # Layer 3: Linear(896 -> 896) + tanh
    h = jnp.dot(h, w3_ref[...], preferred_element_type=jnp.float32)
    o_ref[...] = jnp.tanh(h + b3_ref[...])


def _round_up(n, m):
    return ((n + m - 1) // m) * m


def _pad_to(a, shape):
    return jnp.pad(a, [(0, t - s) for s, t in zip(a.shape, shape)])


def prepare_params(params):
    """One-time zero-padding of weights/biases to lane-aligned shapes.

    Call once after init/update, NOT per forward call (keeps ~14 MiB of pad
    traffic out of every step).  Padding is numerically exact: padded K rows
    multiply zeros, padded hidden columns stay 0 through ReLU, padded output
    columns are sliced off in g_forward.
    """
    w1, b1, w2, b2, w3, b3 = params
    return (
        _pad_to(w1, (IN_PAD, HID_PAD)), _pad_to(b1, (1, HID_PAD)),
        _pad_to(w2, (HID_PAD, HID_PAD)), _pad_to(b2, (1, HID_PAD)),
        _pad_to(w3, (HID_PAD, HID_PAD)), _pad_to(b3, (1, HID_PAD)),
    )


def _choose_tiling(batch):
    """Return (tile_rows, num_tiles) -- balanced, 8-row-aligned batch tiles."""
    b8 = _round_up(batch, 8)
    if b8 < 16:
        return b8, 1                       # one tiny tile; nothing to split
    # At least ceil(B/MAX_TB) tiles (VMEM), and at least 2 tiles so the
    # "parallel" grid axis can shard the batch across both v7x TensorCores.
    # On single-TC v5e/v6e the extra grid step (~0.35 us) is noise next to the
    # ~6.6 MiB resident-weight DMA.
    n_tiles = max(-(-batch // MAX_TB), 2)
    tb = _round_up(-(-batch // n_tiles), 8)
    return tb, n_tiles


@functools.lru_cache(maxsize=None)
def _build_forward(batch, tb, n_tiles, single_buffer_weights):
    """Build and jit the padded-pallas forward for a given batch/tiling."""
    b_pad = tb * n_tiles

    def resident(shape):
        # Constant index_map: the block never changes, so Pallas DMAs it once
        # and keeps it VMEM-resident across the whole grid.
        if single_buffer_weights:
            return pl.BlockSpec(shape, lambda i: (0, 0),
                                pipeline_mode=pl.Buffered(1))
        return pl.BlockSpec(shape, lambda i: (0, 0))

    flops = 2 * b_pad * HID_PAD * (IN_PAD + 2 * HID_PAD)
    bytes_accessed = 4 * (
        b_pad * (IN_PAD + HID_PAD)                       # x in, y out
        + IN_PAD * HID_PAD + 2 * HID_PAD * HID_PAD       # weights (DMA'd once)
        + 3 * HID_PAD)                                   # biases

    call = pl.pallas_call(
        _mlp_kernel,
        out_shape=jax.ShapeDtypeStruct((b_pad, HID_PAD), jnp.float32),
        grid=(n_tiles,),
        in_specs=[
            pl.BlockSpec((tb, IN_PAD), lambda i: (i, 0)),
            resident((IN_PAD, HID_PAD)), resident((1, HID_PAD)),
            resident((HID_PAD, HID_PAD)), resident((1, HID_PAD)),
            resident((HID_PAD, HID_PAD)), resident((1, HID_PAD)),
        ],
        out_specs=pl.BlockSpec((tb, HID_PAD), lambda i: (i, 0)),
        compiler_params=pltpu.CompilerParams(
            dimension_semantics=("parallel",),   # shard batch tiles over v7x TCs
            vmem_limit_bytes=VMEM_LIMIT_BYTES,
        ),
        cost_estimate=pl.CostEstimate(
            flops=flops,
            transcendentals=b_pad * HID_PAD,     # tanh
            bytes_accessed=bytes_accessed,
        ),
    )

    def forward(x, *padded_params):
        x_p = _pad_to(x, (b_pad, IN_PAD))        # per-call pad of x only (tiny)
        out_p = call(x_p, *padded_params)
        return out_p[:batch, :HID_DIM]

    return jax.jit(forward)


def g_forward(x, padded_params):
    """Pallas implementation of G.forward.

    x: (B, 100) float32.  padded_params: output of prepare_params().
    """
    global _SINGLE_BUFFERED_WEIGHTS
    batch = x.shape[0]
    tb, n_tiles = _choose_tiling(batch)

    if _SINGLE_BUFFERED_WEIGHTS is None:
        # First call: try single-buffered resident weights, fall back to the
        # (previously verified) default-buffered spec if rejected.
        try:
            fwd = _build_forward(batch, tb, n_tiles, True)
            out = jax.block_until_ready(fwd(x, *padded_params))
            _SINGLE_BUFFERED_WEIGHTS = True
            return out
        except Exception:
            _SINGLE_BUFFERED_WEIGHTS = False

    fwd = _build_forward(batch, tb, n_tiles, _SINGLE_BUFFERED_WEIGHTS)
    return fwd(x, *padded_params)


def init_params(key):
    """Deterministic init mirroring nn.Linear default (uniform +/- 1/sqrt(fan_in)).

    Weights are stored transposed vs PyTorch: (in_features, out_features)."""
    ks = jax.random.split(key, 6)

    def linear(kw, kb, fan_in, fan_out):
        bound = 1.0 / jnp.sqrt(jnp.float32(fan_in))
        w = jax.random.uniform(kw, (fan_in, fan_out), jnp.float32, -bound, bound)
        b = jax.random.uniform(kb, (1, fan_out), jnp.float32, -bound, bound)
        return w, b

    w1, b1 = linear(ks[0], ks[1], IN_DIM, HID_DIM)
    w2, b2 = linear(ks[2], ks[3], HID_DIM, HID_DIM)
    w3, b3 = linear(ks[4], ks[5], HID_DIM, HID_DIM)
    return (w1, b1, w2, b2, w3, b3)


def g_forward_ref(x, params):
    """Pure-JAX reference for correctness check."""
    w1, b1, w2, b2, w3, b3 = params
    h = jnp.maximum(x @ w1 + b1, 0.0)
    h = jnp.maximum(h @ w2 + b2, 0.0)
    return jnp.tanh(h @ w3 + b3)


if __name__ == "__main__":
    key = jax.random.PRNGKey(0)
    k_params, k_x = jax.random.split(key)
    raw_params = init_params(k_params)
    params = jax.block_until_ready(prepare_params(raw_params))  # pad once

    # Small batch (single tile) and a batch that exercises the balanced
    # multi-tile "parallel" path with padded rows.
    for batch in (2, 20):
        x = jax.random.normal(jax.random.fold_in(k_x, batch),
                              (batch, IN_DIM), dtype=jnp.float32)
        out = jax.block_until_ready(g_forward(x, params))
        ref = g_forward_ref(x, raw_params)
        assert out.shape == (batch, HID_DIM)
        assert jnp.allclose(out, ref, atol=1e-5, rtol=1e-5), (
            "max abs err", float(jnp.max(jnp.abs(out - ref))))

    print("KERNEL_OK")
</pallas_src>

<mosaic_0001>
module attributes {stable_mosaic.version = 11 : i64} {
  func.func @_mlp_kernel(%arg0: i32, %arg1: memref<8x128xf32, #tpu.memory_space<vmem>>, %arg2: memref<128x896xf32, #tpu.memory_space<vmem>>, %arg3: memref<1x896xf32, #tpu.memory_space<vmem>>, %arg4: memref<896x896xf32, #tpu.memory_space<vmem>>, %arg5: memref<1x896xf32, #tpu.memory_space<vmem>>, %arg6: memref<896x896xf32, #tpu.memory_space<vmem>>, %arg7: memref<1x896xf32, #tpu.memory_space<vmem>>, %arg8: memref<8x896xf32, #tpu.memory_space<vmem>>) attributes {dimension_semantics = [#tpu.dimension_semantics<parallel>], iteration_bounds = array<i64: 1>, scalar_prefetch = 0 : i64, scratch_operands = 0 : i64, tpu.core_type = #tpu.core_type<tc>, window_params = [{transform_indices = @transform_0, window_bounds = array<i64: 8, 128>}, {pipeline_mode = #tpu.pipeline_mode<synchronous>, transform_indices = @transform_1, window_bounds = array<i64: 128, 896>}, {pipeline_mode = #tpu.pipeline_mode<synchronous>, transform_indices = @transform_2, window_bounds = array<i64: 1, 896>}, {pipeline_mode = #tpu.pipeline_mode<synchronous>, transform_indices = @transform_3, window_bounds = array<i64: 896, 896>}, {pipeline_mode = #tpu.pipeline_mode<synchronous>, transform_indices = @transform_4, window_bounds = array<i64: 1, 896>}, {pipeline_mode = #tpu.pipeline_mode<synchronous>, transform_indices = @transform_5, window_bounds = array<i64: 896, 896>}, {pipeline_mode = #tpu.pipeline_mode<synchronous>, transform_indices = @transform_6, window_bounds = array<i64: 1, 896>}, {transform_indices = @transform_7, window_bounds = array<i64: 8, 896>}]} {
    %c0 = arith.constant 0 : index
    %c0_0 = arith.constant 0 : index
    %0 = vector.load %arg1[%c0, %c0_0] : memref<8x128xf32, #tpu.memory_space<vmem>>, vector<8x128xf32>
    %c0_1 = arith.constant 0 : index
    %c0_2 = arith.constant 0 : index
    %1 = vector.load %arg2[%c0_1, %c0_2] : memref<128x896xf32, #tpu.memory_space<vmem>>, vector<128x896xf32>
    %cst = arith.constant dense<0.000000e+00> : vector<8x896xf32>
    %2 = tpu.matmul %0, %1, %cst {dimension_numbers = #tpu.dot_dimension_numbers<[1], [0], [0], [1], [0, 0, 1, 1], [], []>} : vector<8x128xf32>, vector<128x896xf32>, vector<8x896xf32> -> vector<8x896xf32>
    %c0_3 = arith.constant 0 : index
    %c0_4 = arith.constant 0 : index
    %3 = vector.load %arg3[%c0_3, %c0_4] : memref<1x896xf32, #tpu.memory_space<vmem>>, vector<1x896xf32>
    %4 = vector.broadcast %3 : vector<1x896xf32> to vector<8x896xf32>
    %5 = arith.addf %2, %4 : vector<8x896xf32>
    %cst_5 = arith.constant 0.000000e+00 : f32
    %6 = vector.broadcast %cst_5 : f32 to vector<8x896xf32>
    %7 = arith.maximumf %5, %6 : vector<8x896xf32>
    %c0_6 = arith.constant 0 : index
    %c0_7 = arith.constant 0 : index
    %8 = vector.load %arg4[%c0_6, %c0_7] : memref<896x896xf32, #tpu.memory_space<vmem>>, vector<896x896xf32>
    %cst_8 = arith.constant dense<0.000000e+00> : vector<8x896xf32>
    %9 = tpu.matmul %7, %8, %cst_8 {dimension_numbers = #tpu.dot_dimension_numbers<[1], [0], [0], [1], [0, 0, 1, 1], [], []>} : vector<8x896xf32>, vector<896x896xf32>, vector<8x896xf32> -> vector<8x896xf32>
    %c0_9 = arith.constant 0 : index
    %c0_10 = arith.constant 0 : index
    %10 = vector.load %arg5[%c0_9, %c0_10] : memref<1x896xf32, #tpu.memory_space<vmem>>, vector<1x896xf32>
    %11 = vector.broadcast %10 : vector<1x896xf32> to vector<8x896xf32>
    %12 = arith.addf %9, %11 : vector<8x896xf32>
    %cst_11 = arith.constant 0.000000e+00 : f32
    %13 = vector.broadcast %cst_11 : f32 to vector<8x896xf32>
    %14 = arith.maximumf %12, %13 : vector<8x896xf32>
    %c0_12 = arith.constant 0 : index
    %c0_13 = arith.constant 0 : index
    %15 = vector.load %arg6[%c0_12, %c0_13] : memref<896x896xf32, #tpu.memory_space<vmem>>, vector<896x896xf32>
    %cst_14 = arith.constant dense<0.000000e+00> : vector<8x896xf32>
    %16 = tpu.matmul %14, %15, %cst_14 {dimension_numbers = #tpu.dot_dimension_numbers<[1], [0], [0], [1], [0, 0, 1, 1], [], []>} : vector<8x896xf32>, vector<896x896xf32>, vector<8x896xf32> -> vector<8x896xf32>
    %c0_15 = arith.constant 0 : index
    %c0_16 = arith.constant 0 : index
    %17 = vector.load %arg7[%c0_15, %c0_16] : memref<1x896xf32, #tpu.memory_space<vmem>>, vector<1x896xf32>
    %18 = vector.broadcast %17 : vector<1x896xf32> to vector<8x896xf32>
    %19 = arith.addf %16, %18 : vector<8x896xf32>
    %20 = math.tanh %19 : vector<8x896xf32>
    %c0_17 = arith.constant 0 : index
    %c0_18 = arith.constant 0 : index
    %21 = vector.load %arg8[%c0_17, %c0_18] : memref<8x896xf32, #tpu.memory_space<vmem>>, vector<8x896xf32>
    tpu.vector_store %arg8[%c0_17, %c0_18], %20 {strides = array<i32>} : memref<8x896xf32, #tpu.memory_space<vmem>>, vector<8x896xf32>,
    return
  }
  func.func @transform_0(%arg0: i32) -> (i32, i32) {
    %c0_i32 = arith.constant 0 : i32
    %c0_i32_0 = arith.constant 0 : i32
    return %arg0, %c0_i32 : i32, i32
  }
  func.func @transform_1(%arg0: i32) -> (i32, i32) {
    %c0_i32 = arith.constant 0 : i32
    %c0_i32_0 = arith.constant 0 : i32
    %c0_i32_1 = arith.constant 0 : i32
    return %c0_i32, %c0_i32_0 : i32, i32
  }
  func.func @transform_2(%arg0: i32) -> (i32, i32) {
    %c0_i32 = arith.constant 0 : i32
    %c0_i32_0 = arith.constant 0 : i32
    %c0_i32_1 = arith.constant 0 : i32
    return %c0_i32, %c0_i32_0 : i32, i32
  }
  func.func @transform_3(%arg0: i32) -> (i32, i32) {
    %c0_i32 = arith.constant 0 : i32
    %c0_i32_0 = arith.constant 0 : i32
    %c0_i32_1 = arith.constant 0 : i32
    return %c0_i32, %c0_i32_0 : i32, i32
  }
  func.func @transform_4(%arg0: i32) -> (i32, i32) {
    %c0_i32 = arith.constant 0 : i32
    %c0_i32_0 = arith.constant 0 : i32
    %c0_i32_1 = arith.constant 0 : i32
    return %c0_i32, %c0_i32_0 : i32, i32
  }
  func.func @transform_5(%arg0: i32) -> (i32, i32) {
    %c0_i32 = arith.constant 0 : i32
    %c0_i32_0 = arith.constant 0 : i32
    %c0_i32_1 = arith.constant 0 : i32
    return %c0_i32, %c0_i32_0 : i32, i32
  }
  func.func @transform_6(%arg0: i32) -> (i32, i32) {
    %c0_i32 = arith.constant 0 : i32
    %c0_i32_0 = arith.constant 0 : i32
    %c0_i32_1 = arith.constant 0 : i32
    return %c0_i32, %c0_i32_0 : i32, i32
  }
  func.func @transform_7(%arg0: i32) -> (i32, i32) {
    %c0_i32 = arith.constant 0 : i32
    %c0_i32_0 = arith.constant 0 : i32
    return %arg0, %c0_i32 : i32, i32
  }
}

module attributes {stable_mosaic.version = 11 : i64} {
  func.func @_mlp_kernel(%arg0: i32, %arg1: memref<8x128xf32, #tpu.memory_space<vmem>>, %arg2: memref<128x896xf32, #tpu.memory_space<vmem>>, %arg3: memref<1x896xf32, #tpu.memory_space<vmem>>, %arg4: memref<896x896xf32, #tpu.memory_space<vmem>>, %arg5: memref<1x896xf32, #tpu.memory_space<vmem>>, %arg6: memref<896x896xf32, #tpu.memory_space<vmem>>, %arg7: memref<1x896xf32, #tpu.memory_space<vmem>>, %arg8: memref<8x896xf32, #tpu.memory_space<vmem>>) attributes {dimension_semantics = [#tpu.dimension_semantics<parallel>], iteration_bounds = array<i64: 1>, scalar_prefetch = 0 : i64, scratch_operands = 0 : i64, tpu.core_type = #tpu.core_type<tc>, window_params = [{transform_indices = @transform_0, window_bounds = array<i64: 8, 128>}, {pipeline_mode = #tpu.pipeline_mode<synchronous>, transform_indices = @transform_1, window_bounds = array<i64: 128, 896>}, {pipeline_mode = #tpu.pipeline_mode<synchronous>, transform_indices = @transform_2, window_bounds = array<i64: 1, 896>}, {pipeline_mode = #tpu.pipeline_mode<synchronous>, transform_indices = @transform_3, window_bounds = array<i64: 896, 896>}, {pipeline_mode = #tpu.pipeline_mode<synchronous>, transform_indices = @transform_4, window_bounds = array<i64: 1, 896>}, {pipeline_mode = #tpu.pipeline_mode<synchronous>, transform_indices = @transform_5, window_bounds = array<i64: 896, 896>}, {pipeline_mode = #tpu.pipeline_mode<synchronous>, transform_indices = @transform_6, window_bounds = array<i64: 1, 896>}, {transform_indices = @transform_7, window_bounds = array<i64: 8, 896>}]} {
    %c0 = arith.constant 0 : index
    %c0_0 = arith.constant 0 : index
    %0 = vector.load %arg1[%c0, %c0_0] : memref<8x128xf32, #tpu.memory_space<vmem>>, vector<8x128xf32>
    %c0_1 = arith.constant 0 : index
    %c0_2 = arith.constant 0 : index
    %1 = vector.load %arg2[%c0_1, %c0_2] : memref<128x896xf32, #tpu.memory_space<vmem>>, vector<128x896xf32>
    %cst = arith.constant dense<0.000000e+00> : vector<8x896xf32>
    %2 = tpu.matmul %0, %1, %cst {dimension_numbers = #tpu.dot_dimension_numbers<[1], [0], [0], [1], [0, 0, 1, 1], [], []>} : vector<8x128xf32>, vector<128x896xf32>, vector<8x896xf32> -> vector<8x896xf32>
    %c0_3 = arith.constant 0 : index
    %c0_4 = arith.constant 0 : index
    %3 = vector.load %arg3[%c0_3, %c0_4] : memref<1x896xf32, #tpu.memory_space<vmem>>, vector<1x896xf32>
    %4 = vector.broadcast %3 : vector<1x896xf32> to vector<8x896xf32>
    %5 = arith.addf %2, %4 : vector<8x896xf32>
    %cst_5 = arith.constant 0.000000e+00 : f32
    %6 = vector.broadcast %cst_5 : f32 to vector<8x896xf32>
    %7 = arith.maximumf %5, %6 : vector<8x896xf32>
    %c0_6 = arith.constant 0 : index
    %c0_7 = arith.constant 0 : index
    %8 = vector.load %arg4[%c0_6, %c0_7] : memref<896x896xf32, #tpu.memory_space<vmem>>, vector<896x896xf32>
    %cst_8 = arith.constant dense<0.000000e+00> : vector<8x896xf32>
    %9 = tpu.matmul %7, %8, %cst_8 {dimension_numbers = #tpu.dot_dimension_numbers<[1], [0], [0], [1], [0, 0, 1, 1], [], []>} : vector<8x896xf32>, vector<896x896xf32>, vector<8x896xf32> -> vector<8x896xf32>
    %c0_9 = arith.constant 0 : index
    %c0_10 = arith.constant 0 : index
    %10 = vector.load %arg5[%c0_9, %c0_10] : memref<1x896xf32, #tpu.memory_space<vmem>>, vector<1x896xf32>
    %11 = vector.broadcast %10 : vector<1x896xf32> to vector<8x896xf32>
    %12 = arith.addf %9, %11 : vector<8x896xf32>
    %cst_11 = arith.constant 0.000000e+00 : f32
    %13 = vector.broadcast %cst_11 : f32 to vector<8x896xf32>
    %14 = arith.maximumf %12, %13 : vector<8x896xf32>
    %c0_12 = arith.constant 0 : index
    %c0_13 = arith.constant 0 : index
    %15 = vector.load %arg6[%c0_12, %c0_13] : memref<896x896xf32, #tpu.memory_space<vmem>>, vector<896x896xf32>
    %cst_14 = arith.constant dense<0.000000e+00> : vector<8x896xf32>
    %16 = tpu.matmul %14, %15, %cst_14 {dimension_numbers = #tpu.dot_dimension_numbers<[1], [0], [0], [1], [0, 0, 1, 1], [], []>} : vector<8x896xf32>, vector<896x896xf32>, vector<8x896xf32> -> vector<8x896xf32>
    %c0_15 = arith.constant 0 : index
    %c0_16 = arith.constant 0 : index
    %17 = vector.load %arg7[%c0_15, %c0_16] : memref<1x896xf32, #tpu.memory_space<vmem>>, vector<1x896xf32>
    %18 = vector.broadcast %17 : vector<1x896xf32> to vector<8x896xf32>
    %19 = arith.addf %16, %18 : vector<8x896xf32>
    %20 = math.tanh %19 : vector<8x896xf32>
    %c0_17 = arith.constant 0 : index
    %c0_18 = arith.constant 0 : index
    %21 = vector.load %arg8[%c0_17, %c0_18] : memref<8x896xf32, #tpu.memory_space<vmem>>, vector<8x896xf32>
    tpu.vector_store %arg8[%c0_17, %c0_18], %20 {strides = array<i32>} : memref<8x896xf32, #tpu.memory_space<vmem>>, vector<8x896xf32>,
    return
  }
  func.func @transform_0(%arg0: i32) -> (i32, i32) {
    %c0_i32 = arith.constant 0 : i32
    %c0_i32_0 = arith.constant 0 : i32
    return %arg0, %c0_i32 : i32, i32
  }
  func.func @transform_1(%arg0: i32) -> (i32, i32) {
    %c0_i32 = arith.constant 0 : i32
    %c0_i32_0 = arith.constant 0 : i32
    %c0_i32_1 = arith.constant 0 : i32
    return %c0_i32, %c0_i32_0 : i32, i32
  }
  func.func @transform_2(%arg0: i32) -> (i32, i32) {
    %c0_i32 = arith.constant 0 : i32
    %c0_i32_0 = arith.constant 0 : i32
    %c0_i32_1 = arith.constant 0 : i32
    return %c0_i32, %c0_i32_0 : i32, i32
  }
  func.func @transform_3(%arg0: i32) -> (i32, i32) {
    %c0_i32 = arith.constant 0 : i32
    %c0_i32_0 = arith.constant 0 : i32
    %c0_i32_1 = arith.constant 0 : i32
    return %c0_i32, %c0_i32_0 : i32, i32
  }
  func.func @transform_4(%arg0: i32) -> (i32, i32) {
    %c0_i32 = arith.constant 0 : i32
    %c0_i32_0 = arith.constant 0 : i32
    %c0_i32_1 = arith.constant 0 : i32
    return %c0_i32, %c0_i32_0 : i32, i32
  }
  func.func @transform_5(%arg0: i32) -> (i32, i32) {
    %c0_i32 = arith.constant 0 : i32
    %c0_i32_0 = arith.constant 0 : i32
    %c0_i32_1 = arith.constant 0 : i32
    return %c0_i32, %c0_i32_0 : i32, i32
  }
  func.func @transform_6(%arg0: i32) -> (i32, i32) {
    %c0_i32 = arith.constant 0 : i32
    %c0_i32_0 = arith.constant 0 : i32
    %c0_i32_1 = arith.constant 0 : i32
    return %c0_i32, %c0_i32_0 : i32, i32
  }
  func.func @transform_7(%arg0: i32) -> (i32, i32) {
    %c0_i32 = arith.constant 0 : i32
    %c0_i32_0 = arith.constant 0 : i32
    return %arg0, %c0_i32 : i32, i32
  }
}

</mosaic_0001>

<llo_original>
// kernel: forward.1
$region0: #{forward.1}
  #allocation0 [shape = 'u32[]', space=smem, size = 0x4, offset = 0x4, fixed_abs, tag = 'smem constant byte address 0x4 - core index']
  #allocation1 [shape = 'u32[144,128]{1,0:T(1,128)}', space=vmem, size = 0x12000, scoped, tag = 'internal scratch']
  %s0 = inlined_call_operand.vmem [shape: f32[8,128], index: 0, kind: input, shape index: {}]
  %s1 = inlined_call_operand.hbm [shape: f32[128,896], index: 1, kind: input, shape index: {}]
  %s2 = inlined_call_operand.hbm [shape: f32[1,896], index: 2, kind: input, shape index: {}]
  %s3 = inlined_call_operand.hbm [shape: f32[896,896], index: 3, kind: input, shape index: {}]
  %s4 = inlined_call_operand.hbm [shape: f32[1,896], index: 4, kind: input, shape index: {}]
  %s5 = inlined_call_operand.hbm [shape: f32[896,896], index: 5, kind: input, shape index: {}]
  %s6 = inlined_call_operand.hbm [shape: f32[1,896], index: 6, kind: input, shape index: {}]
  %s7 = inlined_call_operand.vmem [shape: f32[8,896], index: 7, kind: output, shape index: {}]
  %s8 = sld [smem:[#allocation0]]
  $region62: #{forward.1} parent=0
    _
  %s10 = ssub.s32 1, %s8
  %s11 = scalar_select 0, %s10, %s8
  $region1: #{forward.1} parent=0
    #allocation2 [shape = 'u8[458752]{0}', space=vmem, size = 0x70000, scoped, tag = 'input window, operand 1, single buffered']
    #allocation3 [shape = 's32[1]{0}', space=sflag, size = 0x4, scoped, tag = 'scoped memory for forward.1']
    #allocation4 [shape = 'u8[3584]{0}', space=vmem, size = 0x1000, scoped, tag = 'input window, operand 2, single buffered']
    #allocation5 [shape = 's32[1]{0}', space=sflag, size = 0x4, scoped, tag = 'scoped memory for forward.1']
    #allocation6 [shape = 'u8[3211264]{0}', space=vmem, size = 0x310000, scoped, tag = 'input window, operand 3, single buffered']
    #allocation7 [shape = 'u8[3584]{0}', space=vmem, size = 0x1000, scoped, tag = 'input window, operand 4, single buffered']
    #allocation8 [shape = 's32[1]{0}', space=sflag, size = 0x4, scoped, tag = 'scoped memory for forward.1']
    #allocation9 [shape = 'u8[3211264]{0}', space=vmem, size = 0x310000, scoped, tag = 'input window, operand 5, single buffered']
    #allocation10 [shape = 'u8[3584]{0}', space=vmem, size = 0x1000, scoped, tag = 'input window, operand 6, single buffered']
    #allocation11 [shape = 's32[1]{0}', space=sflag, size = 0x4, scoped, tag = 'scoped memory for forward.1']
    %12 = vsyncpa [#allocation3], 0
    %13 = vsyncpa [#allocation5], 0
    %14 = vsyncpa [#allocation8], 0
    %15 = vsyncpa [#allocation11], 0
    // Predicated region
    $region2: #{forward.1} parent=1 // pred_check
      _
    $region3: #{forward.1} parent=1 // pred_check_branch
      %17 = sbr.rel (0) target = $region5
    $region4: #{forward.1} parent=1 // pred_region
      _
    $region5: #{forward.1} parent=1 // pred_fallthru
      _
    // Predicated region
    $region6: #{forward.1} parent=1 // pred_check
      _
    $region7: #{forward.1} parent=1 // pred_check_branch
      %19 = sbr.rel (0) target = $region9
    $region8: #{forward.1} parent=1 // pred_region
      %s21 = ssub.s32 14336, 14336
      %22 = vsyncadd [#allocation3], %s21
      %s23 = sshll.u32 [#allocation2], 4
      %s24 = int_to_ptr.vmem [resolvable:$true] %s23
      %29 = dma.hbm_to_vmem [thread:$0]  %s1, 14336, %s24, [#allocation3], 896, 896, 56
    $region9: #{forward.1} parent=1 // pred_fallthru
      _
    // Predicated region
    $region10: #{forward.1} parent=1 // pred_check
      _
    $region11: #{forward.1} parent=1 // pred_check_branch
      %31 = sbr.rel (0) target = $region13
    $region12: #{forward.1} parent=1 // pred_region
      %s33 = ssub.s32 112, 112
      %34 = vsyncadd [#allocation5], %s33
      %s36 = sshll.u32 [#allocation4], 4
      %s37 = int_to_ptr.vmem [resolvable:$true] %s36
      %39 = dma.hbm_to_vmem [thread:$0]  %s2, 112, %s37, [#allocation5]
    $region13: #{forward.1} parent=1 // pred_fallthru
      _
    // Predicated region
    $region14: #{forward.1} parent=1 // pred_check
      _
    $region15: #{forward.1} parent=1 // pred_check_branch
      %41 = sbr.rel (0) target = $region17
    $region16: #{forward.1} parent=1 // pred_region
      %s43 = ssub.s32 100352, 100352
      %44 = vsyncadd [#allocation5], %s43
      %s45 = sshll.u32 [#allocation6], 4
      %s46 = int_to_ptr.vmem [resolvable:$true] %s45
      %51 = dma.hbm_to_vmem [thread:$0]  %s3, 100352, %s46, [#allocation5], 896, 896, 56
    $region17: #{forward.1} parent=1 // pred_fallthru
      _
    // Predicated region
    $region18: #{forward.1} parent=1 // pred_check
      _
    $region19: #{forward.1} parent=1 // pred_check_branch
      %53 = sbr.rel (0) target = $region21
    $region20: #{forward.1} parent=1 // pred_region
      %s55 = ssub.s32 112, 112
      %56 = vsyncadd [#allocation8], %s55
      %s58 = sshll.u32 [#allocation7], 4
      %s59 = int_to_ptr.vmem [resolvable:$true] %s58
      %61 = dma.hbm_to_vmem [thread:$0]  %s4, 112, %s59, [#allocation8]
    $region21: #{forward.1} parent=1 // pred_fallthru
      _
    // Predicated region
    $region22: #{forward.1} parent=1 // pred_check
      _
    $region23: #{forward.1} parent=1 // pred_check_branch
      %63 = sbr.rel (0) target = $region25
    $region24: #{forward.1} parent=1 // pred_region
      %s65 = ssub.s32 100352, 100352
      %66 = vsyncadd [#allocation8], %s65
      %s67 = sshll.u32 [#allocation9], 4
      %s68 = int_to_ptr.vmem [resolvable:$true] %s67
      %73 = dma.hbm_to_vmem [thread:$0]  %s5, 100352, %s68, [#allocation8], 896, 896, 56
    $region25: #{forward.1} parent=1 // pred_fallthru
      _
    // Predicated region
    $region26: #{forward.1} parent=1 // pred_check
      _
    $region27: #{forward.1} parent=1 // pred_check_branch
      %75 = sbr.rel (0) target = $region29
    $region28: #{forward.1} parent=1 // pred_region
      %s77 = ssub.s32 112, 112
      %78 = vsyncadd [#allocation11], %s77
      %s80 = sshll.u32 [#allocation10], 4
      %s81 = int_to_ptr.vmem [resolvable:$true] %s80
      %83 = dma.hbm_to_vmem [thread:$0]  %s6, 112, %s81, [#allocation11]
    $region29: #{forward.1} parent=1 // pred_fallthru
      _
    // Predicated region
    $region30: #{forward.1} parent=1 // pred_check
      _
    $region31: #{forward.1} parent=1 // pred_check_branch
      %85 = sbr.rel (0) target = $region33
    $region32: #{forward.1} parent=1 // pred_region
      %86 = dma.done [#allocation3], 14336
    $region33: #{forward.1} parent=1 // pred_fallthru
      _
    // Predicated region
    $region34: #{forward.1} parent=1 // pred_check
      _
    $region35: #{forward.1} parent=1 // pred_check_branch
      %88 = sbr.rel (0) target = $region37
    $region36: #{forward.1} parent=1 // pred_region
      %89 = dma.done [#allocation5], 112
    $region37: #{forward.1} parent=1 // pred_fallthru
      _
    // Predicated region
    $region38: #{forward.1} parent=1 // pred_check
      _
    $region39: #{forward.1} parent=1 // pred_check_branch
      %91 = sbr.rel (0) target = $region41
    $region40: #{forward.1} parent=1 // pred_region
      %92 = dma.done [#allocation5], 100352
    $region41: #{forward.1} parent=1 // pred_fallthru
      _
    // Predicated region
    $region42: #{forward.1} parent=1 // pred_check
      _
    $region43: #{forward.1} parent=1 // pred_check_branch
      %94 = sbr.rel (0) target = $region45
    $region44: #{forward.1} parent=1 // pred_region
      %95 = dma.done [#allocation8], 112
    $region45: #{forward.1} parent=1 // pred_fallthru
      _
    // Predicated region
    $region46: #{forward.1} parent=1 // pred_check
      _
    $region47: #{forward.1} parent=1 // pred_check_branch
      %97 = sbr.rel (0) target = $region49
    $region48: #{forward.1} parent=1 // pred_region
      %98 = dma.done [#allocation8], 100352
    $region49: #{forward.1} parent=1 // pred_fallthru
      _
    // Predicated region
    $region50: #{forward.1} parent=1 // pred_check
      _
    $region51: #{forward.1} parent=1 // pred_check_branch
      %100 = sbr.rel (0) target = $region53
    $region52: #{forward.1} parent=1 // pred_region
      %101 = dma.done [#allocation11], 112
    $region53: #{forward.1} parent=1 // pred_fallthru
      _
    %v102 = vld [vmem:[%s0] sm:$0xff]
    %v103 = vld [vmem:[#allocation2] sm:$0xff]
    %v104 = vld [vmem:[#allocation2 + $0x8] sm:$0xff]
    %v105 = vld [vmem:[#allocation2 + $0x10] sm:$0xff]
    %v106 = vld [vmem:[#allocation2 + $0x18] sm:$0xff]
    %v107 = vld [vmem:[#allocation2 + $0x20] sm:$0xff]
    %v108 = vld [vmem:[#allocation2 + $0x28] sm:$0xff]
    %v109 = vld [vmem:[#allocation2 + $0x30] sm:$0xff]
    %v110 = vld [vmem:[#allocation2 + $0x38] sm:$0xff]
    %v111 = vld [vmem:[#allocation2 + $0x40] sm:$0xff]
    %v112 = vld [vmem:[#allocation2 + $0x48] sm:$0xff]
    %v113 = vld [vmem:[#allocation2 + $0x50] sm:$0xff]
    %v114 = vld [vmem:[#allocation2 + $0x58] sm:$0xff]
    %v115 = vld [vmem:[#allocation2 + $0x60] sm:$0xff]
    %v116 = vld [vmem:[#allocation2 + $0x68] sm:$0xff]
    %v117 = vld [vmem:[#allocation2 + $0x70] sm:$0xff]
    %v118 = vld [vmem:[#allocation2 + $0x78] sm:$0xff]
    %v119 = vld [vmem:[#allocation2 + $0x80] sm:$0xff]
    %v120 = vld [vmem:[#allocation2 + $0x88] sm:$0xff]
    %v121 = vld [vmem:[#allocation2 + $0x90] sm:$0xff]
    %v122 = vld [vmem:[#allocation2 + $0x98] sm:$0xff]
    %v123 = vld [vmem:[#allocation2 + $0xa0] sm:$0xff]
    %v124 = vld [vmem:[#allocation2 + $0xa8] sm:$0xff]
    %v125 = vld [vmem:[#allocation2 + $0xb0] sm:$0xff]
    %v126 = vld [vmem:[#allocation2 + $0xb8] sm:$0xff]
    %v127 = vld [vmem:[#allocation2 + $0xc0] sm:$0xff]
    %v128 = vld [vmem:[#allocation2 + $0xc8] sm:$0xff]
    %v129 = vld [vmem:[#allocation2 + $0xd0] sm:$0xff]
    %v130 = vld [vmem:[#allocation2 + $0xd8] sm:$0xff]
    %v131 = vld [vmem:[#allocation2 + $0xe0] sm:$0xff]
    %v132 = vld [vmem:[#allocation2 + $0xe8] sm:$0xff]
    %v133 = vld [vmem:[#allocation2 + $0xf0] sm:$0xff]
    %v134 = vld [vmem:[#allocation2 + $0xf8] sm:$0xff]
    %v135 = vld [vmem:[#allocation2 + $0x100] sm:$0xff]
    %v136 = vld [vmem:[#allocation2 + $0x108] sm:$0xff]
    %v137 = vld [vmem:[#allocation2 + $0x110] sm:$0xff]
    %v138 = vld [vmem:[#allocation2 + $0x118] sm:$0xff]
    %v139 = vld [vmem:[#allocation2 + $0x120] sm:$0xff]
    %v140 = vld [vmem:[#allocation2 + $0x128] sm:$0xff]
    %v141 = vld [vmem:[#allocation2 + $0x130] sm:$0xff]
    %v142 = vld [vmem:[#allocation2 + $0x138] sm:$0xff]
    %v143 = vld [vmem:[#allocation2 + $0x140] sm:$0xff]
    %v144 = vld [vmem:[#allocation2 + $0x148] sm:$0xff]
    %v145 = vld [vmem:[#allocation2 + $0x150] sm:$0xff]
    %v146 = vld [vmem:[#allocation2 + $0x158] sm:$0xff]
    %v147 = vld [vmem:[#allocation2 + $0x160] sm:$0xff]
    %v148 = vld [vmem:[#allocation2 + $0x168] sm:$0xff]
    %v149 = vld [vmem:[#allocation2 + $0x170] sm:$0xff]
    %v150 = vld [vmem:[#allocation2 + $0x178] sm:$0xff]
    %v151 = vld [vmem:[#allocation2 + $0x180] sm:$0xff]
    %v152 = vld [vmem:[#allocation2 + $0x188] sm:$0xff]
    %v153 = vld [vmem:[#allocation2 + $0x190] sm:$0xff]
    %v154 = vld [vmem:[#allocation2 + $0x198] sm:$0xff]
    %v155 = vld [vmem:[#allocation2 + $0x1a0] sm:$0xff]
    %v156 = vld [vmem:[#allocation2 + $0x1a8] sm:$0xff]
    %v157 = vld [vmem:[#allocation2 + $0x1b0] sm:$0xff]
    %v158 = vld [vmem:[#allocation2 + $0x1b8] sm:$0xff]
    %v159 = vld [vmem:[#allocation2 + $0x1c0] sm:$0xff]
    %v160 = vld [vmem:[#allocation2 + $0x1c8] sm:$0xff]
    %v161 = vld [vmem:[#allocation2 + $0x1d0] sm:$0xff]
    %v162 = vld [vmem:[#allocation2 + $0x1d8] sm:$0xff]
    %v163 = vld [vmem:[#allocation2 + $0x1e0] sm:$0xff]
    %v164 = vld [vmem:[#allocation2 + $0x1e8] sm:$0xff]
    %v165 = vld [vmem:[#allocation2 + $0x1f0] sm:$0xff]
    %v166 = vld [vmem:[#allocation2 + $0x1f8] sm:$0xff]
    %v167 = vld [vmem:[#allocation2 + $0x200] sm:$0xff]
    %v168 = vld [vmem:[#allocation2 + $0x208] sm:$0xff]
    %v169 = vld [vmem:[#allocation2 + $0x210] sm:$0xff]
    %v170 = vld [vmem:[#allocation2 + $0x218] sm:$0xff]
    %v171 = vld [vmem:[#allocation2 + $0x220] sm:$0xff]
    %v172 = vld [vmem:[#allocation2 + $0x228] sm:$0xff]
    %v173 = vld [vmem:[#allocation2 + $0x230] sm:$0xff]
    %v174 = vld [vmem:[#allocation2 + $0x238] sm:$0xff]
    %v175 = vld [vmem:[#allocation2 + $0x240] sm:$0xff]
    %v176 = vld [vmem:[#allocation2 + $0x248] sm:$0xff]
    %v177 = vld [vmem:[#allocation2 + $0x250] sm:$0xff]
    %v178 = vld [vmem:[#allocation2 + $0x258] sm:$0xff]
    %v179 = vld [vmem:[#allocation2 + $0x260] sm:$0xff]
    %v180 = vld [vmem:[#allocation2 + $0x268] sm:$0xff]
    %v181 = vld [vmem:[#allocation2 + $0x270] sm:$0xff]
    %v182 = vld [vmem:[#allocation2 + $0x278] sm:$0xff]
    %v183 = vld [vmem:[#allocation2 + $0x280] sm:$0xff]
    %v184 = vld [vmem:[#allocation2 + $0x288] sm:$0xff]
    %v185 = vld [vmem:[#allocation2 + $0x290] sm:$0xff]
    %v186 = vld [vmem:[#allocation2 + $0x298] sm:$0xff]
    %v187 = vld [vmem:[#allocation2 + $0x2a0] sm:$0xff]
    %v188 = vld [vmem:[#allocation2 + $0x2a8] sm:$0xff]
    %v189 = vld [vmem:[#allocation2 + $0x2b0] sm:$0xff]
    %v190 = vld [vmem:[#allocation2 + $0x2b8] sm:$0xff]
    %v191 = vld [vmem:[#allocation2 + $0x2c0] sm:$0xff]
    %v192 = vld [vmem:[#allocation2 + $0x2c8] sm:$0xff]
    %v193 = vld [vmem:[#allocation2 + $0x2d0] sm:$0xff]
    %v194 = vld [vmem:[#allocation2 + $0x2d8] sm:$0xff]
    %v195 = vld [vmem:[#allocation2 + $0x2e0] sm:$0xff]
    %v196 = vld [vmem:[#allocation2 + $0x2e8] sm:$0xff]
    %v197 = vld [vmem:[#allocation2 + $0x2f0] sm:$0xff]
    %v198 = vld [vmem:[#allocation2 + $0x2f8] sm:$0xff]
    %v199 = vld [vmem:[#allocation2 + $0x300] sm:$0xff]
    %v200 = vld [vmem:[#allocation2 + $0x308] sm:$0xff]
    %v201 = vld [vmem:[#allocation2 + $0x310] sm:$0xff]
    %v202 = vld [vmem:[#allocation2 + $0x318] sm:$0xff]
    %v203 = vld [vmem:[#allocation2 + $0x320] sm:$0xff]
    %v204 = vld [vmem:[#allocation2 + $0x328] sm:$0xff]
    %v205 = vld [vmem:[#allocation2 + $0x330] sm:$0xff]
    %v206 = vld [vmem:[#allocation2 + $0x338] sm:$0xff]
    %v207 = vld [vmem:[#allocation2 + $0x340] sm:$0xff]
    %v208 = vld [vmem:[#allocation2 + $0x348] sm:$0xff]
    %v209 = vld [vmem:[#allocation2 + $0x350] sm:$0xff]
    %v210 = vld [vmem:[#allocation2 + $0x358] sm:$0xff]
    %v211 = vld [vmem:[#allocation2 + $0x360] sm:$0xff]
    %v212 = vld [vmem:[#allocation2 + $0x368] sm:$0xff]
    %v213 = vld [vmem:[#allocation2 + $0x370] sm:$0xff]
    %v214 = vld [vmem:[#allocation2 + $0x378] sm:$0xff]
    %v215 = vld [vmem:[#allocation4] sm:$0xff]
    %v217 = vlaneseq
    %v218 = vshrl.u32 %v217, 7
    %v219 = vsub.s32 0, %v218
    %v220 = vrot.slane %v215, %v219
    %v221 = vlaneseq
    %v222 = vshrl.u32 %v221, 7
    %v223 = vsub.s32 1, %v222
    %v224 = vrot.slane %v215, %v223
    %v225 = vlaneseq
    %v226 = vshrl.u32 %v225, 7
    %v227 = vsub.s32 2, %v226
    %v228 = vrot.slane %v215, %v227
    %v229 = vlaneseq
    %v230 = vshrl.u32 %v229, 7
    %v231 = vsub.s32 3, %v230
    %v232 = vrot.slane %v215, %v231
    %v233 = vlaneseq
    %v234 = vshrl.u32 %v233, 7
    %v235 = vsub.s32 4, %v234
    %v236 = vrot.slane %v215, %v235
    %v237 = vlaneseq
    %v238 = vshrl.u32 %v237, 7
    %v239 = vsub.s32 5, %v238
    %v240 = vrot.slane %v215, %v239
    %v241 = vlaneseq
    %v242 = vshrl.u32 %v241, 7
    %v243 = vsub.s32 6, %v242
    %v244 = vrot.slane %v215, %v243
    %252 = vmatprep.subr.mxu0 %v104
    %253 = vmatpush1.msra.mxu0 %v103
    %254 = vmatprep.subr.mxu0 %v111
    %255 = vmatpush1.msra.mxu0 %v110
    %256 = vmatprep.subr.mxu0 %v118
    %257 = vmatpush1.msra.mxu0 %v117
    %258 = vmatprep.subr.mxu0 %v125
    %259 = vmatpush1.msra.mxu0 %v124
    %260 = vmatprep.subr.mxu0 %v132
    %261 = vmatpush1.msra.mxu0 %v131
    %262 = vmatprep.subr.mxu0 %v139
    %263 = vmatpush1.msra.mxu0 %v138
    %264 = vmatprep.subr.mxu0 %v146
    %265 = vmatpush1.msra.mxu0 %v145
    %266 = vmatprep.subr.mxu0 %v153
    %267 = vmatpush1.msra.mxu0 %v152
    %268 = vmatprep.subr.mxu0 %v160
    %269 = vmatpush1.msra.mxu0 %v159
    %270 = vmatprep.subr.mxu0 %v167
    %271 = vmatpush1.msra.mxu0 %v166
    %272 = vmatprep.subr.mxu0 %v174
    %273 = vmatpush1.msra.mxu0 %v173
    %274 = vmatprep.subr.mxu0 %v181
    %275 = vmatpush1.msra.mxu0 %v180
    %276 = vmatprep.subr.mxu0 %v188
    %277 = vmatpush1.msra.mxu0 %v187
    %278 = vmatprep.subr.mxu0 %v195
    %279 = vmatpush1.msra.mxu0 %v194
    %280 = vmatprep.subr.mxu0 %v202
    %281 = vmatpush1.msra.mxu0 %v201
    %282 = vmatprep.subr.mxu0 %v209
    %283 = vmatpush1.msra.mxu0 %v208
    %284 = vmatprep.subr.mxu0 0.0
    %285 = vmatpush1.msra.mxu0 0.0
    %286 = vmatprep.subr.mxu0 0.0
    %287 = vmatpush1.msra.mxu0 0.0
    %288 = vmatprep.subr.mxu0 0.0
    %289 = vmatpush1.msra.mxu0 0.0
    %290 = vmatprep.subr.mxu0 0.0
    %291 = vmatpush1.msra.mxu0 0.0
    %292 = vmatprep.subr.mxu0 0.0
    %293 = vmatpush1.msra.mxu0 0.0
    %294 = vmatprep.subr.mxu0 0.0
    %295 = vmatpush1.msra.mxu0 0.0
    %296 = vmatprep.subr.mxu0 0.0
    %297 = vmatpush1.msra.mxu0 0.0
    %298 = vmatprep.subr.mxu0 0.0
    %299 = vmatpush1.msra.mxu0 0.0
    %300 = vmatprep.subr.mxu0 0.0
    %301 = vmatpush1.msra.mxu0 0.0
    %302 = vmatprep.subr.mxu0 0.0
    %303 = vmatpush1.msra.mxu0 0.0
    %304 = vmatprep.subr.mxu0 0.0
    %305 = vmatpush1.msra.mxu0 0.0
    %306 = vmatprep.subr.mxu0 0.0
    %307 = vmatpush1.msra.mxu0 0.0
    %308 = vmatprep.subr.mxu0 0.0
    %309 = vmatpush1.msra.mxu0 0.0
    %310 = vmatprep.subr.mxu0 0.0
    %311 = vmatpush1.msra.mxu0 0.0
    %312 = vmatprep.subr.mxu0 0.0
    %313 = vmatpush1.msra.mxu0 0.0
    %314 = vmatprep.subr.mxu0 0.0
    %315 = vmatpush1.msra.mxu0 0.0
    %316 = vmatprep.mubr.f32.mxu0 0.0
    %317 = vmatmul.mubr.f32.gmra.mrb[0].mxu0 %v102
    %v318 = vpop.f32.mrb[0].mxu0
    %v319 = vadd.f32 %v220, %v318
    %v320 = vpop.f32.mrb[0].mxu0
    %v321 = vadd.f32 %v224, %v320
    %322 = vdwg.mxu0
    %323 = vmatprep.subr.mxu0 %v106
    %324 = vmatpush1.msra.mxu0 %v105
    %325 = vmatprep.subr.mxu0 %v113
    %326 = vmatpush1.msra.mxu0 %v112
    %327 = vmatprep.subr.mxu0 %v120
    %328 = vmatpush1.msra.mxu0 %v119
    %329 = vmatprep.subr.mxu0 %v127
    %330 = vmatpush1.msra.mxu0 %v126
    %331 = vmatprep.subr.mxu0 %v134
    %332 = vmatpush1.msra.mxu0 %v133
    %333 = vmatprep.subr.mxu0 %v141
    %334 = vmatpush1.msra.mxu0 %v140
    %335 = vmatprep.subr.mxu0 %v148
    %336 = vmatpush1.msra.mxu0 %v147
    %337 = vmatprep.subr.mxu0 %v155
    %338 = vmatpush1.msra.mxu0 %v154
    %339 = vmatprep.subr.mxu0 %v162
    %340 = vmatpush1.msra.mxu0 %v161
    %341 = vmatprep.subr.mxu0 %v169
    %342 = vmatpush1.msra.mxu0 %v168
    %343 = vmatprep.subr.mxu0 %v176
    %344 = vmatpush1.msra.mxu0 %v175
    %345 = vmatprep.subr.mxu0 %v183
    %346 = vmatpush1.msra.mxu0 %v182
    %347 = vmatprep.subr.mxu0 %v190
    %348 = vmatpush1.msra.mxu0 %v189
    %349 = vmatprep.subr.mxu0 %v197
    %350 = vmatpush1.msra.mxu0 %v196
    %351 = vmatprep.subr.mxu0 %v204
    %352 = vmatpush1.msra.mxu0 %v203
    %353 = vmatprep.subr.mxu0 %v211
    %354 = vmatpush1.msra.mxu0 %v210
    %355 = vmatprep.subr.mxu0 0.0
    %356 = vmatpush1.msra.mxu0 0.0
    %357 = vmatprep.subr.mxu0 0.0
    %358 = vmatpush1.msra.mxu0 0.0
    %359 = vmatprep.subr.mxu0 0.0
    %360 = vmatpush1.msra.mxu0 0.0
    %361 = vmatprep.subr.mxu0 0.0
    %362 = vmatpush1.msra.mxu0 0.0
    %363 = vmatprep.subr.mxu0 0.0
    %364 = vmatpush1.msra.mxu0 0.0
    %365 = vmatprep.subr.mxu0 0.0
    %366 = vmatpush1.msra.mxu0 0.0
    %367 = vmatprep.subr.mxu0 0.0
    %368 = vmatpush1.msra.mxu0 0.0
    %369 = vmatprep.subr.mxu0 0.0
    %370 = vmatpush1.msra.mxu0 0.0
    %371 = vmatprep.subr.mxu0 0.0
    %372 = vmatpush1.msra.mxu0 0.0
    %373 = vmatprep.subr.mxu0 0.0
    %374 = vmatpush1.msra.mxu0 0.0
    %375 = vmatprep.subr.mxu0 0.0
    %376 = vmatpush1.msra.mxu0 0.0
    %377 = vmatprep.subr.mxu0 0.0
    %378 = vmatpush1.msra.mxu0 0.0
    %379 = vmatprep.subr.mxu0 0.0
    %380 = vmatpush1.msra.mxu0 0.0
    %381 = vmatprep.subr.mxu0 0.0
    %382 = vmatpush1.msra.mxu0 0.0
    %383 = vmatprep.subr.mxu0 0.0
    %384 = vmatpush1.msra.mxu0 0.0
    %385 = vmatprep.subr.mxu0 0.0
    %386 = vmatpush1.msra.mxu0 0.0
    %387 = vmatprep.mubr.f32.mxu0 0.0
    %388 = vmatmul.mubr.f32.gmra.mrb[0].mxu0 %v102
    %v389 = vpop.f32.mrb[0].mxu0
    %v390 = vadd.f32 %v228, %v389
    %v391 = vpop.f32.mrb[0].mxu0
    %v392 = vadd.f32 %v232, %v391
    %393 = vdwg.mxu0
    %394 = vmatprep.subr.mxu0 %v108
    %395 = vmatpush1.msra.mxu0 %v107
    %396 = vmatprep.subr.mxu0 %v115
    %397 = vmatpush1.msra.mxu0 %v114
    %398 = vmatprep.subr.mxu0 %v122
    %399 = vmatpush1.msra.mxu0 %v121
    %400 = vmatprep.subr.mxu0 %v129
    %401 = vmatpush1.msra.mxu0 %v128
    %402 = vmatprep.subr.mxu0 %v136
    %403 = vmatpush1.msra.mxu0 %v135
    %404 = vmatprep.subr.mxu0 %v143
    %405 = vmatpush1.msra.mxu0 %v142
    %406 = vmatprep.subr.mxu0 %v150
    %407 = vmatpush1.msra.mxu0 %v149
    %408 = vmatprep.subr.mxu0 %v157
    %409 = vmatpush1.msra.mxu0 %v156
    %410 = vmatprep.subr.mxu0 %v164
    %411 = vmatpush1.msra.mxu0 %v163
    %412 = vmatprep.subr.mxu0 %v171
    %413 = vmatpush1.msra.mxu0 %v170
    %414 = vmatprep.subr.mxu0 %v178
    %415 = vmatpush1.msra.mxu0 %v177
    %416 = vmatprep.subr.mxu0 %v185
    %417 = vmatpush1.msra.mxu0 %v184
    %418 = vmatprep.subr.mxu0 %v192
    %419 = vmatpush1.msra.mxu0 %v191
    %420 = vmatprep.subr.mxu0 %v199
    %421 = vmatpush1.msra.mxu0 %v198
    %422 = vmatprep.subr.mxu0 %v206
    %423 = vmatpush1.msra.mxu0 %v205
    %424 = vmatprep.subr.mxu0 %v213
    %425 = vmatpush1.msra.mxu0 %v212
    %426 = vmatprep.subr.mxu0 0.0
    %427 = vmatpush1.msra.mxu0 0.0
    %428 = vmatprep.subr.mxu0 0.0
    %429 = vmatpush1.msra.mxu0 0.0
    %430 = vmatprep.subr.mxu0 0.0
    %431 = vmatpush1.msra.mxu0 0.0
    %432 = vmatprep.subr.mxu0 0.0
    %433 = vmatpush1.msra.mxu0 0.0
    %434 = vmatprep.subr.mxu0 0.0
    %435 = vmatpush1.msra.mxu0 0.0
    %436 = vmatprep.subr.mxu0 0.0
    %437 = vmatpush1.msra.mxu0 0.0
    %438 = vmatprep.subr.mxu0 0.0
    %439 = vmatpush1.msra.mxu0 0.0
    %440 = vmatprep.subr.mxu0 0.0
    %441 = vmatpush1.msra.mxu0 0.0
    %442 = vmatprep.subr.mxu0 0.0
    %443 = vmatpush1.msra.mxu0 0.0
    %444 = vmatprep.subr.mxu0 0.0
    %445 = vmatpush1.msra.mxu0 0.0
    %446 = vmatprep.subr.mxu0 0.0
    %447 = vmatpush1.msra.mxu0 0.0
    %448 = vmatprep.subr.mxu0 0.0
    %449 = vmatpush1.msra.mxu0 0.0
    %450 = vmatprep.subr.mxu0 0.0
    %451 = vmatpush1.msra.mxu0 0.0
    %452 = vmatprep.subr.mxu0 0.0
    %453 = vmatpush1.msra.mxu0 0.0
    %454 = vmatprep.subr.mxu0 0.0
    %455 = vmatpush1.msra.mxu0 0.0
    %456 = vmatprep.subr.mxu0 0.0
    %457 = vmatpush1.msra.mxu0 0.0
    %458 = vmatprep.mubr.f32.mxu0 0.0
    %459 = vmatmul.mubr.f32.gmra.mrb[0].mxu0 %v102
    %v460 = vpop.f32.mrb[0].mxu0
    %v461 = vadd.f32 %v236, %v460
    %v462 = vpop.f32.mrb[0].mxu0
    %v463 = vadd.f32 %v240, %v462
    %464 = vdwg.mxu0
    %465 = vmatprep.subr.mxu0 0.0
    %466 = vmatpush1.msra.mxu0 %v109
    %467 = vmatprep.subr.mxu0 0.0
    %468 = vmatpush1.msra.mxu0 %v116
    %469 = vmatprep.subr.mxu0 0.0
    %470 = vmatpush1.msra.mxu0 %v123
    %471 = vmatprep.subr.mxu0 0.0
    %472 = vmatpush1.msra.mxu0 %v130
    %473 = vmatprep.subr.mxu0 0.0
    %474 = vmatpush1.msra.mxu0 %v137
    %475 = vmatprep.subr.mxu0 0.0
    %476 = vmatpush1.msra.mxu0 %v144
    %477 = vmatprep.subr.mxu0 0.0
    %478 = vmatpush1.msra.mxu0 %v151
    %479 = vmatprep.subr.mxu0 0.0
    %480 = vmatpush1.msra.mxu0 %v158
    %481 = vmatprep.subr.mxu0 0.0
    %482 = vmatpush1.msra.mxu0 %v165
    %483 = vmatprep.subr.mxu0 0.0
    %484 = vmatpush1.msra.mxu0 %v172
    %485 = vmatprep.subr.mxu0 0.0
    %486 = vmatpush1.msra.mxu0 %v179
    %487 = vmatprep.subr.mxu0 0.0
    %488 = vmatpush1.msra.mxu0 %v186
    %489 = vmatprep.subr.mxu0 0.0
    %490 = vmatpush1.msra.mxu0 %v193
    %491 = vmatprep.subr.mxu0 0.0
    %492 = vmatpush1.msra.mxu0 %v200
    %493 = vmatprep.subr.mxu0 0.0
    %494 = vmatpush1.msra.mxu0 %v207
    %495 = vmatprep.subr.mxu0 0.0
    %496 = vmatpush1.msra.mxu0 %v214
    %497 = vmatprep.subr.mxu0 0.0
    %498 = vmatpush1.msra.mxu0 0.0
    %499 = vmatprep.subr.mxu0 0.0
    %500 = vmatpush1.msra.mxu0 0.0
    %501 = vmatprep.subr.mxu0 0.0
    %502 = vmatpush1.msra.mxu0 0.0
    %503 = vmatprep.subr.mxu0 0.0
    %504 = vmatpush1.msra.mxu0 0.0
    %505 = vmatprep.subr.mxu0 0.0
    %506 = vmatpush1.msra.mxu0 0.0
    %507 = vmatprep.subr.mxu0 0.0
    %508 = vmatpush1.msra.mxu0 0.0
    %509 = vmatprep.subr.mxu0 0.0
    %510 = vmatpush1.msra.mxu0 0.0
    %511 = vmatprep.subr.mxu0 0.0
    %512 = vmatpush1.msra.mxu0 0.0
    %513 = vmatprep.subr.mxu0 0.0
    %514 = vmatpush1.msra.mxu0 0.0
    %515 = vmatprep.subr.mxu0 0.0
    %516 = vmatpush1.msra.mxu0 0.0
    %517 = vmatprep.subr.mxu0 0.0
    %518 = vmatpush1.msra.mxu0 0.0
    %519 = vmatprep.subr.mxu0 0.0
    %520 = vmatpush1.msra.mxu0 0.0
    %521 = vmatprep.subr.mxu0 0.0
    %522 = vmatpush1.msra.mxu0 0.0
    %523 = vmatprep.subr.mxu0 0.0
    %524 = vmatpush1.msra.mxu0 0.0
    %525 = vmatprep.subr.mxu0 0.0
    %526 = vmatpush1.msra.mxu0 0.0
    %527 = vmatprep.subr.mxu0 0.0
    %528 = vmatpush1.msra.mxu0 0.0
    %529 = vmatprep.mubr.f32.mxu0 0.0
    %530 = vmatmul.mubr.f32.gmra.mrb[0].mxu0 %v102
    %v531 = vpop.f32.mrb[0].mxu0
    %v532 = vadd.f32 %v244, %v531
    %v533 = vpop.f32.mrb[0].mxu0
    %534 = vdwg.mxu0
    %v535 = vmax.f32 %v319, 0.0
    %v536 = vmax.f32 %v321, 0.0
    %v537 = vmax.f32 %v390, 0.0
    %v538 = vmax.f32 %v392, 0.0
    %v539 = vmax.f32 %v461, 0.0
    %v540 = vmax.f32 %v463, 0.0
    %v541 = vmax.f32 %v532, 0.0
    %v542 = vld [vmem:[#allocation6] sm:$0xff]
    %v543 = vld [vmem:[#allocation6 + $0x8] sm:$0xff]
    %v544 = vld [vmem:[#allocation6 + $0x10] sm:$0xff]
    %v545 = vld [vmem:[#allocation6 + $0x18] sm:$0xff]
    %v546 = vld [vmem:[#allocation6 + $0x20] sm:$0xff]
    %v547 = vld [vmem:[#allocation6 + $0x28] sm:$0xff]
    %v548 = vld [vmem:[#allocation6 + $0x30] sm:$0xff]
    %v549 = vld [vmem:[#allocation6 + $0x38] sm:$0xff]
    %v550 = vld [vmem:[#allocation6 + $0x40] sm:$0xff]
    %v551 = vld [vmem:[#allocation6 + $0x48] sm:$0xff]
    %v552 = vld [vmem:[#allocation6 + $0x50] sm:$0xff]
    %v553 = vld [vmem:[#allocation6 + $0x58] sm:$0xff]
    %v554 = vld [vmem:[#allocation6 + $0x60] sm:$0xff]
    %v555 = vld [vmem:[#allocation6 + $0x68] sm:$0xff]
    %v556 = vld [vmem:[#allocation6 + $0x70] sm:$0xff]
    %v557 = vld [vmem:[#allocation6 + $0x78] sm:$0xff]
    %v558 = vld [vmem:[#allocation6 + $0x80] sm:$0xff]
    %v559 = vld [vmem:[#allocation6 + $0x88] sm:$0xff]
    %v560 = vld [vmem:[#allocation6 + $0x90] sm:$0xff]
    %v561 = vld [vmem:[#allocation6 + $0x98] sm:$0xff]
    %v562 = vld [vmem:[#allocation6 + $0xa0] sm:$0xff]
    %v563 = vld [vmem:[#allocation6 + $0xa8] sm:$0xff]
    %v564 = vld [vmem:[#allocation6 + $0xb0] sm:$0xff]
    %v565 = vld [vmem:[#allocation6 + $0xb8] sm:$0xff]
    %v566 = vld [vmem:[#allocation6 + $0xc0] sm:$0xff]
    %v567 = vld [vmem:[#allocation6 + $0xc8] sm:$0xff]
    %v568 = vld [vmem:[#allocation6 + $0xd0] sm:$0xff]
    %v569 = vld [vmem:[#allocation6 + $0xd8] sm:$0xff]
    %v570 = vld [vmem:[#allocation6 + $0xe0] sm:$0xff]
    %v571 = vld [vmem:[#allocation6 + $0xe8] sm:$0xff]
    %v572 = vld [vmem:[#allocation6 + $0xf0] sm:$0xff]
    %v573 = vld [vmem:[#allocation6 + $0xf8] sm:$0xff]
    %v574 = vld [vmem:[#allocation6 + $0x100] sm:$0xff]
    %v575 = vld [vmem:[#allocation6 + $0x108] sm:$0xff]
    %v576 = vld [vmem:[#allocation6 + $0x110] sm:$0xff]
    %v577 = vld [vmem:[#allocation6 + $0x118] sm:$0xff]
    %v578 = vld [vmem:[#allocation6 + $0x120] sm:$0xff]
    %v579 = vld [vmem:[#allocation6 + $0x128] sm:$0xff]
    %v580 = vld [vmem:[#allocation6 + $0x130] sm:$0xff]
    %v581 = vld [vmem:[#allocation6 + $0x138] sm:$0xff]
    %v582 = vld [vmem:[#allocation6 + $0x140] sm:$0xff]
    %v583 = vld [vmem:[#allocation6 + $0x148] sm:$0xff]
    %v584 = vld [vmem:[#allocation6 + $0x150] sm:$0xff]
    %v585 = vld [vmem:[#allocation6 + $0x158] sm:$0xff]
    %v586 = vld [vmem:[#allocation6 + $0x160] sm:$0xff]
    %v587 = vld [vmem:[#allocation6 + $0x168] sm:$0xff]
    %v588 = vld [vmem:[#allocation6 + $0x170] sm:$0xff]
    %v589 = vld [vmem:[#allocation6 + $0x178] sm:$0xff]
    %v590 = vld [vmem:[#allocation6 + $0x180] sm:$0xff]
    %v591 = vld [vmem:[#allocation6 + $0x188] sm:$0xff]
    %v592 = vld [vmem:[#allocation6 + $0x190] sm:$0xff]
    %v593 = vld [vmem:[#allocation6 + $0x198] sm:$0xff]
    %v594 = vld [vmem:[#allocation6 + $0x1a0] sm:$0xff]
    %v595 = vld [vmem:[#allocation6 + $0x1a8] sm:$0xff]
    %v596 = vld [vmem:[#allocation6 + $0x1b0] sm:$0xff]
    %v597 = vld [vmem:[#allocation6 + $0x1b8] sm:$0xff]
    %v598 = vld [vmem:[#allocation6 + $0x1c0] sm:$0xff]
    %v599 = vld [vmem:[#allocation6 + $0x1c8] sm:$0xff]
    %v600 = vld [vmem:[#allocation6 + $0x1d0] sm:$0xff]
    %v601 = vld [vmem:[#allocation6 + $0x1d8] sm:$0xff]
    %v602 = vld [vmem:[#allocation6 + $0x1e0] sm:$0xff]
    %v603 = vld [vmem:[#allocation6 + $0x1e8] sm:$0xff]
    %v604 = vld [vmem:[#allocation6 + $0x1f0] sm:$0xff]
    %v605 = vld [vmem:[#allocation6 + $0x1f8] sm:$0xff]
    %v606 = vld [vmem:[#allocation6 + $0x200] sm:$0xff]
    %v607 = vld [vmem:[#allocation6 + $0x208] sm:$0xff]
    %v608 = vld [vmem:[#allocation6 + $0x210] sm:$0xff]
    %v609 = vld [vmem:[#allocation6 + $0x218] sm:$0xff]
    %v610 = vld [vmem:[#allocation6 + $0x220] sm:$0xff]
    %v611 = vld [vmem:[#allocation6 + $0x228] sm:$0xff]
    %v612 = vld [vmem:[#allocation6 + $0x230] sm:$0xff]
    %v613 = vld [vmem:[#allocation6 + $0x238] sm:$0xff]
    %v614 = vld [vmem:[#allocation6 + $0x240] sm:$0xff]
    %v615 = vld [vmem:[#allocation6 + $0x248] sm:$0xff]
    %v616 = vld [vmem:[#allocation6 + $0x250] sm:$0xff]
    %v617 = vld [vmem:[#allocation6 + $0x258] sm:$0xff]
    %v618 = vld [vmem:[#allocation6 + $0x260] sm:$0xff]
    %v619 = vld [vmem:[#allocation6 + $0x268] sm:$0xff]
    %v620 = vld [vmem:[#allocation6 + $0x270] sm:$0xff]
    %v621 = vld [vmem:[#allocation6 + $0x278] sm:$0xff]
    %v622 = vld [vmem:[#allocation6 + $0x280] sm:$0xff]
    %v623 = vld [vmem:[#allocation6 + $0x288] sm:$0xff]
    %v624 = vld [vmem:[#allocation6 + $0x290] sm:$0xff]
    %v625 = vld [vmem:[#allocation6 + $0x298] sm:$0xff]
    %v626 = vld [vmem:[#allocation6 + $0x2a0] sm:$0xff]
    %v627 = vld [vmem:[#allocation6 + $0x2a8] sm:$0xff]
    %v628 = vld [vmem:[#allocation6 + $0x2b0] sm:$0xff]
    %v629 = vld [vmem:[#allocation6 + $0x2b8] sm:$0xff]
    %v630 = vld [vmem:[#allocation6 + $0x2c0] sm:$0xff]
    %v631 = vld [vmem:[#allocation6 + $0x2c8] sm:$0xff]
    %v632 = vld [vmem:[#allocation6 + $0x2d0] sm:$0xff]
    %v633 = vld [vmem:[#allocation6 + $0x2d8] sm:$0xff]
    %v634 = vld [vmem:[#allocation6 + $0x2e0] sm:$0xff]
    %v635 = vld [vmem:[#allocation6 + $0x2e8] sm:$0xff]
    %v636 = vld [vmem:[#allocation6 + $0x2f0] sm:$0xff]
    %v637 = vld [vmem:[#allocation6 + $0x2f8] sm:$0xff]
    %v638 = vld [vmem:[#allocation6 + $0x300] sm:$0xff]
    %v639 = vld [vmem:[#allocation6 + $0x308] sm:$0xff]
    %v640 = vld [vmem:[#allocation6 + $0x310] sm:$0xff]
    %v641 = vld [vmem:[#allocation6 + $0x318] sm:$0xff]
    %v642 = vld [vmem:[#allocation6 + $0x320] sm:$0xff]
    %v643 = vld [vmem:[#allocation6 + $0x328] sm:$0xff]
    %v644 = vld [vmem:[#allocation6 + $0x330] sm:$0xff]
    %v645 = vld [vmem:[#allocation6 + $0x338] sm:$0xff]
    %v646 = vld [vmem:[#allocation6 + $0x340] sm:$0xff]
    %v647 = vld [vmem:[#allocation6 + $0x348] sm:$0xff]
    %v648 = vld [vmem:[#allocation6 + $0x350] sm:$0xff]
    %v649 = vld [vmem:[#allocation6 + $0x358] sm:$0xff]
    %v650 = vld [vmem:[#allocation6 + $0x360] sm:$0xff]
    %v651 = vld [vmem:[#allocation6 + $0x368] sm:$0xff]
    %v652 = vld [vmem:[#allocation6 + $0x370] sm:$0xff]
    %v653 = vld [vmem:[#allocation6 + $0x378] sm:$0xff]
    %v654 = vld [vmem:[#allocation6 + $0x380] sm:$0xff]
    %v655 = vld [vmem:[#allocation6 + $0x388] sm:$0xff]
    %v656 = vld [vmem:[#allocation6 + $0x390] sm:$0xff]
    %v657 = vld [vmem:[#allocation6 + $0x398] sm:$0xff]
    %v658 = vld [vmem:[#allocation6 + $0x3a0] sm:$0xff]
    %v659 = vld [vmem:[#allocation6 + $0x3a8] sm:$0xff]
    %v660 = vld [vmem:[#allocation6 + $0x3b0] sm:$0xff]
    %v661 = vld [vmem:[#allocation6 + $0x3b8] sm:$0xff]
    %v662 = vld [vmem:[#allocation6 + $0x3c0] sm:$0xff]
    %v663 = vld [vmem:[#allocation6 + $0x3c8] sm:$0xff]
    %v664 = vld [vmem:[#allocation6 + $0x3d0] sm:$0xff]
    %v665 = vld [vmem:[#allocation6 + $0x3d8] sm:$0xff]
    %v666 = vld [vmem:[#allocation6 + $0x3e0] sm:$0xff]
    %v667 = vld [vmem:[#allocation6 + $0x3e8] sm:$0xff]
    %v668 = vld [vmem:[#allocation6 + $0x3f0] sm:$0xff]
    %v669 = vld [vmem:[#allocation6 + $0x3f8] sm:$0xff]
    %v670 = vld [vmem:[#allocation6 + $0x400] sm:$0xff]
    %v671 = vld [vmem:[#allocation6 + $0x408] sm:$0xff]
    %v672 = vld [vmem:[#allocation6 + $0x410] sm:$0xff]
    %v673 = vld [vmem:[#allocation6 + $0x418] sm:$0xff]
    %v674 = vld [vmem:[#allocation6 + $0x420] sm:$0xff]
    %v675 = vld [vmem:[#allocation6 + $0x428] sm:$0xff]
    %v676 = vld [vmem:[#allocation6 + $0x430] sm:$0xff]
    %v677 = vld [vmem:[#allocation6 + $0x438] sm:$0xff]
    %v678 = vld [vmem:[#allocation6 + $0x440] sm:$0xff]
    %v679 = vld [vmem:[#allocation6 + $0x448] sm:$0xff]
    %v680 = vld [vmem:[#allocation6 + $0x450] sm:$0xff]
    %v681 = vld [vmem:[#allocation6 + $0x458] sm:$0xff]
    %v682 = vld [vmem:[#allocation6 + $0x460] sm:$0xff]
    %v683 = vld [vmem:[#allocation6 + $0x468] sm:$0xff]
    %v684 = vld [vmem:[#allocation6 + $0x470] sm:$0xff]
    %v685 = vld [vmem:[#allocation6 + $0x478] sm:$0xff]
    %v686 = vld [vmem:[#allocation6 + $0x480] sm:$0xff]
    %v687 = vld [vmem:[#allocation6 + $0x488] sm:$0xff]
    %v688 = vld [vmem:[#allocation6 + $0x490] sm:$0xff]
    %v689 = vld [vmem:[#allocation6 + $0x498] sm:$0xff]
    %v690 = vld [vmem:[#allocation6 + $0x4a0] sm:$0xff]
    %v691 = vld [vmem:[#allocation6 + $0x4a8] sm:$0xff]
    %v692 = vld [vmem:[#allocation6 + $0x4b0] sm:$0xff]
    %v693 = vld [vmem:[#allocation6 + $0x4b8] sm:$0xff]
    %v694 = vld [vmem:[#allocation6 + $0x4c0] sm:$0xff]
    %v695 = vld [vmem:[#allocation6 + $0x4c8] sm:$0xff]
    %v696 = vld [vmem:[#allocation6 + $0x4d0] sm:$0xff]
    %v697 = vld [vmem:[#allocation6 + $0x4d8] sm:$0xff]
    %v698 = vld [vmem:[#allocation6 + $0x4e0] sm:$0xff]
    %v699 = vld [vmem:[#allocation6 + $0x4e8] sm:$0xff]
    %v700 = vld [vmem:[#allocation6 + $0x4f0] sm:$0xff]
    %v701 = vld [vmem:[#allocation6 + $0x4f8] sm:$0xff]
    %v702 = vld [vmem:[#allocation6 + $0x500] sm:$0xff]
    %v703 = vld [vmem:[#allocation6 + $0x508] sm:$0xff]
    %v704 = vld [vmem:[#allocation6 + $0x510] sm:$0xff]
    %v705 = vld [vmem:[#allocation6 + $0x518] sm:$0xff]
    %v706 = vld [vmem:[#allocation6 + $0x520] sm:$0xff]
    %v707 = vld [vmem:[#allocation6 + $0x528] sm:$0xff]
    %v708 = vld [vmem:[#allocation6 + $0x530] sm:$0xff]
    %v709 = vld [vmem:[#allocation6 + $0x538] sm:$0xff]
    %v710 = vld [vmem:[#allocation6 + $0x540] sm:$0xff]
    %v711 = vld [vmem:[#allocation6 + $0x548] sm:$0xff]
    %v712 = vld [vmem:[#allocation6 + $0x550] sm:$0xff]
    %v713 = vld [vmem:[#allocation6 + $0x558] sm:$0xff]
    %v714 = vld [vmem:[#allocation6 + $0x560] sm:$0xff]
    %v715 = vld [vmem:[#allocation6 + $0x568] sm:$0xff]
    %v716 = vld [vmem:[#allocation6 + $0x570] sm:$0xff]
    %v717 = vld [vmem:[#allocation6 + $0x578] sm:$0xff]
    %v718 = vld [vmem:[#allocation6 + $0x580] sm:$0xff]
    %v719 = vld [vmem:[#allocation6 + $0x588] sm:$0xff]
    %v720 = vld [vmem:[#allocation6 + $0x590] sm:$0xff]
    %v721 = vld [vmem:[#allocation6 + $0x598] sm:$0xff]
    %v722 = vld [vmem:[#allocation6 + $0x5a0] sm:$0xff]
    %v723 = vld [vmem:[#allocation6 + $0x5a8] sm:$0xff]
    %v724 = vld [vmem:[#allocation6 + $0x5b0] sm:$0xff]
    %v725 = vld [vmem:[#allocation6 + $0x5b8] sm:$0xff]
    %v726 = vld [vmem:[#allocation6 + $0x5c0] sm:$0xff]
    %v727 = vld [vmem:[#allocation6 + $0x5c8] sm:$0xff]
    %v728 = vld [vmem:[#allocation6 + $0x5d0] sm:$0xff]
    %v729 = vld [vmem:[#allocation6 + $0x5d8] sm:$0xff]
    %v730 = vld [vmem:[#allocation6 + $0x5e0] sm:$0xff]
    %v731 = vld [vmem:[#allocation6 + $0x5e8] sm:$0xff]
    %v732 = vld [vmem:[#allocation6 + $0x5f0] sm:$0xff]
    %v733 = vld [vmem:[#allocation6 + $0x5f8] sm:$0xff]
    %v734 = vld [vmem:[#allocation6 + $0x600] sm:$0xff]
    %v735 = vld [vmem:[#allocation6 + $0x608] sm:$0xff]
    %v736 = vld [vmem:[#allocation6 + $0x610] sm:$0xff]
    %v737 = vld [vmem:[#allocation6 + $0x618] sm:$0xff]
    %v738 = vld [vmem:[#allocation6 + $0x620] sm:$0xff]
    %v739 = vld [vmem:[#allocation6 + $0x628] sm:$0xff]
    %v740 = vld [vmem:[#allocation6 + $0x630] sm:$0xff]
    %v741 = vld [vmem:[#allocation6 + $0x638] sm:$0xff]
    %v742 = vld [vmem:[#allocation6 + $0x640] sm:$0xff]
    %v743 = vld [vmem:[#allocation6 + $0x648] sm:$0xff]
    %v744 = vld [vmem:[#allocation6 + $0x650] sm:$0xff]
    %v745 = vld [vmem:[#allocation6 + $0x658] sm:$0xff]
    %v746 = vld [vmem:[#allocation6 + $0x660] sm:$0xff]
    %v747 = vld [vmem:[#allocation6 + $0x668] sm:$0xff]
    %v748 = vld [vmem:[#allocation6 + $0x670] sm:$0xff]
    %v749 = vld [vmem:[#allocation6 + $0x678] sm:$0xff]
    %v750 = vld [vmem:[#allocation6 + $0x680] sm:$0xff]
    %v751 = vld [vmem:[#allocation6 + $0x688] sm:$0xff]
    %v752 = vld [vmem:[#allocation6 + $0x690] sm:$0xff]
    %v753 = vld [vmem:[#allocation6 + $0x698] sm:$0xff]
    %v754 = vld [vmem:[#allocation6 + $0x6a0] sm:$0xff]
    %v755 = vld [vmem:[#allocation6 + $0x6a8] sm:$0xff]
    %v756 = vld [vmem:[#allocation6 + $0x6b0] sm:$0xff]
    %v757 = vld [vmem:[#allocation6 + $0x6b8] sm:$0xff]
    %v758 = vld [vmem:[#allocation6 + $0x6c0] sm:$0xff]
    %v759 = vld [vmem:[#allocation6 + $0x6c8] sm:$0xff]
    %v760 = vld [vmem:[#allocation6 + $0x6d0] sm:$0xff]
    %v761 = vld [vmem:[#allocation6 + $0x6d8] sm:$0xff]
    %v762 = vld [vmem:[#allocation6 + $0x6e0] sm:$0xff]
    %v763 = vld [vmem:[#allocation6 + $0x6e8] sm:$0xff]
    %v764 = vld [vmem:[#allocation6 + $0x6f0] sm:$0xff]
    %v765 = vld [vmem:[#allocation6 + $0x6f8] sm:$0xff]
    %v766 = vld [vmem:[#allocation6 + $0x700] sm:$0xff]
    %v767 = vld [vmem:[#allocation6 + $0x708] sm:$0xff]
    %v768 = vld [vmem:[#allocation6 + $0x710] sm:$0xff]
    %v769 = vld [vmem:[#allocation6 + $0x718] sm:$0xff]
    %v770 = vld [vmem:[#allocation6 + $0x720] sm:$0xff]
    %v771 = vld [vmem:[#allocation6 + $0x728] sm:$0xff]
    %v772 = vld [vmem:[#allocation6 + $0x730] sm:$0xff]
    %v773 = vld [vmem:[#allocation6 + $0x738] sm:$0xff]
    %v774 = vld [vmem:[#allocation6 + $0x740] sm:$0xff]
    %v775 = vld [vmem:[#allocation6 + $0x748] sm:$0xff]
    %v776 = vld [vmem:[#allocation6 + $0x750] sm:$0xff]
    %v777 = vld [vmem:[#allocation6 + $0x758] sm:$0xff]
    %v778 = vld [vmem:[#allocation6 + $0x760] sm:$0xff]
    %v779 = vld [vmem:[#allocation6 + $0x768] sm:$0xff]
    %v780 = vld [vmem:[#allocation6 + $0x770] sm:$0xff]
    %v781 = vld [vmem:[#allocation6 + $0x778] sm:$0xff]
    %v782 = vld [vmem:[#allocation6 + $0x780] sm:$0xff]
    %v783 = vld [vmem:[#allocation6 + $0x788] sm:$0xff]
    %v784 = vld [vmem:[#allocation6 + $0x790] sm:$0xff]
    %v785 = vld [vmem:[#allocation6 + $0x798] sm:$0xff]
    %v786 = vld [vmem:[#allocation6 + $0x7a0] sm:$0xff]
    %v787 = vld [vmem:[#allocation6 + $0x7a8] sm:$0xff]
    %v788 = vld [vmem:[#allocation6 + $0x7b0] sm:$0xff]
    %v789 = vld [vmem:[#allocation6 + $0x7b8] sm:$0xff]
    %v790 = vld [vmem:[#allocation6 + $0x7c0] sm:$0xff]
    %v791 = vld [vmem:[#allocation6 + $0x7c8] sm:$0xff]
    %v792 = vld [vmem:[#allocation6 + $0x7d0] sm:$0xff]
    %v793 = vld [vmem:[#allocation6 + $0x7d8] sm:$0xff]
    %v794 = vld [vmem:[#allocation6 + $0x7e0] sm:$0xff]
    %v795 = vld [vmem:[#allocation6 + $0x7e8] sm:$0xff]
    %v796 = vld [vmem:[#allocation6 + $0x7f0] sm:$0xff]
    %v797 = vld [vmem:[#allocation6 + $0x7f8] sm:$0xff]
    %v798 = vld [vmem:[#allocation6 + $0x800] sm:$0xff]
    %v799 = vld [vmem:[#allocation6 + $0x808] sm:$0xff]
    %v800 = vld [vmem:[#allocation6 + $0x810] sm:$0xff]
    %v801 = vld [vmem:[#allocation6 + $0x818] sm:$0xff]
    %v802 = vld [vmem:[#allocation6 + $0x820] sm:$0xff]
    %v803 = vld [vmem:[#allocation6 + $0x828] sm:$0xff]
    %v804 = vld [vmem:[#allocation6 + $0x830] sm:$0xff]
    %v805 = vld [vmem:[#allocation6 + $0x838] sm:$0xff]
    %v806 = vld [vmem:[#allocation6 + $0x840] sm:$0xff]
    %v807 = vld [vmem:[#allocation6 + $0x848] sm:$0xff]
    %v808 = vld [vmem:[#allocation6 + $0x850] sm:$0xff]
    %v809 = vld [vmem:[#allocation6 + $0x858] sm:$0xff]
    %v810 = vld [vmem:[#allocation6 + $0x860] sm:$0xff]
    %v811 = vld [vmem:[#allocation6 + $0x868] sm:$0xff]
    %v812 = vld [vmem:[#allocation6 + $0x870] sm:$0xff]
    %v813 = vld [vmem:[#allocation6 + $0x878] sm:$0xff]
    %v814 = vld [vmem:[#allocation6 + $0x880] sm:$0xff]
    %v815 = vld [vmem:[#allocation6 + $0x888] sm:$0xff]
    %v816 = vld [vmem:[#allocation6 + $0x890] sm:$0xff]
    %v817 = vld [vmem:[#allocation6 + $0x898] sm:$0xff]
    %v818 = vld [vmem:[#allocation6 + $0x8a0] sm:$0xff]
    %v819 = vld [vmem:[#allocation6 + $0x8a8] sm:$0xff]
    %v820 = vld [vmem:[#allocation6 + $0x8b0] sm:$0xff]
    %v821 = vld [vmem:[#allocation6 + $0x8b8] sm:$0xff]
    %v822 = vld [vmem:[#allocation6 + $0x8c0] sm:$0xff]
    %v823 = vld [vmem:[#allocation6 + $0x8c8] sm:$0xff]
    %v824 = vld [vmem:[#allocation6 + $0x8d0] sm:$0xff]
    %v825 = vld [vmem:[#allocation6 + $0x8d8] sm:$0xff]
    %v826 = vld [vmem:[#allocation6 + $0x8e0] sm:$0xff]
    %v827 = vld [vmem:[#allocation6 + $0x8e8] sm:$0xff]
    %v828 = vld [vmem:[#allocation6 + $0x8f0] sm:$0xff]
    %v829 = vld [vmem:[#allocation6 + $0x8f8] sm:$0xff]
    %v830 = vld [vmem:[#allocation6 + $0x900] sm:$0xff]
    %v831 = vld [vmem:[#allocation6 + $0x908] sm:$0xff]
    %v832 = vld [vmem:[#allocation6 + $0x910] sm:$0xff]
    %v833 = vld [vmem:[#allocation6 + $0x918] sm:$0xff]
    %v834 = vld [vmem:[#allocation6 + $0x920] sm:$0xff]
    %v835 = vld [vmem:[#allocation6 + $0x928] sm:$0xff]
    %v836 = vld [vmem:[#allocation6 + $0x930] sm:$0xff]
    %v837 = vld [vmem:[#allocation6 + $0x938] sm:$0xff]
    %v838 = vld [vmem:[#allocation6 + $0x940] sm:$0xff]
    %v839 = vld [vmem:[#allocation6 + $0x948] sm:$0xff]
    %v840 = vld [vmem:[#allocation6 + $0x950] sm:$0xff]
    %v841 = vld [vmem:[#allocation6 + $0x958] sm:$0xff]
    %v842 = vld [vmem:[#allocation6 + $0x960] sm:$0xff]
    %v843 = vld [vmem:[#allocation6 + $0x968] sm:$0xff]
    %v844 = vld [vmem:[#allocation6 + $0x970] sm:$0xff]
    %v845 = vld [vmem:[#allocation6 + $0x978] sm:$0xff]
    %v846 = vld [vmem:[#allocation6 + $0x980] sm:$0xff]
    %v847 = vld [vmem:[#allocation6 + $0x988] sm:$0xff]
    %v848 = vld [vmem:[#allocation6 + $0x990] sm:$0xff]
    %v849 = vld [vmem:[#allocation6 + $0x998] sm:$0xff]
    %v850 = vld [vmem:[#allocation6 + $0x9a0] sm:$0xff]
    %v851 = vld [vmem:[#allocation6 + $0x9a8] sm:$0xff]
    %v852 = vld [vmem:[#allocation6 + $0x9b0] sm:$0xff]
    %v853 = vld [vmem:[#allocation6 + $0x9b8] sm:$0xff]
    %v854 = vld [vmem:[#allocation6 + $0x9c0] sm:$0xff]
    %v855 = vld [vmem:[#allocation6 + $0x9c8] sm:$0xff]
    %v856 = vld [vmem:[#allocation6 + $0x9d0] sm:$0xff]
    %v857 = vld [vmem:[#allocation6 + $0x9d8] sm:$0xff]
    %v858 = vld [vmem:[#allocation6 + $0x9e0] sm:$0xff]
    %v859 = vld [vmem:[#allocation6 + $0x9e8] sm:$0xff]
    %v860 = vld [vmem:[#allocation6 + $0x9f0] sm:$0xff]
    %v861 = vld [vmem:[#allocation6 + $0x9f8] sm:$0xff]
    %v862 = vld [vmem:[#allocation6 + $0xa00] sm:$0xff]
    %v863 = vld [vmem:[#allocation6 + $0xa08] sm:$0xff]
    %v864 = vld [vmem:[#allocation6 + $0xa10] sm:$0xff]
    %v865 = vld [vmem:[#allocation6 + $0xa18] sm:$0xff]
    %v866 = vld [vmem:[#allocation6 + $0xa20] sm:$0xff]
    %v867 = vld [vmem:[#allocation6 + $0xa28] sm:$0xff]
    %v868 = vld [vmem:[#allocation6 + $0xa30] sm:$0xff]
    %v869 = vld [vmem:[#allocation6 + $0xa38] sm:$0xff]
    %v870 = vld [vmem:[#allocation6 + $0xa40] sm:$0xff]
    %v871 = vld [vmem:[#allocation6 + $0xa48] sm:$0xff]
    %v872 = vld [vmem:[#allocation6 + $0xa50] sm:$0xff]
    %v873 = vld [vmem:[#allocation6 + $0xa58] sm:$0xff]
    %v874 = vld [vmem:[#allocation6 + $0xa60] sm:$0xff]
    %v875 = vld [vmem:[#allocation6 + $0xa68] sm:$0xff]
    %v876 = vld [vmem:[#allocation6 + $0xa70] sm:$0xff]
    %v877 = vld [vmem:[#allocation6 + $0xa78] sm:$0xff]
    %v878 = vld [vmem:[#allocation6 + $0xa80] sm:$0xff]
    %v879 = vld [vmem:[#allocation6 + $0xa88] sm:$0xff]
    %v880 = vld [vmem:[#allocation6 + $0xa90] sm:$0xff]
    %v881 = vld [vmem:[#allocation6 + $0xa98] sm:$0xff]
    %v882 = vld [vmem:[#allocation6 + $0xaa0] sm:$0xff]
    %v883 = vld [vmem:[#allocation6 + $0xaa8] sm:$0xff]
    %v884 = vld [vmem:[#allocation6 + $0xab0] sm:$0xff]
    %v885 = vld [vmem:[#allocation6 + $0xab8] sm:$0xff]
    %v886 = vld [vmem:[#allocation6 + $0xac0] sm:$0xff]
    %v887 = vld [vmem:[#allocation6 + $0xac8] sm:$0xff]
    %v888 = vld [vmem:[#allocation6 + $0xad0] sm:$0xff]
    %v889 = vld [vmem:[#allocation6 + $0xad8] sm:$0xff]
    %v890 = vld [vmem:[#allocation6 + $0xae0] sm:$0xff]
    %v891 = vld [vmem:[#allocation6 + $0xae8] sm:$0xff]
    %v892 = vld [vmem:[#allocation6 + $0xaf0] sm:$0xff]
    %v893 = vld [vmem:[#allocation6 + $0xaf8] sm:$0xff]
    %v894 = vld [vmem:[#allocation6 + $0xb00] sm:$0xff]
    %v895 = vld [vmem:[#allocation6 + $0xb08] sm:$0xff]
    %v896 = vld [vmem:[#allocation6 + $0xb10] sm:$0xff]
    %v897 = vld [vmem:[#allocation6 + $0xb18] sm:$0xff]
    %v898 = vld [vmem:[#allocation6 + $0xb20] sm:$0xff]
    %v899 = vld [vmem:[#allocation6 + $0xb28] sm:$0xff]
    %v900 = vld [vmem:[#allocation6 + $0xb30] sm:$0xff]
    %v901 = vld [vmem:[#allocation6 + $0xb38] sm:$0xff]
    %v902 = vld [vmem:[#allocation6 + $0xb40] sm:$0xff]
    %v903 = vld [vmem:[#allocation6 + $0xb48] sm:$0xff]
    %v904 = vld [vmem:[#allocation6 + $0xb50] sm:$0xff]
    %v905 = vld [vmem:[#allocation6 + $0xb58] sm:$0xff]
    %v906 = vld [vmem:[#allocation6 + $0xb60] sm:$0xff]
    %v907 = vld [vmem:[#allocation6 + $0xb68] sm:$0xff]
    %v908 = vld [vmem:[#allocation6 + $0xb70] sm:$0xff]
    %v909 = vld [vmem:[#allocation6 + $0xb78] sm:$0xff]
    %v910 = vld [vmem:[#allocation6 + $0xb80] sm:$0xff]
    %v911 = vld [vmem:[#allocation6 + $0xb88] sm:$0xff]
    %v912 = vld [vmem:[#allocation6 + $0xb90] sm:$0xff]
    %v913 = vld [vmem:[#allocation6 + $0xb98] sm:$0xff]
    %v914 = vld [vmem:[#allocation6 + $0xba0] sm:$0xff]
    %v915 = vld [vmem:[#allocation6 + $0xba8] sm:$0xff]
    %v916 = vld [vmem:[#allocation6 + $0xbb0] sm:$0xff]
    %v917 = vld [vmem:[#allocation6 + $0xbb8] sm:$0xff]
    %v918 = vld [vmem:[#allocation6 + $0xbc0] sm:$0xff]
    %v919 = vld [vmem:[#allocation6 + $0xbc8] sm:$0xff]
    %v920 = vld [vmem:[#allocation6 + $0xbd0] sm:$0xff]
    %v921 = vld [vmem:[#allocation6 + $0xbd8] sm:$0xff]
    %v922 = vld [vmem:[#allocation6 + $0xbe0] sm:$0xff]
    %v923 = vld [vmem:[#allocation6 + $0xbe8] sm:$0xff]
    %v924 = vld [vmem:[#allocation6 + $0xbf0] sm:$0xff]
    %v925 = vld [vmem:[#allocation6 + $0xbf8] sm:$0xff]
    %v926 = vld [vmem:[#allocation6 + $0xc00] sm:$0xff]
    %v927 = vld [vmem:[#allocation6 + $0xc08] sm:$0xff]
    %v928 = vld [vmem:[#allocation6 + $0xc10] sm:$0xff]
    %v929 = vld [vmem:[#allocation6 + $0xc18] sm:$0xff]
    %v930 = vld [vmem:[#allocation6 + $0xc20] sm:$0xff]
    %v931 = vld [vmem:[#allocation6 + $0xc28] sm:$0xff]
    %v932 = vld [vmem:[#allocation6 + $0xc30] sm:$0xff]
    %v933 = vld [vmem:[#allocation6 + $0xc38] sm:$0xff]
    %v934 = vld [vmem:[#allocation6 + $0xc40] sm:$0xff]
    %v935 = vld [vmem:[#allocation6 + $0xc48] sm:$0xff]
    %v936 = vld [vmem:[#allocation6 + $0xc50] sm:$0xff]
    %v937 = vld [vmem:[#allocation6 + $0xc58] sm:$0xff]
    %v938 = vld [vmem:[#allocation6 + $0xc60] sm:$0xff]
    %v939 = vld [vmem:[#allocation6 + $0xc68] sm:$0xff]
    %v940 = vld [vmem:[#allocation6 + $0xc70] sm:$0xff]
    %v941 = vld [vmem:[#allocation6 + $0xc78] sm:$0xff]
    %v942 = vld [vmem:[#allocation6 + $0xc80] sm:$0xff]
    %v943 = vld [vmem:[#allocation6 + $0xc88] sm:$0xff]
    %v944 = vld [vmem:[#allocation6 + $0xc90] sm:$0xff]
    %v945 = vld [vmem:[#allocation6 + $0xc98] sm:$0xff]
    %v946 = vld [vmem:[#allocation6 + $0xca0] sm:$0xff]
    %v947 = vld [vmem:[#allocation6 + $0xca8] sm:$0xff]
    %v948 = vld [vmem:[#allocation6 + $0xcb0] sm:$0xff]
    %v949 = vld [vmem:[#allocation6 + $0xcb8] sm:$0xff]
    %v950 = vld [vmem:[#allocation6 + $0xcc0] sm:$0xff]
    %v951 = vld [vmem:[#allocation6 + $0xcc8] sm:$0xff]
    %v952 = vld [vmem:[#allocation6 + $0xcd0] sm:$0xff]
    %v953 = vld [vmem:[#allocation6 + $0xcd8] sm:$0xff]
    %v954 = vld [vmem:[#allocation6 + $0xce0] sm:$0xff]
    %v955 = vld [vmem:[#allocation6 + $0xce8] sm:$0xff]
    %v956 = vld [vmem:[#allocation6 + $0xcf0] sm:$0xff]
    %v957 = vld [vmem:[#allocation6 + $0xcf8] sm:$0xff]
    %v958 = vld [vmem:[#allocation6 + $0xd00] sm:$0xff]
    %v959 = vld [vmem:[#allocation6 + $0xd08] sm:$0xff]
    %v960 = vld [vmem:[#allocation6 + $0xd10] sm:$0xff]
    %v961 = vld [vmem:[#allocation6 + $0xd18] sm:$0xff]
    %v962 = vld [vmem:[#allocation6 + $0xd20] sm:$0xff]
    %v963 = vld [vmem:[#allocation6 + $0xd28] sm:$0xff]
    %v964 = vld [vmem:[#allocation6 + $0xd30] sm:$0xff]
    %v965 = vld [vmem:[#allocation6 + $0xd38] sm:$0xff]
    %v966 = vld [vmem:[#allocation6 + $0xd40] sm:$0xff]
    %v967 = vld [vmem:[#allocation6 + $0xd48] sm:$0xff]
    %v968 = vld [vmem:[#allocation6 + $0xd50] sm:$0xff]
    %v969 = vld [vmem:[#allocation6 + $0xd58] sm:$0xff]
    %v970 = vld [vmem:[#allocation6 + $0xd60] sm:$0xff]
    %v971 = vld [vmem:[#allocation6 + $0xd68] sm:$0xff]
    %v972 = vld [vmem:[#allocation6 + $0xd70] sm:$0xff]
    %v973 = vld [vmem:[#allocation6 + $0xd78] sm:$0xff]
    %v974 = vld [vmem:[#allocation6 + $0xd80] sm:$0xff]
    %v975 = vld [vmem:[#allocation6 + $0xd88] sm:$0xff]
    %v976 = vld [vmem:[#allocation6 + $0xd90] sm:$0xff]
    %v977 = vld [vmem:[#allocation6 + $0xd98] sm:$0xff]
    %v978 = vld [vmem:[#allocation6 + $0xda0] sm:$0xff]
    %v979 = vld [vmem:[#allocation6 + $0xda8] sm:$0xff]
    %v980 = vld [vmem:[#allocation6 + $0xdb0] sm:$0xff]
    %v981 = vld [vmem:[#allocation6 + $0xdb8] sm:$0xff]
    %v982 = vld [vmem:[#allocation6 + $0xdc0] sm:$0xff]
    %v983 = vld [vmem:[#allocation6 + $0xdc8] sm:$0xff]
    %v984 = vld [vmem:[#allocation6 + $0xdd0] sm:$0xff]
    %v985 = vld [vmem:[#allocation6 + $0xdd8] sm:$0xff]
    %v986 = vld [vmem:[#allocation6 + $0xde0] sm:$0xff]
    %v987 = vld [vmem:[#allocation6 + $0xde8] sm:$0xff]
    %v988 = vld [vmem:[#allocation6 + $0xdf0] sm:$0xff]
    %v989 = vld [vmem:[#allocation6 + $0xdf8] sm:$0xff]
    %v990 = vld [vmem:[#allocation6 + $0xe00] sm:$0xff]
    %v991 = vld [vmem:[#allocation6 + $0xe08] sm:$0xff]
    %v992 = vld [vmem:[#allocation6 + $0xe10] sm:$0xff]
    %v993 = vld [vmem:[#allocation6 + $0xe18] sm:$0xff]
    %v994 = vld [vmem:[#allocation6 + $0xe20] sm:$0xff]
    %v995 = vld [vmem:[#allocation6 + $0xe28] sm:$0xff]
    %v996 = vld [vmem:[#allocation6 + $0xe30] sm:$0xff]
    %v997 = vld [vmem:[#allocation6 + $0xe38] sm:$0xff]
    %v998 = vld [vmem:[#allocation6 + $0xe40] sm:$0xff]
    %v999 = vld [vmem:[#allocation6 + $0xe48] sm:$0xff]
    %v1000 = vld [vmem:[#allocation6 + $0xe50] sm:$0xff]
    %v1001 = vld [vmem:[#allocation6 + $0xe58] sm:$0xff]
    %v1002 = vld [vmem:[#allocation6 + $0xe60] sm:$0xff]
    %v1003 = vld [vmem:[#allocation6 + $0xe68] sm:$0xff]
    %v1004 = vld [vmem:[#allocation6 + $0xe70] sm:$0xff]
    %v1005 = vld [vmem:[#allocation6 + $0xe78] sm:$0xff]
    %v1006 = vld [vmem:[#allocation6 + $0xe80] sm:$0xff]
    %v1007 = vld [vmem:[#allocation6 + $0xe88] sm:$0xff]
    %v1008 = vld [vmem:[#allocation6 + $0xe90] sm:$0xff]
    %v1009 = vld [vmem:[#allocation6 + $0xe98] sm:$0xff]
    %v1010 = vld [vmem:[#allocation6 + $0xea0] sm:$0xff]
    %v1011 = vld [vmem:[#allocation6 + $0xea8] sm:$0xff]
    %v1012 = vld [vmem:[#allocation6 + $0xeb0] sm:$0xff]
    %v1013 = vld [vmem:[#allocation6 + $0xeb8] sm:$0xff]
    %v1014 = vld [vmem:[#allocation6 + $0xec0] sm:$0xff]
    %v1015 = vld [vmem:[#allocation6 + $0xec8] sm:$0xff]
    %v1016 = vld [vmem:[#allocation6 + $0xed0] sm:$0xff]
    %v1017 = vld [vmem:[#allocation6 + $0xed8] sm:$0xff]
    %v1018 = vld [vmem:[#allocation6 + $0xee0] sm:$0xff]
    %v1019 = vld [vmem:[#allocation6 + $0xee8] sm:$0xff]
    %v1020 = vld [vmem:[#allocation6 + $0xef0] sm:$0xff]
    %v1021 = vld [vmem:[#allocation6 + $0xef8] sm:$0xff]
    %v1022 = vld [vmem:[#allocation6 + $0xf00] sm:$0xff]
    %v1023 = vld [vmem:[#allocation6 + $0xf08] sm:$0xff]
    %v1024 = vld [vmem:[#allocation6 + $0xf10] sm:$0xff]
    %v1025 = vld [vmem:[#allocation6 + $0xf18] sm:$0xff]
    %v1026 = vld [vmem:[#allocation6 + $0xf20] sm:$0xff]
    %v1027 = vld [vmem:[#allocation6 + $0xf28] sm:$0xff]
    %v1028 = vld [vmem:[#allocation6 + $0xf30] sm:$0xff]
    %v1029 = vld [vmem:[#allocation6 + $0xf38] sm:$0xff]
    %v1030 = vld [vmem:[#allocation6 + $0xf40] sm:$0xff]
    %v1031 = vld [vmem:[#allocation6 + $0xf48] sm:$0xff]
    %v1032 = vld [vmem:[#allocation6 + $0xf50] sm:$0xff]
    %v1033 = vld [vmem:[#allocation6 + $0xf58] sm:$0xff]
    %v1034 = vld [vmem:[#allocation6 + $0xf60] sm:$0xff]
    %v1035 = vld [vmem:[#allocation6 + $0xf68] sm:$0xff]
    %v1036 = vld [vmem:[#allocation6 + $0xf70] sm:$0xff]
    %v1037 = vld [vmem:[#allocation6 + $0xf78] sm:$0xff]
    %v1038 = vld [vmem:[#allocation6 + $0xf80] sm:$0xff]
    %v1039 = vld [vmem:[#allocation6 + $0xf88] sm:$0xff]
    %v1040 = vld [vmem:[#allocation6 + $0xf90] sm:$0xff]
    %v1041 = vld [vmem:[#allocation6 + $0xf98] sm:$0xff]
    %v1042 = vld [vmem:[#allocation6 + $0xfa0] sm:$0xff]
    %v1043 = vld [vmem:[#allocation6 + $0xfa8] sm:$0xff]
    %v1044 = vld [vmem:[#allocation6 + $0xfb0] sm:$0xff]
    %v1045 = vld [vmem:[#allocation6 + $0xfb8] sm:$0xff]
    %v1046 = vld [vmem:[#allocation6 + $0xfc0] sm:$0xff]
    %v1047 = vld [vmem:[#allocation6 + $0xfc8] sm:$0xff]
    %v1048 = vld [vmem:[#allocation6 + $0xfd0] sm:$0xff]
    %v1049 = vld [vmem:[#allocation6 + $0xfd8] sm:$0xff]
    %v1050 = vld [vmem:[#allocation6 + $0xfe0] sm:$0xff]
    %v1051 = vld [vmem:[#allocation6 + $0xfe8] sm:$0xff]
    %v1052 = vld [vmem:[#allocation6 + $0xff0] sm:$0xff]
    %v1053 = vld [vmem:[#allocation6 + $0xff8] sm:$0xff]
    %v1054 = vld [vmem:[#allocation6 + $0x1000] sm:$0xff]
    %v1055 = vld [vmem:[#allocation6 + $0x1008] sm:$0xff]
    %v1056 = vld [vmem:[#allocation6 + $0x1010] sm:$0xff]
    %v1057 = vld [vmem:[#allocation6 + $0x1018] sm:$0xff]
    %v1058 = vld [vmem:[#allocation6 + $0x1020] sm:$0xff]
    %v1059 = vld [vmem:[#allocation6 + $0x1028] sm:$0xff]
    %v1060 = vld [vmem:[#allocation6 + $0x1030] sm:$0xff]
    %v1061 = vld [vmem:[#allocation6 + $0x1038] sm:$0xff]
    %v1062 = vld [vmem:[#allocation6 + $0x1040] sm:$0xff]
    %v1063 = vld [vmem:[#allocation6 + $0x1048] sm:$0xff]
    %v1064 = vld [vmem:[#allocation6 + $0x1050] sm:$0xff]
    %v1065 = vld [vmem:[#allocation6 + $0x1058] sm:$0xff]
    %v1066 = vld [vmem:[#allocation6 + $0x1060] sm:$0xff]
    %v1067 = vld [vmem:[#allocation6 + $0x1068] sm:$0xff]
    %v1068 = vld [vmem:[#allocation6 + $0x1070] sm:$0xff]
    %v1069 = vld [vmem:[#allocation6 + $0x1078] sm:$0xff]
    %v1070 = vld [vmem:[#allocation6 + $0x1080] sm:$0xff]
    %v1071 = vld [vmem:[#allocation6 + $0x1088] sm:$0xff]
    %v1072 = vld [vmem:[#allocation6 + $0x1090] sm:$0xff]
    %v1073 = vld [vmem:[#allocation6 + $0x1098] sm:$0xff]
    %v1074 = vld [vmem:[#allocation6 + $0x10a0] sm:$0xff]
    %v1075 = vld [vmem:[#allocation6 + $0x10a8] sm:$0xff]
    %v1076 = vld [vmem:[#allocation6 + $0x10b0] sm:$0xff]
    %v1077 = vld [vmem:[#allocation6 + $0x10b8] sm:$0xff]
    %v1078 = vld [vmem:[#allocation6 + $0x10c0] sm:$0xff]
    %v1079 = vld [vmem:[#allocation6 + $0x10c8] sm:$0xff]
    %v1080 = vld [vmem:[#allocation6 + $0x10d0] sm:$0xff]
    %v1081 = vld [vmem:[#allocation6 + $0x10d8] sm:$0xff]
    %v1082 = vld [vmem:[#allocation6 + $0x10e0] sm:$0xff]
    %v1083 = vld [vmem:[#allocation6 + $0x10e8] sm:$0xff]
    %v1084 = vld [vmem:[#allocation6 + $0x10f0] sm:$0xff]
    %v1085 = vld [vmem:[#allocation6 + $0x10f8] sm:$0xff]
    %v1086 = vld [vmem:[#allocation6 + $0x1100] sm:$0xff]
    %v1087 = vld [vmem:[#allocation6 + $0x1108] sm:$0xff]
    %v1088 = vld [vmem:[#allocation6 + $0x1110] sm:$0xff]
    %v1089 = vld [vmem:[#allocation6 + $0x1118] sm:$0xff]
    %v1090 = vld [vmem:[#allocation6 + $0x1120] sm:$0xff]
    %v1091 = vld [vmem:[#allocation6 + $0x1128] sm:$0xff]
    %v1092 = vld [vmem:[#allocation6 + $0x1130] sm:$0xff]
    %v1093 = vld [vmem:[#allocation6 + $0x1138] sm:$0xff]
    %v1094 = vld [vmem:[#allocation6 + $0x1140] sm:$0xff]
    %v1095 = vld [vmem:[#allocation6 + $0x1148] sm:$0xff]
    %v1096 = vld [vmem:[#allocation6 + $0x1150] sm:$0xff]
    %v1097 = vld [vmem:[#allocation6 + $0x1158] sm:$0xff]
    %v1098 = vld [vmem:[#allocation6 + $0x1160] sm:$0xff]
    %v1099 = vld [vmem:[#allocation6 + $0x1168] sm:$0xff]
    %v1100 = vld [vmem:[#allocation6 + $0x1170] sm:$0xff]
    %v1101 = vld [vmem:[#allocation6 + $0x1178] sm:$0xff]
    %v1102 = vld [vmem:[#allocation6 + $0x1180] sm:$0xff]
    %v1103 = vld [vmem:[#allocation6 + $0x1188] sm:$0xff]
    %v1104 = vld [vmem:[#allocation6 + $0x1190] sm:$0xff]
    %v1105 = vld [vmem:[#allocation6 + $0x1198] sm:$0xff]
    %v1106 = vld [vmem:[#allocation6 + $0x11a0] sm:$0xff]
    %v1107 = vld [vmem:[#allocation6 + $0x11a8] sm:$0xff]
    %v1108 = vld [vmem:[#allocation6 + $0x11b0] sm:$0xff]
    %v1109 = vld [vmem:[#allocation6 + $0x11b8] sm:$0xff]
    %v1110 = vld [vmem:[#allocation6 + $0x11c0] sm:$0xff]
    %v1111 = vld [vmem:[#allocation6 + $0x11c8] sm:$0xff]
    %v1112 = vld [vmem:[#allocation6 + $0x11d0] sm:$0xff]
    %v1113 = vld [vmem:[#allocation6 + $0x11d8] sm:$0xff]
    %v1114 = vld [vmem:[#allocation6 + $0x11e0] sm:$0xff]
    %v1115 = vld [vmem:[#allocation6 + $0x11e8] sm:$0xff]
    %v1116 = vld [vmem:[#allocation6 + $0x11f0] sm:$0xff]
    %v1117 = vld [vmem:[#allocation6 + $0x11f8] sm:$0xff]
    %v1118 = vld [vmem:[#allocation6 + $0x1200] sm:$0xff]
    %v1119 = vld [vmem:[#allocation6 + $0x1208] sm:$0xff]
    %v1120 = vld [vmem:[#allocation6 + $0x1210] sm:$0xff]
    %v1121 = vld [vmem:[#allocation6 + $0x1218] sm:$0xff]
    %v1122 = vld [vmem:[#allocation6 + $0x1220] sm:$0xff]
    %v1123 = vld [vmem:[#allocation6 + $0x1228] sm:$0xff]
    %v1124 = vld [vmem:[#allocation6 + $0x1230] sm:$0xff]
    %v1125 = vld [vmem:[#allocation6 + $0x1238] sm:$0xff]
    %v1126 = vld [vmem:[#allocation6 + $0x1240] sm:$0xff]
    %v1127 = vld [vmem:[#allocation6 + $0x1248] sm:$0xff]
    %v1128 = vld [vmem:[#allocation6 + $0x1250] sm:$0xff]
    %v1129 = vld [vmem:[#allocation6 + $0x1258] sm:$0xff]
    %v1130 = vld [vmem:[#allocation6 + $0x1260] sm:$0xff]
    %v1131 = vld [vmem:[#allocation6 + $0x1268] sm:$0xff]
    %v1132 = vld [vmem:[#allocation6 + $0x1270] sm:$0xff]
    %v1133 = vld [vmem:[#allocation6 + $0x1278] sm:$0xff]
    %v1134 = vld [vmem:[#allocation6 + $0x1280] sm:$0xff]
    %v1135 = vld [vmem:[#allocation6 + $0x1288] sm:$0xff]
    %v1136 = vld [vmem:[#allocation6 + $0x1290] sm:$0xff]
    %v1137 = vld [vmem:[#allocation6 + $0x1298] sm:$0xff]
    %v1138 = vld [vmem:[#allocation6 + $0x12a0] sm:$0xff]
    %v1139 = vld [vmem:[#allocation6 + $0x12a8] sm:$0xff]
    %v1140 = vld [vmem:[#allocation6 + $0x12b0] sm:$0xff]
    %v1141 = vld [vmem:[#allocation6 + $0x12b8] sm:$0xff]
    %v1142 = vld [vmem:[#allocation6 + $0x12c0] sm:$0xff]
    %v1143 = vld [vmem:[#allocation6 + $0x12c8] sm:$0xff]
    %v1144 = vld [vmem:[#allocation6 + $0x12d0] sm:$0xff]
    %v1145 = vld [vmem:[#allocation6 + $0x12d8] sm:$0xff]
    %v1146 = vld [vmem:[#allocation6 + $0x12e0] sm:$0xff]
    %v1147 = vld [vmem:[#allocation6 + $0x12e8] sm:$0xff]
    %v1148 = vld [vmem:[#allocation6 + $0x12f0] sm:$0xff]
    %v1149 = vld [vmem:[#allocation6 + $0x12f8] sm:$0xff]
    %v1150 = vld [vmem:[#allocation6 + $0x1300] sm:$0xff]
    %v1151 = vld [vmem:[#allocation6 + $0x1308] sm:$0xff]
    %v1152 = vld [vmem:[#allocation6 + $0x1310] sm:$0xff]
    %v1153 = vld [vmem:[#allocation6 + $0x1318] sm:$0xff]
    %v1154 = vld [vmem:[#allocation6 + $0x1320] sm:$0xff]
    %v1155 = vld [vmem:[#allocation6 + $0x1328] sm:$0xff]
    %v1156 = vld [vmem:[#allocation6 + $0x1330] sm:$0xff]
    %v1157 = vld [vmem:[#allocation6 + $0x1338] sm:$0xff]
    %v1158 = vld [vmem:[#allocation6 + $0x1340] sm:$0xff]
    %v1159 = vld [vmem:[#allocation6 + $0x1348] sm:$0xff]
    %v1160 = vld [vmem:[#allocation6 + $0x1350] sm:$0xff]
    %v1161 = vld [vmem:[#allocation6 + $0x1358] sm:$0xff]
    %v1162 = vld [vmem:[#allocation6 + $0x1360] sm:$0xff]
    %v1163 = vld [vmem:[#allocation6 + $0x1368] sm:$0xff]
    %v1164 = vld [vmem:[#allocation6 + $0x1370] sm:$0xff]
    %v1165 = vld [vmem:[#allocation6 + $0x1378] sm:$0xff]
    %v1166 = vld [vmem:[#allocation6 + $0x1380] sm:$0xff]
    %v1167 = vld [vmem:[#allocation6 + $0x1388] sm:$0xff]
    %v1168 = vld [vmem:[#allocation6 + $0x1390] sm:$0xff]
    %v1169 = vld [vmem:[#allocation6 + $0x1398] sm:$0xff]
    %v1170 = vld [vmem:[#allocation6 + $0x13a0] sm:$0xff]
    %v1171 = vld [vmem:[#allocation6 + $0x13a8] sm:$0xff]
    %v1172 = vld [vmem:[#allocation6 + $0x13b0] sm:$0xff]
    %v1173 = vld [vmem:[#allocation6 + $0x13b8] sm:$0xff]
    %v1174 = vld [vmem:[#allocation6 + $0x13c0] sm:$0xff]
    %v1175 = vld [vmem:[#allocation6 + $0x13c8] sm:$0xff]
    %v1176 = vld [vmem:[#allocation6 + $0x13d0] sm:$0xff]
    %v1177 = vld [vmem:[#allocation6 + $0x13d8] sm:$0xff]
    %v1178 = vld [vmem:[#allocation6 + $0x13e0] sm:$0xff]
    %v1179 = vld [vmem:[#allocation6 + $0x13e8] sm:$0xff]
    %v1180 = vld [vmem:[#allocation6 + $0x13f0] sm:$0xff]
    %v1181 = vld [vmem:[#allocation6 + $0x13f8] sm:$0xff]
    %v1182 = vld [vmem:[#allocation6 + $0x1400] sm:$0xff]
    %v1183 = vld [vmem:[#allocation6 + $0x1408] sm:$0xff]
    %v1184 = vld [vmem:[#allocation6 + $0x1410] sm:$0xff]
    %v1185 = vld [vmem:[#allocation6 + $0x1418] sm:$0xff]
    %v1186 = vld [vmem:[#allocation6 + $0x1420] sm:$0xff]
    %v1187 = vld [vmem:[#allocation6 + $0x1428] sm:$0xff]
    %v1188 = vld [vmem:[#allocation6 + $0x1430] sm:$0xff]
    %v1189 = vld [vmem:[#allocation6 + $0x1438] sm:$0xff]
    %v1190 = vld [vmem:[#allocation6 + $0x1440] sm:$0xff]
    %v1191 = vld [vmem:[#allocation6 + $0x1448] sm:$0xff]
    %v1192 = vld [vmem:[#allocation6 + $0x1450] sm:$0xff]
    %v1193 = vld [vmem:[#allocation6 + $0x1458] sm:$0xff]
    %v1194 = vld [vmem:[#allocation6 + $0x1460] sm:$0xff]
    %v1195 = vld [vmem:[#allocation6 + $0x1468] sm:$0xff]
    %v1196 = vld [vmem:[#allocation6 + $0x1470] sm:$0xff]
    %v1197 = vld [vmem:[#allocation6 + $0x1478] sm:$0xff]
    %v1198 = vld [vmem:[#allocation6 + $0x1480] sm:$0xff]
    %v1199 = vld [vmem:[#allocation6 + $0x1488] sm:$0xff]
    %v1200 = vld [vmem:[#allocation6 + $0x1490] sm:$0xff]
    %v1201 = vld [vmem:[#allocation6 + $0x1498] sm:$0xff]
    %v1202 = vld [vmem:[#allocation6 + $0x14a0] sm:$0xff]
    %v1203 = vld [vmem:[#allocation6 + $0x14a8] sm:$0xff]
    %v1204 = vld [vmem:[#allocation6 + $0x14b0] sm:$0xff]
    %v1205 = vld [vmem:[#allocation6 + $0x14b8] sm:$0xff]
    %v1206 = vld [vmem:[#allocation6 + $0x14c0] sm:$0xff]
    %v1207 = vld [vmem:[#allocation6 + $0x14c8] sm:$0xff]
    %v1208 = vld [vmem:[#allocation6 + $0x14d0] sm:$0xff]
    %v1209 = vld [vmem:[#allocation6 + $0x14d8] sm:$0xff]
    %v1210 = vld [vmem:[#allocation6 + $0x14e0] sm:$0xff]
    %v1211 = vld [vmem:[#allocation6 + $0x14e8] sm:$0xff]
    %v1212 = vld [vmem:[#allocation6 + $0x14f0] sm:$0xff]
    %v1213 = vld [vmem:[#allocation6 + $0x14f8] sm:$0xff]
    %v1214 = vld [vmem:[#allocation6 + $0x1500] sm:$0xff]
    %v1215 = vld [vmem:[#allocation6 + $0x1508] sm:$0xff]
    %v1216 = vld [vmem:[#allocation6 + $0x1510] sm:$0xff]
    %v1217 = vld [vmem:[#allocation6 + $0x1518] sm:$0xff]
    %v1218 = vld [vmem:[#allocation6 + $0x1520] sm:$0xff]
    %v1219 = vld [vmem:[#allocation6 + $0x1528] sm:$0xff]
    %v1220 = vld [vmem:[#allocation6 + $0x1530] sm:$0xff]
    %v1221 = vld [vmem:[#allocation6 + $0x1538] sm:$0xff]
    %v1222 = vld [vmem:[#allocation6 + $0x1540] sm:$0xff]
    %v1223 = vld [vmem:[#allocation6 + $0x1548] sm:$0xff]
    %v1224 = vld [vmem:[#allocation6 + $0x1550] sm:$0xff]
    %v1225 = vld [vmem:[#allocation6 + $0x1558] sm:$0xff]
    %v1226 = vld [vmem:[#allocation6 + $0x1560] sm:$0xff]
    %v1227 = vld [vmem:[#allocation6 + $0x1568] sm:$0xff]
    %v1228 = vld [vmem:[#allocation6 + $0x1570] sm:$0xff]
    %v1229 = vld [vmem:[#allocation6 + $0x1578] sm:$0xff]
    %v1230 = vld [vmem:[#allocation6 + $0x1580] sm:$0xff]
    %v1231 = vld [vmem:[#allocation6 + $0x1588] sm:$0xff]
    %v1232 = vld [vmem:[#allocation6 + $0x1590] sm:$0xff]
    %v1233 = vld [vmem:[#allocation6 + $0x1598] sm:$0xff]
    %v1234 = vld [vmem:[#allocation6 + $0x15a0] sm:$0xff]
    %v1235 = vld [vmem:[#allocation6 + $0x15a8] sm:$0xff]
    %v1236 = vld [vmem:[#allocation6 + $0x15b0] sm:$0xff]
    %v1237 = vld [vmem:[#allocation6 + $0x15b8] sm:$0xff]
    %v1238 = vld [vmem:[#allocation6 + $0x15c0] sm:$0xff]
    %v1239 = vld [vmem:[#allocation6 + $0x15c8] sm:$0xff]
    %v1240 = vld [vmem:[#allocation6 + $0x15d0] sm:$0xff]
    %v1241 = vld [vmem:[#allocation6 + $0x15d8] sm:$0xff]
    %v1242 = vld [vmem:[#allocation6 + $0x15e0] sm:$0xff]
    %v1243 = vld [vmem:[#allocation6 + $0x15e8] sm:$0xff]
    %v1244 = vld [vmem:[#allocation6 + $0x15f0] sm:$0xff]
    %v1245 = vld [vmem:[#allocation6 + $0x15f8] sm:$0xff]
    %v1246 = vld [vmem:[#allocation6 + $0x1600] sm:$0xff]
    %v1247 = vld [vmem:[#allocation6 + $0x1608] sm:$0xff]
    %v1248 = vld [vmem:[#allocation6 + $0x1610] sm:$0xff]
    %v1249 = vld [vmem:[#allocation6 + $0x1618] sm:$0xff]
    %v1250 = vld [vmem:[#allocation6 + $0x1620] sm:$0xff]
    %v1251 = vld [vmem:[#allocation6 + $0x1628] sm:$0xff]
    %v1252 = vld [vmem:[#allocation6 + $0x1630] sm:$0xff]
    %v1253 = vld [vmem:[#allocation6 + $0x1638] sm:$0xff]
    %v1254 = vld [vmem:[#allocation6 + $0x1640] sm:$0xff]
    %v1255 = vld [vmem:[#allocation6 + $0x1648] sm:$0xff]
    %v1256 = vld [vmem:[#allocation6 + $0x1650] sm:$0xff]
    %v1257 = vld [vmem:[#allocation6 + $0x1658] sm:$0xff]
    %v1258 = vld [vmem:[#allocation6 + $0x1660] sm:$0xff]
    %v1259 = vld [vmem:[#allocation6 + $0x1668] sm:$0xff]
    %v1260 = vld [vmem:[#allocation6 + $0x1670] sm:$0xff]
    %v1261 = vld [vmem:[#allocation6 + $0x1678] sm:$0xff]
    %v1262 = vld [vmem:[#allocation6 + $0x1680] sm:$0xff]
    %v1263 = vld [vmem:[#allocation6 + $0x1688] sm:$0xff]
    %v1264 = vld [vmem:[#allocation6 + $0x1690] sm:$0xff]
    %v1265 = vld [vmem:[#allocation6 + $0x1698] sm:$0xff]
    %v1266 = vld [vmem:[#allocation6 + $0x16a0] sm:$0xff]
    %v1267 = vld [vmem:[#allocation6 + $0x16a8] sm:$0xff]
    %v1268 = vld [vmem:[#allocation6 + $0x16b0] sm:$0xff]
    %v1269 = vld [vmem:[#allocation6 + $0x16b8] sm:$0xff]
    %v1270 = vld [vmem:[#allocation6 + $0x16c0] sm:$0xff]
    %v1271 = vld [vmem:[#allocation6 + $0x16c8] sm:$0xff]
    %v1272 = vld [vmem:[#allocation6 + $0x16d0] sm:$0xff]
    %v1273 = vld [vmem:[#allocation6 + $0x16d8] sm:$0xff]
    %v1274 = vld [vmem:[#allocation6 + $0x16e0] sm:$0xff]
    %v1275 = vld [vmem:[#allocation6 + $0x16e8] sm:$0xff]
    %v1276 = vld [vmem:[#allocation6 + $0x16f0] sm:$0xff]
    %v1277 = vld [vmem:[#allocation6 + $0x16f8] sm:$0xff]
    %v1278 = vld [vmem:[#allocation6 + $0x1700] sm:$0xff]
    %v1279 = vld [vmem:[#allocation6 + $0x1708] sm:$0xff]
    %v1280 = vld [vmem:[#allocation6 + $0x1710] sm:$0xff]
    %v1281 = vld [vmem:[#allocation6 + $0x1718] sm:$0xff]
    %v1282 = vld [vmem:[#allocation6 + $0x1720] sm:$0xff]
    %v1283 = vld [vmem:[#allocation6 + $0x1728] sm:$0xff]
    %v1284 = vld [vmem:[#allocation6 + $0x1730] sm:$0xff]
    %v1285 = vld [vmem:[#allocation6 + $0x1738] sm:$0xff]
    %v1286 = vld [vmem:[#allocation6 + $0x1740] sm:$0xff]
    %v1287 = vld [vmem:[#allocation6 + $0x1748] sm:$0xff]
    %v1288 = vld [vmem:[#allocation6 + $0x1750] sm:$0xff]
    %v1289 = vld [vmem:[#allocation6 + $0x1758] sm:$0xff]
    %v1290 = vld [vmem:[#allocation6 + $0x1760] sm:$0xff]
    %v1291 = vld [vmem:[#allocation6 + $0x1768] sm:$0xff]
    %v1292 = vld [vmem:[#allocation6 + $0x1770] sm:$0xff]
    %v1293 = vld [vmem:[#allocation6 + $0x1778] sm:$0xff]
    %v1294 = vld [vmem:[#allocation6 + $0x1780] sm:$0xff]
    %v1295 = vld [vmem:[#allocation6 + $0x1788] sm:$0xff]
    %v1296 = vld [vmem:[#allocation6 + $0x1790] sm:$0xff]
    %v1297 = vld [vmem:[#allocation6 + $0x1798] sm:$0xff]
    %v1298 = vld [vmem:[#allocation6 + $0x17a0] sm:$0xff]
    %v1299 = vld [vmem:[#allocation6 + $0x17a8] sm:$0xff]
    %v1300 = vld [vmem:[#allocation6 + $0x17b0] sm:$0xff]
    %v1301 = vld [vmem:[#allocation6 + $0x17b8] sm:$0xff]
    %v1302 = vld [vmem:[#allocation6 + $0x17c0] sm:$0xff]
    %v1303 = vld [vmem:[#allocation6 + $0x17c8] sm:$0xff]
    %v1304 = vld [vmem:[#allocation6 + $0x17d0] sm:$0xff]
    %v1305 = vld [vmem:[#allocation6 + $0x17d8] sm:$0xff]
    %v1306 = vld [vmem:[#allocation6 + $0x17e0] sm:$0xff]
    %v1307 = vld [vmem:[#allocation6 + $0x17e8] sm:$0xff]
    %v1308 = vld [vmem:[#allocation6 + $0x17f0] sm:$0xff]
    %v1309 = vld [vmem:[#allocation6 + $0x17f8] sm:$0xff]
    %v1310 = vld [vmem:[#allocation6 + $0x1800] sm:$0xff]
    %v1311 = vld [vmem:[#allocation6 + $0x1808] sm:$0xff]
    %v1312 = vld [vmem:[#allocation6 + $0x1810] sm:$0xff]
    %v1313 = vld [vmem:[#allocation6 + $0x1818] sm:$0xff]
    %v1314 = vld [vmem:[#allocation6 + $0x1820] sm:$0xff]
    %v1315 = vld [vmem:[#allocation6 + $0x1828] sm:$0xff]
    %v1316 = vld [vmem:[#allocation6 + $0x1830] sm:$0xff]
    %v1317 = vld [vmem:[#allocation6 + $0x1838] sm:$0xff]
    %v1318 = vld [vmem:[#allocation6 + $0x1840] sm:$0xff]
    %v1319 = vld [vmem:[#allocation6 + $0x1848] sm:$0xff]
    %v1320 = vld [vmem:[#allocation6 + $0x1850] sm:$0xff]
    %v1321 = vld [vmem:[#allocation6 + $0x1858] sm:$0xff]
    %v1322 = vld [vmem:[#allocation6 + $0x1860] sm:$0xff]
    %v1323 = vld [vmem:[#allocation6 + $0x1868] sm:$0xff]
    %v1324 = vld [vmem:[#allocation6 + $0x1870] sm:$0xff]
    %v1325 = vld [vmem:[#allocation6 + $0x1878] sm:$0xff]
    %v1326 = vld [vmem:[#allocation7] sm:$0xff]
    %v1328 = vlaneseq
    %v1329 = vshrl.u32 %v1328, 7
    %v1330 = vsub.s32 0, %v1329
    %v1331 = vrot.slane %v1326, %v1330
    %v1332 = vlaneseq
    %v1333 = vshrl.u32 %v1332, 7
    %v1334 = vsub.s32 1, %v1333
    %v1335 = vrot.slane %v1326, %v1334
    %v1336 = vlaneseq
    %v1337 = vshrl.u32 %v1336, 7
    %v1338 = vsub.s32 2, %v1337
    %v1339 = vrot.slane %v1326, %v1338
    %v1340 = vlaneseq
    %v1341 = vshrl.u32 %v1340, 7
    %v1342 = vsub.s32 3, %v1341
    %v1343 = vrot.slane %v1326, %v1342
    %v1344 = vlaneseq
    %v1345 = vshrl.u32 %v1344, 7
    %v1346 = vsub.s32 4, %v1345
    %v1347 = vrot.slane %v1326, %v1346
    %v1348 = vlaneseq
    %v1349 = vshrl.u32 %v1348, 7
    %v1350 = vsub.s32 5, %v1349
    %v1351 = vrot.slane %v1326, %v1350
    %v1352 = vlaneseq
    %v1353 = vshrl.u32 %v1352, 7
    %v1354 = vsub.s32 6, %v1353
    %v1355 = vrot.slane %v1326, %v1354
    %1363 = vmatprep.subr.mxu0 %v543
    %1364 = vmatpush1.msra.mxu0 %v542
    %1365 = vmatprep.subr.mxu0 %v550
    %1366 = vmatpush1.msra.mxu0 %v549
    %1367 = vmatprep.subr.mxu0 %v557
    %1368 = vmatpush1.msra.mxu0 %v556
    %1369 = vmatprep.subr.mxu0 %v564
    %1370 = vmatpush1.msra.mxu0 %v563
    %1371 = vmatprep.subr.mxu0 %v571
    %1372 = vmatpush1.msra.mxu0 %v570
    %1373 = vmatprep.subr.mxu0 %v578
    %1374 = vmatpush1.msra.mxu0 %v577
    %1375 = vmatprep.subr.mxu0 %v585
    %1376 = vmatpush1.msra.mxu0 %v584
    %1377 = vmatprep.subr.mxu0 %v592
    %1378 = vmatpush1.msra.mxu0 %v591
    %1379 = vmatprep.subr.mxu0 %v599
    %1380 = vmatpush1.msra.mxu0 %v598
    %1381 = vmatprep.subr.mxu0 %v606
    %1382 = vmatpush1.msra.mxu0 %v605
    %1383 = vmatprep.subr.mxu0 %v613
    %1384 = vmatpush1.msra.mxu0 %v612
    %1385 = vmatprep.subr.mxu0 %v620
    %1386 = vmatpush1.msra.mxu0 %v619
    %1387 = vmatprep.subr.mxu0 %v627
    %1388 = vmatpush1.msra.mxu0 %v626
    %1389 = vmatprep.subr.mxu0 %v634
    %1390 = vmatpush1.msra.mxu0 %v633
    %1391 = vmatprep.subr.mxu0 %v641
    %1392 = vmatpush1.msra.mxu0 %v640
    %1393 = vmatprep.subr.mxu0 %v648
    %1394 = vmatpush1.msra.mxu0 %v647
    %1395 = vmatprep.subr.mxu0 %v655
    %1396 = vmatpush1.msra.mxu0 %v654
    %1397 = vmatprep.subr.mxu0 %v662
    %1398 = vmatpush1.msra.mxu0 %v661
    %1399 = vmatprep.subr.mxu0 %v669
    %1400 = vmatpush1.msra.mxu0 %v668
    %1401 = vmatprep.subr.mxu0 %v676
    %1402 = vmatpush1.msra.mxu0 %v675
    %1403 = vmatprep.subr.mxu0 %v683
    %1404 = vmatpush1.msra.mxu0 %v682
    %1405 = vmatprep.subr.mxu0 %v690
    %1406 = vmatpush1.msra.mxu0 %v689
    %1407 = vmatprep.subr.mxu0 %v697
    %1408 = vmatpush1.msra.mxu0 %v696
    %1409 = vmatprep.subr.mxu0 %v704
    %1410 = vmatpush1.msra.mxu0 %v703
    %1411 = vmatprep.subr.mxu0 %v711
    %1412 = vmatpush1.msra.mxu0 %v710
    %1413 = vmatprep.subr.mxu0 %v718
    %1414 = vmatpush1.msra.mxu0 %v717
    %1415 = vmatprep.subr.mxu0 %v725
    %1416 = vmatpush1.msra.mxu0 %v724
    %1417 = vmatprep.subr.mxu0 %v732
    %1418 = vmatpush1.msra.mxu0 %v731
    %1419 = vmatprep.subr.mxu0 %v739
    %1420 = vmatpush1.msra.mxu0 %v738
    %1421 = vmatprep.subr.mxu0 %v746
    %1422 = vmatpush1.msra.mxu0 %v745
    %1423 = vmatprep.subr.mxu0 %v753
    %1424 = vmatpush1.msra.mxu0 %v752
    %1425 = vmatprep.subr.mxu0 %v760
    %1426 = vmatpush1.msra.mxu0 %v759
    %1427 = vmatprep.mubr.f32.mxu0 %v536
    %1428 = vmatmul.mubr.f32.gmra.mrb[0].mxu0 %v535
    %v1429 = vpop.f32.mrb[0].mxu0
    %v1430 = vadd.f32 %v1331, %v1429
    %v1431 = vpop.f32.mrb[0].mxu0
    %v1432 = vadd.f32 %v1335, %v1431
    %1433 = vdwg.mxu0
    %1434 = vmatprep.subr.mxu0 %v767
    %1435 = vmatpush1.msra.mxu0 %v766
    %1436 = vmatprep.subr.mxu0 %v774
    %1437 = vmatpush1.msra.mxu0 %v773
    %1438 = vmatprep.subr.mxu0 %v781
    %1439 = vmatpush1.msra.mxu0 %v780
    %1440 = vmatprep.subr.mxu0 %v788
    %1441 = vmatpush1.msra.mxu0 %v787
    %1442 = vmatprep.subr.mxu0 %v795
    %1443 = vmatpush1.msra.mxu0 %v794
    %1444 = vmatprep.subr.mxu0 %v802
    %1445 = vmatpush1.msra.mxu0 %v801
    %1446 = vmatprep.subr.mxu0 %v809
    %1447 = vmatpush1.msra.mxu0 %v808
    %1448 = vmatprep.subr.mxu0 %v816
    %1449 = vmatpush1.msra.mxu0 %v815
    %1450 = vmatprep.subr.mxu0 %v823
    %1451 = vmatpush1.msra.mxu0 %v822
    %1452 = vmatprep.subr.mxu0 %v830
    %1453 = vmatpush1.msra.mxu0 %v829
    %1454 = vmatprep.subr.mxu0 %v837
    %1455 = vmatpush1.msra.mxu0 %v836
    %1456 = vmatprep.subr.mxu0 %v844
    %1457 = vmatpush1.msra.mxu0 %v843
    %1458 = vmatprep.subr.mxu0 %v851
    %1459 = vmatpush1.msra.mxu0 %v850
    %1460 = vmatprep.subr.mxu0 %v858
    %1461 = vmatpush1.msra.mxu0 %v857
    %1462 = vmatprep.subr.mxu0 %v865
    %1463 = vmatpush1.msra.mxu0 %v864
    %1464 = vmatprep.subr.mxu0 %v872
    %1465 = vmatpush1.msra.mxu0 %v871
    %1466 = vmatprep.subr.mxu0 %v879
    %1467 = vmatpush1.msra.mxu0 %v878
    %1468 = vmatprep.subr.mxu0 %v886
    %1469 = vmatpush1.msra.mxu0 %v885
    %1470 = vmatprep.subr.mxu0 %v893
    %1471 = vmatpush1.msra.mxu0 %v892
    %1472 = vmatprep.subr.mxu0 %v900
    %1473 = vmatpush1.msra.mxu0 %v899
    %1474 = vmatprep.subr.mxu0 %v907
    %1475 = vmatpush1.msra.mxu0 %v906
    %1476 = vmatprep.subr.mxu0 %v914
    %1477 = vmatpush1.msra.mxu0 %v913
    %1478 = vmatprep.subr.mxu0 %v921
    %1479 = vmatpush1.msra.mxu0 %v920
    %1480 = vmatprep.subr.mxu0 %v928
    %1481 = vmatpush1.msra.mxu0 %v927
    %1482 = vmatprep.subr.mxu0 %v935
    %1483 = vmatpush1.msra.mxu0 %v934
    %1484 = vmatprep.subr.mxu0 %v942
    %1485 = vmatpush1.msra.mxu0 %v941
    %1486 = vmatprep.subr.mxu0 %v949
    %1487 = vmatpush1.msra.mxu0 %v948
    %1488 = vmatprep.subr.mxu0 %v956
    %1489 = vmatpush1.msra.mxu0 %v955
    %1490 = vmatprep.subr.mxu0 %v963
    %1491 = vmatpush1.msra.mxu0 %v962
    %1492 = vmatprep.subr.mxu0 %v970
    %1493 = vmatpush1.msra.mxu0 %v969
    %1494 = vmatprep.subr.mxu0 %v977
    %1495 = vmatpush1.msra.mxu0 %v976
    %1496 = vmatprep.subr.mxu0 %v984
    %1497 = vmatpush1.msra.mxu0 %v983
    %1498 = vmatprep.mubr.f32.mxu0 %v538
    %1499 = vmatmul.mubr.f32.gmra.mrb[0].mxu0 %v537
    %v1500 = vpop.f32.mrb[0].mxu0
    %v1501 = vadd.f32 %v1430, %v1500
    %v1502 = vpop.f32.mrb[0].mxu0
    %v1503 = vadd.f32 %v1432, %v1502
    %1504 = vdwg.mxu0
    %1505 = vmatprep.subr.mxu0 %v991
    %1506 = vmatpush1.msra.mxu0 %v990
    %1507 = vmatprep.subr.mxu0 %v998
    %1508 = vmatpush1.msra.mxu0 %v997
    %1509 = vmatprep.subr.mxu0 %v1005
    %1510 = vmatpush1.msra.mxu0 %v1004
    %1511 = vmatprep.subr.mxu0 %v1012
    %1512 = vmatpush1.msra.mxu0 %v1011
    %1513 = vmatprep.subr.mxu0 %v1019
    %1514 = vmatpush1.msra.mxu0 %v1018
    %1515 = vmatprep.subr.mxu0 %v1026
    %1516 = vmatpush1.msra.mxu0 %v1025
    %1517 = vmatprep.subr.mxu0 %v1033
    %1518 = vmatpush1.msra.mxu0 %v1032
    %1519 = vmatprep.subr.mxu0 %v1040
    %1520 = vmatpush1.msra.mxu0 %v1039
    %1521 = vmatprep.subr.mxu0 %v1047
    %1522 = vmatpush1.msra.mxu0 %v1046
    %1523 = vmatprep.subr.mxu0 %v1054
    %1524 = vmatpush1.msra.mxu0 %v1053
    %1525 = vmatprep.subr.mxu0 %v1061
    %1526 = vmatpush1.msra.mxu0 %v1060
    %1527 = vmatprep.subr.mxu0 %v1068
    %1528 = vmatpush1.msra.mxu0 %v1067
    %1529 = vmatprep.subr.mxu0 %v1075
    %1530 = vmatpush1.msra.mxu0 %v1074
    %1531 = vmatprep.subr.mxu0 %v1082
    %1532 = vmatpush1.msra.mxu0 %v1081
    %1533 = vmatprep.subr.mxu0 %v1089
    %1534 = vmatpush1.msra.mxu0 %v1088
    %1535 = vmatprep.subr.mxu0 %v1096
    %1536 = vmatpush1.msra.mxu0 %v1095
    %1537 = vmatprep.subr.mxu0 %v1103
    %1538 = vmatpush1.msra.mxu0 %v1102
    %1539 = vmatprep.subr.mxu0 %v1110
    %1540 = vmatpush1.msra.mxu0 %v1109
    %1541 = vmatprep.subr.mxu0 %v1117
    %1542 = vmatpush1.msra.mxu0 %v1116
    %1543 = vmatprep.subr.mxu0 %v1124
    %1544 = vmatpush1.msra.mxu0 %v1123
    %1545 = vmatprep.subr.mxu0 %v1131
    %1546 = vmatpush1.msra.mxu0 %v1130
    %1547 = vmatprep.subr.mxu0 %v1138
    %1548 = vmatpush1.msra.mxu0 %v1137
    %1549 = vmatprep.subr.mxu0 %v1145
    %1550 = vmatpush1.msra.mxu0 %v1144
    %1551 = vmatprep.subr.mxu0 %v1152
    %1552 = vmatpush1.msra.mxu0 %v1151
    %1553 = vmatprep.subr.mxu0 %v1159
    %1554 = vmatpush1.msra.mxu0 %v1158
    %1555 = vmatprep.subr.mxu0 %v1166
    %1556 = vmatpush1.msra.mxu0 %v1165
    %1557 = vmatprep.subr.mxu0 %v1173
    %1558 = vmatpush1.msra.mxu0 %v1172
    %1559 = vmatprep.subr.mxu0 %v1180
    %1560 = vmatpush1.msra.mxu0 %v1179
    %1561 = vmatprep.subr.mxu0 %v1187
    %1562 = vmatpush1.msra.mxu0 %v1186
    %1563 = vmatprep.subr.mxu0 %v1194
    %1564 = vmatpush1.msra.mxu0 %v1193
    %1565 = vmatprep.subr.mxu0 %v1201
    %1566 = vmatpush1.msra.mxu0 %v1200
    %1567 = vmatprep.subr.mxu0 %v1208
    %1568 = vmatpush1.msra.mxu0 %v1207
    %1569 = vmatprep.mubr.f32.mxu0 %v540
    %1570 = vmatmul.mubr.f32.gmra.mrb[0].mxu0 %v539
    %v1571 = vpop.f32.mrb[0].mxu0
    %v1572 = vadd.f32 %v1501, %v1571
    %v1573 = vpop.f32.mrb[0].mxu0
    %v1574 = vadd.f32 %v1503, %v1573
    %1575 = vdwg.mxu0
    %1576 = vmatprep.subr.mxu0 %v1215
    %1577 = vmatpush1.msra.mxu0 %v1214
    %1578 = vmatprep.subr.mxu0 %v1222
    %1579 = vmatpush1.msra.mxu0 %v1221
    %1580 = vmatprep.subr.mxu0 %v1229
    %1581 = vmatpush1.msra.mxu0 %v1228
    %1582 = vmatprep.subr.mxu0 %v1236
    %1583 = vmatpush1.msra.mxu0 %v1235
    %1584 = vmatprep.subr.mxu0 %v1243
    %1585 = vmatpush1.msra.mxu0 %v1242
    %1586 = vmatprep.subr.mxu0 %v1250
    %1587 = vmatpush1.msra.mxu0 %v1249
    %1588 = vmatprep.subr.mxu0 %v1257
    %1589 = vmatpush1.msra.mxu0 %v1256
    %1590 = vmatprep.subr.mxu0 %v1264
    %1591 = vmatpush1.msra.mxu0 %v1263
    %1592 = vmatprep.subr.mxu0 %v1271
    %1593 = vmatpush1.msra.mxu0 %v1270
    %1594 = vmatprep.subr.mxu0 %v1278
    %1595 = vmatpush1.msra.mxu0 %v1277
    %1596 = vmatprep.subr.mxu0 %v1285
    %1597 = vmatpush1.msra.mxu0 %v1284
    %1598 = vmatprep.subr.mxu0 %v1292
    %1599 = vmatpush1.msra.mxu0 %v1291
    %1600 = vmatprep.subr.mxu0 %v1299
    %1601 = vmatpush1.msra.mxu0 %v1298
    %1602 = vmatprep.subr.mxu0 %v1306
    %1603 = vmatpush1.msra.mxu0 %v1305
    %1604 = vmatprep.subr.mxu0 %v1313
    %1605 = vmatpush1.msra.mxu0 %v1312
    %1606 = vmatprep.subr.mxu0 %v1320
    %1607 = vmatpush1.msra.mxu0 %v1319
    %1608 = vmatprep.subr.mxu0 0.0
    %1609 = vmatpush1.msra.mxu0 0.0
    %1610 = vmatprep.subr.mxu0 0.0
    %1611 = vmatpush1.msra.mxu0 0.0
    %1612 = vmatprep.subr.mxu0 0.0
    %1613 = vmatpush1.msra.mxu0 0.0
    %1614 = vmatprep.subr.mxu0 0.0
    %1615 = vmatpush1.msra.mxu0 0.0
    %1616 = vmatprep.subr.mxu0 0.0
    %1617 = vmatpush1.msra.mxu0 0.0
    %1618 = vmatprep.subr.mxu0 0.0
    %1619 = vmatpush1.msra.mxu0 0.0
    %1620 = vmatprep.subr.mxu0 0.0
    %1621 = vmatpush1.msra.mxu0 0.0
    %1622 = vmatprep.subr.mxu0 0.0
    %1623 = vmatpush1.msra.mxu0 0.0
    %1624 = vmatprep.subr.mxu0 0.0
    %1625 = vmatpush1.msra.mxu0 0.0
    %1626 = vmatprep.subr.mxu0 0.0
    %1627 = vmatpush1.msra.mxu0 0.0
    %1628 = vmatprep.subr.mxu0 0.0
    %1629 = vmatpush1.msra.mxu0 0.0
    %1630 = vmatprep.subr.mxu0 0.0
    %1631 = vmatpush1.msra.mxu0 0.0
    %1632 = vmatprep.subr.mxu0 0.0
    %1633 = vmatpush1.msra.mxu0 0.0
    %1634 = vmatprep.subr.mxu0 0.0
    %1635 = vmatpush1.msra.mxu0 0.0
    %1636 = vmatprep.subr.mxu0 0.0
    %1637 = vmatpush1.msra.mxu0 0.0
    %1638 = vmatprep.subr.mxu0 0.0
    %1639 = vmatpush1.msra.mxu0 0.0
    %1640 = vmatprep.mubr.f32.mxu0 0.0
    %1641 = vmatmul.mubr.f32.gmra.mrb[0].mxu0 %v541
    %v1642 = vpop.f32.mrb[0].mxu0
    %v1643 = vadd.f32 %v1572, %v1642
    %v1644 = vpop.f32.mrb[0].mxu0
    %v1645 = vadd.f32 %v1574, %v1644
    %1646 = vdwg.mxu0
    %1647 = vmatprep.subr.mxu0 %v545
    %1648 = vmatpush1.msra.mxu0 %v544
    %1649 = vmatprep.subr.mxu0 %v552
    %1650 = vmatpush1.msra.mxu0 %v551
    %1651 = vmatprep.subr.mxu0 %v559
    %1652 = vmatpush1.msra.mxu0 %v558
    %1653 = vmatprep.subr.mxu0 %v566
    %1654 = vmatpush1.msra.mxu0 %v565
    %1655 = vmatprep.subr.mxu0 %v573
    %1656 = vmatpush1.msra.mxu0 %v572
    %1657 = vmatprep.subr.mxu0 %v580
    %1658 = vmatpush1.msra.mxu0 %v579
    %1659 = vmatprep.subr.mxu0 %v587
    %1660 = vmatpush1.msra.mxu0 %v586
    %1661 = vmatprep.subr.mxu0 %v594
    %1662 = vmatpush1.msra.mxu0 %v593
    %1663 = vmatprep.subr.mxu0 %v601
    %1664 = vmatpush1.msra.mxu0 %v600
    %1665 = vmatprep.subr.mxu0 %v608
    %1666 = vmatpush1.msra.mxu0 %v607
    %1667 = vmatprep.subr.mxu0 %v615
    %1668 = vmatpush1.msra.mxu0 %v614
    %1669 = vmatprep.subr.mxu0 %v622
    %1670 = vmatpush1.msra.mxu0 %v621
    %1671 = vmatprep.subr.mxu0 %v629
    %1672 = vmatpush1.msra.mxu0 %v628
    %1673 = vmatprep.subr.mxu0 %v636
    %1674 = vmatpush1.msra.mxu0 %v635
    %1675 = vmatprep.subr.mxu0 %v643
    %1676 = vmatpush1.msra.mxu0 %v642
    %1677 = vmatprep.subr.mxu0 %v650
    %1678 = vmatpush1.msra.mxu0 %v649
    %1679 = vmatprep.subr.mxu0 %v657
    %1680 = vmatpush1.msra.mxu0 %v656
    %1681 = vmatprep.subr.mxu0 %v664
    %1682 = vmatpush1.msra.mxu0 %v663
    %1683 = vmatprep.subr.mxu0 %v671
    %1684 = vmatpush1.msra.mxu0 %v670
    %1685 = vmatprep.subr.mxu0 %v678
    %1686 = vmatpush1.msra.mxu0 %v677
    %1687 = vmatprep.subr.mxu0 %v685
    %1688 = vmatpush1.msra.mxu0 %v684
    %1689 = vmatprep.subr.mxu0 %v692
    %1690 = vmatpush1.msra.mxu0 %v691
    %1691 = vmatprep.subr.mxu0 %v699
    %1692 = vmatpush1.msra.mxu0 %v698
    %1693 = vmatprep.subr.mxu0 %v706
    %1694 = vmatpush1.msra.mxu0 %v705
    %1695 = vmatprep.subr.mxu0 %v713
    %1696 = vmatpush1.msra.mxu0 %v712
    %1697 = vmatprep.subr.mxu0 %v720
    %1698 = vmatpush1.msra.mxu0 %v719
    %1699 = vmatprep.subr.mxu0 %v727
    %1700 = vmatpush1.msra.mxu0 %v726
    %1701 = vmatprep.subr.mxu0 %v734
    %1702 = vmatpush1.msra.mxu0 %v733
    %1703 = vmatprep.subr.mxu0 %v741
    %1704 = vmatpush1.msra.mxu0 %v740
    %1705 = vmatprep.subr.mxu0 %v748
    %1706 = vmatpush1.msra.mxu0 %v747
    %1707 = vmatprep.subr.mxu0 %v755
    %1708 = vmatpush1.msra.mxu0 %v754
    %1709 = vmatprep.subr.mxu0 %v762
    %1710 = vmatpush1.msra.mxu0 %v761
    %1711 = vmatprep.mubr.f32.mxu0 %v536
    %1712 = vmatmul.mubr.f32.gmra.mrb[0].mxu0 %v535
    %v1713 = vpop.f32.mrb[0].mxu0
    %v1714 = vadd.f32 %v1339, %v1713
    %v1715 = vpop.f32.mrb[0].mxu0
    %v1716 = vadd.f32 %v1343, %v1715
    %1717 = vdwg.mxu0
    %1718 = vmatprep.subr.mxu0 %v769
    %1719 = vmatpush1.msra.mxu0 %v768
    %1720 = vmatprep.subr.mxu0 %v776
    %1721 = vmatpush1.msra.mxu0 %v775
    %1722 = vmatprep.subr.mxu0 %v783
    %1723 = vmatpush1.msra.mxu0 %v782
    %1724 = vmatprep.subr.mxu0 %v790
    %1725 = vmatpush1.msra.mxu0 %v789
    %1726 = vmatprep.subr.mxu0 %v797
    %1727 = vmatpush1.msra.mxu0 %v796
    %1728 = vmatprep.subr.mxu0 %v804
    %1729 = vmatpush1.msra.mxu0 %v803
    %1730 = vmatprep.subr.mxu0 %v811
    %1731 = vmatpush1.msra.mxu0 %v810
    %1732 = vmatprep.subr.mxu0 %v818
    %1733 = vmatpush1.msra.mxu0 %v817
    %1734 = vmatprep.subr.mxu0 %v825
    %1735 = vmatpush1.msra.mxu0 %v824
    %1736 = vmatprep.subr.mxu0 %v832
    %1737 = vmatpush1.msra.mxu0 %v831
    %1738 = vmatprep.subr.mxu0 %v839
    %1739 = vmatpush1.msra.mxu0 %v838
    %1740 = vmatprep.subr.mxu0 %v846
    %1741 = vmatpush1.msra.mxu0 %v845
    %1742 = vmatprep.subr.mxu0 %v853
    %1743 = vmatpush1.msra.mxu0 %v852
    %1744 = vmatprep.subr.mxu0 %v860
    %1745 = vmatpush1.msra.mxu0 %v859
    %1746 = vmatprep.subr.mxu0 %v867
    %1747 = vmatpush1.msra.mxu0 %v866
    %1748 = vmatprep.subr.mxu0 %v874
    %1749 = vmatpush1.msra.mxu0 %v873
    %1750 = vmatprep.subr.mxu0 %v881
    %1751 = vmatpush1.msra.mxu0 %v880
    %1752 = vmatprep.subr.mxu0 %v888
    %1753 = vmatpush1.msra.mxu0 %v887
    %1754 = vmatprep.subr.mxu0 %v895
    %1755 = vmatpush1.msra.mxu0 %v894
    %1756 = vmatprep.subr.mxu0 %v902
    %1757 = vmatpush1.msra.mxu0 %v901
    %1758 = vmatprep.subr.mxu0 %v909
    %1759 = vmatpush1.msra.mxu0 %v908
    %1760 = vmatprep.subr.mxu0 %v916
    %1761 = vmatpush1.msra.mxu0 %v915
    %1762 = vmatprep.subr.mxu0 %v923
    %1763 = vmatpush1.msra.mxu0 %v922
    %1764 = vmatprep.subr.mxu0 %v930
    %1765 = vmatpush1.msra.mxu0 %v929
    %1766 = vmatprep.subr.mxu0 %v937
    %1767 = vmatpush1.msra.mxu0 %v936
    %1768 = vmatprep.subr.mxu0 %v944
    %1769 = vmatpush1.msra.mxu0 %v943
    %1770 = vmatprep.subr.mxu0 %v951
    %1771 = vmatpush1.msra.mxu0 %v950
    %1772 = vmatprep.subr.mxu0 %v958
    %1773 = vmatpush1.msra.mxu0 %v957
    %1774 = vmatprep.subr.mxu0 %v965
    %1775 = vmatpush1.msra.mxu0 %v964
    %1776 = vmatprep.subr.mxu0 %v972
    %1777 = vmatpush1.msra.mxu0 %v971
    %1778 = vmatprep.subr.mxu0 %v979
    %1779 = vmatpush1.msra.mxu0 %v978
    %1780 = vmatprep.subr.mxu0 %v986
    %1781 = vmatpush1.msra.mxu0 %v985
    %1782 = vmatprep.mubr.f32.mxu0 %v538
    %1783 = vmatmul.mubr.f32.gmra.mrb[0].mxu0 %v537
    %v1784 = vpop.f32.mrb[0].mxu0
    %v1785 = vadd.f32 %v1714, %v1784
    %v1786 = vpop.f32.mrb[0].mxu0
    %v1787 = vadd.f32 %v1716, %v1786
    %1788 = vdwg.mxu0
    %1789 = vmatprep.subr.mxu0 %v993
    %1790 = vmatpush1.msra.mxu0 %v992
    %1791 = vmatprep.subr.mxu0 %v1000
    %1792 = vmatpush1.msra.mxu0 %v999
    %1793 = vmatprep.subr.mxu0 %v1007
    %1794 = vmatpush1.msra.mxu0 %v1006
    %1795 = vmatprep.subr.mxu0 %v1014
    %1796 = vmatpush1.msra.mxu0 %v1013
    %1797 = vmatprep.subr.mxu0 %v1021
    %1798 = vmatpush1.msra.mxu0 %v1020
    %1799 = vmatprep.subr.mxu0 %v1028
    %1800 = vmatpush1.msra.mxu0 %v1027
    %1801 = vmatprep.subr.mxu0 %v1035
    %1802 = vmatpush1.msra.mxu0 %v1034
    %1803 = vmatprep.subr.mxu0 %v1042
    %1804 = vmatpush1.msra.mxu0 %v1041
    %1805 = vmatprep.subr.mxu0 %v1049
    %1806 = vmatpush1.msra.mxu0 %v1048
    %1807 = vmatprep.subr.mxu0 %v1056
    %1808 = vmatpush1.msra.mxu0 %v1055
    %1809 = vmatprep.subr.mxu0 %v1063
    %1810 = vmatpush1.msra.mxu0 %v1062
    %1811 = vmatprep.subr.mxu0 %v1070
    %1812 = vmatpush1.msra.mxu0 %v1069
    %1813 = vmatprep.subr.mxu0 %v1077
    %1814 = vmatpush1.msra.mxu0 %v1076
    %1815 = vmatprep.subr.mxu0 %v1084
    %1816 = vmatpush1.msra.mxu0 %v1083
    %1817 = vmatprep.subr.mxu0 %v1091
    %1818 = vmatpush1.msra.mxu0 %v1090
    %1819 = vmatprep.subr.mxu0 %v1098
    %1820 = vmatpush1.msra.mxu0 %v1097
    %1821 = vmatprep.subr.mxu0 %v1105
    %1822 = vmatpush1.msra.mxu0 %v1104
    %1823 = vmatprep.subr.mxu0 %v1112
    %1824 = vmatpush1.msra.mxu0 %v1111
    %1825 = vmatprep.subr.mxu0 %v1119
    %1826 = vmatpush1.msra.mxu0 %v1118
    %1827 = vmatprep.subr.mxu0 %v1126
    %1828 = vmatpush1.msra.mxu0 %v1125
    %1829 = vmatprep.subr.mxu0 %v1133
    %1830 = vmatpush1.msra.mxu0 %v1132
    %1831 = vmatprep.subr.mxu0 %v1140
    %1832 = vmatpush1.msra.mxu0 %v1139
    %1833 = vmatprep.subr.mxu0 %v1147
    %1834 = vmatpush1.msra.mxu0 %v1146
    %1835 = vmatprep.subr.mxu0 %v1154
    %1836 = vmatpush1.msra.mxu0 %v1153
    %1837 = vmatprep.subr.mxu0 %v1161
    %1838 = vmatpush1.msra.mxu0 %v1160
    %1839 = vmatprep.subr.mxu0 %v1168
    %1840 = vmatpush1.msra.mxu0 %v1167
    %1841 = vmatprep.subr.mxu0 %v1175
    %1842 = vmatpush1.msra.mxu0 %v1174
    %1843 = vmatprep.subr.mxu0 %v1182
    %1844 = vmatpush1.msra.mxu0 %v1181
    %1845 = vmatprep.subr.mxu0 %v1189
    %1846 = vmatpush1.msra.mxu0 %v1188
    %1847 = vmatprep.subr.mxu0 %v1196
    %1848 = vmatpush1.msra.mxu0 %v1195
    %1849 = vmatprep.subr.mxu0 %v1203
    %1850 = vmatpush1.msra.mxu0 %v1202
    %1851 = vmatprep.subr.mxu0 %v1210
    %1852 = vmatpush1.msra.mxu0 %v1209
    %1853 = vmatprep.mubr.f32.mxu0 %v540
    %1854 = vmatmul.mubr.f32.gmra.mrb[0].mxu0 %v539
    %v1855 = vpop.f32.mrb[0].mxu0
    %v1856 = vadd.f32 %v1785, %v1855
    %v1857 = vpop.f32.mrb[0].mxu0
    %v1858 = vadd.f32 %v1787, %v1857
    %1859 = vdwg.mxu0
    %1860 = vmatprep.subr.mxu0 %v1217
    %1861 = vmatpush1.msra.mxu0 %v1216
    %1862 = vmatprep.subr.mxu0 %v1224
    %1863 = vmatpush1.msra.mxu0 %v1223
    %1864 = vmatprep.subr.mxu0 %v1231
    %1865 = vmatpush1.msra.mxu0 %v1230
    %1866 = vmatprep.subr.mxu0 %v1238
    %1867 = vmatpush1.msra.mxu0 %v1237
    %1868 = vmatprep.subr.mxu0 %v1245
    %1869 = vmatpush1.msra.mxu0 %v1244
    %1870 = vmatprep.subr.mxu0 %v1252
    %1871 = vmatpush1.msra.mxu0 %v1251
    %1872 = vmatprep.subr.mxu0 %v1259
    %1873 = vmatpush1.msra.mxu0 %v1258
    %1874 = vmatprep.subr.mxu0 %v1266
    %1875 = vmatpush1.msra.mxu0 %v1265
    %1876 = vmatprep.subr.mxu0 %v1273
    %1877 = vmatpush1.msra.mxu0 %v1272
    %1878 = vmatprep.subr.mxu0 %v1280
    %1879 = vmatpush1.msra.mxu0 %v1279
    %1880 = vmatprep.subr.mxu0 %v1287
    %1881 = vmatpush1.msra.mxu0 %v1286
    %1882 = vmatprep.subr.mxu0 %v1294
    %1883 = vmatpush1.msra.mxu0 %v1293
    %1884 = vmatprep.subr.mxu0 %v1301
    %1885 = vmatpush1.msra.mxu0 %v1300
    %1886 = vmatprep.subr.mxu0 %v1308
    %1887 = vmatpush1.msra.mxu0 %v1307
    %1888 = vmatprep.subr.mxu0 %v1315
    %1889 = vmatpush1.msra.mxu0 %v1314
    %1890 = vmatprep.subr.mxu0 %v1322
    %1891 = vmatpush1.msra.mxu0 %v1321
    %1892 = vmatprep.subr.mxu0 0.0
    %1893 = vmatpush1.msra.mxu0 0.0
    %1894 = vmatprep.subr.mxu0 0.0
    %1895 = vmatpush1.msra.mxu0 0.0
    %1896 = vmatprep.subr.mxu0 0.0
    %1897 = vmatpush1.msra.mxu0 0.0
    %1898 = vmatprep.subr.mxu0 0.0
    %1899 = vmatpush1.msra.mxu0 0.0
    %1900 = vmatprep.subr.mxu0 0.0
    %1901 = vmatpush1.msra.mxu0 0.0
    %1902 = vmatprep.subr.mxu0 0.0
    %1903 = vmatpush1.msra.mxu0 0.0
    %1904 = vmatprep.subr.mxu0 0.0
    %1905 = vmatpush1.msra.mxu0 0.0
    %1906 = vmatprep.subr.mxu0 0.0
    %1907 = vmatpush1.msra.mxu0 0.0
    %1908 = vmatprep.subr.mxu0 0.0
    %1909 = vmatpush1.msra.mxu0 0.0
    %1910 = vmatprep.subr.mxu0 0.0
    %1911 = vmatpush1.msra.mxu0 0.0
    %1912 = vmatprep.subr.mxu0 0.0
    %1913 = vmatpush1.msra.mxu0 0.0
    %1914 = vmatprep.subr.mxu0 0.0
    %1915 = vmatpush1.msra.mxu0 0.0
    %1916 = vmatprep.subr.mxu0 0.0
    %1917 = vmatpush1.msra.mxu0 0.0
    %1918 = vmatprep.subr.mxu0 0.0
    %1919 = vmatpush1.msra.mxu0 0.0
    %1920 = vmatprep.subr.mxu0 0.0
    %1921 = vmatpush1.msra.mxu0 0.0
    %1922 = vmatprep.subr.mxu0 0.0
    %1923 = vmatpush1.msra.mxu0 0.0
    %1924 = vmatprep.mubr.f32.mxu0 0.0
    %1925 = vmatmul.mubr.f32.gmra.mrb[0].mxu0 %v541
    %v1926 = vpop.f32.mrb[0].mxu0
    %v1927 = vadd.f32 %v1856, %v1926
    %v1928 = vpop.f32.mrb[0].mxu0
    %v1929 = vadd.f32 %v1858, %v1928
    %1930 = vdwg.mxu0
    %1931 = vmatprep.subr.mxu0 %v547
    %1932 = vmatpush1.msra.mxu0 %v546
    %1933 = vmatprep.subr.mxu0 %v554
    %1934 = vmatpush1.msra.mxu0 %v553
    %1935 = vmatprep.subr.mxu0 %v561
    %1936 = vmatpush1.msra.mxu0 %v560
    %1937 = vmatprep.subr.mxu0 %v568
    %1938 = vmatpush1.msra.mxu0 %v567
    %1939 = vmatprep.subr.mxu0 %v575
    %1940 = vmatpush1.msra.mxu0 %v574
    %1941 = vmatprep.subr.mxu0 %v582
    %1942 = vmatpush1.msra.mxu0 %v581
    %1943 = vmatprep.subr.mxu0 %v589
    %1944 = vmatpush1.msra.mxu0 %v588
    %1945 = vmatprep.subr.mxu0 %v596
    %1946 = vmatpush1.msra.mxu0 %v595
    %1947 = vmatprep.subr.mxu0 %v603
    %1948 = vmatpush1.msra.mxu0 %v602
    %1949 = vmatprep.subr.mxu0 %v610
    %1950 = vmatpush1.msra.mxu0 %v609
    %1951 = vmatprep.subr.mxu0 %v617
    %1952 = vmatpush1.msra.mxu0 %v616
    %1953 = vmatprep.subr.mxu0 %v624
    %1954 = vmatpush1.msra.mxu0 %v623
    %1955 = vmatprep.subr.mxu0 %v631
    %1956 = vmatpush1.msra.mxu0 %v630
    %1957 = vmatprep.subr.mxu0 %v638
    %1958 = vmatpush1.msra.mxu0 %v637
    %1959 = vmatprep.subr.mxu0 %v645
    %1960 = vmatpush1.msra.mxu0 %v644
    %1961 = vmatprep.subr.mxu0 %v652
    %1962 = vmatpush1.msra.mxu0 %v651
    %1963 = vmatprep.subr.mxu0 %v659
    %1964 = vmatpush1.msra.mxu0 %v658
    %1965 = vmatprep.subr.mxu0 %v666
    %1966 = vmatpush1.msra.mxu0 %v665
    %1967 = vmatprep.subr.mxu0 %v673
    %1968 = vmatpush1.msra.mxu0 %v672
    %1969 = vmatprep.subr.mxu0 %v680
    %1970 = vmatpush1.msra.mxu0 %v679
    %1971 = vmatprep.subr.mxu0 %v687
    %1972 = vmatpush1.msra.mxu0 %v686
    %1973 = vmatprep.subr.mxu0 %v694
    %1974 = vmatpush1.msra.mxu0 %v693
    %1975 = vmatprep.subr.mxu0 %v701
    %1976 = vmatpush1.msra.mxu0 %v700
    %1977 = vmatprep.subr.mxu0 %v708
    %1978 = vmatpush1.msra.mxu0 %v707
    %1979 = vmatprep.subr.mxu0 %v715
    %1980 = vmatpush1.msra.mxu0 %v714
    %1981 = vmatprep.subr.mxu0 %v722
    %1982 = vmatpush1.msra.mxu0 %v721
    %1983 = vmatprep.subr.mxu0 %v729
    %1984 = vmatpush1.msra.mxu0 %v728
    %1985 = vmatprep.subr.mxu0 %v736
    %1986 = vmatpush1.msra.mxu0 %v735
    %1987 = vmatprep.subr.mxu0 %v743
    %1988 = vmatpush1.msra.mxu0 %v742
    %1989 = vmatprep.subr.mxu0 %v750
    %1990 = vmatpush1.msra.mxu0 %v749
    %1991 = vmatprep.subr.mxu0 %v757
    %1992 = vmatpush1.msra.mxu0 %v756
    %1993 = vmatprep.subr.mxu0 %v764
    %1994 = vmatpush1.msra.mxu0 %v763
    %1995 = vmatprep.mubr.f32.mxu0 %v536
    %1996 = vmatmul.mubr.f32.gmra.mrb[0].mxu0 %v535
    %v1997 = vpop.f32.mrb[0].mxu0
    %v1998 = vadd.f32 %v1347, %v1997
    %v1999 = vpop.f32.mrb[0].mxu0
    %v2000 = vadd.f32 %v1351, %v1999
    %2001 = vdwg.mxu0
    %2002 = vmatprep.subr.mxu0 %v771
    %2003 = vmatpush1.msra.mxu0 %v770
    %2004 = vmatprep.subr.mxu0 %v778
    %2005 = vmatpush1.msra.mxu0 %v777
    %2006 = vmatprep.subr.mxu0 %v785
    %2007 = vmatpush1.msra.mxu0 %v784
    %2008 = vmatprep.subr.mxu0 %v792
    %2009 = vmatpush1.msra.mxu0 %v791
    %2010 = vmatprep.subr.mxu0 %v799
    %2011 = vmatpush1.msra.mxu0 %v798
    %2012 = vmatprep.subr.mxu0 %v806
    %2013 = vmatpush1.msra.mxu0 %v805
    %2014 = vmatprep.subr.mxu0 %v813
    %2015 = vmatpush1.msra.mxu0 %v812
    %2016 = vmatprep.subr.mxu0 %v820
    %2017 = vmatpush1.msra.mxu0 %v819
    %2018 = vmatprep.subr.mxu0 %v827
    %2019 = vmatpush1.msra.mxu0 %v826
    %2020 = vmatprep.subr.mxu0 %v834
    %2021 = vmatpush1.msra.mxu0 %v833
    %2022 = vmatprep.subr.mxu0 %v841
    %2023 = vmatpush1.msra.mxu0 %v840
    %2024 = vmatprep.subr.mxu0 %v848
    %2025 = vmatpush1.msra.mxu0 %v847
    %2026 = vmatprep.subr.mxu0 %v855
    %2027 = vmatpush1.msra.mxu0 %v854
    %2028 = vmatprep.subr.mxu0 %v862
    %2029 = vmatpush1.msra.mxu0 %v861
    %2030 = vmatprep.subr.mxu0 %v869
    %2031 = vmatpush1.msra.mxu0 %v868
    %2032 = vmatprep.subr.mxu0 %v876
    %2033 = vmatpush1.msra.mxu0 %v875
    %2034 = vmatprep.subr.mxu0 %v883
    %2035 = vmatpush1.msra.mxu0 %v882
    %2036 = vmatprep.subr.mxu0 %v890
    %2037 = vmatpush1.msra.mxu0 %v889
    %2038 = vmatprep.subr.mxu0 %v897
    %2039 = vmatpush1.msra.mxu0 %v896
    %2040 = vmatprep.subr.mxu0 %v904
    %2041 = vmatpush1.msra.mxu0 %v903
    %2042 = vmatprep.subr.mxu0 %v911
    %2043 = vmatpush1.msra.mxu0 %v910
    %2044 = vmatprep.subr.mxu0 %v918
    %2045 = vmatpush1.msra.mxu0 %v917
    %2046 = vmatprep.subr.mxu0 %v925
    %2047 = vmatpush1.msra.mxu0 %v924
    %2048 = vmatprep.subr.mxu0 %v932
    %2049 = vmatpush1.msra.mxu0 %v931
    %2050 = vmatprep.subr.mxu0 %v939
    %2051 = vmatpush1.msra.mxu0 %v938
    %2052 = vmatprep.subr.mxu0 %v946
    %2053 = vmatpush1.msra.mxu0 %v945
    %2054 = vmatprep.subr.mxu0 %v953
    %2055 = vmatpush1.msra.mxu0 %v952
    %2056 = vmatprep.subr.mxu0 %v960
    %2057 = vmatpush1.msra.mxu0 %v959
    %2058 = vmatprep.subr.mxu0 %v967
    %2059 = vmatpush1.msra.mxu0 %v966
    %2060 = vmatprep.subr.mxu0 %v974
    %2061 = vmatpush1.msra.mxu0 %v973
    %2062 = vmatprep.subr.mxu0 %v981
    %2063 = vmatpush1.msra.mxu0 %v980
    %2064 = vmatprep.subr.mxu0 %v988
    %2065 = vmatpush1.msra.mxu0 %v987
    %2066 = vmatprep.mubr.f32.mxu0 %v538
    %2067 = vmatmul.mubr.f32.gmra.mrb[0].mxu0 %v537
    %v2068 = vpop.f32.mrb[0].mxu0
    %v2069 = vadd.f32 %v1998, %v2068
    %v2070 = vpop.f32.mrb[0].mxu0
    %v2071 = vadd.f32 %v2000, %v2070
    %2072 = vdwg.mxu0
    %2073 = vmatprep.subr.mxu0 %v995
    %2074 = vmatpush1.msra.mxu0 %v994
    %2075 = vmatprep.subr.mxu0 %v1002
    %2076 = vmatpush1.msra.mxu0 %v1001
    %2077 = vmatprep.subr.mxu0 %v1009
    %2078 = vmatpush1.msra.mxu0 %v1008
    %2079 = vmatprep.subr.mxu0 %v1016
    %2080 = vmatpush1.msra.mxu0 %v1015
    %2081 = vmatprep.subr.mxu0 %v1023
    %2082 = vmatpush1.msra.mxu0 %v1022
    %2083 = vmatprep.subr.mxu0 %v1030
    %2084 = vmatpush1.msra.mxu0 %v1029
    %2085 = vmatprep.subr.mxu0 %v1037
    %2086 = vmatpush1.msra.mxu0 %v1036
    %2087 = vmatprep.subr.mxu0 %v1044
    %2088 = vmatpush1.msra.mxu0 %v1043
    %2089 = vmatprep.subr.mxu0 %v1051
    %2090 = vmatpush1.msra.mxu0 %v1050
    %2091 = vmatprep.subr.mxu0 %v1058
    %2092 = vmatpush1.msra.mxu0 %v1057
    %2093 = vmatprep.subr.mxu0 %v1065
    %2094 = vmatpush1.msra.mxu0 %v1064
    %2095 = vmatprep.subr.mxu0 %v1072
    %2096 = vmatpush1.msra.mxu0 %v1071
    %2097 = vmatprep.subr.mxu0 %v1079
    %2098 = vmatpush1.msra.mxu0 %v1078
    %2099 = vmatprep.subr.mxu0 %v1086
    %2100 = vmatpush1.msra.mxu0 %v1085
    %2101 = vmatprep.subr.mxu0 %v1093
    %2102 = vmatpush1.msra.mxu0 %v1092
    %2103 = vmatprep.subr.mxu0 %v1100
    %2104 = vmatpush1.msra.mxu0 %v1099
    %2105 = vmatprep.subr.mxu0 %v1107
    %2106 = vmatpush1.msra.mxu0 %v1106
    %2107 = vmatprep.subr.mxu0 %v1114
    %2108 = vmatpush1.msra.mxu0 %v1113
    %2109 = vmatprep.subr.mxu0 %v1121
    %2110 = vmatpush1.msra.mxu0 %v1120
    %2111 = vmatprep.subr.mxu0 %v1128
    %2112 = vmatpush1.msra.mxu0 %v1127
    %2113 = vmatprep.subr.mxu0 %v1135
    %2114 = vmatpush1.msra.mxu0 %v1134
    %2115 = vmatprep.subr.mxu0 %v1142
    %2116 = vmatpush1.msra.mxu0 %v1141
    %2117 = vmatprep.subr.mxu0 %v1149
    %2118 = vmatpush1.msra.mxu0 %v1148
    %2119 = vmatprep.subr.mxu0 %v1156
    %2120 = vmatpush1.msra.mxu0 %v1155
    %2121 = vmatprep.subr.mxu0 %v1163
    %2122 = vmatpush1.msra.mxu0 %v1162
    %2123 = vmatprep.subr.mxu0 %v1170
    %2124 = vmatpush1.msra.mxu0 %v1169
    %2125 = vmatprep.subr.mxu0 %v1177
    %2126 = vmatpush1.msra.mxu0 %v1176
    %2127 = vmatprep.subr.mxu0 %v1184
    %2128 = vmatpush1.msra.mxu0 %v1183
    %2129 = vmatprep.subr.mxu0 %v1191
    %2130 = vmatpush1.msra.mxu0 %v1190
    %2131 = vmatprep.subr.mxu0 %v1198
    %2132 = vmatpush1.msra.mxu0 %v1197
    %2133 = vmatprep.subr.mxu0 %v1205
    %2134 = vmatpush1.msra.mxu0 %v1204
    %2135 = vmatprep.subr.mxu0 %v1212
    %2136 = vmatpush1.msra.mxu0 %v1211
    %2137 = vmatprep.mubr.f32.mxu0 %v540
    %2138 = vmatmul.mubr.f32.gmra.mrb[0].mxu0 %v539
    %v2139 = vpop.f32.mrb[0].mxu0
    %v2140 = vadd.f32 %v2069, %v2139
    %v2141 = vpop.f32.mrb[0].mxu0
    %v2142 = vadd.f32 %v2071, %v2141
    %2143 = vdwg.mxu0
    %2144 = vmatprep.subr.mxu0 %v1219
    %2145 = vmatpush1.msra.mxu0 %v1218
    %2146 = vmatprep.subr.mxu0 %v1226
    %2147 = vmatpush1.msra.mxu0 %v1225
    %2148 = vmatprep.subr.mxu0 %v1233
    %2149 = vmatpush1.msra.mxu0 %v1232
    %2150 = vmatprep.subr.mxu0 %v1240
    %2151 = vmatpush1.msra.mxu0 %v1239
    %2152 = vmatprep.subr.mxu0 %v1247
    %2153 = vmatpush1.msra.mxu0 %v1246
    %2154 = vmatprep.subr.mxu0 %v1254
    %2155 = vmatpush1.msra.mxu0 %v1253
    %2156 = vmatprep.subr.mxu0 %v1261
    %2157 = vmatpush1.msra.mxu0 %v1260
    %2158 = vmatprep.subr.mxu0 %v1268
    %2159 = vmatpush1.msra.mxu0 %v1267
    %2160 = vmatprep.subr.mxu0 %v1275
    %2161 = vmatpush1.msra.mxu0 %v1274
    %2162 = vmatprep.subr.mxu0 %v1282
    %2163 = vmatpush1.msra.mxu0 %v1281
    %2164 = vmatprep.subr.mxu0 %v1289
    %2165 = vmatpush1.msra.mxu0 %v1288
    %2166 = vmatprep.subr.mxu0 %v1296
    %2167 = vmatpush1.msra.mxu0 %v1295
    %2168 = vmatprep.subr.mxu0 %v1303
    %2169 = vmatpush1.msra.mxu0 %v1302
    %2170 = vmatprep.subr.mxu0 %v1310
    %2171 = vmatpush1.msra.mxu0 %v1309
    %2172 = vmatprep.subr.mxu0 %v1317
    %2173 = vmatpush1.msra.mxu0 %v1316
    %2174 = vmatprep.subr.mxu0 %v1324
    %2175 = vmatpush1.msra.mxu0 %v1323
    %2176 = vmatprep.subr.mxu0 0.0
    %2177 = vmatpush1.msra.mxu0 0.0
    %2178 = vmatprep.subr.mxu0 0.0
    %2179 = vmatpush1.msra.mxu0 0.0
    %2180 = vmatprep.subr.mxu0 0.0
    %2181 = vmatpush1.msra.mxu0 0.0
    %2182 = vmatprep.subr.mxu0 0.0
    %2183 = vmatpush1.msra.mxu0 0.0
    %2184 = vmatprep.subr.mxu0 0.0
    %2185 = vmatpush1.msra.mxu0 0.0
    %2186 = vmatprep.subr.mxu0 0.0
    %2187 = vmatpush1.msra.mxu0 0.0
    %2188 = vmatprep.subr.mxu0 0.0
    %2189 = vmatpush1.msra.mxu0 0.0
    %2190 = vmatprep.subr.mxu0 0.0
    %2191 = vmatpush1.msra.mxu0 0.0
    %2192 = vmatprep.subr.mxu0 0.0
    %2193 = vmatpush1.msra.mxu0 0.0
    %2194 = vmatprep.subr.mxu0 0.0
    %2195 = vmatpush1.msra.mxu0 0.0
    %2196 = vmatprep.subr.mxu0 0.0
    %2197 = vmatpush1.msra.mxu0 0.0
    %2198 = vmatprep.subr.mxu0 0.0
    %2199 = vmatpush1.msra.mxu0 0.0
    %2200 = vmatprep.subr.mxu0 0.0
    %2201 = vmatpush1.msra.mxu0 0.0
    %2202 = vmatprep.subr.mxu0 0.0
    %2203 = vmatpush1.msra.mxu0 0.0
    %2204 = vmatprep.subr.mxu0 0.0
    %2205 = vmatpush1.msra.mxu0 0.0
    %2206 = vmatprep.subr.mxu0 0.0
    %2207 = vmatpush1.msra.mxu0 0.0
    %2208 = vmatprep.mubr.f32.mxu0 0.0
    %2209 = vmatmul.mubr.f32.gmra.mrb[0].mxu0 %v541
    %v2210 = vpop.f32.mrb[0].mxu0
    %v2211 = vadd.f32 %v2140, %v2210
    %v2212 = vpop.f32.mrb[0].mxu0
    %v2213 = vadd.f32 %v2142, %v2212
    %2214 = vdwg.mxu0
    %2215 = vmatprep.subr.mxu0 0.0
    %2216 = vmatpush1.msra.mxu0 %v548
    %2217 = vmatprep.subr.mxu0 0.0
    %2218 = vmatpush1.msra.mxu0 %v555
    %2219 = vmatprep.subr.mxu0 0.0
    %2220 = vmatpush1.msra.mxu0 %v562
    %2221 = vmatprep.subr.mxu0 0.0
    %2222 = vmatpush1.msra.mxu0 %v569
    %2223 = vmatprep.subr.mxu0 0.0
    %2224 = vmatpush1.msra.mxu0 %v576
    %2225 = vmatprep.subr.mxu0 0.0
    %2226 = vmatpush1.msra.mxu0 %v583
    %2227 = vmatprep.subr.mxu0 0.0
    %2228 = vmatpush1.msra.mxu0 %v590
    %2229 = vmatprep.subr.mxu0 0.0
    %2230 = vmatpush1.msra.mxu0 %v597
    %2231 = vmatprep.subr.mxu0 0.0
    %2232 = vmatpush1.msra.mxu0 %v604
    %2233 = vmatprep.subr.mxu0 0.0
    %2234 = vmatpush1.msra.mxu0 %v611
    %2235 = vmatprep.subr.mxu0 0.0
    %2236 = vmatpush1.msra.mxu0 %v618
    %2237 = vmatprep.subr.mxu0 0.0
    %2238 = vmatpush1.msra.mxu0 %v625
    %2239 = vmatprep.subr.mxu0 0.0
    %2240 = vmatpush1.msra.mxu0 %v632
    %2241 = vmatprep.subr.mxu0 0.0
    %2242 = vmatpush1.msra.mxu0 %v639
    %2243 = vmatprep.subr.mxu0 0.0
    %2244 = vmatpush1.msra.mxu0 %v646
    %2245 = vmatprep.subr.mxu0 0.0
    %2246 = vmatpush1.msra.mxu0 %v653
    %2247 = vmatprep.subr.mxu0 0.0
    %2248 = vmatpush1.msra.mxu0 %v660
    %2249 = vmatprep.subr.mxu0 0.0
    %2250 = vmatpush1.msra.mxu0 %v667
    %2251 = vmatprep.subr.mxu0 0.0
    %2252 = vmatpush1.msra.mxu0 %v674
    %2253 = vmatprep.subr.mxu0 0.0
    %2254 = vmatpush1.msra.mxu0 %v681
    %2255 = vmatprep.subr.mxu0 0.0
    %2256 = vmatpush1.msra.mxu0 %v688
    %2257 = vmatprep.subr.mxu0 0.0
    %2258 = vmatpush1.msra.mxu0 %v695
    %2259 = vmatprep.subr.mxu0 0.0
    %2260 = vmatpush1.msra.mxu0 %v702
    %2261 = vmatprep.subr.mxu0 0.0
    %2262 = vmatpush1.msra.mxu0 %v709
    %2263 = vmatprep.subr.mxu0 0.0
    %2264 = vmatpush1.msra.mxu0 %v716
    %2265 = vmatprep.subr.mxu0 0.0
    %2266 = vmatpush1.msra.mxu0 %v723
    %2267 = vmatprep.subr.mxu0 0.0
    %2268 = vmatpush1.msra.mxu0 %v730
    %2269 = vmatprep.subr.mxu0 0.0
    %2270 = vmatpush1.msra.mxu0 %v737
    %2271 = vmatprep.subr.mxu0 0.0
    %2272 = vmatpush1.msra.mxu0 %v744
    %2273 = vmatprep.subr.mxu0 0.0
    %2274 = vmatpush1.msra.mxu0 %v751
    %2275 = vmatprep.subr.mxu0 0.0
    %2276 = vmatpush1.msra.mxu0 %v758
    %2277 = vmatprep.subr.mxu0 0.0
    %2278 = vmatpush1.msra.mxu0 %v765
    %2279 = vmatprep.mubr.f32.mxu0 %v536
    %2280 = vmatmul.mubr.f32.gmra.mrb[0].mxu0 %v535
    %v2281 = vpop.f32.mrb[0].mxu0
    %v2282 = vadd.f32 %v1355, %v2281
    %v2283 = vpop.f32.mrb[0].mxu0
    %2284 = vdwg.mxu0
    %2285 = vmatprep.subr.mxu0 0.0
    %2286 = vmatpush1.msra.mxu0 %v772
    %2287 = vmatprep.subr.mxu0 0.0
    %2288 = vmatpush1.msra.mxu0 %v779
    %2289 = vmatprep.subr.mxu0 0.0
    %2290 = vmatpush1.msra.mxu0 %v786
    %2291 = vmatprep.subr.mxu0 0.0
    %2292 = vmatpush1.msra.mxu0 %v793
    %2293 = vmatprep.subr.mxu0 0.0
    %2294 = vmatpush1.msra.mxu0 %v800
    %2295 = vmatprep.subr.mxu0 0.0
    %2296 = vmatpush1.msra.mxu0 %v807
    %2297 = vmatprep.subr.mxu0 0.0
    %2298 = vmatpush1.msra.mxu0 %v814
    %2299 = vmatprep.subr.mxu0 0.0
    %2300 = vmatpush1.msra.mxu0 %v821
    %2301 = vmatprep.subr.mxu0 0.0
    %2302 = vmatpush1.msra.mxu0 %v828
    %2303 = vmatprep.subr.mxu0 0.0
    %2304 = vmatpush1.msra.mxu0 %v835
    %2305 = vmatprep.subr.mxu0 0.0
    %2306 = vmatpush1.msra.mxu0 %v842
    %2307 = vmatprep.subr.mxu0 0.0
    %2308 = vmatpush1.msra.mxu0 %v849
    %2309 = vmatprep.subr.mxu0 0.0
    %2310 = vmatpush1.msra.mxu0 %v856
    %2311 = vmatprep.subr.mxu0 0.0
    %2312 = vmatpush1.msra.mxu0 %v863
    %2313 = vmatprep.subr.mxu0 0.0
    %2314 = vmatpush1.msra.mxu0 %v870
    %2315 = vmatprep.subr.mxu0 0.0
    %2316 = vmatpush1.msra.mxu0 %v877
    %2317 = vmatprep.subr.mxu0 0.0
    %2318 = vmatpush1.msra.mxu0 %v884
    %2319 = vmatprep.subr.mxu0 0.0
    %2320 = vmatpush1.msra.mxu0 %v891
    %2321 = vmatprep.subr.mxu0 0.0
    %2322 = vmatpush1.msra.mxu0 %v898
    %2323 = vmatprep.subr.mxu0 0.0
    %2324 = vmatpush1.msra.mxu0 %v905
    %2325 = vmatprep.subr.mxu0 0.0
    %2326 = vmatpush1.msra.mxu0 %v912
    %2327 = vmatprep.subr.mxu0 0.0
    %2328 = vmatpush1.msra.mxu0 %v919
    %2329 = vmatprep.subr.mxu0 0.0
    %2330 = vmatpush1.msra.mxu0 %v926
    %2331 = vmatprep.subr.mxu0 0.0
    %2332 = vmatpush1.msra.mxu0 %v933
    %2333 = vmatprep.subr.mxu0 0.0
    %2334 = vmatpush1.msra.mxu0 %v940
    %2335 = vmatprep.subr.mxu0 0.0
    %2336 = vmatpush1.msra.mxu0 %v947
    %2337 = vmatprep.subr.mxu0 0.0
    %2338 = vmatpush1.msra.mxu0 %v954
    %2339 = vmatprep.subr.mxu0 0.0
    %2340 = vmatpush1.msra.mxu0 %v961
    %2341 = vmatprep.subr.mxu0 0.0
    %2342 = vmatpush1.msra.mxu0 %v968
    %2343 = vmatprep.subr.mxu0 0.0
    %2344 = vmatpush1.msra.mxu0 %v975
    %2345 = vmatprep.subr.mxu0 0.0
    %2346 = vmatpush1.msra.mxu0 %v982
    %2347 = vmatprep.subr.mxu0 0.0
    %2348 = vmatpush1.msra.mxu0 %v989
    %2349 = vmatprep.mubr.f32.mxu0 %v538
    %2350 = vmatmul.mubr.f32.gmra.mrb[0].mxu0 %v537
    %v2351 = vpop.f32.mrb[0].mxu0
    %v2352 = vadd.f32 %v2282, %v2351
    %v2353 = vpop.f32.mrb[0].mxu0
    %2354 = vdwg.mxu0
    %2355 = vmatprep.subr.mxu0 0.0
    %2356 = vmatpush1.msra.mxu0 %v996
    %2357 = vmatprep.subr.mxu0 0.0
    %2358 = vmatpush1.msra.mxu0 %v1003
    %2359 = vmatprep.subr.mxu0 0.0
    %2360 = vmatpush1.msra.mxu0 %v1010
    %2361 = vmatprep.subr.mxu0 0.0
    %2362 = vmatpush1.msra.mxu0 %v1017
    %2363 = vmatprep.subr.mxu0 0.0
    %2364 = vmatpush1.msra.mxu0 %v1024
    %2365 = vmatprep.subr.mxu0 0.0
    %2366 = vmatpush1.msra.mxu0 %v1031
    %2367 = vmatprep.subr.mxu0 0.0
    %2368 = vmatpush1.msra.mxu0 %v1038
    %2369 = vmatprep.subr.mxu0 0.0
    %2370 = vmatpush1.msra.mxu0 %v1045
    %2371 = vmatprep.subr.mxu0 0.0
    %2372 = vmatpush1.msra.mxu0 %v1052
    %2373 = vmatprep.subr.mxu0 0.0
    %2374 = vmatpush1.msra.mxu0 %v1059
    %2375 = vmatprep.subr.mxu0 0.0
    %2376 = vmatpush1.msra.mxu0 %v1066
    %2377 = vmatprep.subr.mxu0 0.0
    %2378 = vmatpush1.msra.mxu0 %v1073
    %2379 = vmatprep.subr.mxu0 0.0
    %2380 = vmatpush1.msra.mxu0 %v1080
    %2381 = vmatprep.subr.mxu0 0.0
    %2382 = vmatpush1.msra.mxu0 %v1087
    %2383 = vmatprep.subr.mxu0 0.0
    %2384 = vmatpush1.msra.mxu0 %v1094
    %2385 = vmatprep.subr.mxu0 0.0
    %2386 = vmatpush1.msra.mxu0 %v1101
    %2387 = vmatprep.subr.mxu0 0.0
    %2388 = vmatpush1.msra.mxu0 %v1108
    %2389 = vmatprep.subr.mxu0 0.0
    %2390 = vmatpush1.msra.mxu0 %v1115
    %2391 = vmatprep.subr.mxu0 0.0
    %2392 = vmatpush1.msra.mxu0 %v1122
    %2393 = vmatprep.subr.mxu0 0.0
    %2394 = vmatpush1.msra.mxu0 %v1129
    %2395 = vmatprep.subr.mxu0 0.0
    %2396 = vmatpush1.msra.mxu0 %v1136
    %2397 = vmatprep.subr.mxu0 0.0
    %2398 = vmatpush1.msra.mxu0 %v1143
    %2399 = vmatprep.subr.mxu0 0.0
    %2400 = vmatpush1.msra.mxu0 %v1150
    %2401 = vmatprep.subr.mxu0 0.0
    %2402 = vmatpush1.msra.mxu0 %v1157
    %2403 = vmatprep.subr.mxu0 0.0
    %2404 = vmatpush1.msra.mxu0 %v1164
    %2405 = vmatprep.subr.mxu0 0.0
    %2406 = vmatpush1.msra.mxu0 %v1171
    %2407 = vmatprep.subr.mxu0 0.0
    %2408 = vmatpush1.msra.mxu0 %v1178
    %2409 = vmatprep.subr.mxu0 0.0
    %2410 = vmatpush1.msra.mxu0 %v1185
    %2411 = vmatprep.subr.mxu0 0.0
    %2412 = vmatpush1.msra.mxu0 %v1192
    %2413 = vmatprep.subr.mxu0 0.0
    %2414 = vmatpush1.msra.mxu0 %v1199
    %2415 = vmatprep.subr.mxu0 0.0
    %2416 = vmatpush1.msra.mxu0 %v1206
    %2417 = vmatprep.subr.mxu0 0.0
    %2418 = vmatpush1.msra.mxu0 %v1213
    %2419 = vmatprep.mubr.f32.mxu0 %v540
    %2420 = vmatmul.mubr.f32.gmra.mrb[0].mxu0 %v539
    %v2421 = vpop.f32.mrb[0].mxu0
    %v2422 = vadd.f32 %v2352, %v2421
    %v2423 = vpop.f32.mrb[0].mxu0
    %2424 = vdwg.mxu0
    %2425 = vmatprep.subr.mxu0 0.0
    %2426 = vmatpush1.msra.mxu0 %v1220
    %2427 = vmatprep.subr.mxu0 0.0
    %2428 = vmatpush1.msra.mxu0 %v1227
    %2429 = vmatprep.subr.mxu0 0.0
    %2430 = vmatpush1.msra.mxu0 %v1234
    %2431 = vmatprep.subr.mxu0 0.0
    %2432 = vmatpush1.msra.mxu0 %v1241
    %2433 = vmatprep.subr.mxu0 0.0
    %2434 = vmatpush1.msra.mxu0 %v1248
    %2435 = vmatprep.subr.mxu0 0.0
    %2436 = vmatpush1.msra.mxu0 %v1255
    %2437 = vmatprep.subr.mxu0 0.0
    %2438 = vmatpush1.msra.mxu0 %v1262
    %2439 = vmatprep.subr.mxu0 0.0
    %2440 = vmatpush1.msra.mxu0 %v1269
    %2441 = vmatprep.subr.mxu0 0.0
    %2442 = vmatpush1.msra.mxu0 %v1276
    %2443 = vmatprep.subr.mxu0 0.0
    %2444 = vmatpush1.msra.mxu0 %v1283
    %2445 = vmatprep.subr.mxu0 0.0
    %2446 = vmatpush1.msra.mxu0 %v1290
    %2447 = vmatprep.subr.mxu0 0.0
    %2448 = vmatpush1.msra.mxu0 %v1297
    %2449 = vmatprep.subr.mxu0 0.0
    %2450 = vmatpush1.msra.mxu0 %v1304
    %2451 = vmatprep.subr.mxu0 0.0
    %2452 = vmatpush1.msra.mxu0 %v1311
    %2453 = vmatprep.subr.mxu0 0.0
    %2454 = vmatpush1.msra.mxu0 %v1318
    %2455 = vmatprep.subr.mxu0 0.0
    %2456 = vmatpush1.msra.mxu0 %v1325
    %2457 = vmatprep.subr.mxu0 0.0
    %2458 = vmatpush1.msra.mxu0 0.0
    %2459 = vmatprep.subr.mxu0 0.0
    %2460 = vmatpush1.msra.mxu0 0.0
    %2461 = vmatprep.subr.mxu0 0.0
    %2462 = vmatpush1.msra.mxu0 0.0
    %2463 = vmatprep.subr.mxu0 0.0
    %2464 = vmatpush1.msra.mxu0 0.0
    %2465 = vmatprep.subr.mxu0 0.0
    %2466 = vmatpush1.msra.mxu0 0.0
    %2467 = vmatprep.subr.mxu0 0.0
    %2468 = vmatpush1.msra.mxu0 0.0
    %2469 = vmatprep.subr.mxu0 0.0
    %2470 = vmatpush1.msra.mxu0 0.0
    %2471 = vmatprep.subr.mxu0 0.0
    %2472 = vmatpush1.msra.mxu0 0.0
    %2473 = vmatprep.subr.mxu0 0.0
    %2474 = vmatpush1.msra.mxu0 0.0
    %2475 = vmatprep.subr.mxu0 0.0
    %2476 = vmatpush1.msra.mxu0 0.0
    %2477 = vmatprep.subr.mxu0 0.0
    %2478 = vmatpush1.msra.mxu0 0.0
    %2479 = vmatprep.subr.mxu0 0.0
    %2480 = vmatpush1.msra.mxu0 0.0
    %2481 = vmatprep.subr.mxu0 0.0
    %2482 = vmatpush1.msra.mxu0 0.0
    %2483 = vmatprep.subr.mxu0 0.0
    %2484 = vmatpush1.msra.mxu0 0.0
    %2485 = vmatprep.subr.mxu0 0.0
    %2486 = vmatpush1.msra.mxu0 0.0
    %2487 = vmatprep.subr.mxu0 0.0
    %2488 = vmatpush1.msra.mxu0 0.0
    %2489 = vmatprep.mubr.f32.mxu0 0.0
    %2490 = vmatmul.mubr.f32.gmra.mrb[0].mxu0 %v541
    %v2491 = vpop.f32.mrb[0].mxu0
    %v2492 = vadd.f32 %v2422, %v2491
    %v2493 = vpop.f32.mrb[0].mxu0
    %2494 = vdwg.mxu0
    %v2495 = vmax.f32 %v1643, 0.0
    %v2496 = vmax.f32 %v1645, 0.0
    %v2497 = vmax.f32 %v1927, 0.0
    %v2498 = vmax.f32 %v1929, 0.0
    %v2499 = vmax.f32 %v2211, 0.0
    %v2500 = vmax.f32 %v2213, 0.0
    %v2501 = vmax.f32 %v2492, 0.0
    %v2502 = vld [vmem:[#allocation9] sm:$0xff]
    %v2503 = vld [vmem:[#allocation9 + $0x8] sm:$0xff]
    %v2504 = vld [vmem:[#allocation9 + $0x10] sm:$0xff]
    %v2505 = vld [vmem:[#allocation9 + $0x18] sm:$0xff]
    %v2506 = vld [vmem:[#allocation9 + $0x20] sm:$0xff]
    %v2507 = vld [vmem:[#allocation9 + $0x28] sm:$0xff]
    %v2508 = vld [vmem:[#allocation9 + $0x30] sm:$0xff]
    %v2509 = vld [vmem:[#allocation9 + $0x38] sm:$0xff]
    %v2510 = vld [vmem:[#allocation9 + $0x40] sm:$0xff]
    %v2511 = vld [vmem:[#allocation9 + $0x48] sm:$0xff]
    %v2512 = vld [vmem:[#allocation9 + $0x50] sm:$0xff]
    %v2513 = vld [vmem:[#allocation9 + $0x58] sm:$0xff]
    %v2514 = vld [vmem:[#allocation9 + $0x60] sm:$0xff]
    %v2515 = vld [vmem:[#allocation9 + $0x68] sm:$0xff]
    %v2516 = vld [vmem:[#allocation9 + $0x70] sm:$0xff]
    %v2517 = vld [vmem:[#allocation9 + $0x78] sm:$0xff]
    %v2518 = vld [vmem:[#allocation9 + $0x80] sm:$0xff]
    %v2519 = vld [vmem:[#allocation9 + $0x88] sm:$0xff]
    %v2520 = vld [vmem:[#allocation9 + $0x90] sm:$0xff]
    %v2521 = vld [vmem:[#allocation9 + $0x98] sm:$0xff]
    %v2522 = vld [vmem:[#allocation9 + $0xa0] sm:$0xff]
    %v2523 = vld [vmem:[#allocation9 + $0xa8] sm:$0xff]
    %v2524 = vld [vmem:[#allocation9 + $0xb0] sm:$0xff]
    %v2525 = vld [vmem:[#allocation9 + $0xb8] sm:$0xff]
    %v2526 = vld [vmem:[#allocation9 + $0xc0] sm:$0xff]
    %v2527 = vld [vmem:[#allocation9 + $0xc8] sm:$0xff]
    %v2528 = vld [vmem:[#allocation9 + $0xd0] sm:$0xff]
    %v2529 = vld [vmem:[#allocation9 + $0xd8] sm:$0xff]
    %v2530 = vld [vmem:[#allocation9 + $0xe0] sm:$0xff]
    %v2531 = vld [vmem:[#allocation9 + $0xe8] sm:$0xff]
    %v2532 = vld [vmem:[#allocation9 + $0xf0] sm:$0xff]
    %v2533 = vld [vmem:[#allocation9 + $0xf8] sm:$0xff]
    %v2534 = vld [vmem:[#allocation9 + $0x100] sm:$0xff]
    %v2535 = vld [vmem:[#allocation9 + $0x108] sm:$0xff]
    %v2536 = vld [vmem:[#allocation9 + $0x110] sm:$0xff]
    %v2537 = vld [vmem:[#allocation9 + $0x118] sm:$0xff]
    %v2538 = vld [vmem:[#allocation9 + $0x120] sm:$0xff]
    %v2539 = vld [vmem:[#allocation9 + $0x128] sm:$0xff]
    %v2540 = vld [vmem:[#allocation9 + $0x130] sm:$0xff]
    %v2541 = vld [vmem:[#allocation9 + $0x138] sm:$0xff]
    %v2542 = vld [vmem:[#allocation9 + $0x140] sm:$0xff]
    %v2543 = vld [vmem:[#allocation9 + $0x148] sm:$0xff]
    %v2544 = vld [vmem:[#allocation9 + $0x150] sm:$0xff]
    %v2545 = vld [vmem:[#allocation9 + $0x158] sm:$0xff]
    %v2546 = vld [vmem:[#allocation9 + $0x160] sm:$0xff]
    %v2547 = vld [vmem:[#allocation9 + $0x168] sm:$0xff]
    %v2548 = vld [vmem:[#allocation9 + $0x170] sm:$0xff]
    %v2549 = vld [vmem:[#allocation9 + $0x178] sm:$0xff]
    %v2550 = vld [vmem:[#allocation9 + $0x180] sm:$0xff]
    %v2551 = vld [vmem:[#allocation9 + $0x188] sm:$0xff]
    %v2552 = vld [vmem:[#allocation9 + $0x190] sm:$0xff]
    %v2553 = vld [vmem:[#allocation9 + $0x198] sm:$0xff]
    %v2554 = vld [vmem:[#allocation9 + $0x1a0] sm:$0xff]
    %v2555 = vld [vmem:[#allocation9 + $0x1a8] sm:$0xff]
    %v2556 = vld [vmem:[#allocation9 + $0x1b0] sm:$0xff]
    %v2557 = vld [vmem:[#allocation9 + $0x1b8] sm:$0xff]
    %v2558 = vld [vmem:[#allocation9 + $0x1c0] sm:$0xff]
    %v2559 = vld [vmem:[#allocation9 + $0x1c8] sm:$0xff]
    %v2560 = vld [vmem:[#allocation9 + $0x1d0] sm:$0xff]
    %v2561 = vld [vmem:[#allocation9 + $0x1d8] sm:$0xff]
    %v2562 = vld [vmem:[#allocation9 + $0x1e0] sm:$0xff]
    %v2563 = vld [vmem:[#allocation9 + $0x1e8] sm:$0xff]
    %v2564 = vld [vmem:[#allocation9 + $0x1f0] sm:$0xff]
    %v2565 = vld [vmem:[#allocation9 + $0x1f8] sm:$0xff]
    %v2566 = vld [vmem:[#allocation9 + $0x200] sm:$0xff]
    %v2567 = vld [vmem:[#allocation9 + $0x208] sm:$0xff]
    %v2568 = vld [vmem:[#allocation9 + $0x210] sm:$0xff]
    %v2569 = vld [vmem:[#allocation9 + $0x218] sm:$0xff]
    %v2570 = vld [vmem:[#allocation9 + $0x220] sm:$0xff]
    %v2571 = vld [vmem:[#allocation9 + $0x228] sm:$0xff]
    %v2572 = vld [vmem:[#allocation9 + $0x230] sm:$0xff]
    %v2573 = vld [vmem:[#allocation9 + $0x238] sm:$0xff]
    %v2574 = vld [vmem:[#allocation9 + $0x240] sm:$0xff]
    %v2575 = vld [vmem:[#allocation9 + $0x248] sm:$0xff]
    %v2576 = vld [vmem:[#allocation9 + $0x250] sm:$0xff]
    %v2577 = vld [vmem:[#allocation9 + $0x258] sm:$0xff]
    %v2578 = vld [vmem:[#allocation9 + $0x260] sm:$0xff]
    %v2579 = vld [vmem:[#allocation9 + $0x268] sm:$0xff]
    %v2580 = vld [vmem:[#allocation9 + $0x270] sm:$0xff]
    %v2581 = vld [vmem:[#allocation9 + $0x278] sm:$0xff]
    %v2582 = vld [vmem:[#allocation9 + $0x280] sm:$0xff]
    %v2583 = vld [vmem:[#allocation9 + $0x288] sm:$0xff]
    %v2584 = vld [vmem:[#allocation9 + $0x290] sm:$0xff]
    %v2585 = vld [vmem:[#allocation9 + $0x298] sm:$0xff]
    %v2586 = vld [vmem:[#allocation9 + $0x2a0] sm:$0xff]
    %v2587 = vld [vmem:[#allocation9 + $0x2a8] sm:$0xff]
    %v2588 = vld [vmem:[#allocation9 + $0x2b0] sm:$0xff]
    %v2589 = vld [vmem:[#allocation9 + $0x2b8] sm:$0xff]
    %v2590 = vld [vmem:[#allocation9 + $0x2c0] sm:$0xff]
    %v2591 = vld [vmem:[#allocation9 + $0x2c8] sm:$0xff]
    %v2592 = vld [vmem:[#allocation9 + $0x2d0] sm:$0xff]
    %v2593 = vld [vmem:[#allocation9 + $0x2d8] sm:$0xff]
    %v2594 = vld [vmem:[#allocation9 + $0x2e0] sm:$0xff]
    %v2595 = vld [vmem:[#allocation9 + $0x2e8] sm:$0xff]
    %v2596 = vld [vmem:[#allocation9 + $0x2f0] sm:$0xff]
    %v2597 = vld [vmem:[#allocation9 + $0x2f8] sm:$0xff]
    %v2598 = vld [vmem:[#allocation9 + $0x300] sm:$0xff]
    %v2599 = vld [vmem:[#allocation9 + $0x308] sm:$0xff]
    %v2600 = vld [vmem:[#allocation9 + $0x310] sm:$0xff]
    %v2601 = vld [vmem:[#allocation9 + $0x318] sm:$0xff]
    %v2602 = vld [vmem:[#allocation9 + $0x320] sm:$0xff]
    %v2603 = vld [vmem:[#allocation9 + $0x328] sm:$0xff]
    %v2604 = vld [vmem:[#allocation9 + $0x330] sm:$0xff]
    %v2605 = vld [vmem:[#allocation9 + $0x338] sm:$0xff]
    %v2606 = vld [vmem:[#allocation9 + $0x340] sm:$0xff]
    %v2607 = vld [vmem:[#allocation9 + $0x348] sm:$0xff]
    %v2608 = vld [vmem:[#allocation9 + $0x350] sm:$0xff]
    %v2609 = vld [vmem:[#allocation9 + $0x358] sm:$0xff]
    %v2610 = vld [vmem:[#allocation9 + $0x360] sm:$0xff]
    %v2611 = vld [vmem:[#allocation9 + $0x368] sm:$0xff]
    %v2612 = vld [vmem:[#allocation9 + $0x370] sm:$0xff]
    %v2613 = vld [vmem:[#allocation9 + $0x378] sm:$0xff]
    %v2614 = vld [vmem:[#allocation9 + $0x380] sm:$0xff]
    %v2615 = vld [vmem:[#allocation9 + $0x388] sm:$0xff]
    %v2616 = vld [vmem:[#allocation9 + $0x390] sm:$0xff]
    %v2617 = vld [vmem:[#allocation9 + $0x398] sm:$0xff]
    %v2618 = vld [vmem:[#allocation9 + $0x3a0] sm:$0xff]
    %v2619 = vld [vmem:[#allocation9 + $0x3a8] sm:$0xff]
    %v2620 = vld [vmem:[#allocation9 + $0x3b0] sm:$0xff]
    %v2621 = vld [vmem:[#allocation9 + $0x3b8] sm:$0xff]
    %v2622 = vld [vmem:[#allocation9 + $0x3c0] sm:$0xff]
    %v2623 = vld [vmem:[#allocation9 + $0x3c8] sm:$0xff]
    %v2624 = vld [vmem:[#allocation9 + $0x3d0] sm:$0xff]
    %v2625 = vld [vmem:[#allocation9 + $0x3d8] sm:$0xff]
    %v2626 = vld [vmem:[#allocation9 + $0x3e0] sm:$0xff]
    %v2627 = vld [vmem:[#allocation9 + $0x3e8] sm:$0xff]
    %v2628 = vld [vmem:[#allocation9 + $0x3f0] sm:$0xff]
    %v2629 = vld [vmem:[#allocation9 + $0x3f8] sm:$0xff]
    %v2630 = vld [vmem:[#allocation9 + $0x400] sm:$0xff]
    %v2631 = vld [vmem:[#allocation9 + $0x408] sm:$0xff]
    %v2632 = vld [vmem:[#allocation9 + $0x410] sm:$0xff]
    %v2633 = vld [vmem:[#allocation9 + $0x418] sm:$0xff]
    %v2634 = vld [vmem:[#allocation9 + $0x420] sm:$0xff]
    %v2635 = vld [vmem:[#allocation9 + $0x428] sm:$0xff]
    %v2636 = vld [vmem:[#allocation9 + $0x430] sm:$0xff]
    %v2637 = vld [vmem:[#allocation9 + $0x438] sm:$0xff]
    %v2638 = vld [vmem:[#allocation9 + $0x440] sm:$0xff]
    %v2639 = vld [vmem:[#allocation9 + $0x448] sm:$0xff]
    %v2640 = vld [vmem:[#allocation9 + $0x450] sm:$0xff]
    %v2641 = vld [vmem:[#allocation9 + $0x458] sm:$0xff]
    %v2642 = vld [vmem:[#allocation9 + $0x460] sm:$0xff]
    %v2643 = vld [vmem:[#allocation9 + $0x468] sm:$0xff]
    %v2644 = vld [vmem:[#allocation9 + $0x470] sm:$0xff]
    %v2645 = vld [vmem:[#allocation9 + $0x478] sm:$0xff]
    %v2646 = vld [vmem:[#allocation9 + $0x480] sm:$0xff]
    %v2647 = vld [vmem:[#allocation9 + $0x488] sm:$0xff]
    %v2648 = vld [vmem:[#allocation9 + $0x490] sm:$0xff]
    %v2649 = vld [vmem:[#allocation9 + $0x498] sm:$0xff]
    %v2650 = vld [vmem:[#allocation9 + $0x4a0] sm:$0xff]
    %v2651 = vld [vmem:[#allocation9 + $0x4a8] sm:$0xff]
    %v2652 = vld [vmem:[#allocation9 + $0x4b0] sm:$0xff]
    %v2653 = vld [vmem:[#allocation9 + $0x4b8] sm:$0xff]
    %v2654 = vld [vmem:[#allocation9 + $0x4c0] sm:$0xff]
    %v2655 = vld [vmem:[#allocation9 + $0x4c8] sm:$0xff]
    %v2656 = vld [vmem:[#allocation9 + $0x4d0] sm:$0xff]
    %v2657 = vld [vmem:[#allocation9 + $0x4d8] sm:$0xff]
    %v2658 = vld [vmem:[#allocation9 + $0x4e0] sm:$0xff]
    %v2659 = vld [vmem:[#allocation9 + $0x4e8] sm:$0xff]
    %v2660 = vld [vmem:[#allocation9 + $0x4f0] sm:$0xff]
    %v2661 = vld [vmem:[#allocation9 + $0x4f8] sm:$0xff]
    %v2662 = vld [vmem:[#allocation9 + $0x500] sm:$0xff]
    %v2663 = vld [vmem:[#allocation9 + $0x508] sm:$0xff]
    %v2664 = vld [vmem:[#allocation9 + $0x510] sm:$0xff]
    %v2665 = vld [vmem:[#allocation9 + $0x518] sm:$0xff]
    %v2666 = vld [vmem:[#allocation9 + $0x520] sm:$0xff]
    %v2667 = vld [vmem:[#allocation9 + $0x528] sm:$0xff]
    %v2668 = vld [vmem:[#allocation9 + $0x530] sm:$0xff]
    %v2669 = vld [vmem:[#allocation9 + $0x538] sm:$0xff]
    %v2670 = vld [vmem:[#allocation9 + $0x540] sm:$0xff]
    %v2671 = vld [vmem:[#allocation9 + $0x548] sm:$0xff]
    %v2672 = vld [vmem:[#allocation9 + $0x550] sm:$0xff]
    %v2673 = vld [vmem:[#allocation9 + $0x558] sm:$0xff]
    %v2674 = vld [vmem:[#allocation9 + $0x560] sm:$0xff]
    %v2675 = vld [vmem:[#allocation9 + $0x568] sm:$0xff]
    %v2676 = vld [vmem:[#allocation9 + $0x570] sm:$0xff]
    %v2677 = vld [vmem:[#allocation9 + $0x578] sm:$0xff]
    %v2678 = vld [vmem:[#allocation9 + $0x580] sm:$0xff]
    %v2679 = vld [vmem:[#allocation9 + $0x588] sm:$0xff]
    %v2680 = vld [vmem:[#allocation9 + $0x590] sm:$0xff]
    %v2681 = vld [vmem:[#allocation9 + $0x598] sm:$0xff]
    %v2682 = vld [vmem:[#allocation9 + $0x5a0] sm:$0xff]
    %v2683 = vld [vmem:[#allocation9 + $0x5a8] sm:$0xff]
    %v2684 = vld [vmem:[#allocation9 + $0x5b0] sm:$0xff]
    %v2685 = vld [vmem:[#allocation9 + $0x5b8] sm:$0xff]
    %v2686 = vld [vmem:[#allocation9 + $0x5c0] sm:$0xff]
    %v2687 = vld [vmem:[#allocation9 + $0x5c8] sm:$0xff]
    %v2688 = vld [vmem:[#allocation9 + $0x5d0] sm:$0xff]
    %v2689 = vld [vmem:[#allocation9 + $0x5d8] sm:$0xff]
    %v2690 = vld [vmem:[#allocation9 + $0x5e0] sm:$0xff]
    %v2691 = vld [vmem:[#allocation9 + $0x5e8] sm:$0xff]
    %v2692 = vld [vmem:[#allocation9 + $0x5f0] sm:$0xff]
    %v2693 = vld [vmem:[#allocation9 + $0x5f8] sm:$0xff]
    %v2694 = vld [vmem:[#allocation9 + $0x600] sm:$0xff]
    %v2695 = vld [vmem:[#allocation9 + $0x608] sm:$0xff]
    %v2696 = vld [vmem:[#allocation9 + $0x610] sm:$0xff]
    %v2697 = vld [vmem:[#allocation9 + $0x618] sm:$0xff]
    %v2698 = vld [vmem:[#allocation9 + $0x620] sm:$0xff]
    %v2699 = vld [vmem:[#allocation9 + $0x628] sm:$0xff]
    %v2700 = vld [vmem:[#allocation9 + $0x630] sm:$0xff]
    %v2701 = vld [vmem:[#allocation9 + $0x638] sm:$0xff]
    %v2702 = vld [vmem:[#allocation9 + $0x640] sm:$0xff]
    %v2703 = vld [vmem:[#allocation9 + $0x648] sm:$0xff]
    %v2704 = vld [vmem:[#allocation9 + $0x650] sm:$0xff]
    %v2705 = vld [vmem:[#allocation9 + $0x658] sm:$0xff]
    %v2706 = vld [vmem:[#allocation9 + $0x660] sm:$0xff]
    %v2707 = vld [vmem:[#allocation9 + $0x668] sm:$0xff]
    %v2708 = vld [vmem:[#allocation9 + $0x670] sm:$0xff]
    %v2709 = vld [vmem:[#allocation9 + $0x678] sm:$0xff]
    %v2710 = vld [vmem:[#allocation9 + $0x680] sm:$0xff]
    %v2711 = vld [vmem:[#allocation9 + $0x688] sm:$0xff]
    %v2712 = vld [vmem:[#allocation9 + $0x690] sm:$0xff]
    %v2713 = vld [vmem:[#allocation9 + $0x698] sm:$0xff]
    %v2714 = vld [vmem:[#allocation9 + $0x6a0] sm:$0xff]
    %v2715 = vld [vmem:[#allocation9 + $0x6a8] sm:$0xff]
    %v2716 = vld [vmem:[#allocation9 + $0x6b0] sm:$0xff]
    %v2717 = vld [vmem:[#allocation9 + $0x6b8] sm:$0xff]
    %v2718 = vld [vmem:[#allocation9 + $0x6c0] sm:$0xff]
    %v2719 = vld [vmem:[#allocation9 + $0x6c8] sm:$0xff]
    %v2720 = vld [vmem:[#allocation9 + $0x6d0] sm:$0xff]
    %v2721 = vld [vmem:[#allocation9 + $0x6d8] sm:$0xff]
    %v2722 = vld [vmem:[#allocation9 + $0x6e0] sm:$0xff]
    %v2723 = vld [vmem:[#allocation9 + $0x6e8] sm:$0xff]
    %v2724 = vld [vmem:[#allocation9 + $0x6f0] sm:$0xff]
    %v2725 = vld [vmem:[#allocation9 + $0x6f8] sm:$0xff]
    %v2726 = vld [vmem:[#allocation9 + $0x700] sm:$0xff]
    %v2727 = vld [vmem:[#allocation9 + $0x708] sm:$0xff]
    %v2728 = vld [vmem:[#allocation9 + $0x710] sm:$0xff]
    %v2729 = vld [vmem:[#allocation9 + $0x718] sm:$0xff]
    %v2730 = vld [vmem:[#allocation9 + $0x720] sm:$0xff]
    %v2731 = vld [vmem:[#allocation9 + $0x728] sm:$0xff]
    %v2732 = vld [vmem:[#allocation9 + $0x730] sm:$0xff]
    %v2733 = vld [vmem:[#allocation9 + $0x738] sm:$0xff]
    %v2734 = vld [vmem:[#allocation9 + $0x740] sm:$0xff]
    %v2735 = vld [vmem:[#allocation9 + $0x748] sm:$0xff]
    %v2736 = vld [vmem:[#allocation9 + $0x750] sm:$0xff]
    %v2737 = vld [vmem:[#allocation9 + $0x758] sm:$0xff]
    %v2738 = vld [vmem:[#allocation9 + $0x760] sm:$0xff]
    %v2739 = vld [vmem:[#allocation9 + $0x768] sm:$0xff]
    %v2740 = vld [vmem:[#allocation9 + $0x770] sm:$0xff]
    %v2741 = vld [vmem:[#allocation9 + $0x778] sm:$0xff]
    %v2742 = vld [vmem:[#allocation9 + $0x780] sm:$0xff]
    %v2743 = vld [vmem:[#allocation9 + $0x788] sm:$0xff]
    %v2744 = vld [vmem:[#allocation9 + $0x790] sm:$0xff]
    %v2745 = vld [vmem:[#allocation9 + $0x798] sm:$0xff]
    %v2746 = vld [vmem:[#allocation9 + $0x7a0] sm:$0xff]
    %v2747 = vld [vmem:[#allocation9 + $0x7a8] sm:$0xff]
    %v2748 = vld [vmem:[#allocation9 + $0x7b0] sm:$0xff]
    %v2749 = vld [vmem:[#allocation9 + $0x7b8] sm:$0xff]
    %v2750 = vld [vmem:[#allocation9 + $0x7c0] sm:$0xff]
    %v2751 = vld [vmem:[#allocation9 + $0x7c8] sm:$0xff]
    %v2752 = vld [vmem:[#allocation9 + $0x7d0] sm:$0xff]
    %v2753 = vld [vmem:[#allocation9 + $0x7d8] sm:$0xff]
    %v2754 = vld [vmem:[#allocation9 + $0x7e0] sm:$0xff]
    %v2755 = vld [vmem:[#allocation9 + $0x7e8] sm:$0xff]
    %v2756 = vld [vmem:[#allocation9 + $0x7f0] sm:$0xff]
    %v2757 = vld [vmem:[#allocation9 + $0x7f8] sm:$0xff]
    %v2758 = vld [vmem:[#allocation9 + $0x800] sm:$0xff]
    %v2759 = vld [vmem:[#allocation9 + $0x808] sm:$0xff]
    %v2760 = vld [vmem:[#allocation9 + $0x810] sm:$0xff]
    %v2761 = vld [vmem:[#allocation9 + $0x818] sm:$0xff]
    %v2762 = vld [vmem:[#allocation9 + $0x820] sm:$0xff]
    %v2763 = vld [vmem:[#allocation9 + $0x828] sm:$0xff]
    %v2764 = vld [vmem:[#allocation9 + $0x830] sm:$0xff]
    %v2765 = vld [vmem:[#allocation9 + $0x838] sm:$0xff]
    %v2766 = vld [vmem:[#allocation9 + $0x840] sm:$0xff]
    %v2767 = vld [vmem:[#allocation9 + $0x848] sm:$0xff]
    %v2768 = vld [vmem:[#allocation9 + $0x850] sm:$0xff]
    %v2769 = vld [vmem:[#allocation9 + $0x858] sm:$0xff]
    %v2770 = vld [vmem:[#allocation9 + $0x860] sm:$0xff]
    %v2771 = vld [vmem:[#allocation9 + $0x868] sm:$0xff]
    %v2772 = vld [vmem:[#allocation9 + $0x870] sm:$0xff]
    %v2773 = vld [vmem:[#allocation9 + $0x878] sm:$0xff]
    %v2774 = vld [vmem:[#allocation9 + $0x880] sm:$0xff]
    %v2775 = vld [vmem:[#allocation9 + $0x888] sm:$0xff]
    %v2776 = vld [vmem:[#allocation9 + $0x890] sm:$0xff]
    %v2777 = vld [vmem:[#allocation9 + $0x898] sm:$0xff]
    %v2778 = vld [vmem:[#allocation9 + $0x8a0] sm:$0xff]
    %v2779 = vld [vmem:[#allocation9 + $0x8a8] sm:$0xff]
    %v2780 = vld [vmem:[#allocation9 + $0x8b0] sm:$0xff]
    %v2781 = vld [vmem:[#allocation9 + $0x8b8] sm:$0xff]
    %v2782 = vld [vmem:[#allocation9 + $0x8c0] sm:$0xff]
    %v2783 = vld [vmem:[#allocation9 + $0x8c8] sm:$0xff]
    %v2784 = vld [vmem:[#allocation9 + $0x8d0] sm:$0xff]
    %v2785 = vld [vmem:[#allocation9 + $0x8d8] sm:$0xff]
    %v2786 = vld [vmem:[#allocation9 + $0x8e0] sm:$0xff]
    %v2787 = vld [vmem:[#allocation9 + $0x8e8] sm:$0xff]
    %v2788 = vld [vmem:[#allocation9 + $0x8f0] sm:$0xff]
    %v2789 = vld [vmem:[#allocation9 + $0x8f8] sm:$0xff]
    %v2790 = vld [vmem:[#allocation9 + $0x900] sm:$0xff]
    %v2791 = vld [vmem:[#allocation9 + $0x908] sm:$0xff]
    %v2792 = vld [vmem:[#allocation9 + $0x910] sm:$0xff]
    %v2793 = vld [vmem:[#allocation9 + $0x918] sm:$0xff]
    %v2794 = vld [vmem:[#allocation9 + $0x920] sm:$0xff]
    %v2795 = vld [vmem:[#allocation9 + $0x928] sm:$0xff]
    %v2796 = vld [vmem:[#allocation9 + $0x930] sm:$0xff]
    %v2797 = vld [vmem:[#allocation9 + $0x938] sm:$0xff]
    %v2798 = vld [vmem:[#allocation9 + $0x940] sm:$0xff]
    %v2799 = vld [vmem:[#allocation9 + $0x948] sm:$0xff]
    %v2800 = vld [vmem:[#allocation9 + $0x950] sm:$0xff]
    %v2801 = vld [vmem:[#allocation9 + $0x958] sm:$0xff]
    %v2802 = vld [vmem:[#allocation9 + $0x960] sm:$0xff]
    %v2803 = vld [vmem:[#allocation9 + $0x968] sm:$0xff]
    %v2804 = vld [vmem:[#allocation9 + $0x970] sm:$0xff]
    %v2805 = vld [vmem:[#allocation9 + $0x978] sm:$0xff]
    %v2806 = vld [vmem:[#allocation9 + $0x980] sm:$0xff]
    %v2807 = vld [vmem:[#allocation9 + $0x988] sm:$0xff]
    %v2808 = vld [vmem:[#allocation9 + $0x990] sm:$0xff]
    %v2809 = vld [vmem:[#allocation9 + $0x998] sm:$0xff]
    %v2810 = vld [vmem:[#allocation9 + $0x9a0] sm:$0xff]
    %v2811 = vld [vmem:[#allocation9 + $0x9a8] sm:$0xff]
    %v2812 = vld [vmem:[#allocation9 + $0x9b0] sm:$0xff]
    %v2813 = vld [vmem:[#allocation9 + $0x9b8] sm:$0xff]
    %v2814 = vld [vmem:[#allocation9 + $0x9c0] sm:$0xff]
    %v2815 = vld [vmem:[#allocation9 + $0x9c8] sm:$0xff]
    %v2816 = vld [vmem:[#allocation9 + $0x9d0] sm:$0xff]
    %v2817 = vld [vmem:[#allocation9 + $0x9d8] sm:$0xff]
    %v2818 = vld [vmem:[#allocation9 + $0x9e0] sm:$0xff]
    %v2819 = vld [vmem:[#allocation9 + $0x9e8] sm:$0xff]
    %v2820 = vld [vmem:[#allocation9 + $0x9f0] sm:$0xff]
    %v2821 = vld [vmem:[#allocation9 + $0x9f8] sm:$0xff]
    %v2822 = vld [vmem:[#allocation9 + $0xa00] sm:$0xff]
    %v2823 = vld [vmem:[#allocation9 + $0xa08] sm:$0xff]
    %v2824 = vld [vmem:[#allocation9 + $0xa10] sm:$0xff]
    %v2825 = vld [vmem:[#allocation9 + $0xa18] sm:$0xff]
    %v2826 = vld [vmem:[#allocation9 + $0xa20] sm:$0xff]
    %v2827 = vld [vmem:[#allocation9 + $0xa28] sm:$0xff]
    %v2828 = vld [vmem:[#allocation9 + $0xa30] sm:$0xff]
    %v2829 = vld [vmem:[#allocation9 + $0xa38] sm:$0xff]
    %v2830 = vld [vmem:[#allocation9 + $0xa40] sm:$0xff]
    %v2831 = vld [vmem:[#allocation9 + $0xa48] sm:$0xff]
    %v2832 = vld [vmem:[#allocation9 + $0xa50] sm:$0xff]
    %v2833 = vld [vmem:[#allocation9 + $0xa58] sm:$0xff]
    %v2834 = vld [vmem:[#allocation9 + $0xa60] sm:$0xff]
    %v2835 = vld [vmem:[#allocation9 + $0xa68] sm:$0xff]
    %v2836 = vld [vmem:[#allocation9 + $0xa70] sm:$0xff]
    %v2837 = vld [vmem:[#allocation9 + $0xa78] sm:$0xff]
    %v2838 = vld [vmem:[#allocation9 + $0xa80] sm:$0xff]
    %v2839 = vld [vmem:[#allocation9 + $0xa88] sm:$0xff]
    %v2840 = vld [vmem:[#allocation9 + $0xa90] sm:$0xff]
    %v2841 = vld [vmem:[#allocation9 + $0xa98] sm:$0xff]
    %v2842 = vld [vmem:[#allocation9 + $0xaa0] sm:$0xff]
    %v2843 = vld [vmem:[#allocation9 + $0xaa8] sm:$0xff]
    %v2844 = vld [vmem:[#allocation9 + $0xab0] sm:$0xff]
    %v2845 = vld [vmem:[#allocation9 + $0xab8] sm:$0xff]
    %v2846 = vld [vmem:[#allocation9 + $0xac0] sm:$0xff]
    %v2847 = vld [vmem:[#allocation9 + $0xac8] sm:$0xff]
    %v2848 = vld [vmem:[#allocation9 + $0xad0] sm:$0xff]
    %v2849 = vld [vmem:[#allocation9 + $0xad8] sm:$0xff]
    %v2850 = vld [vmem:[#allocation9 + $0xae0] sm:$0xff]
    %v2851 = vld [vmem:[#allocation9 + $0xae8] sm:$0xff]
    %v2852 = vld [vmem:[#allocation9 + $0xaf0] sm:$0xff]
    %v2853 = vld [vmem:[#allocation9 + $0xaf8] sm:$0xff]
    %v2854 = vld [vmem:[#allocation9 + $0xb00] sm:$0xff]
    %v2855 = vld [vmem:[#allocation9 + $0xb08] sm:$0xff]
    %v2856 = vld [vmem:[#allocation9 + $0xb10] sm:$0xff]
    %v2857 = vld [vmem:[#allocation9 + $0xb18] sm:$0xff]
    %v2858 = vld [vmem:[#allocation9 + $0xb20] sm:$0xff]
    %v2859 = vld [vmem:[#allocation9 + $0xb28] sm:$0xff]
    %v2860 = vld [vmem:[#allocation9 + $0xb30] sm:$0xff]
    %v2861 = vld [vmem:[#allocation9 + $0xb38] sm:$0xff]
    %v2862 = vld [vmem:[#allocation9 + $0xb40] sm:$0xff]
    %v2863 = vld [vmem:[#allocation9 + $0xb48] sm:$0xff]
    %v2864 = vld [vmem:[#allocation9 + $0xb50] sm:$0xff]
    %v2865 = vld [vmem:[#allocation9 + $0xb58] sm:$0xff]
    %v2866 = vld [vmem:[#allocation9 + $0xb60] sm:$0xff]
    %v2867 = vld [vmem:[#allocation9 + $0xb68] sm:$0xff]
    %v2868 = vld [vmem:[#allocation9 + $0xb70] sm:$0xff]
    %v2869 = vld [vmem:[#allocation9 + $0xb78] sm:$0xff]
    %v2870 = vld [vmem:[#allocation9 + $0xb80] sm:$0xff]
    %v2871 = vld [vmem:[#allocation9 + $0xb88] sm:$0xff]
    %v2872 = vld [vmem:[#allocation9 + $0xb90] sm:$0xff]
    %v2873 = vld [vmem:[#allocation9 + $0xb98] sm:$0xff]
    %v2874 = vld [vmem:[#allocation9 + $0xba0] sm:$0xff]
    %v2875 = vld [vmem:[#allocation9 + $0xba8] sm:$0xff]
    %v2876 = vld [vmem:[#allocation9 + $0xbb0] sm:$0xff]
    %v2877 = vld [vmem:[#allocation9 + $0xbb8] sm:$0xff]
    %v2878 = vld [vmem:[#allocation9 + $0xbc0] sm:$0xff]
    %v2879 = vld [vmem:[#allocation9 + $0xbc8] sm:$0xff]
    %v2880 = vld [vmem:[#allocation9 + $0xbd0] sm:$0xff]
    %v2881 = vld [vmem:[#allocation9 + $0xbd8] sm:$0xff]
    %v2882 = vld [vmem:[#allocation9 + $0xbe0] sm:$0xff]
    %v2883 = vld [vmem:[#allocation9 + $0xbe8] sm:$0xff]
    %v2884 = vld [vmem:[#allocation9 + $0xbf0] sm:$0xff]
    %v2885 = vld [vmem:[#allocation9 + $0xbf8] sm:$0xff]
    %v2886 = vld [vmem:[#allocation9 + $0xc00] sm:$0xff]
    %v2887 = vld [vmem:[#allocation9 + $0xc08] sm:$0xff]
    %v2888 = vld [vmem:[#allocation9 + $0xc10] sm:$0xff]
    %v2889 = vld [vmem:[#allocation9 + $0xc18] sm:$0xff]
    %v2890 = vld [vmem:[#allocation9 + $0xc20] sm:$0xff]
    %v2891 = vld [vmem:[#allocation9 + $0xc28] sm:$0xff]
    %v2892 = vld [vmem:[#allocation9 + $0xc30] sm:$0xff]
    %v2893 = vld [vmem:[#allocation9 + $0xc38] sm:$0xff]
    %v2894 = vld [vmem:[#allocation9 + $0xc40] sm:$0xff]
    %v2895 = vld [vmem:[#allocation9 + $0xc48] sm:$0xff]
    %v2896 = vld [vmem:[#allocation9 + $0xc50] sm:$0xff]
    %v2897 = vld [vmem:[#allocation9 + $0xc58] sm:$0xff]
    %v2898 = vld [vmem:[#allocation9 + $0xc60] sm:$0xff]
    %v2899 = vld [vmem:[#allocation9 + $0xc68] sm:$0xff]
    %v2900 = vld [vmem:[#allocation9 + $0xc70] sm:$0xff]
    %v2901 = vld [vmem:[#allocation9 + $0xc78] sm:$0xff]
    %v2902 = vld [vmem:[#allocation9 + $0xc80] sm:$0xff]
    %v2903 = vld [vmem:[#allocation9 + $0xc88] sm:$0xff]
    %v2904 = vld [vmem:[#allocation9 + $0xc90] sm:$0xff]
    %v2905 = vld [vmem:[#allocation9 + $0xc98] sm:$0xff]
    %v2906 = vld [vmem:[#allocation9 + $0xca0] sm:$0xff]
    %v2907 = vld [vmem:[#allocation9 + $0xca8] sm:$0xff]
    %v2908 = vld [vmem:[#allocation9 + $0xcb0] sm:$0xff]
    %v2909 = vld [vmem:[#allocation9 + $0xcb8] sm:$0xff]
    %v2910 = vld [vmem:[#allocation9 + $0xcc0] sm:$0xff]
    %v2911 = vld [vmem:[#allocation9 + $0xcc8] sm:$0xff]
    %v2912 = vld [vmem:[#allocation9 + $0xcd0] sm:$0xff]
    %v2913 = vld [vmem:[#allocation9 + $0xcd8] sm:$0xff]
    %v2914 = vld [vmem:[#allocation9 + $0xce0] sm:$0xff]
    %v2915 = vld [vmem:[#allocation9 + $0xce8] sm:$0xff]
    %v2916 = vld [vmem:[#allocation9 + $0xcf0] sm:$0xff]
    %v2917 = vld [vmem:[#allocation9 + $0xcf8] sm:$0xff]
    %v2918 = vld [vmem:[#allocation9 + $0xd00] sm:$0xff]
    %v2919 = vld [vmem:[#allocation9 + $0xd08] sm:$0xff]
    %v2920 = vld [vmem:[#allocation9 + $0xd10] sm:$0xff]
    %v2921 = vld [vmem:[#allocation9 + $0xd18] sm:$0xff]
    %v2922 = vld [vmem:[#allocation9 + $0xd20] sm:$0xff]
    %v2923 = vld [vmem:[#allocation9 + $0xd28] sm:$0xff]
    %v2924 = vld [vmem:[#allocation9 + $0xd30] sm:$0xff]
    %v2925 = vld [vmem:[#allocation9 + $0xd38] sm:$0xff]
    %v2926 = vld [vmem:[#allocation9 + $0xd40] sm:$0xff]
    %v2927 = vld [vmem:[#allocation9 + $0xd48] sm:$0xff]
    %v2928 = vld [vmem:[#allocation9 + $0xd50] sm:$0xff]
    %v2929 = vld [vmem:[#allocation9 + $0xd58] sm:$0xff]
    %v2930 = vld [vmem:[#allocation9 + $0xd60] sm:$0xff]
    %v2931 = vld [vmem:[#allocation9 + $0xd68] sm:$0xff]
    %v2932 = vld [vmem:[#allocation9 + $0xd70] sm:$0xff]
    %v2933 = vld [vmem:[#allocation9 + $0xd78] sm:$0xff]
    %v2934 = vld [vmem:[#allocation9 + $0xd80] sm:$0xff]
    %v2935 = vld [vmem:[#allocation9 + $0xd88] sm:$0xff]
    %v2936 = vld [vmem:[#allocation9 + $0xd90] sm:$0xff]
    %v2937 = vld [vmem:[#allocation9 + $0xd98] sm:$0xff]
    %v2938 = vld [vmem:[#allocation9 + $0xda0] sm:$0xff]
    %v2939 = vld [vmem:[#allocation9 + $0xda8] sm:$0xff]
    %v2940 = vld [vmem:[#allocation9 + $0xdb0] sm:$0xff]
    %v2941 = vld [vmem:[#allocation9 + $0xdb8] sm:$0xff]
    %v2942 = vld [vmem:[#allocation9 + $0xdc0] sm:$0xff]
    %v2943 = vld [vmem:[#allocation9 + $0xdc8] sm:$0xff]
    %v2944 = vld [vmem:[#allocation9 + $0xdd0] sm:$0xff]
    %v2945 = vld [vmem:[#allocation9 + $0xdd8] sm:$0xff]
    %v2946 = vld [vmem:[#allocation9 + $0xde0] sm:$0xff]
    %v2947 = vld [vmem:[#allocation9 + $0xde8] sm:$0xff]
    %v2948 = vld [vmem:[#allocation9 + $0xdf0] sm:$0xff]
    %v2949 = vld [vmem:[#allocation9 + $0xdf8] sm:$0xff]
    %v2950 = vld [vmem:[#allocation9 + $0xe00] sm:$0xff]
    %v2951 = vld [vmem:[#allocation9 + $0xe08] sm:$0xff]
    %v2952 = vld [vmem:[#allocation9 + $0xe10] sm:$0xff]
    %v2953 = vld [vmem:[#allocation9 + $0xe18] sm:$0xff]
    %v2954 = vld [vmem:[#allocation9 + $0xe20] sm:$0xff]
    %v2955 = vld [vmem:[#allocation9 + $0xe28] sm:$0xff]
    %v2956 = vld [vmem:[#allocation9 + $0xe30] sm:$0xff]
    %v2957 = vld [vmem:[#allocation9 + $0xe38] sm:$0xff]
    %v2958 = vld [vmem:[#allocation9 + $0xe40] sm:$0xff]
    %v2959 = vld [vmem:[#allocation9 + $0xe48] sm:$0xff]
    %v2960 = vld [vmem:[#allocation9 + $0xe50] sm:$0xff]
    %v2961 = vld [vmem:[#allocation9 + $0xe58] sm:$0xff]
    %v2962 = vld [vmem:[#allocation9 + $0xe60] sm:$0xff]
    %v2963 = vld [vmem:[#allocation9 + $0xe68] sm:$0xff]
    %v2964 = vld [vmem:[#allocation9 + $0xe70] sm:$0xff]
    %v2965 = vld [vmem:[#allocation9 + $0xe78] sm:$0xff]
    %v2966 = vld [vmem:[#allocation9 + $0xe80] sm:$0xff]
    %v2967 = vld [vmem:[#allocation9 + $0xe88] sm:$0xff]
    %v2968 = vld [vmem:[#allocation9 + $0xe90] sm:$0xff]
    %v2969 = vld [vmem:[#allocation9 + $0xe98] sm:$0xff]
    %v2970 = vld [vmem:[#allocation9 + $0xea0] sm:$0xff]
    %v2971 = vld [vmem:[#allocation9 + $0xea8] sm:$0xff]
    %v2972 = vld [vmem:[#allocation9 + $0xeb0] sm:$0xff]
    %v2973 = vld [vmem:[#allocation9 + $0xeb8] sm:$0xff]
    %v2974 = vld [vmem:[#allocation9 + $0xec0] sm:$0xff]
    %v2975 = vld [vmem:[#allocation9 + $0xec8] sm:$0xff]
    %v2976 = vld [vmem:[#allocation9 + $0xed0] sm:$0xff]
    %v2977 = vld [vmem:[#allocation9 + $0xed8] sm:$0xff]
    %v2978 = vld [vmem:[#allocation9 + $0xee0] sm:$0xff]
    %v2979 = vld [vmem:[#allocation9 + $0xee8] sm:$0xff]
    %v2980 = vld [vmem:[#allocation9 + $0xef0] sm:$0xff]
    %v2981 = vld [vmem:[#allocation9 + $0xef8] sm:$0xff]
    %v2982 = vld [vmem:[#allocation9 + $0xf00] sm:$0xff]
    %v2983 = vld [vmem:[#allocation9 + $0xf08] sm:$0xff]
    %v2984 = vld [vmem:[#allocation9 + $0xf10] sm:$0xff]
    %v2985 = vld [vmem:[#allocation9 + $0xf18] sm:$0xff]
    %v2986 = vld [vmem:[#allocation9 + $0xf20] sm:$0xff]
    %v2987 = vld [vmem:[#allocation9 + $0xf28] sm:$0xff]
    %v2988 = vld [vmem:[#allocation9 + $0xf30] sm:$0xff]
    %v2989 = vld [vmem:[#allocation9 + $0xf38] sm:$0xff]
    %v2990 = vld [vmem:[#allocation9 + $0xf40] sm:$0xff]
    %v2991 = vld [vmem:[#allocation9 + $0xf48] sm:$0xff]
    %v2992 = vld [vmem:[#allocation9 + $0xf50] sm:$0xff]
    %v2993 = vld [vmem:[#allocation9 + $0xf58] sm:$0xff]
    %v2994 = vld [vmem:[#allocation9 + $0xf60] sm:$0xff]
    %v2995 = vld [vmem:[#allocation9 + $0xf68] sm:$0xff]
    %v2996 = vld [vmem:[#allocation9 + $0xf70] sm:$0xff]
    %v2997 = vld [vmem:[#allocation9 + $0xf78] sm:$0xff]
    %v2998 = vld [vmem:[#allocation9 + $0xf80] sm:$0xff]
    %v2999 = vld [vmem:[#allocation9 + $0xf88] sm:$0xff]
    %v3000 = vld [vmem:[#allocation9 + $0xf90] sm:$0xff]
    %v3001 = vld [vmem:[#allocation9 + $0xf98] sm:$0xff]
    %v3002 = vld [vmem:[#allocation9 + $0xfa0] sm:$0xff]
    %v3003 = vld [vmem:[#allocation9 + $0xfa8] sm:$0xff]
    %v3004 = vld [vmem:[#allocation9 + $0xfb0] sm:$0xff]
    %v3005 = vld [vmem:[#allocation9 + $0xfb8] sm:$0xff]
    %v3006 = vld [vmem:[#allocation9 + $0xfc0] sm:$0xff]
    %v3007 = vld [vmem:[#allocation9 + $0xfc8] sm:$0xff]
    %v3008 = vld [vmem:[#allocation9 + $0xfd0] sm:$0xff]
    %v3009 = vld [vmem:[#allocation9 + $0xfd8] sm:$0xff]
    %v3010 = vld [vmem:[#allocation9 + $0xfe0] sm:$0xff]
    %v3011 = vld [vmem:[#allocation9 + $0xfe8] sm:$0xff]
    %v3012 = vld [vmem:[#allocation9 + $0xff0] sm:$0xff]
    %v3013 = vld [vmem:[#allocation9 + $0xff8] sm:$0xff]
    %v3014 = vld [vmem:[#allocation9 + $0x1000] sm:$0xff]
    %v3015 = vld [vmem:[#allocation9 + $0x1008] sm:$0xff]
    %v3016 = vld [vmem:[#allocation9 + $0x1010] sm:$0xff]
    %v3017 = vld [vmem:[#allocation9 + $0x1018] sm:$0xff]
    %v3018 = vld [vmem:[#allocation9 + $0x1020] sm:$0xff]
    %v3019 = vld [vmem:[#allocation9 + $0x1028] sm:$0xff]
    %v3020 = vld [vmem:[#allocation9 + $0x1030] sm:$0xff]
    %v3021 = vld [vmem:[#allocation9 + $0x1038] sm:$0xff]
    %v3022 = vld [vmem:[#allocation9 + $0x1040] sm:$0xff]
    %v3023 = vld [vmem:[#allocation9 + $0x1048] sm:$0xff]
    %v3024 = vld [vmem:[#allocation9 + $0x1050] sm:$0xff]
    %v3025 = vld [vmem:[#allocation9 + $0x1058] sm:$0xff]
    %v3026 = vld [vmem:[#allocation9 + $0x1060] sm:$0xff]
    %v3027 = vld [vmem:[#allocation9 + $0x1068] sm:$0xff]
    %v3028 = vld [vmem:[#allocation9 + $0x1070] sm:$0xff]
    %v3029 = vld [vmem:[#allocation9 + $0x1078] sm:$0xff]
    %v3030 = vld [vmem:[#allocation9 + $0x1080] sm:$0xff]
    %v3031 = vld [vmem:[#allocation9 + $0x1088] sm:$0xff]
    %v3032 = vld [vmem:[#allocation9 + $0x1090] sm:$0xff]
    %v3033 = vld [vmem:[#allocation9 + $0x1098] sm:$0xff]
    %v3034 = vld [vmem:[#allocation9 + $0x10a0] sm:$0xff]
    %v3035 = vld [vmem:[#allocation9 + $0x10a8] sm:$0xff]
    %v3036 = vld [vmem:[#allocation9 + $0x10b0] sm:$0xff]
    %v3037 = vld [vmem:[#allocation9 + $0x10b8] sm:$0xff]
    %v3038 = vld [vmem:[#allocation9 + $0x10c0] sm:$0xff]
    %v3039 = vld [vmem:[#allocation9 + $0x10c8] sm:$0xff]
    %v3040 = vld [vmem:[#allocation9 + $0x10d0] sm:$0xff]
    %v3041 = vld [vmem:[#allocation9 + $0x10d8] sm:$0xff]
    %v3042 = vld [vmem:[#allocation9 + $0x10e0] sm:$0xff]
    %v3043 = vld [vmem:[#allocation9 + $0x10e8] sm:$0xff]
    %v3044 = vld [vmem:[#allocation9 + $0x10f0] sm:$0xff]
    %v3045 = vld [vmem:[#allocation9 + $0x10f8] sm:$0xff]
    %v3046 = vld [vmem:[#allocation9 + $0x1100] sm:$0xff]
    %v3047 = vld [vmem:[#allocation9 + $0x1108] sm:$0xff]
    %v3048 = vld [vmem:[#allocation9 + $0x1110] sm:$0xff]
    %v3049 = vld [vmem:[#allocation9 + $0x1118] sm:$0xff]
    %v3050 = vld [vmem:[#allocation9 + $0x1120] sm:$0xff]
    %v3051 = vld [vmem:[#allocation9 + $0x1128] sm:$0xff]
    %v3052 = vld [vmem:[#allocation9 + $0x1130] sm:$0xff]
    %v3053 = vld [vmem:[#allocation9 + $0x1138] sm:$0xff]
    %v3054 = vld [vmem:[#allocation9 + $0x1140] sm:$0xff]
    %v3055 = vld [vmem:[#allocation9 + $0x1148] sm:$0xff]
    %v3056 = vld [vmem:[#allocation9 + $0x1150] sm:$0xff]
    %v3057 = vld [vmem:[#allocation9 + $0x1158] sm:$0xff]
    %v3058 = vld [vmem:[#allocation9 + $0x1160] sm:$0xff]
    %v3059 = vld [vmem:[#allocation9 + $0x1168] sm:$0xff]
    %v3060 = vld [vmem:[#allocation9 + $0x1170] sm:$0xff]
    %v3061 = vld [vmem:[#allocation9 + $0x1178] sm:$0xff]
    %v3062 = vld [vmem:[#allocation9 + $0x1180] sm:$0xff]
    %v3063 = vld [vmem:[#allocation9 + $0x1188] sm:$0xff]
    %v3064 = vld [vmem:[#allocation9 + $0x1190] sm:$0xff]
    %v3065 = vld [vmem:[#allocation9 + $0x1198] sm:$0xff]
    %v3066 = vld [vmem:[#allocation9 + $0x11a0] sm:$0xff]
    %v3067 = vld [vmem:[#allocation9 + $0x11a8] sm:$0xff]
    %v3068 = vld [vmem:[#allocation9 + $0x11b0] sm:$0xff]
    %v3069 = vld [vmem:[#allocation9 + $0x11b8] sm:$0xff]
    %v3070 = vld [vmem:[#allocation9 + $0x11c0] sm:$0xff]
    %v3071 = vld [vmem:[#allocation9 + $0x11c8] sm:$0xff]
    %v3072 = vld [vmem:[#allocation9 + $0x11d0] sm:$0xff]
    %v3073 = vld [vmem:[#allocation9 + $0x11d8] sm:$0xff]
    %v3074 = vld [vmem:[#allocation9 + $0x11e0] sm:$0xff]
    %v3075 = vld [vmem:[#allocation9 + $0x11e8] sm:$0xff]
    %v3076 = vld [vmem:[#allocation9 + $0x11f0] sm:$0xff]
    %v3077 = vld [vmem:[#allocation9 + $0x11f8] sm:$0xff]
    %v3078 = vld [vmem:[#allocation9 + $0x1200] sm:$0xff]
    %v3079 = vld [vmem:[#allocation9 + $0x1208] sm:$0xff]
    %v3080 = vld [vmem:[#allocation9 + $0x1210] sm:$0xff]
    %v3081 = vld [vmem:[#allocation9 + $0x1218] sm:$0xff]
    %v3082 = vld [vmem:[#allocation9 + $0x1220] sm:$0xff]
    %v3083 = vld [vmem:[#allocation9 + $0x1228] sm:$0xff]
    %v3084 = vld [vmem:[#allocation9 + $0x1230] sm:$0xff]
    %v3085 = vld [vmem:[#allocation9 + $0x1238] sm:$0xff]
    %v3086 = vld [vmem:[#allocation9 + $0x1240] sm:$0xff]
    %v3087 = vld [vmem:[#allocation9 + $0x1248] sm:$0xff]
    %v3088 = vld [vmem:[#allocation9 + $0x1250] sm:$0xff]
    %v3089 = vld [vmem:[#allocation9 + $0x1258] sm:$0xff]
    %v3090 = vld [vmem:[#allocation9 + $0x1260] sm:$0xff]
    %v3091 = vld [vmem:[#allocation9 + $0x1268] sm:$0xff]
    %v3092 = vld [vmem:[#allocation9 + $0x1270] sm:$0xff]
    %v3093 = vld [vmem:[#allocation9 + $0x1278] sm:$0xff]
    %v3094 = vld [vmem:[#allocation9 + $0x1280] sm:$0xff]
    %v3095 = vld [vmem:[#allocation9 + $0x1288] sm:$0xff]
    %v3096 = vld [vmem:[#allocation9 + $0x1290] sm:$0xff]
    %v3097 = vld [vmem:[#allocation9 + $0x1298] sm:$0xff]
    %v3098 = vld [vmem:[#allocation9 + $0x12a0] sm:$0xff]
    %v3099 = vld [vmem:[#allocation9 + $0x12a8] sm:$0xff]
    %v3100 = vld [vmem:[#allocation9 + $0x12b0] sm:$0xff]
    %v3101 = vld [vmem:[#allocation9 + $0x12b8] sm:$0xff]
    %v3102 = vld [vmem:[#allocation9 + $0x12c0] sm:$0xff]
    %v3103 = vld [vmem:[#allocation9 + $0x12c8] sm:$0xff]
    %v3104 = vld [vmem:[#allocation9 + $0x12d0] sm:$0xff]
    %v3105 = vld [vmem:[#allocation9 + $0x12d8] sm:$0xff]
    %v3106 = vld [vmem:[#allocation9 + $0x12e0] sm:$0xff]
    %v3107 = vld [vmem:[#allocation9 + $0x12e8] sm:$0xff]
    %v3108 = vld [vmem:[#allocation9 + $0x12f0] sm:$0xff]
    %v3109 = vld [vmem:[#allocation9 + $0x12f8] sm:$0xff]
    %v3110 = vld [vmem:[#allocation9 + $0x1300] sm:$0xff]
    %v3111 = vld [vmem:[#allocation9 + $0x1308] sm:$0xff]
    %v3112 = vld [vmem:[#allocation9 + $0x1310] sm:$0xff]
    %v3113 = vld [vmem:[#allocation9 + $0x1318] sm:$0xff]
    %v3114 = vld [vmem:[#allocation9 + $0x1320] sm:$0xff]
    %v3115 = vld [vmem:[#allocation9 + $0x1328] sm:$0xff]
    %v3116 = vld [vmem:[#allocation9 + $0x1330] sm:$0xff]
    %v3117 = vld [vmem:[#allocation9 + $0x1338] sm:$0xff]
    %v3118 = vld [vmem:[#allocation9 + $0x1340] sm:$0xff]
    %v3119 = vld [vmem:[#allocation9 + $0x1348] sm:$0xff]
    %v3120 = vld [vmem:[#allocation9 + $0x1350] sm:$0xff]
    %v3121 = vld [vmem:[#allocation9 + $0x1358] sm:$0xff]
    %v3122 = vld [vmem:[#allocation9 + $0x1360] sm:$0xff]
    %v3123 = vld [vmem:[#allocation9 + $0x1368] sm:$0xff]
    %v3124 = vld [vmem:[#allocation9 + $0x1370] sm:$0xff]
    %v3125 = vld [vmem:[#allocation9 + $0x1378] sm:$0xff]
    %v3126 = vld [vmem:[#allocation9 + $0x1380] sm:$0xff]
    %v3127 = vld [vmem:[#allocation9 + $0x1388] sm:$0xff]
    %v3128 = vld [vmem:[#allocation9 + $0x1390] sm:$0xff]
    %v3129 = vld [vmem:[#allocation9 + $0x1398] sm:$0xff]
    %v3130 = vld [vmem:[#allocation9 + $0x13a0] sm:$0xff]
    %v3131 = vld [vmem:[#allocation9 + $0x13a8] sm:$0xff]
    %v3132 = vld [vmem:[#allocation9 + $0x13b0] sm:$0xff]
    %v3133 = vld [vmem:[#allocation9 + $0x13b8] sm:$0xff]
    %v3134 = vld [vmem:[#allocation9 + $0x13c0] sm:$0xff]
    %v3135 = vld [vmem:[#allocation9 + $0x13c8] sm:$0xff]
    %v3136 = vld [vmem:[#allocation9 + $0x13d0] sm:$0xff]
    %v3137 = vld [vmem:[#allocation9 + $0x13d8] sm:$0xff]
    %v3138 = vld [vmem:[#allocation9 + $0x13e0] sm:$0xff]
    %v3139 = vld [vmem:[#allocation9 + $0x13e8] sm:$0xff]
    %v3140 = vld [vmem:[#allocation9 + $0x13f0] sm:$0xff]
    %v3141 = vld [vmem:[#allocation9 + $0x13f8] sm:$0xff]
    %v3142 = vld [vmem:[#allocation9 + $0x1400] sm:$0xff]
    %v3143 = vld [vmem:[#allocation9 + $0x1408] sm:$0xff]
    %v3144 = vld [vmem:[#allocation9 + $0x1410] sm:$0xff]
    %v3145 = vld [vmem:[#allocation9 + $0x1418] sm:$0xff]
    %v3146 = vld [vmem:[#allocation9 + $0x1420] sm:$0xff]
    %v3147 = vld [vmem:[#allocation9 + $0x1428] sm:$0xff]
    %v3148 = vld [vmem:[#allocation9 + $0x1430] sm:$0xff]
    %v3149 = vld [vmem:[#allocation9 + $0x1438] sm:$0xff]
    %v3150 = vld [vmem:[#allocation9 + $0x1440] sm:$0xff]
    %v3151 = vld [vmem:[#allocation9 + $0x1448] sm:$0xff]
    %v3152 = vld [vmem:[#allocation9 + $0x1450] sm:$0xff]
    %v3153 = vld [vmem:[#allocation9 + $0x1458] sm:$0xff]
    %v3154 = vld [vmem:[#allocation9 + $0x1460] sm:$0xff]
    %v3155 = vld [vmem:[#allocation9 + $0x1468] sm:$0xff]
    %v3156 = vld [vmem:[#allocation9 + $0x1470] sm:$0xff]
    %v3157 = vld [vmem:[#allocation9 + $0x1478] sm:$0xff]
    %v3158 = vld [vmem:[#allocation9 + $0x1480] sm:$0xff]
    %v3159 = vld [vmem:[#allocation9 + $0x1488] sm:$0xff]
    %v3160 = vld [vmem:[#allocation9 + $0x1490] sm:$0xff]
    %v3161 = vld [vmem:[#allocation9 + $0x1498] sm:$0xff]
    %v3162 = vld [vmem:[#allocation9 + $0x14a0] sm:$0xff]
    %v3163 = vld [vmem:[#allocation9 + $0x14a8] sm:$0xff]
    %v3164 = vld [vmem:[#allocation9 + $0x14b0] sm:$0xff]
    %v3165 = vld [vmem:[#allocation9 + $0x14b8] sm:$0xff]
    %v3166 = vld [vmem:[#allocation9 + $0x14c0] sm:$0xff]
    %v3167 = vld [vmem:[#allocation9 + $0x14c8] sm:$0xff]
    %v3168 = vld [vmem:[#allocation9 + $0x14d0] sm:$0xff]
    %v3169 = vld [vmem:[#allocation9 + $0x14d8] sm:$0xff]
    %v3170 = vld [vmem:[#allocation9 + $0x14e0] sm:$0xff]
    %v3171 = vld [vmem:[#allocation9 + $0x14e8] sm:$0xff]
    %v3172 = vld [vmem:[#allocation9 + $0x14f0] sm:$0xff]
    %v3173 = vld [vmem:[#allocation9 + $0x14f8] sm:$0xff]
    %v3174 = vld [vmem:[#allocation9 + $0x1500] sm:$0xff]
    %v3175 = vld [vmem:[#allocation9 + $0x1508] sm:$0xff]
    %v3176 = vld [vmem:[#allocation9 + $0x1510] sm:$0xff]
    %v3177 = vld [vmem:[#allocation9 + $0x1518] sm:$0xff]
    %v3178 = vld [vmem:[#allocation9 + $0x1520] sm:$0xff]
    %v3179 = vld [vmem:[#allocation9 + $0x1528] sm:$0xff]
    %v3180 = vld [vmem:[#allocation9 + $0x1530] sm:$0xff]
    %v3181 = vld [vmem:[#allocation9 + $0x1538] sm:$0xff]
    %v3182 = vld [vmem:[#allocation9 + $0x1540] sm:$0xff]
    %v3183 = vld [vmem:[#allocation9 + $0x1548] sm:$0xff]
    %v3184 = vld [vmem:[#allocation9 + $0x1550] sm:$0xff]
    %v3185 = vld [vmem:[#allocation9 + $0x1558] sm:$0xff]
    %v3186 = vld [vmem:[#allocation9 + $0x1560] sm:$0xff]
    %v3187 = vld [vmem:[#allocation9 + $0x1568] sm:$0xff]
    %v3188 = vld [vmem:[#allocation9 + $0x1570] sm:$0xff]
    %v3189 = vld [vmem:[#allocation9 + $0x1578] sm:$0xff]
    %v3190 = vld [vmem:[#allocation9 + $0x1580] sm:$0xff]
    %v3191 = vld [vmem:[#allocation9 + $0x1588] sm:$0xff]
    %v3192 = vld [vmem:[#allocation9 + $0x1590] sm:$0xff]
    %v3193 = vld [vmem:[#allocation9 + $0x1598] sm:$0xff]
    %v3194 = vld [vmem:[#allocation9 + $0x15a0] sm:$0xff]
    %v3195 = vld [vmem:[#allocation9 + $0x15a8] sm:$0xff]
    %v3196 = vld [vmem:[#allocation9 + $0x15b0] sm:$0xff]
    %v3197 = vld [vmem:[#allocation9 + $0x15b8] sm:$0xff]
    %v3198 = vld [vmem:[#allocation9 + $0x15c0] sm:$0xff]
    %v3199 = vld [vmem:[#allocation9 + $0x15c8] sm:$0xff]
    %v3200 = vld [vmem:[#allocation9 + $0x15d0] sm:$0xff]
    %v3201 = vld [vmem:[#allocation9 + $0x15d8] sm:$0xff]
    %v3202 = vld [vmem:[#allocation9 + $0x15e0] sm:$0xff]
    %v3203 = vld [vmem:[#allocation9 + $0x15e8] sm:$0xff]
    %v3204 = vld [vmem:[#allocation9 + $0x15f0] sm:$0xff]
    %v3205 = vld [vmem:[#allocation9 + $0x15f8] sm:$0xff]
    %v3206 = vld [vmem:[#allocation9 + $0x1600] sm:$0xff]
    %v3207 = vld [vmem:[#allocation9 + $0x1608] sm:$0xff]
    %v3208 = vld [vmem:[#allocation9 + $0x1610] sm:$0xff]
    %v3209 = vld [vmem:[#allocation9 + $0x1618] sm:$0xff]
    %v3210 = vld [vmem:[#allocation9 + $0x1620] sm:$0xff]
    %v3211 = vld [vmem:[#allocation9 + $0x1628] sm:$0xff]
    %v3212 = vld [vmem:[#allocation9 + $0x1630] sm:$0xff]
    %v3213 = vld [vmem:[#allocation9 + $0x1638] sm:$0xff]
    %v3214 = vld [vmem:[#allocation9 + $0x1640] sm:$0xff]
    %v3215 = vld [vmem:[#allocation9 + $0x1648] sm:$0xff]
    %v3216 = vld [vmem:[#allocation9 + $0x1650] sm:$0xff]
    %v3217 = vld [vmem:[#allocation9 + $0x1658] sm:$0xff]
    %v3218 = vld [vmem:[#allocation9 + $0x1660] sm:$0xff]
    %v3219 = vld [vmem:[#allocation9 + $0x1668] sm:$0xff]
    %v3220 = vld [vmem:[#allocation9 + $0x1670] sm:$0xff]
    %v3221 = vld [vmem:[#allocation9 + $0x1678] sm:$0xff]
    %v3222 = vld [vmem:[#allocation9 + $0x1680] sm:$0xff]
    %v3223 = vld [vmem:[#allocation9 + $0x1688] sm:$0xff]
    %v3224 = vld [vmem:[#allocation9 + $0x1690] sm:$0xff]
    %v3225 = vld [vmem:[#allocation9 + $0x1698] sm:$0xff]
    %v3226 = vld [vmem:[#allocation9 + $0x16a0] sm:$0xff]
    %v3227 = vld [vmem:[#allocation9 + $0x16a8] sm:$0xff]
    %v3228 = vld [vmem:[#allocation9 + $0x16b0] sm:$0xff]
    %v3229 = vld [vmem:[#allocation9 + $0x16b8] sm:$0xff]
    %v3230 = vld [vmem:[#allocation9 + $0x16c0] sm:$0xff]
    %v3231 = vld [vmem:[#allocation9 + $0x16c8] sm:$0xff]
    %v3232 = vld [vmem:[#allocation9 + $0x16d0] sm:$0xff]
    %v3233 = vld [vmem:[#allocation9 + $0x16d8] sm:$0xff]
    %v3234 = vld [vmem:[#allocation9 + $0x16e0] sm:$0xff]
    %v3235 = vld [vmem:[#allocation9 + $0x16e8] sm:$0xff]
    %v3236 = vld [vmem:[#allocation9 + $0x16f0] sm:$0xff]
    %v3237 = vld [vmem:[#allocation9 + $0x16f8] sm:$0xff]
    %v3238 = vld [vmem:[#allocation9 + $0x1700] sm:$0xff]
    %v3239 = vld [vmem:[#allocation9 + $0x1708] sm:$0xff]
    %v3240 = vld [vmem:[#allocation9 + $0x1710] sm:$0xff]
    %v3241 = vld [vmem:[#allocation9 + $0x1718] sm:$0xff]
    %v3242 = vld [vmem:[#allocation9 + $0x1720] sm:$0xff]
    %v3243 = vld [vmem:[#allocation9 + $0x1728] sm:$0xff]
    %v3244 = vld [vmem:[#allocation9 + $0x1730] sm:$0xff]
    %v3245 = vld [vmem:[#allocation9 + $0x1738] sm:$0xff]
    %v3246 = vld [vmem:[#allocation9 + $0x1740] sm:$0xff]
    %v3247 = vld [vmem:[#allocation9 + $0x1748] sm:$0xff]
    %v3248 = vld [vmem:[#allocation9 + $0x1750] sm:$0xff]
    %v3249 = vld [vmem:[#allocation9 + $0x1758] sm:$0xff]
    %v3250 = vld [vmem:[#allocation9 + $0x1760] sm:$0xff]
    %v3251 = vld [vmem:[#allocation9 + $0x1768] sm:$0xff]
    %v3252 = vld [vmem:[#allocation9 + $0x1770] sm:$0xff]
    %v3253 = vld [vmem:[#allocation9 + $0x1778] sm:$0xff]
    %v3254 = vld [vmem:[#allocation9 + $0x1780] sm:$0xff]
    %v3255 = vld [vmem:[#allocation9 + $0x1788] sm:$0xff]
    %v3256 = vld [vmem:[#allocation9 + $0x1790] sm:$0xff]
    %v3257 = vld [vmem:[#allocation9 + $0x1798] sm:$0xff]
    %v3258 = vld [vmem:[#allocation9 + $0x17a0] sm:$0xff]
    %v3259 = vld [vmem:[#allocation9 + $0x17a8] sm:$0xff]
    %v3260 = vld [vmem:[#allocation9 + $0x17b0] sm:$0xff]
    %v3261 = vld [vmem:[#allocation9 + $0x17b8] sm:$0xff]
    %v3262 = vld [vmem:[#allocation9 + $0x17c0] sm:$0xff]
    %v3263 = vld [vmem:[#allocation9 + $0x17c8] sm:$0xff]
    %v3264 = vld [vmem:[#allocation9 + $0x17d0] sm:$0xff]
    %v3265 = vld [vmem:[#allocation9 + $0x17d8] sm:$0xff]
    %v3266 = vld [vmem:[#allocation9 + $0x17e0] sm:$0xff]
    %v3267 = vld [vmem:[#allocation9 + $0x17e8] sm:$0xff]
    %v3268 = vld [vmem:[#allocation9 + $0x17f0] sm:$0xff]
    %v3269 = vld [vmem:[#allocation9 + $0x17f8] sm:$0xff]
    %v3270 = vld [vmem:[#allocation9 + $0x1800] sm:$0xff]
    %v3271 = vld [vmem:[#allocation9 + $0x1808] sm:$0xff]
    %v3272 = vld [vmem:[#allocation9 + $0x1810] sm:$0xff]
    %v3273 = vld [vmem:[#allocation9 + $0x1818] sm:$0xff]
    %v3274 = vld [vmem:[#allocation9 + $0x1820] sm:$0xff]
    %v3275 = vld [vmem:[#allocation9 + $0x1828] sm:$0xff]
    %v3276 = vld [vmem:[#allocation9 + $0x1830] sm:$0xff]
    %v3277 = vld [vmem:[#allocation9 + $0x1838] sm:$0xff]
    %v3278 = vld [vmem:[#allocation9 + $0x1840] sm:$0xff]
    %v3279 = vld [vmem:[#allocation9 + $0x1848] sm:$0xff]
    %v3280 = vld [vmem:[#allocation9 + $0x1850] sm:$0xff]
    %v3281 = vld [vmem:[#allocation9 + $0x1858] sm:$0xff]
    %v3282 = vld [vmem:[#allocation9 + $0x1860] sm:$0xff]
    %v3283 = vld [vmem:[#allocation9 + $0x1868] sm:$0xff]
    %v3284 = vld [vmem:[#allocation9 + $0x1870] sm:$0xff]
    %v3285 = vld [vmem:[#allocation9 + $0x1878] sm:$0xff]
    %v3286 = vld [vmem:[#allocation10] sm:$0xff]
    %v3288 = vlaneseq
    %v3289 = vshrl.u32 %v3288, 7
    %v3290 = vsub.s32 0, %v3289
    %v3291 = vrot.slane %v3286, %v3290
    %v3292 = vlaneseq
    %v3293 = vshrl.u32 %v3292, 7
    %v3294 = vsub.s32 1, %v3293
    %v3295 = vrot.slane %v3286, %v3294
    %v3296 = vlaneseq
    %v3297 = vshrl.u32 %v3296, 7
    %v3298 = vsub.s32 2, %v3297
    %v3299 = vrot.slane %v3286, %v3298
    %v3300 = vlaneseq
    %v3301 = vshrl.u32 %v3300, 7
    %v3302 = vsub.s32 3, %v3301
    %v3303 = vrot.slane %v3286, %v3302
    %v3304 = vlaneseq
    %v3305 = vshrl.u32 %v3304, 7
    %v3306 = vsub.s32 4, %v3305
    %v3307 = vrot.slane %v3286, %v3306
    %v3308 = vlaneseq
    %v3309 = vshrl.u32 %v3308, 7
    %v3310 = vsub.s32 5, %v3309
    %v3311 = vrot.slane %v3286, %v3310
    %v3312 = vlaneseq
    %v3313 = vshrl.u32 %v3312, 7
    %v3314 = vsub.s32 6, %v3313
    %v3315 = vrot.slane %v3286, %v3314
    %3323 = vmatprep.subr.mxu0 %v2503
    %3324 = vmatpush1.msra.mxu0 %v2502
    %3325 = vmatprep.subr.mxu0 %v2510
    %3326 = vmatpush1.msra.mxu0 %v2509
    %3327 = vmatprep.subr.mxu0 %v2517
    %3328 = vmatpush1.msra.mxu0 %v2516
    %3329 = vmatprep.subr.mxu0 %v2524
    %3330 = vmatpush1.msra.mxu0 %v2523
    %3331 = vmatprep.subr.mxu0 %v2531
    %3332 = vmatpush1.msra.mxu0 %v2530
    %3333 = vmatprep.subr.mxu0 %v2538
    %3334 = vmatpush1.msra.mxu0 %v2537
    %3335 = vmatprep.subr.mxu0 %v2545
    %3336 = vmatpush1.msra.mxu0 %v2544
    %3337 = vmatprep.subr.mxu0 %v2552
    %3338 = vmatpush1.msra.mxu0 %v2551
    %3339 = vmatprep.subr.mxu0 %v2559
    %3340 = vmatpush1.msra.mxu0 %v2558
    %3341 = vmatprep.subr.mxu0 %v2566
    %3342 = vmatpush1.msra.mxu0 %v2565
    %3343 = vmatprep.subr.mxu0 %v2573
    %3344 = vmatpush1.msra.mxu0 %v2572
    %3345 = vmatprep.subr.mxu0 %v2580
    %3346 = vmatpush1.msra.mxu0 %v2579
    %3347 = vmatprep.subr.mxu0 %v2587
    %3348 = vmatpush1.msra.mxu0 %v2586
    %3349 = vmatprep.subr.mxu0 %v2594
    %3350 = vmatpush1.msra.mxu0 %v2593
    %3351 = vmatprep.subr.mxu0 %v2601
    %3352 = vmatpush1.msra.mxu0 %v2600
    %3353 = vmatprep.subr.mxu0 %v2608
    %3354 = vmatpush1.msra.mxu0 %v2607
    %3355 = vmatprep.subr.mxu0 %v2615
    %3356 = vmatpush1.msra.mxu0 %v2614
    %3357 = vmatprep.subr.mxu0 %v2622
    %3358 = vmatpush1.msra.mxu0 %v2621
    %3359 = vmatprep.subr.mxu0 %v2629
    %3360 = vmatpush1.msra.mxu0 %v2628
    %3361 = vmatprep.subr.mxu0 %v2636
    %3362 = vmatpush1.msra.mxu0 %v2635
    %3363 = vmatprep.subr.mxu0 %v2643
    %3364 = vmatpush1.msra.mxu0 %v2642
    %3365 = vmatprep.subr.mxu0 %v2650
    %3366 = vmatpush1.msra.mxu0 %v2649
    %3367 = vmatprep.subr.mxu0 %v2657
    %3368 = vmatpush1.msra.mxu0 %v2656
    %3369 = vmatprep.subr.mxu0 %v2664
    %3370 = vmatpush1.msra.mxu0 %v2663
    %3371 = vmatprep.subr.mxu0 %v2671
    %3372 = vmatpush1.msra.mxu0 %v2670
    %3373 = vmatprep.subr.mxu0 %v2678
    %3374 = vmatpush1.msra.mxu0 %v2677
    %3375 = vmatprep.subr.mxu0 %v2685
    %3376 = vmatpush1.msra.mxu0 %v2684
    %3377 = vmatprep.subr.mxu0 %v2692
    %3378 = vmatpush1.msra.mxu0 %v2691
    %3379 = vmatprep.subr.mxu0 %v2699
    %3380 = vmatpush1.msra.mxu0 %v2698
    %3381 = vmatprep.subr.mxu0 %v2706
    %3382 = vmatpush1.msra.mxu0 %v2705
    %3383 = vmatprep.subr.mxu0 %v2713
    %3384 = vmatpush1.msra.mxu0 %v2712
    %3385 = vmatprep.subr.mxu0 %v2720
    %3386 = vmatpush1.msra.mxu0 %v2719
    %3387 = vmatprep.mubr.f32.mxu0 %v2496
    %3388 = vmatmul.mubr.f32.gmra.mrb[0].mxu0 %v2495
    %v3389 = vpop.f32.mrb[0].mxu0
    %v3390 = vadd.f32 %v3291, %v3389
    %v3391 = vpop.f32.mrb[0].mxu0
    %v3392 = vadd.f32 %v3295, %v3391
    %3393 = vdwg.mxu0
    %3394 = vmatprep.subr.mxu0 %v2727
    %3395 = vmatpush1.msra.mxu0 %v2726
    %3396 = vmatprep.subr.mxu0 %v2734
    %3397 = vmatpush1.msra.mxu0 %v2733
    %3398 = vmatprep.subr.mxu0 %v2741
    %3399 = vmatpush1.msra.mxu0 %v2740
    %3400 = vmatprep.subr.mxu0 %v2748
    %3401 = vmatpush1.msra.mxu0 %v2747
    %3402 = vmatprep.subr.mxu0 %v2755
    %3403 = vmatpush1.msra.mxu0 %v2754
    %3404 = vmatprep.subr.mxu0 %v2762
    %3405 = vmatpush1.msra.mxu0 %v2761
    %3406 = vmatprep.subr.mxu0 %v2769
    %3407 = vmatpush1.msra.mxu0 %v2768
    %3408 = vmatprep.subr.mxu0 %v2776
    %3409 = vmatpush1.msra.mxu0 %v2775
    %3410 = vmatprep.subr.mxu0 %v2783
    %3411 = vmatpush1.msra.mxu0 %v2782
    %3412 = vmatprep.subr.mxu0 %v2790
    %3413 = vmatpush1.msra.mxu0 %v2789
    %3414 = vmatprep.subr.mxu0 %v2797
    %3415 = vmatpush1.msra.mxu0 %v2796
    %3416 = vmatprep.subr.mxu0 %v2804
    %3417 = vmatpush1.msra.mxu0 %v2803
    %3418 = vmatprep.subr.mxu0 %v2811
    %3419 = vmatpush1.msra.mxu0 %v2810
    %3420 = vmatprep.subr.mxu0 %v2818
    %3421 = vmatpush1.msra.mxu0 %v2817
    %3422 = vmatprep.subr.mxu0 %v2825
    %3423 = vmatpush1.msra.mxu0 %v2824
    %3424 = vmatprep.subr.mxu0 %v2832
    %3425 = vmatpush1.msra.mxu0 %v2831
    %3426 = vmatprep.subr.mxu0 %v2839
    %3427 = vmatpush1.msra.mxu0 %v2838
    %3428 = vmatprep.subr.mxu0 %v2846
    %3429 = vmatpush1.msra.mxu0 %v2845
    %3430 = vmatprep.subr.mxu0 %v2853
    %3431 = vmatpush1.msra.mxu0 %v2852
    %3432 = vmatprep.subr.mxu0 %v2860
    %3433 = vmatpush1.msra.mxu0 %v2859
    %3434 = vmatprep.subr.mxu0 %v2867
    %3435 = vmatpush1.msra.mxu0 %v2866
    %3436 = vmatprep.subr.mxu0 %v2874
    %3437 = vmatpush1.msra.mxu0 %v2873
    %3438 = vmatprep.subr.mxu0 %v2881
    %3439 = vmatpush1.msra.mxu0 %v2880
    %3440 = vmatprep.subr.mxu0 %v2888
    %3441 = vmatpush1.msra.mxu0 %v2887
    %3442 = vmatprep.subr.mxu0 %v2895
    %3443 = vmatpush1.msra.mxu0 %v2894
    %3444 = vmatprep.subr.mxu0 %v2902
    %3445 = vmatpush1.msra.mxu0 %v2901
    %3446 = vmatprep.subr.mxu0 %v2909
    %3447 = vmatpush1.msra.mxu0 %v2908
    %3448 = vmatprep.subr.mxu0 %v2916
    %3449 = vmatpush1.msra.mxu0 %v2915
    %3450 = vmatprep.subr.mxu0 %v2923
    %3451 = vmatpush1.msra.mxu0 %v2922
    %3452 = vmatprep.subr.mxu0 %v2930
    %3453 = vmatpush1.msra.mxu0 %v2929
    %3454 = vmatprep.subr.mxu0 %v2937
    %3455 = vmatpush1.msra.mxu0 %v2936
    %3456 = vmatprep.subr.mxu0 %v2944
    %3457 = vmatpush1.msra.mxu0 %v2943
    %3458 = vmatprep.mubr.f32.mxu0 %v2498
    %3459 = vmatmul.mubr.f32.gmra.mrb[0].mxu0 %v2497
    %v3460 = vpop.f32.mrb[0].mxu0
    %v3461 = vadd.f32 %v3390, %v3460
    %v3462 = vpop.f32.mrb[0].mxu0
    %v3463 = vadd.f32 %v3392, %v3462
    %3464 = vdwg.mxu0
    %3465 = vmatprep.subr.mxu0 %v2951
    %3466 = vmatpush1.msra.mxu0 %v2950
    %3467 = vmatprep.subr.mxu0 %v2958
    %3468 = vmatpush1.msra.mxu0 %v2957
    %3469 = vmatprep.subr.mxu0 %v2965
    %3470 = vmatpush1.msra.mxu0 %v2964
    %3471 = vmatprep.subr.mxu0 %v2972
    %3472 = vmatpush1.msra.mxu0 %v2971
    %3473 = vmatprep.subr.mxu0 %v2979
    %3474 = vmatpush1.msra.mxu0 %v2978
    %3475 = vmatprep.subr.mxu0 %v2986
    %3476 = vmatpush1.msra.mxu0 %v2985
    %3477 = vmatprep.subr.mxu0 %v2993
    %3478 = vmatpush1.msra.mxu0 %v2992
    %3479 = vmatprep.subr.mxu0 %v3000
    %3480 = vmatpush1.msra.mxu0 %v2999
    %3481 = vmatprep.subr.mxu0 %v3007
    %3482 = vmatpush1.msra.mxu0 %v3006
    %3483 = vmatprep.subr.mxu0 %v3014
    %3484 = vmatpush1.msra.mxu0 %v3013
    %3485 = vmatprep.subr.mxu0 %v3021
    %3486 = vmatpush1.msra.mxu0 %v3020
    %3487 = vmatprep.subr.mxu0 %v3028
    %3488 = vmatpush1.msra.mxu0 %v3027
    %3489 = vmatprep.subr.mxu0 %v3035
    %3490 = vmatpush1.msra.mxu0 %v3034
    %3491 = vmatprep.subr.mxu0 %v3042
    %3492 = vmatpush1.msra.mxu0 %v3041
    %3493 = vmatprep.subr.mxu0 %v3049
    %3494 = vmatpush1.msra.mxu0 %v3048
    %3495 = vmatprep.subr.mxu0 %v3056
    %3496 = vmatpush1.msra.mxu0 %v3055
    %3497 = vmatprep.subr.mxu0 %v3063
    %3498 = vmatpush1.msra.mxu0 %v3062
    %3499 = vmatprep.subr.mxu0 %v3070
    %3500 = vmatpush1.msra.mxu0 %v3069
    %3501 = vmatprep.subr.mxu0 %v3077
    %3502 = vmatpush1.msra.mxu0 %v3076
    %3503 = vmatprep.subr.mxu0 %v3084
    %3504 = vmatpush1.msra.mxu0 %v3083
    %3505 = vmatprep.subr.mxu0 %v3091
    %3506 = vmatpush1.msra.mxu0 %v3090
    %3507 = vmatprep.subr.mxu0 %v3098
    %3508 = vmatpush1.msra.mxu0 %v3097
    %3509 = vmatprep.subr.mxu0 %v3105
    %3510 = vmatpush1.msra.mxu0 %v3104
    %3511 = vmatprep.subr.mxu0 %v3112
    %3512 = vmatpush1.msra.mxu0 %v3111
    %3513 = vmatprep.subr.mxu0 %v3119
    %3514 = vmatpush1.msra.mxu0 %v3118
    %3515 = vmatprep.subr.mxu0 %v3126
    %3516 = vmatpush1.msra.mxu0 %v3125
    %3517 = vmatprep.subr.mxu0 %v3133
    %3518 = vmatpush1.msra.mxu0 %v3132
    %3519 = vmatprep.subr.mxu0 %v3140
    %3520 = vmatpush1.msra.mxu0 %v3139
    %3521 = vmatprep.subr.mxu0 %v3147
    %3522 = vmatpush1.msra.mxu0 %v3146
    %3523 = vmatprep.subr.mxu0 %v3154
    %3524 = vmatpush1.msra.mxu0 %v3153
    %3525 = vmatprep.subr.mxu0 %v3161
    %3526 = vmatpush1.msra.mxu0 %v3160
    %3527 = vmatprep.subr.mxu0 %v3168
    %3528 = vmatpush1.msra.mxu0 %v3167
    %3529 = vmatprep.mubr.f32.mxu0 %v2500
    %3530 = vmatmul.mubr.f32.gmra.mrb[0].mxu0 %v2499
    %v3531 = vpop.f32.mrb[0].mxu0
    %v3532 = vadd.f32 %v3461, %v3531
    %v3533 = vpop.f32.mrb[0].mxu0
    %v3534 = vadd.f32 %v3463, %v3533
    %3535 = vdwg.mxu0
    %3536 = vmatprep.subr.mxu0 %v3175
    %3537 = vmatpush1.msra.mxu0 %v3174
    %3538 = vmatprep.subr.mxu0 %v3182
    %3539 = vmatpush1.msra.mxu0 %v3181
    %3540 = vmatprep.subr.mxu0 %v3189
    %3541 = vmatpush1.msra.mxu0 %v3188
    %3542 = vmatprep.subr.mxu0 %v3196
    %3543 = vmatpush1.msra.mxu0 %v3195
    %3544 = vmatprep.subr.mxu0 %v3203
    %3545 = vmatpush1.msra.mxu0 %v3202
    %3546 = vmatprep.subr.mxu0 %v3210
    %3547 = vmatpush1.msra.mxu0 %v3209
    %3548 = vmatprep.subr.mxu0 %v3217
    %3549 = vmatpush1.msra.mxu0 %v3216
    %3550 = vmatprep.subr.mxu0 %v3224
    %3551 = vmatpush1.msra.mxu0 %v3223
    %3552 = vmatprep.subr.mxu0 %v3231
    %3553 = vmatpush1.msra.mxu0 %v3230
    %3554 = vmatprep.subr.mxu0 %v3238
    %3555 = vmatpush1.msra.mxu0 %v3237
    %3556 = vmatprep.subr.mxu0 %v3245
    %3557 = vmatpush1.msra.mxu0 %v3244
    %3558 = vmatprep.subr.mxu0 %v3252
    %3559 = vmatpush1.msra.mxu0 %v3251
    %3560 = vmatprep.subr.mxu0 %v3259
    %3561 = vmatpush1.msra.mxu0 %v3258
    %3562 = vmatprep.subr.mxu0 %v3266
    %3563 = vmatpush1.msra.mxu0 %v3265
    %3564 = vmatprep.subr.mxu0 %v3273
    %3565 = vmatpush1.msra.mxu0 %v3272
    %3566 = vmatprep.subr.mxu0 %v3280
    %3567 = vmatpush1.msra.mxu0 %v3279
    %3568 = vmatprep.subr.mxu0 0.0
    %3569 = vmatpush1.msra.mxu0 0.0
    %3570 = vmatprep.subr.mxu0 0.0
    %3571 = vmatpush1.msra.mxu0 0.0
    %3572 = vmatprep.subr.mxu0 0.0
    %3573 = vmatpush1.msra.mxu0 0.0
    %3574 = vmatprep.subr.mxu0 0.0
    %3575 = vmatpush1.msra.mxu0 0.0
    %3576 = vmatprep.subr.mxu0 0.0
    %3577 = vmatpush1.msra.mxu0 0.0
    %3578 = vmatprep.subr.mxu0 0.0
    %3579 = vmatpush1.msra.mxu0 0.0
    %3580 = vmatprep.subr.mxu0 0.0
    %3581 = vmatpush1.msra.mxu0 0.0
    %3582 = vmatprep.subr.mxu0 0.0
    %3583 = vmatpush1.msra.mxu0 0.0
    %3584 = vmatprep.subr.mxu0 0.0
    %3585 = vmatpush1.msra.mxu0 0.0
    %3586 = vmatprep.subr.mxu0 0.0
    %3587 = vmatpush1.msra.mxu0 0.0
    %3588 = vmatprep.subr.mxu0 0.0
    %3589 = vmatpush1.msra.mxu0 0.0
    %3590 = vmatprep.subr.mxu0 0.0
    %3591 = vmatpush1.msra.mxu0 0.0
    %3592 = vmatprep.subr.mxu0 0.0
    %3593 = vmatpush1.msra.mxu0 0.0
    %3594 = vmatprep.subr.mxu0 0.0
    %3595 = vmatpush1.msra.mxu0 0.0
    %3596 = vmatprep.subr.mxu0 0.0
    %3597 = vmatpush1.msra.mxu0 0.0
    %3598 = vmatprep.subr.mxu0 0.0
    %3599 = vmatpush1.msra.mxu0 0.0
    %3600 = vmatprep.mubr.f32.mxu0 0.0
    %3601 = vmatmul.mubr.f32.gmra.mrb[0].mxu0 %v2501
    %v3602 = vpop.f32.mrb[0].mxu0
    %v3603 = vadd.f32 %v3532, %v3602
    %v3604 = vpop.f32.mrb[0].mxu0
    %v3605 = vadd.f32 %v3534, %v3604
    %3606 = vdwg.mxu0
    %3607 = vmatprep.subr.mxu0 %v2505
    %3608 = vmatpush1.msra.mxu0 %v2504
    %3609 = vmatprep.subr.mxu0 %v2512
    %3610 = vmatpush1.msra.mxu0 %v2511
    %3611 = vmatprep.subr.mxu0 %v2519
    %3612 = vmatpush1.msra.mxu0 %v2518
    %3613 = vmatprep.subr.mxu0 %v2526
    %3614 = vmatpush1.msra.mxu0 %v2525
    %3615 = vmatprep.subr.mxu0 %v2533
    %3616 = vmatpush1.msra.mxu0 %v2532
    %3617 = vmatprep.subr.mxu0 %v2540
    %3618 = vmatpush1.msra.mxu0 %v2539
    %3619 = vmatprep.subr.mxu0 %v2547
    %3620 = vmatpush1.msra.mxu0 %v2546
    %3621 = vmatprep.subr.mxu0 %v2554
    %3622 = vmatpush1.msra.mxu0 %v2553
    %3623 = vmatprep.subr.mxu0 %v2561
    %3624 = vmatpush1.msra.mxu0 %v2560
    %3625 = vmatprep.subr.mxu0 %v2568
    %3626 = vmatpush1.msra.mxu0 %v2567
    %3627 = vmatprep.subr.mxu0 %v2575
    %3628 = vmatpush1.msra.mxu0 %v2574
    %3629 = vmatprep.subr.mxu0 %v2582
    %3630 = vmatpush1.msra.mxu0 %v2581
    %3631 = vmatprep.subr.mxu0 %v2589
    %3632 = vmatpush1.msra.mxu0 %v2588
    %3633 = vmatprep.subr.mxu0 %v2596
    %3634 = vmatpush1.msra.mxu0 %v2595
    %3635 = vmatprep.subr.mxu0 %v2603
    %3636 = vmatpush1.msra.mxu0 %v2602
    %3637 = vmatprep.subr.mxu0 %v2610
    %3638 = vmatpush1.msra.mxu0 %v2609
    %3639 = vmatprep.subr.mxu0 %v2617
    %3640 = vmatpush1.msra.mxu0 %v2616
    %3641 = vmatprep.subr.mxu0 %v2624
    %3642 = vmatpush1.msra.mxu0 %v2623
    %3643 = vmatprep.subr.mxu0 %v2631
    %3644 = vmatpush1.msra.mxu0 %v2630
    %3645 = vmatprep.subr.mxu0 %v2638
    %3646 = vmatpush1.msra.mxu0 %v2637
    %3647 = vmatprep.subr.mxu0 %v2645
    %3648 = vmatpush1.msra.mxu0 %v2644
    %3649 = vmatprep.subr.mxu0 %v2652
    %3650 = vmatpush1.msra.mxu0 %v2651
    %3651 = vmatprep.subr.mxu0 %v2659
    %3652 = vmatpush1.msra.mxu0 %v2658
    %3653 = vmatprep.subr.mxu0 %v2666
    %3654 = vmatpush1.msra.mxu0 %v2665
    %3655 = vmatprep.subr.mxu0 %v2673
    %3656 = vmatpush1.msra.mxu0 %v2672
    %3657 = vmatprep.subr.mxu0 %v2680
    %3658 = vmatpush1.msra.mxu0 %v2679
    %3659 = vmatprep.subr.mxu0 %v2687
    %3660 = vmatpush1.msra.mxu0 %v2686
    %3661 = vmatprep.subr.mxu0 %v2694
    %3662 = vmatpush1.msra.mxu0 %v2693
    %3663 = vmatprep.subr.mxu0 %v2701
    %3664 = vmatpush1.msra.mxu0 %v2700
    %3665 = vmatprep.subr.mxu0 %v2708
    %3666 = vmatpush1.msra.mxu0 %v2707
    %3667 = vmatprep.subr.mxu0 %v2715
    %3668 = vmatpush1.msra.mxu0 %v2714
    %3669 = vmatprep.subr.mxu0 %v2722
    %3670 = vmatpush1.msra.mxu0 %v2721
    %3671 = vmatprep.mubr.f32.mxu0 %v2496
    %3672 = vmatmul.mubr.f32.gmra.mrb[0].mxu0 %v2495
    %v3673 = vpop.f32.mrb[0].mxu0
    %v3674 = vadd.f32 %v3299, %v3673
    %v3675 = vpop.f32.mrb[0].mxu0
    %v3676 = vadd.f32 %v3303, %v3675
    %3677 = vdwg.mxu0
    %3678 = vmatprep.subr.mxu0 %v2729
    %3679 = vmatpush1.msra.mxu0 %v2728
    %3680 = vmatprep.subr.mxu0 %v2736
    %3681 = vmatpush1.msra.mxu0 %v2735
    %3682 = vmatprep.subr.mxu0 %v2743
    %3683 = vmatpush1.msra.mxu0 %v2742
    %3684 = vmatprep.subr.mxu0 %v2750
    %3685 = vmatpush1.msra.mxu0 %v2749
    %3686 = vmatprep.subr.mxu0 %v2757
    %3687 = vmatpush1.msra.mxu0 %v2756
    %3688 = vmatprep.subr.mxu0 %v2764
    %3689 = vmatpush1.msra.mxu0 %v2763
    %3690 = vmatprep.subr.mxu0 %v2771
    %3691 = vmatpush1.msra.mxu0 %v2770
    %3692 = vmatprep.subr.mxu0 %v2778
    %3693 = vmatpush1.msra.mxu0 %v2777
    %3694 = vmatprep.subr.mxu0 %v2785
    %3695 = vmatpush1.msra.mxu0 %v2784
    %3696 = vmatprep.subr.mxu0 %v2792
    %3697 = vmatpush1.msra.mxu0 %v2791
    %3698 = vmatprep.subr.mxu0 %v2799
    %3699 = vmatpush1.msra.mxu0 %v2798
    %3700 = vmatprep.subr.mxu0 %v2806
    %3701 = vmatpush1.msra.mxu0 %v2805
    %3702 = vmatprep.subr.mxu0 %v2813
    %3703 = vmatpush1.msra.mxu0 %v2812
    %3704 = vmatprep.subr.mxu0 %v2820
    %3705 = vmatpush1.msra.mxu0 %v2819
    %3706 = vmatprep.subr.mxu0 %v2827
    %3707 = vmatpush1.msra.mxu0 %v2826
    %3708 = vmatprep.subr.mxu0 %v2834
    %3709 = vmatpush1.msra.mxu0 %v2833
    %3710 = vmatprep.subr.mxu0 %v2841
    %3711 = vmatpush1.msra.mxu0 %v2840
    %3712 = vmatprep.subr.mxu0 %v2848
    %3713 = vmatpush1.msra.mxu0 %v2847
    %3714 = vmatprep.subr.mxu0 %v2855
    %3715 = vmatpush1.msra.mxu0 %v2854
    %3716 = vmatprep.subr.mxu0 %v2862
    %3717 = vmatpush1.msra.mxu0 %v2861
    %3718 = vmatprep.subr.mxu0 %v2869
    %3719 = vmatpush1.msra.mxu0 %v2868
    %3720 = vmatprep.subr.mxu0 %v2876
    %3721 = vmatpush1.msra.mxu0 %v2875
    %3722 = vmatprep.subr.mxu0 %v2883
    %3723 = vmatpush1.msra.mxu0 %v2882
    %3724 = vmatprep.subr.mxu0 %v2890
    %3725 = vmatpush1.msra.mxu0 %v2889
    %3726 = vmatprep.subr.mxu0 %v2897
    %3727 = vmatpush1.msra.mxu0 %v2896
    %3728 = vmatprep.subr.mxu0 %v2904
    %3729 = vmatpush1.msra.mxu0 %v2903
    %3730 = vmatprep.subr.mxu0 %v2911
    %3731 = vmatpush1.msra.mxu0 %v2910
    %3732 = vmatprep.subr.mxu0 %v2918
    %3733 = vmatpush1.msra.mxu0 %v2917
    %3734 = vmatprep.subr.mxu0 %v2925
    %3735 = vmatpush1.msra.mxu0 %v2924
    %3736 = vmatprep.subr.mxu0 %v2932
    %3737 = vmatpush1.msra.mxu0 %v2931
    %3738 = vmatprep.subr.mxu0 %v2939
    %3739 = vmatpush1.msra.mxu0 %v2938
    %3740 = vmatprep.subr.mxu0 %v2946
    %3741 = vmatpush1.msra.mxu0 %v2945
    %3742 = vmatprep.mubr.f32.mxu0 %v2498
    %3743 = vmatmul.mubr.f32.gmra.mrb[0].mxu0 %v2497
    %v3744 = vpop.f32.mrb[0].mxu0
    %v3745 = vadd.f32 %v3674, %v3744
    %v3746 = vpop.f32.mrb[0].mxu0
    %v3747 = vadd.f32 %v3676, %v3746
    %3748 = vdwg.mxu0
    %3749 = vmatprep.subr.mxu0 %v2953
    %3750 = vmatpush1.msra.mxu0 %v2952
    %3751 = vmatprep.subr.mxu0 %v2960
    %3752 = vmatpush1.msra.mxu0 %v2959
    %3753 = vmatprep.subr.mxu0 %v2967
    %3754 = vmatpush1.msra.mxu0 %v2966
    %3755 = vmatprep.subr.mxu0 %v2974
    %3756 = vmatpush1.msra.mxu0 %v2973
    %3757 = vmatprep.subr.mxu0 %v2981
    %3758 = vmatpush1.msra.mxu0 %v2980
    %3759 = vmatprep.subr.mxu0 %v2988
    %3760 = vmatpush1.msra.mxu0 %v2987
    %3761 = vmatprep.subr.mxu0 %v2995
    %3762 = vmatpush1.msra.mxu0 %v2994
    %3763 = vmatprep.subr.mxu0 %v3002
    %3764 = vmatpush1.msra.mxu0 %v3001
    %3765 = vmatprep.subr.mxu0 %v3009
    %3766 = vmatpush1.msra.mxu0 %v3008
    %3767 = vmatprep.subr.mxu0 %v3016
    %3768 = vmatpush1.msra.mxu0 %v3015
    %3769 = vmatprep.subr.mxu0 %v3023
    %3770 = vmatpush1.msra.mxu0 %v3022
    %3771 = vmatprep.subr.mxu0 %v3030
    %3772 = vmatpush1.msra.mxu0 %v3029
    %3773 = vmatprep.subr.mxu0 %v3037
    %3774 = vmatpush1.msra.mxu0 %v3036
    %3775 = vmatprep.subr.mxu0 %v3044
    %3776 = vmatpush1.msra.mxu0 %v3043
    %3777 = vmatprep.subr.mxu0 %v3051
    %3778 = vmatpush1.msra.mxu0 %v3050
    %3779 = vmatprep.subr.mxu0 %v3058
    %3780 = vmatpush1.msra.mxu0 %v3057
    %3781 = vmatprep.subr.mxu0 %v3065
    %3782 = vmatpush1.msra.mxu0 %v3064
    %3783 = vmatprep.subr.mxu0 %v3072
    %3784 = vmatpush1.msra.mxu0 %v3071
    %3785 = vmatprep.subr.mxu0 %v3079
    %3786 = vmatpush1.msra.mxu0 %v3078
    %3787 = vmatprep.subr.mxu0 %v3086
    %3788 = vmatpush1.msra.mxu0 %v3085
    %3789 = vmatprep.subr.mxu0 %v3093
    %3790 = vmatpush1.msra.mxu0 %v3092
    %3791 = vmatprep.subr.mxu0 %v3100
    %3792 = vmatpush1.msra.mxu0 %v3099
    %3793 = vmatprep.subr.mxu0 %v3107
    %3794 = vmatpush1.msra.mxu0 %v3106
    %3795 = vmatprep.subr.mxu0 %v3114
    %3796 = vmatpush1.msra.mxu0 %v3113
    %3797 = vmatprep.subr.mxu0 %v3121
    %3798 = vmatpush1.msra.mxu0 %v3120
    %3799 = vmatprep.subr.mxu0 %v3128
    %3800 = vmatpush1.msra.mxu0 %v3127
    %3801 = vmatprep.subr.mxu0 %v3135
    %3802 = vmatpush1.msra.mxu0 %v3134
    %3803 = vmatprep.subr.mxu0 %v3142
    %3804 = vmatpush1.msra.mxu0 %v3141
    %3805 = vmatprep.subr.mxu0 %v3149
    %3806 = vmatpush1.msra.mxu0 %v3148
    %3807 = vmatprep.subr.mxu0 %v3156
    %3808 = vmatpush1.msra.mxu0 %v3155
    %3809 = vmatprep.subr.mxu0 %v3163
    %3810 = vmatpush1.msra.mxu0 %v3162
    %3811 = vmatprep.subr.mxu0 %v3170
    %3812 = vmatpush1.msra.mxu0 %v3169
    %3813 = vmatprep.mubr.f32.mxu0 %v2500
    %3814 = vmatmul.mubr.f32.gmra.mrb[0].mxu0 %v2499
    %v3815 = vpop.f32.mrb[0].mxu0
    %v3816 = vadd.f32 %v3745, %v3815
    %v3817 = vpop.f32.mrb[0].mxu0
    %v3818 = vadd.f32 %v3747, %v3817
    %3819 = vdwg.mxu0
    %3820 = vmatprep.subr.mxu0 %v3177
    %3821 = vmatpush1.msra.mxu0 %v3176
    %3822 = vmatprep.subr.mxu0 %v3184
    %3823 = vmatpush1.msra.mxu0 %v3183
    %3824 = vmatprep.subr.mxu0 %v3191
    %3825 = vmatpush1.msra.mxu0 %v3190
    %3826 = vmatprep.subr.mxu0 %v3198
    %3827 = vmatpush1.msra.mxu0 %v3197
    %3828 = vmatprep.subr.mxu0 %v3205
    %3829 = vmatpush1.msra.mxu0 %v3204
    %3830 = vmatprep.subr.mxu0 %v3212
    %3831 = vmatpush1.msra.mxu0 %v3211
    %3832 = vmatprep.subr.mxu0 %v3219
    %3833 = vmatpush1.msra.mxu0 %v3218
    %3834 = vmatprep.subr.mxu0 %v3226
    %3835 = vmatpush1.msra.mxu0 %v3225
    %3836 = vmatprep.subr.mxu0 %v3233
    %3837 = vmatpush1.msra.mxu0 %v3232
    %3838 = vmatprep.subr.mxu0 %v3240
    %3839 = vmatpush1.msra.mxu0 %v3239
    %3840 = vmatprep.subr.mxu0 %v3247
    %3841 = vmatpush1.msra.mxu0 %v3246
    %3842 = vmatprep.subr.mxu0 %v3254
    %3843 = vmatpush1.msra.mxu0 %v3253
    %3844 = vmatprep.subr.mxu0 %v3261
    %3845 = vmatpush1.msra.mxu0 %v3260
    %3846 = vmatprep.subr.mxu0 %v3268
    %3847 = vmatpush1.msra.mxu0 %v3267
    %3848 = vmatprep.subr.mxu0 %v3275
    %3849 = vmatpush1.msra.mxu0 %v3274
    %3850 = vmatprep.subr.mxu0 %v3282
    %3851 = vmatpush1.msra.mxu0 %v3281
    %3852 = vmatprep.subr.mxu0 0.0
    %3853 = vmatpush1.msra.mxu0 0.0
    %3854 = vmatprep.subr.mxu0 0.0
    %3855 = vmatpush1.msra.mxu0 0.0
    %3856 = vmatprep.subr.mxu0 0.0
    %3857 = vmatpush1.msra.mxu0 0.0
    %3858 = vmatprep.subr.mxu0 0.0
    %3859 = vmatpush1.msra.mxu0 0.0
    %3860 = vmatprep.subr.mxu0 0.0
    %3861 = vmatpush1.msra.mxu0 0.0
    %3862 = vmatprep.subr.mxu0 0.0
    %3863 = vmatpush1.msra.mxu0 0.0
    %3864 = vmatprep.subr.mxu0 0.0
    %3865 = vmatpush1.msra.mxu0 0.0
    %3866 = vmatprep.subr.mxu0 0.0
    %3867 = vmatpush1.msra.mxu0 0.0
    %3868 = vmatprep.subr.mxu0 0.0
    %3869 = vmatpush1.msra.mxu0 0.0
    %3870 = vmatprep.subr.mxu0 0.0
    %3871 = vmatpush1.msra.mxu0 0.0
    %3872 = vmatprep.subr.mxu0 0.0
    %3873 = vmatpush1.msra.mxu0 0.0
    %3874 = vmatprep.subr.mxu0 0.0
    %3875 = vmatpush1.msra.mxu0 0.0
    %3876 = vmatprep.subr.mxu0 0.0
    %3877 = vmatpush1.msra.mxu0 0.0
    %3878 = vmatprep.subr.mxu0 0.0
    %3879 = vmatpush1.msra.mxu0 0.0
    %3880 = vmatprep.subr.mxu0 0.0
    %3881 = vmatpush1.msra.mxu0 0.0
    %3882 = vmatprep.subr.mxu0 0.0
    %3883 = vmatpush1.msra.mxu0 0.0
    %3884 = vmatprep.mubr.f32.mxu0 0.0
    %3885 = vmatmul.mubr.f32.gmra.mrb[0].mxu0 %v2501
    %v3886 = vpop.f32.mrb[0].mxu0
    %v3887 = vadd.f32 %v3816, %v3886
    %v3888 = vpop.f32.mrb[0].mxu0
    %v3889 = vadd.f32 %v3818, %v3888
    %3890 = vdwg.mxu0
    %3891 = vmatprep.subr.mxu0 %v2507
    %3892 = vmatpush1.msra.mxu0 %v2506
    %3893 = vmatprep.subr.mxu0 %v2514
    %3894 = vmatpush1.msra.mxu0 %v2513
    %3895 = vmatprep.subr.mxu0 %v2521
    %3896 = vmatpush1.msra.mxu0 %v2520
    %3897 = vmatprep.subr.mxu0 %v2528
    %3898 = vmatpush1.msra.mxu0 %v2527
    %3899 = vmatprep.subr.mxu0 %v2535
    %3900 = vmatpush1.msra.mxu0 %v2534
    %3901 = vmatprep.subr.mxu0 %v2542
    %3902 = vmatpush1.msra.mxu0 %v2541
    %3903 = vmatprep.subr.mxu0 %v2549
    %3904 = vmatpush1.msra.mxu0 %v2548
    %3905 = vmatprep.subr.mxu0 %v2556
    %3906 = vmatpush1.msra.mxu0 %v2555
    %3907 = vmatprep.subr.mxu0 %v2563
    %3908 = vmatpush1.msra.mxu0 %v2562
    %3909 = vmatprep.subr.mxu0 %v2570
    %3910 = vmatpush1.msra.mxu0 %v2569
    %3911 = vmatprep.subr.mxu0 %v2577
    %3912 = vmatpush1.msra.mxu0 %v2576
    %3913 = vmatprep.subr.mxu0 %v2584
    %3914 = vmatpush1.msra.mxu0 %v2583
    %3915 = vmatprep.subr.mxu0 %v2591
    %3916 = vmatpush1.msra.mxu0 %v2590
    %3917 = vmatprep.subr.mxu0 %v2598
    %3918 = vmatpush1.msra.mxu0 %v2597
    %3919 = vmatprep.subr.mxu0 %v2605
    %3920 = vmatpush1.msra.mxu0 %v2604
    %3921 = vmatprep.subr.mxu0 %v2612
    %3922 = vmatpush1.msra.mxu0 %v2611
    %3923 = vmatprep.subr.mxu0 %v2619
    %3924 = vmatpush1.msra.mxu0 %v2618
    %3925 = vmatprep.subr.mxu0 %v2626
    %3926 = vmatpush1.msra.mxu0 %v2625
    %3927 = vmatprep.subr.mxu0 %v2633
    %3928 = vmatpush1.msra.mxu0 %v2632
    %3929 = vmatprep.subr.mxu0 %v2640
    %3930 = vmatpush1.msra.mxu0 %v2639
    %3931 = vmatprep.subr.mxu0 %v2647
    %3932 = vmatpush1.msra.mxu0 %v2646
    %3933 = vmatprep.subr.mxu0 %v2654
    %3934 = vmatpush1.msra.mxu0 %v2653
    %3935 = vmatprep.subr.mxu0 %v2661
    %3936 = vmatpush1.msra.mxu0 %v2660
    %3937 = vmatprep.subr.mxu0 %v2668
    %3938 = vmatpush1.msra.mxu0 %v2667
    %3939 = vmatprep.subr.mxu0 %v2675
    %3940 = vmatpush1.msra.mxu0 %v2674
    %3941 = vmatprep.subr.mxu0 %v2682
    %3942 = vmatpush1.msra.mxu0 %v2681
    %3943 = vmatprep.subr.mxu0 %v2689
    %3944 = vmatpush1.msra.mxu0 %v2688
    %3945 = vmatprep.subr.mxu0 %v2696
    %3946 = vmatpush1.msra.mxu0 %v2695
    %3947 = vmatprep.subr.mxu0 %v2703
    %3948 = vmatpush1.msra.mxu0 %v2702
    %3949 = vmatprep.subr.mxu0 %v2710
    %3950 = vmatpush1.msra.mxu0 %v2709
    %3951 = vmatprep.subr.mxu0 %v2717
    %3952 = vmatpush1.msra.mxu0 %v2716
    %3953 = vmatprep.subr.mxu0 %v2724
    %3954 = vmatpush1.msra.mxu0 %v2723
    %3955 = vmatprep.mubr.f32.mxu0 %v2496
    %3956 = vmatmul.mubr.f32.gmra.mrb[0].mxu0 %v2495
    %v3957 = vpop.f32.mrb[0].mxu0
    %v3958 = vadd.f32 %v3307, %v3957
    %v3959 = vpop.f32.mrb[0].mxu0
    %v3960 = vadd.f32 %v3311, %v3959
    %3961 = vdwg.mxu0
    %3962 = vmatprep.subr.mxu0 %v2731
    %3963 = vmatpush1.msra.mxu0 %v2730
    %3964 = vmatprep.subr.mxu0 %v2738
    %3965 = vmatpush1.msra.mxu0 %v2737
    %3966 = vmatprep.subr.mxu0 %v2745
    %3967 = vmatpush1.msra.mxu0 %v2744
    %3968 = vmatprep.subr.mxu0 %v2752
    %3969 = vmatpush1.msra.mxu0 %v2751
    %3970 = vmatprep.subr.mxu0 %v2759
    %3971 = vmatpush1.msra.mxu0 %v2758
    %3972 = vmatprep.subr.mxu0 %v2766
    %3973 = vmatpush1.msra.mxu0 %v2765
    %3974 = vmatprep.subr.mxu0 %v2773
    %3975 = vmatpush1.msra.mxu0 %v2772
    %3976 = vmatprep.subr.mxu0 %v2780
    %3977 = vmatpush1.msra.mxu0 %v2779
    %3978 = vmatprep.subr.mxu0 %v2787
    %3979 = vmatpush1.msra.mxu0 %v2786
    %3980 = vmatprep.subr.mxu0 %v2794
    %3981 = vmatpush1.msra.mxu0 %v2793
    %3982 = vmatprep.subr.mxu0 %v2801
    %3983 = vmatpush1.msra.mxu0 %v2800
    %3984 = vmatprep.subr.mxu0 %v2808
    %3985 = vmatpush1.msra.mxu0 %v2807
    %3986 = vmatprep.subr.mxu0 %v2815
    %3987 = vmatpush1.msra.mxu0 %v2814
    %3988 = vmatprep.subr.mxu0 %v2822
    %3989 = vmatpush1.msra.mxu0 %v2821
    %3990 = vmatprep.subr.mxu0 %v2829
    %3991 = vmatpush1.msra.mxu0 %v2828
    %3992 = vmatprep.subr.mxu0 %v2836
    %3993 = vmatpush1.msra.mxu0 %v2835
    %3994 = vmatprep.subr.mxu0 %v2843
    %3995 = vmatpush1.msra.mxu0 %v2842
    %3996 = vmatprep.subr.mxu0 %v2850
    %3997 = vmatpush1.msra.mxu0 %v2849
    %3998 = vmatprep.subr.mxu0 %v2857
    %3999 = vmatpush1.msra.mxu0 %v2856
    %4000 = vmatprep.subr.mxu0 %v2864
    %4001 = vmatpush1.msra.mxu0 %v2863
    %4002 = vmatprep.subr.mxu0 %v2871
    %4003 = vmatpush1.msra.mxu0 %v2870
    %4004 = vmatprep.subr.mxu0 %v2878
    %4005 = vmatpush1.msra.mxu0 %v2877
    %4006 = vmatprep.subr.mxu0 %v2885
    %4007 = vmatpush1.msra.mxu0 %v2884
    %4008 = vmatprep.subr.mxu0 %v2892
    %4009 = vmatpush1.msra.mxu0 %v2891
    %4010 = vmatprep.subr.mxu0 %v2899
    %4011 = vmatpush1.msra.mxu0 %v2898
    %4012 = vmatprep.subr.mxu0 %v2906
    %4013 = vmatpush1.msra.mxu0 %v2905
    %4014 = vmatprep.subr.mxu0 %v2913
    %4015 = vmatpush1.msra.mxu0 %v2912
    %4016 = vmatprep.subr.mxu0 %v2920
    %4017 = vmatpush1.msra.mxu0 %v2919
    %4018 = vmatprep.subr.mxu0 %v2927
    %4019 = vmatpush1.msra.mxu0 %v2926
    %4020 = vmatprep.subr.mxu0 %v2934
    %4021 = vmatpush1.msra.mxu0 %v2933
    %4022 = vmatprep.subr.mxu0 %v2941
    %4023 = vmatpush1.msra.mxu0 %v2940
    %4024 = vmatprep.subr.mxu0 %v2948
    %4025 = vmatpush1.msra.mxu0 %v2947
    %4026 = vmatprep.mubr.f32.mxu0 %v2498
    %4027 = vmatmul.mubr.f32.gmra.mrb[0].mxu0 %v2497
    %v4028 = vpop.f32.mrb[0].mxu0
    %v4029 = vadd.f32 %v3958, %v4028
    %v4030 = vpop.f32.mrb[0].mxu0
    %v4031 = vadd.f32 %v3960, %v4030
    %4032 = vdwg.mxu0
    %4033 = vmatprep.subr.mxu0 %v2955
    %4034 = vmatpush1.msra.mxu0 %v2954
    %4035 = vmatprep.subr.mxu0 %v2962
    %4036 = vmatpush1.msra.mxu0 %v2961
    %4037 = vmatprep.subr.mxu0 %v2969
    %4038 = vmatpush1.msra.mxu0 %v2968
    %4039 = vmatprep.subr.mxu0 %v2976
    %4040 = vmatpush1.msra.mxu0 %v2975
    %4041 = vmatprep.subr.mxu0 %v2983
    %4042 = vmatpush1.msra.mxu0 %v2982
    %4043 = vmatprep.subr.mxu0 %v2990
    %4044 = vmatpush1.msra.mxu0 %v2989
    %4045 = vmatprep.subr.mxu0 %v2997
    %4046 = vmatpush1.msra.mxu0 %v2996
    %4047 = vmatprep.subr.mxu0 %v3004
    %4048 = vmatpush1.msra.mxu0 %v3003
    %4049 = vmatprep.subr.mxu0 %v3011
    %4050 = vmatpush1.msra.mxu0 %v3010
    %4051 = vmatprep.subr.mxu0 %v3018
    %4052 = vmatpush1.msra.mxu0 %v3017
    %4053 = vmatprep.subr.mxu0 %v3025
    %4054 = vmatpush1.msra.mxu0 %v3024
    %4055 = vmatprep.subr.mxu0 %v3032
    %4056 = vmatpush1.msra.mxu0 %v3031
    %4057 = vmatprep.subr.mxu0 %v3039
    %4058 = vmatpush1.msra.mxu0 %v3038
    %4059 = vmatprep.subr.mxu0 %v3046
    %4060 = vmatpush1.msra.mxu0 %v3045
    %4061 = vmatprep.subr.mxu0 %v3053
    %4062 = vmatpush1.msra.mxu0 %v3052
    %4063 = vmatprep.subr.mxu0 %v3060
    %4064 = vmatpush1.msra.mxu0 %v3059
    %4065 = vmatprep.subr.mxu0 %v3067
    %4066 = vmatpush1.msra.mxu0 %v3066
    %4067 = vmatprep.subr.mxu0 %v3074
    %4068 = vmatpush1.msra.mxu0 %v3073
    %4069 = vmatprep.subr.mxu0 %v3081
    %4070 = vmatpush1.msra.mxu0 %v3080
    %4071 = vmatprep.subr.mxu0 %v3088
    %4072 = vmatpush1.msra.mxu0 %v3087
    %4073 = vmatprep.subr.mxu0 %v3095
    %4074 = vmatpush1.msra.mxu0 %v3094
    %4075 = vmatprep.subr.mxu0 %v3102
    %4076 = vmatpush1.msra.mxu0 %v3101
    %4077 = vmatprep.subr.mxu0 %v3109
    %4078 = vmatpush1.msra.mxu0 %v3108
    %4079 = vmatprep.subr.mxu0 %v3116
    %4080 = vmatpush1.msra.mxu0 %v3115
    %4081 = vmatprep.subr.mxu0 %v3123
    %4082 = vmatpush1.msra.mxu0 %v3122
    %4083 = vmatprep.subr.mxu0 %v3130
    %4084 = vmatpush1.msra.mxu0 %v3129
    %4085 = vmatprep.subr.mxu0 %v3137
    %4086 = vmatpush1.msra.mxu0 %v3136
    %4087 = vmatprep.subr.mxu0 %v3144
    %4088 = vmatpush1.msra.mxu0 %v3143
    %4089 = vmatprep.subr.mxu0 %v3151
    %4090 = vmatpush1.msra.mxu0 %v3150
    %4091 = vmatprep.subr.mxu0 %v3158
    %4092 = vmatpush1.msra.mxu0 %v3157
    %4093 = vmatprep.subr.mxu0 %v3165
    %4094 = vmatpush1.msra.mxu0 %v3164
    %4095 = vmatprep.subr.mxu0 %v3172
    %4096 = vmatpush1.msra.mxu0 %v3171
    %4097 = vmatprep.mubr.f32.mxu0 %v2500
    %4098 = vmatmul.mubr.f32.gmra.mrb[0].mxu0 %v2499
    %v4099 = vpop.f32.mrb[0].mxu0
    %v4100 = vadd.f32 %v4029, %v4099
    %v4101 = vpop.f32.mrb[0].mxu0
    %v4102 = vadd.f32 %v4031, %v4101
    %4103 = vdwg.mxu0
    %4104 = vmatprep.subr.mxu0 %v3179
    %4105 = vmatpush1.msra.mxu0 %v3178
    %4106 = vmatprep.subr.mxu0 %v3186
    %4107 = vmatpush1.msra.mxu0 %v3185
    %4108 = vmatprep.subr.mxu0 %v3193
    %4109 = vmatpush1.msra.mxu0 %v3192
    %4110 = vmatprep.subr.mxu0 %v3200
    %4111 = vmatpush1.msra.mxu0 %v3199
    %4112 = vmatprep.subr.mxu0 %v3207
    %4113 = vmatpush1.msra.mxu0 %v3206
    %4114 = vmatprep.subr.mxu0 %v3214
    %4115 = vmatpush1.msra.mxu0 %v3213
    %4116 = vmatprep.subr.mxu0 %v3221
    %4117 = vmatpush1.msra.mxu0 %v3220
    %4118 = vmatprep.subr.mxu0 %v3228
    %4119 = vmatpush1.msra.mxu0 %v3227
    %4120 = vmatprep.subr.mxu0 %v3235
    %4121 = vmatpush1.msra.mxu0 %v3234
    %4122 = vmatprep.subr.mxu0 %v3242
    %4123 = vmatpush1.msra.mxu0 %v3241
    %4124 = vmatprep.subr.mxu0 %v3249
    %4125 = vmatpush1.msra.mxu0 %v3248
    %4126 = vmatprep.subr.mxu0 %v3256
    %4127 = vmatpush1.msra.mxu0 %v3255
    %4128 = vmatprep.subr.mxu0 %v3263
    %4129 = vmatpush1.msra.mxu0 %v3262
    %4130 = vmatprep.subr.mxu0 %v3270
    %4131 = vmatpush1.msra.mxu0 %v3269
    %4132 = vmatprep.subr.mxu0 %v3277
    %4133 = vmatpush1.msra.mxu0 %v3276
    %4134 = vmatprep.subr.mxu0 %v3284
    %4135 = vmatpush1.msra.mxu0 %v3283
    %4136 = vmatprep.subr.mxu0 0.0
    %4137 = vmatpush1.msra.mxu0 0.0
    %4138 = vmatprep.subr.mxu0 0.0
    %4139 = vmatpush1.msra.mxu0 0.0
    %4140 = vmatprep.subr.mxu0 0.0
    %4141 = vmatpush1.msra.mxu0 0.0
    %4142 = vmatprep.subr.mxu0 0.0
    %4143 = vmatpush1.msra.mxu0 0.0
    %4144 = vmatprep.subr.mxu0 0.0
    %4145 = vmatpush1.msra.mxu0 0.0
    %4146 = vmatprep.subr.mxu0 0.0
    %4147 = vmatpush1.msra.mxu0 0.0
    %4148 = vmatprep.subr.mxu0 0.0
    %4149 = vmatpush1.msra.mxu0 0.0
    %4150 = vmatprep.subr.mxu0 0.0
    %4151 = vmatpush1.msra.mxu0 0.0
    %4152 = vmatprep.subr.mxu0 0.0
    %4153 = vmatpush1.msra.mxu0 0.0
    %4154 = vmatprep.subr.mxu0 0.0
    %4155 = vmatpush1.msra.mxu0 0.0
    %4156 = vmatprep.subr.mxu0 0.0
    %4157 = vmatpush1.msra.mxu0 0.0
    %4158 = vmatprep.subr.mxu0 0.0
    %4159 = vmatpush1.msra.mxu0 0.0
    %4160 = vmatprep.subr.mxu0 0.0
    %4161 = vmatpush1.msra.mxu0 0.0
    %4162 = vmatprep.subr.mxu0 0.0
    %4163 = vmatpush1.msra.mxu0 0.0
    %4164 = vmatprep.subr.mxu0 0.0
    %4165 = vmatpush1.msra.mxu0 0.0
    %4166 = vmatprep.subr.mxu0 0.0
    %4167 = vmatpush1.msra.mxu0 0.0
    %4168 = vmatprep.mubr.f32.mxu0 0.0
    %4169 = vmatmul.mubr.f32.gmra.mrb[0].mxu0 %v2501
    %v4170 = vpop.f32.mrb[0].mxu0
    %v4171 = vadd.f32 %v4100, %v4170
    %v4172 = vpop.f32.mrb[0].mxu0
    %v4173 = vadd.f32 %v4102, %v4172
    %4174 = vdwg.mxu0
    %4175 = vmatprep.subr.mxu0 0.0
    %4176 = vmatpush1.msra.mxu0 %v2508
    %4177 = vmatprep.subr.mxu0 0.0
    %4178 = vmatpush1.msra.mxu0 %v2515
    %4179 = vmatprep.subr.mxu0 0.0
    %4180 = vmatpush1.msra.mxu0 %v2522
    %4181 = vmatprep.subr.mxu0 0.0
    %4182 = vmatpush1.msra.mxu0 %v2529
    %4183 = vmatprep.subr.mxu0 0.0
    %4184 = vmatpush1.msra.mxu0 %v2536
    %4185 = vmatprep.subr.mxu0 0.0
    %4186 = vmatpush1.msra.mxu0 %v2543
    %4187 = vmatprep.subr.mxu0 0.0
    %4188 = vmatpush1.msra.mxu0 %v2550
    %4189 = vmatprep.subr.mxu0 0.0
    %4190 = vmatpush1.msra.mxu0 %v2557
    %4191 = vmatprep.subr.mxu0 0.0
    %4192 = vmatpush1.msra.mxu0 %v2564
    %4193 = vmatprep.subr.mxu0 0.0
    %4194 = vmatpush1.msra.mxu0 %v2571
    %4195 = vmatprep.subr.mxu0 0.0
    %4196 = vmatpush1.msra.mxu0 %v2578
    %4197 = vmatprep.subr.mxu0 0.0
    %4198 = vmatpush1.msra.mxu0 %v2585
    %4199 = vmatprep.subr.mxu0 0.0
    %4200 = vmatpush1.msra.mxu0 %v2592
    %4201 = vmatprep.subr.mxu0 0.0
    %4202 = vmatpush1.msra.mxu0 %v2599
    %4203 = vmatprep.subr.mxu0 0.0
    %4204 = vmatpush1.msra.mxu0 %v2606
    %4205 = vmatprep.subr.mxu0 0.0
    %4206 = vmatpush1.msra.mxu0 %v2613
    %4207 = vmatprep.subr.mxu0 0.0
    %4208 = vmatpush1.msra.mxu0 %v2620
    %4209 = vmatprep.subr.mxu0 0.0
    %4210 = vmatpush1.msra.mxu0 %v2627
    %4211 = vmatprep.subr.mxu0 0.0
    %4212 = vmatpush1.msra.mxu0 %v2634
    %4213 = vmatprep.subr.mxu0 0.0
    %4214 = vmatpush1.msra.mxu0 %v2641
    %4215 = vmatprep.subr.mxu0 0.0
    %4216 = vmatpush1.msra.mxu0 %v2648
    %4217 = vmatprep.subr.mxu0 0.0
    %4218 = vmatpush1.msra.mxu0 %v2655
    %4219 = vmatprep.subr.mxu0 0.0
    %4220 = vmatpush1.msra.mxu0 %v2662
    %4221 = vmatprep.subr.mxu0 0.0
    %4222 = vmatpush1.msra.mxu0 %v2669
    %4223 = vmatprep.subr.mxu0 0.0
    %4224 = vmatpush1.msra.mxu0 %v2676
    %4225 = vmatprep.subr.mxu0 0.0
    %4226 = vmatpush1.msra.mxu0 %v2683
    %4227 = vmatprep.subr.mxu0 0.0
    %4228 = vmatpush1.msra.mxu0 %v2690
    %4229 = vmatprep.subr.mxu0 0.0
    %4230 = vmatpush1.msra.mxu0 %v2697
    %4231 = vmatprep.subr.mxu0 0.0
    %4232 = vmatpush1.msra.mxu0 %v2704
    %4233 = vmatprep.subr.mxu0 0.0
    %4234 = vmatpush1.msra.mxu0 %v2711
    %4235 = vmatprep.subr.mxu0 0.0
    %4236 = vmatpush1.msra.mxu0 %v2718
    %4237 = vmatprep.subr.mxu0 0.0
    %4238 = vmatpush1.msra.mxu0 %v2725
    %4239 = vmatprep.mubr.f32.mxu0 %v2496
    %4240 = vmatmul.mubr.f32.gmra.mrb[0].mxu0 %v2495
    %v4241 = vpop.f32.mrb[0].mxu0
    %v4242 = vadd.f32 %v3315, %v4241
    %v4243 = vpop.f32.mrb[0].mxu0
    %4244 = vdwg.mxu0
    %4245 = vmatprep.subr.mxu0 0.0
    %4246 = vmatpush1.msra.mxu0 %v2732
    %4247 = vmatprep.subr.mxu0 0.0
    %4248 = vmatpush1.msra.mxu0 %v2739
    %4249 = vmatprep.subr.mxu0 0.0
    %4250 = vmatpush1.msra.mxu0 %v2746
    %4251 = vmatprep.subr.mxu0 0.0
    %4252 = vmatpush1.msra.mxu0 %v2753
    %4253 = vmatprep.subr.mxu0 0.0
    %4254 = vmatpush1.msra.mxu0 %v2760
    %4255 = vmatprep.subr.mxu0 0.0
    %4256 = vmatpush1.msra.mxu0 %v2767
    %4257 = vmatprep.subr.mxu0 0.0
    %4258 = vmatpush1.msra.mxu0 %v2774
    %4259 = vmatprep.subr.mxu0 0.0
    %4260 = vmatpush1.msra.mxu0 %v2781
    %4261 = vmatprep.subr.mxu0 0.0
    %4262 = vmatpush1.msra.mxu0 %v2788
    %4263 = vmatprep.subr.mxu0 0.0
    %4264 = vmatpush1.msra.mxu0 %v2795
    %4265 = vmatprep.subr.mxu0 0.0
    %4266 = vmatpush1.msra.mxu0 %v2802
    %4267 = vmatprep.subr.mxu0 0.0
    %4268 = vmatpush1.msra.mxu0 %v2809
    %4269 = vmatprep.subr.mxu0 0.0
    %4270 = vmatpush1.msra.mxu0 %v2816
    %4271 = vmatprep.subr.mxu0 0.0
    %4272 = vmatpush1.msra.mxu0 %v2823
    %4273 = vmatprep.subr.mxu0 0.0
    %4274 = vmatpush1.msra.mxu0 %v2830
    %4275 = vmatprep.subr.mxu0 0.0
    %4276 = vmatpush1.msra.mxu0 %v2837
    %4277 = vmatprep.subr.mxu0 0.0
    %4278 = vmatpush1.msra.mxu0 %v2844
    %4279 = vmatprep.subr.mxu0 0.0
    %4280 = vmatpush1.msra.mxu0 %v2851
    %4281 = vmatprep.subr.mxu0 0.0
    %4282 = vmatpush1.msra.mxu0 %v2858
    %4283 = vmatprep.subr.mxu0 0.0
    %4284 = vmatpush1.msra.mxu0 %v2865
    %4285 = vmatprep.subr.mxu0 0.0
    %4286 = vmatpush1.msra.mxu0 %v2872
    %4287 = vmatprep.subr.mxu0 0.0
    %4288 = vmatpush1.msra.mxu0 %v2879
    %4289 = vmatprep.subr.mxu0 0.0
    %4290 = vmatpush1.msra.mxu0 %v2886
    %4291 = vmatprep.subr.mxu0 0.0
    %4292 = vmatpush1.msra.mxu0 %v2893
    %4293 = vmatprep.subr.mxu0 0.0
    %4294 = vmatpush1.msra.mxu0 %v2900
    %4295 = vmatprep.subr.mxu0 0.0
    %4296 = vmatpush1.msra.mxu0 %v2907
    %4297 = vmatprep.subr.mxu0 0.0
    %4298 = vmatpush1.msra.mxu0 %v2914
    %4299 = vmatprep.subr.mxu0 0.0
    %4300 = vmatpush1.msra.mxu0 %v2921
    %4301 = vmatprep.subr.mxu0 0.0
    %4302 = vmatpush1.msra.mxu0 %v2928
    %4303 = vmatprep.subr.mxu0 0.0
    %4304 = vmatpush1.msra.mxu0 %v2935
    %4305 = vmatprep.subr.mxu0 0.0
    %4306 = vmatpush1.msra.mxu0 %v2942
    %4307 = vmatprep.subr.mxu0 0.0
    %4308 = vmatpush1.msra.mxu0 %v2949
    %4309 = vmatprep.mubr.f32.mxu0 %v2498
    %4310 = vmatmul.mubr.f32.gmra.mrb[0].mxu0 %v2497
    %v4311 = vpop.f32.mrb[0].mxu0
    %v4312 = vadd.f32 %v4242, %v4311
    %v4313 = vpop.f32.mrb[0].mxu0
    %4314 = vdwg.mxu0
    %4315 = vmatprep.subr.mxu0 0.0
    %4316 = vmatpush1.msra.mxu0 %v2956
    %4317 = vmatprep.subr.mxu0 0.0
    %4318 = vmatpush1.msra.mxu0 %v2963
    %4319 = vmatprep.subr.mxu0 0.0
    %4320 = vmatpush1.msra.mxu0 %v2970
    %4321 = vmatprep.subr.mxu0 0.0
    %4322 = vmatpush1.msra.mxu0 %v2977
    %4323 = vmatprep.subr.mxu0 0.0
    %4324 = vmatpush1.msra.mxu0 %v2984
    %4325 = vmatprep.subr.mxu0 0.0
    %4326 = vmatpush1.msra.mxu0 %v2991
    %4327 = vmatprep.subr.mxu0 0.0
    %4328 = vmatpush1.msra.mxu0 %v2998
    %4329 = vmatprep.subr.mxu0 0.0
    %4330 = vmatpush1.msra.mxu0 %v3005
    %4331 = vmatprep.subr.mxu0 0.0
    %4332 = vmatpush1.msra.mxu0 %v3012
    %4333 = vmatprep.subr.mxu0 0.0
    %4334 = vmatpush1.msra.mxu0 %v3019
    %4335 = vmatprep.subr.mxu0 0.0
    %4336 = vmatpush1.msra.mxu0 %v3026
    %4337 = vmatprep.subr.mxu0 0.0
    %4338 = vmatpush1.msra.mxu0 %v3033
    %4339 = vmatprep.subr.mxu0 0.0
    %4340 = vmatpush1.msra.mxu0 %v3040
    %4341 = vmatprep.subr.mxu0 0.0
    %4342 = vmatpush1.msra.mxu0 %v3047
    %4343 = vmatprep.subr.mxu0 0.0
    %4344 = vmatpush1.msra.mxu0 %v3054
    %4345 = vmatprep.subr.mxu0 0.0
    %4346 = vmatpush1.msra.mxu0 %v3061
    %4347 = vmatprep.subr.mxu0 0.0
    %4348 = vmatpush1.msra.mxu0 %v3068
    %4349 = vmatprep.subr.mxu0 0.0
    %4350 = vmatpush1.msra.mxu0 %v3075
    %4351 = vmatprep.subr.mxu0 0.0
    %4352 = vmatpush1.msra.mxu0 %v3082
    %4353 = vmatprep.subr.mxu0 0.0
    %4354 = vmatpush1.msra.mxu0 %v3089
    %4355 = vmatprep.subr.mxu0 0.0
    %4356 = vmatpush1.msra.mxu0 %v3096
    %4357 = vmatprep.subr.mxu0 0.0
    %4358 = vmatpush1.msra.mxu0 %v3103
    %4359 = vmatprep.subr.mxu0 0.0
    %4360 = vmatpush1.msra.mxu0 %v3110
    %4361 = vmatprep.subr.mxu0 0.0
    %4362 = vmatpush1.msra.mxu0 %v3117
    %4363 = vmatprep.subr.mxu0 0.0
    %4364 = vmatpush1.msra.mxu0 %v3124
    %4365 = vmatprep.subr.mxu0 0.0
    %4366 = vmatpush1.msra.mxu0 %v3131
    %4367 = vmatprep.subr.mxu0 0.0
    %4368 = vmatpush1.msra.mxu0 %v3138
    %4369 = vmatprep.subr.mxu0 0.0
    %4370 = vmatpush1.msra.mxu0 %v3145
    %4371 = vmatprep.subr.mxu0 0.0
    %4372 = vmatpush1.msra.mxu0 %v3152
    %4373 = vmatprep.subr.mxu0 0.0
    %4374 = vmatpush1.msra.mxu0 %v3159
    %4375 = vmatprep.subr.mxu0 0.0
    %4376 = vmatpush1.msra.mxu0 %v3166
    %4377 = vmatprep.subr.mxu0 0.0
    %4378 = vmatpush1.msra.mxu0 %v3173
    %4379 = vmatprep.mubr.f32.mxu0 %v2500
    %4380 = vmatmul.mubr.f32.gmra.mrb[0].mxu0 %v2499
    %v4381 = vpop.f32.mrb[0].mxu0
    %v4382 = vadd.f32 %v4312, %v4381
    %v4383 = vpop.f32.mrb[0].mxu0
    %4384 = vdwg.mxu0
    %4385 = vmatprep.subr.mxu0 0.0
    %4386 = vmatpush1.msra.mxu0 %v3180
    %4387 = vmatprep.subr.mxu0 0.0
    %4388 = vmatpush1.msra.mxu0 %v3187
    %4389 = vmatprep.subr.mxu0 0.0
    %4390 = vmatpush1.msra.mxu0 %v3194
    %4391 = vmatprep.subr.mxu0 0.0
    %4392 = vmatpush1.msra.mxu0 %v3201
    %4393 = vmatprep.subr.mxu0 0.0
    %4394 = vmatpush1.msra.mxu0 %v3208
    %4395 = vmatprep.subr.mxu0 0.0
    %4396 = vmatpush1.msra.mxu0 %v3215
    %4397 = vmatprep.subr.mxu0 0.0
    %4398 = vmatpush1.msra.mxu0 %v3222
    %4399 = vmatprep.subr.mxu0 0.0
    %4400 = vmatpush1.msra.mxu0 %v3229
    %4401 = vmatprep.subr.mxu0 0.0
    %4402 = vmatpush1.msra.mxu0 %v3236
    %4403 = vmatprep.subr.mxu0 0.0
    %4404 = vmatpush1.msra.mxu0 %v3243
    %4405 = vmatprep.subr.mxu0 0.0
    %4406 = vmatpush1.msra.mxu0 %v3250
    %4407 = vmatprep.subr.mxu0 0.0
    %4408 = vmatpush1.msra.mxu0 %v3257
    %4409 = vmatprep.subr.mxu0 0.0
    %4410 = vmatpush1.msra.mxu0 %v3264
    %4411 = vmatprep.subr.mxu0 0.0
    %4412 = vmatpush1.msra.mxu0 %v3271
    %4413 = vmatprep.subr.mxu0 0.0
    %4414 = vmatpush1.msra.mxu0 %v3278
    %4415 = vmatprep.subr.mxu0 0.0
    %4416 = vmatpush1.msra.mxu0 %v3285
    %4417 = vmatprep.subr.mxu0 0.0
    %4418 = vmatpush1.msra.mxu0 0.0
    %4419 = vmatprep.subr.mxu0 0.0
    %4420 = vmatpush1.msra.mxu0 0.0
    %4421 = vmatprep.subr.mxu0 0.0
    %4422 = vmatpush1.msra.mxu0 0.0
    %4423 = vmatprep.subr.mxu0 0.0
    %4424 = vmatpush1.msra.mxu0 0.0
    %4425 = vmatprep.subr.mxu0 0.0
    %4426 = vmatpush1.msra.mxu0 0.0
    %4427 = vmatprep.subr.mxu0 0.0
    %4428 = vmatpush1.msra.mxu0 0.0
    %4429 = vmatprep.subr.mxu0 0.0
    %4430 = vmatpush1.msra.mxu0 0.0
    %4431 = vmatprep.subr.mxu0 0.0
    %4432 = vmatpush1.msra.mxu0 0.0
    %4433 = vmatprep.subr.mxu0 0.0
    %4434 = vmatpush1.msra.mxu0 0.0
    %4435 = vmatprep.subr.mxu0 0.0
    %4436 = vmatpush1.msra.mxu0 0.0
    %4437 = vmatprep.subr.mxu0 0.0
    %4438 = vmatpush1.msra.mxu0 0.0
    %4439 = vmatprep.subr.mxu0 0.0
    %4440 = vmatpush1.msra.mxu0 0.0
    %4441 = vmatprep.subr.mxu0 0.0
    %4442 = vmatpush1.msra.mxu0 0.0
    %4443 = vmatprep.subr.mxu0 0.0
    %4444 = vmatpush1.msra.mxu0 0.0
    %4445 = vmatprep.subr.mxu0 0.0
    %4446 = vmatpush1.msra.mxu0 0.0
    %4447 = vmatprep.subr.mxu0 0.0
    %4448 = vmatpush1.msra.mxu0 0.0
    %4449 = vmatprep.mubr.f32.mxu0 0.0
    %4450 = vmatmul.mubr.f32.gmra.mrb[0].mxu0 %v2501
    %v4451 = vpop.f32.mrb[0].mxu0
    %v4452 = vadd.f32 %v4382, %v4451
    %v4453 = vpop.f32.mrb[0].mxu0
    %4454 = vdwg.mxu0
    %v4455 = vtanh.pop %v3603
    %v4456 = vtanh.pop %v3605
    %v4457 = vtanh.pop %v3887
    %v4458 = vtanh.pop %v3889
    %v4459 = vtanh.pop %v4171
    %v4460 = vtanh.pop %v4173
    %v4461 = vtanh.pop %v4452
    %4462 = vst [vmem:[%s7] sm:$0xff] %v4455
    %4463 = vst [vmem:[%s7 + $0x8] sm:$0xff] %v4456
    %4464 = vst [vmem:[%s7 + $0x10] sm:$0xff] %v4457
    %4465 = vst [vmem:[%s7 + $0x18] sm:$0xff] %v4458
    %4466 = vst [vmem:[%s7 + $0x20] sm:$0xff] %v4459
    %4467 = vst [vmem:[%s7 + $0x28] sm:$0xff] %v4460
    %4468 = vst [vmem:[%s7 + $0x30] sm:$0xff] %v4461
    // Predicated region
    $region54: #{forward.1} parent=1 // pred_check
      _
    $region55: #{forward.1} parent=1 // pred_check_branch
      %4470 = sbr.rel (0) target = $region57
    $region56: #{forward.1} parent=1 // pred_region
      _
    $region57: #{forward.1} parent=1 // pred_fallthru
      _
    // Predicated region
    $region58: #{forward.1} parent=1 // pred_check
      _
    $region59: #{forward.1} parent=1 // pred_check_branch
      %4472 = sbr.rel (0) target = $region61
    $region60: #{forward.1} parent=1 // pred_region
      _
    $region61: #{forward.1} parent=1 // pred_fallthru
      _
    %4473 = vsyncpa [#allocation3], 1
    %4474 = vsyncpa [#allocation5], 1
    %4475 = vsyncpa [#allocation8], 1
    %4476 = vsyncpa [#allocation11], 1

// kernel: forward.1
$region0: #{forward.1}
  #allocation0 [shape = 'u32[]', space=smem, size = 0x4, offset = 0x4, fixed_abs, tag = 'smem constant byte address 0x4 - core index']
  #allocation1 [shape = 'u32[144,128]{1,0:T(1,128)}', space=vmem, size = 0x12000, scoped, tag = 'internal scratch']
  %s0 = inlined_call_operand.vmem [shape: f32[8,128], index: 0, kind: input, shape index: {}]
  %s1 = inlined_call_operand.hbm [shape: f32[128,896], index: 1, kind: input, shape index: {}]
  %s2 = inlined_call_operand.hbm [shape: f32[1,896], index: 2, kind: input, shape index: {}]
  %s3 = inlined_call_operand.hbm [shape: f32[896,896], index: 3, kind: input, shape index: {}]
  %s4 = inlined_call_operand.hbm [shape: f32[1,896], index: 4, kind: input, shape index: {}]
  %s5 = inlined_call_operand.hbm [shape: f32[896,896], index: 5, kind: input, shape index: {}]
  %s6 = inlined_call_operand.hbm [shape: f32[1,896], index: 6, kind: input, shape index: {}]
  %s7 = inlined_call_operand.vmem [shape: f32[8,896], index: 7, kind: output, shape index: {}]
  %s8 = sld [smem:[#allocation0]]
  $region62: #{forward.1} parent=0
    _
  %s10 = ssub.s32 1, %s8
  %s11 = scalar_select 0, %s10, %s8
  $region1: #{forward.1} parent=0
    #allocation2 [shape = 'u8[458752]{0}', space=vmem, size = 0x70000, scoped, tag = 'input window, operand 1, single buffered']
    #allocation3 [shape = 's32[1]{0}', space=sflag, size = 0x4, scoped, tag = 'scoped memory for forward.1']
    #allocation4 [shape = 'u8[3584]{0}', space=vmem, size = 0x1000, scoped, tag = 'input window, operand 2, single buffered']
    #allocation5 [shape = 's32[1]{0}', space=sflag, size = 0x4, scoped, tag = 'scoped memory for forward.1']
    #allocation6 [shape = 'u8[3211264]{0}', space=vmem, size = 0x310000, scoped, tag = 'input window, operand 3, single buffered']
    #allocation7 [shape = 'u8[3584]{0}', space=vmem, size = 0x1000, scoped, tag = 'input window, operand 4, single buffered']
    #allocation8 [shape = 's32[1]{0}', space=sflag, size = 0x4, scoped, tag = 'scoped memory for forward.1']
    #allocation9 [shape = 'u8[3211264]{0}', space=vmem, size = 0x310000, scoped, tag = 'input window, operand 5, single buffered']
    #allocation10 [shape = 'u8[3584]{0}', space=vmem, size = 0x1000, scoped, tag = 'input window, operand 6, single buffered']
    #allocation11 [shape = 's32[1]{0}', space=sflag, size = 0x4, scoped, tag = 'scoped memory for forward.1']
    %12 = vsyncpa [#allocation3], 0
    %13 = vsyncpa [#allocation5], 0
    %14 = vsyncpa [#allocation8], 0
    %15 = vsyncpa [#allocation11], 0
    // Predicated region
    $region2: #{forward.1} parent=1 // pred_check
      _
    $region3: #{forward.1} parent=1 // pred_check_branch
      %17 = sbr.rel (0) target = $region5
    $region4: #{forward.1} parent=1 // pred_region
      _
    $region5: #{forward.1} parent=1 // pred_fallthru
      _
    // Predicated region
    $region6: #{forward.1} parent=1 // pred_check
      _
    $region7: #{forward.1} parent=1 // pred_check_branch
      %19 = sbr.rel (0) target = $region9
    $region8: #{forward.1} parent=1 // pred_region
      %s21 = ssub.s32 14336, 14336
      %22 = vsyncadd [#allocation3], %s21
      %s23 = sshll.u32 [#allocation2], 4
      %s24 = int_to_ptr.vmem [resolvable:$true] %s23
      %29 = dma.hbm_to_vmem [thread:$0]  %s1, 14336, %s24, [#allocation3], 896, 896, 56
    $region9: #{forward.1} parent=1 // pred_fallthru
      _
    // Predicated region
    $region10: #{forward.1} parent=1 // pred_check
      _
    $region11: #{forward.1} parent=1 // pred_check_branch
      %31 = sbr.rel (0) target = $region13
    $region12: #{forward.1} parent=1 // pred_region
      %s33 = ssub.s32 112, 112
      %34 = vsyncadd [#allocation5], %s33
      %s36 = sshll.u32 [#allocation4], 4
      %s37 = int_to_ptr.vmem [resolvable:$true] %s36
      %39 = dma.hbm_to_vmem [thread:$0]  %s2, 112, %s37, [#allocation5]
    $region13: #{forward.1} parent=1 // pred_fallthru
      _
    // Predicated region
    $region14: #{forward.1} parent=1 // pred_check
      _
    $region15: #{forward.1} parent=1 // pred_check_branch
      %41 = sbr.rel (0) target = $region17
    $region16: #{forward.1} parent=1 // pred_region
      %s43 = ssub.s32 100352, 100352
      %44 = vsyncadd [#allocation5], %s43
      %s45 = sshll.u32 [#allocation6], 4
      %s46 = int_to_ptr.vmem [resolvable:$true] %s45
      %51 = dma.hbm_to_vmem [thread:$0]  %s3, 100352, %s46, [#allocation5], 896, 896, 56
    $region17: #{forward.1} parent=1 // pred_fallthru
      _
    // Predicated region
    $region18: #{forward.1} parent=1 // pred_check
      _
    $region19: #{forward.1} parent=1 // pred_check_branch
      %53 = sbr.rel (0) target = $region21
    $region20: #{forward.1} parent=1 // pred_region
      %s55 = ssub.s32 112, 112
      %56 = vsyncadd [#allocation8], %s55
      %s58 = sshll.u32 [#allocation7], 4
      %s59 = int_to_ptr.vmem [resolvable:$true] %s58
      %61 = dma.hbm_to_vmem [thread:$0]  %s4, 112, %s59, [#allocation8]
    $region21: #{forward.1} parent=1 // pred_fallthru
      _
    // Predicated region
    $region22: #{forward.1} parent=1 // pred_check
      _
    $region23: #{forward.1} parent=1 // pred_check_branch
      %63 = sbr.rel (0) target = $region25
    $region24: #{forward.1} parent=1 // pred_region
      %s65 = ssub.s32 100352, 100352
      %66 = vsyncadd [#allocation8], %s65
      %s67 = sshll.u32 [#allocation9], 4
      %s68 = int_to_ptr.vmem [resolvable:$true] %s67
      %73 = dma.hbm_to_vmem [thread:$0]  %s5, 100352, %s68, [#allocation8], 896, 896, 56
    $region25: #{forward.1} parent=1 // pred_fallthru
      _
    // Predicated region
    $region26: #{forward.1} parent=1 // pred_check
      _
    $region27: #{forward.1} parent=1 // pred_check_branch
      %75 = sbr.rel (0) target = $region29
    $region28: #{forward.1} parent=1 // pred_region
      %s77 = ssub.s32 112, 112
      %78 = vsyncadd [#allocation11], %s77
      %s80 = sshll.u32 [#allocation10], 4
      %s81 = int_to_ptr.vmem [resolvable:$true] %s80
      %83 = dma.hbm_to_vmem [thread:$0]  %s6, 112, %s81, [#allocation11]
    $region29: #{forward.1} parent=1 // pred_fallthru
      _
    // Predicated region
    $region30: #{forward.1} parent=1 // pred_check
      _
    $region31: #{forward.1} parent=1 // pred_check_branch
      %85 = sbr.rel (0) target = $region33
    $region32: #{forward.1} parent=1 // pred_region
      %86 = dma.done [#allocation3], 14336
    $region33: #{forward.1} parent=1 // pred_fallthru
      _
    // Predicated region
    $region34: #{forward.1} parent=1 // pred_check
      _
    $region35: #{forward.1} parent=1 // pred_check_branch
      %88 = sbr.rel (0) target = $region37
    $region36: #{forward.1} parent=1 // pred_region
      %89 = dma.done [#allocation5], 112
    $region37: #{forward.1} parent=1 // pred_fallthru
      _
    // Predicated region
    $region38: #{forward.1} parent=1 // pred_check
      _
    $region39: #{forward.1} parent=1 // pred_check_branch
      %91 = sbr.rel (0) target = $region41
    $region40: #{forward.1} parent=1 // pred_region
      %92 = dma.done [#allocation5], 100352
    $region41: #{forward.1} parent=1 // pred_fallthru
      _
    // Predicated region
    $region42: #{forward.1} parent=1 // pred_check
      _
    $region43: #{forward.1} parent=1 // pred_check_branch
      %94 = sbr.rel (0) target = $region45
    $region44: #{forward.1} parent=1 // pred_region
      %95 = dma.done [#allocation8], 112
    $region45: #{forward.1} parent=1 // pred_fallthru
      _
    // Predicated region
    $region46: #{forward.1} parent=1 // pred_check
      _
    $region47: #{forward.1} parent=1 // pred_check_branch
      %97 = sbr.rel (0) target = $region49
    $region48: #{forward.1} parent=1 // pred_region
      %98 = dma.done [#allocation8], 100352
    $region49: #{forward.1} parent=1 // pred_fallthru
      _
    // Predicated region
    $region50: #{forward.1} parent=1 // pred_check
      _
    $region51: #{forward.1} parent=1 // pred_check_branch
      %100 = sbr.rel (0) target = $region53
    $region52: #{forward.1} parent=1 // pred_region
      %101 = dma.done [#allocation11], 112
    $region53: #{forward.1} parent=1 // pred_fallthru
      _
    %v102 = vld [vmem:[%s0] sm:$0xff]
    %v103 = vld [vmem:[#allocation2] sm:$0xff]
    %v104 = vld [vmem:[#allocation2 + $0x8] sm:$0xff]
    %v105 = vld [vmem:[#allocation2 + $0x10] sm:$0xff]
    %v106 = vld [vmem:[#allocation2 + $0x18] sm:$0xff]
    %v107 = vld [vmem:[#allocation2 + $0x20] sm:$0xff]
    %v108 = vld [vmem:[#allocation2 + $0x28] sm:$0xff]
    %v109 = vld [vmem:[#allocation2 + $0x30] sm:$0xff]
    %v110 = vld [vmem:[#allocation2 + $0x38] sm:$0xff]
    %v111 = vld [vmem:[#allocation2 + $0x40] sm:$0xff]
    %v112 = vld [vmem:[#allocation2 + $0x48] sm:$0xff]
    %v113 = vld [vmem:[#allocation2 + $0x50] sm:$0xff]
    %v114 = vld [vmem:[#allocation2 + $0x58] sm:$0xff]
    %v115 = vld [vmem:[#allocation2 + $0x60] sm:$0xff]
    %v116 = vld [vmem:[#allocation2 + $0x68] sm:$0xff]
    %v117 = vld [vmem:[#allocation2 + $0x70] sm:$0xff]
    %v118 = vld [vmem:[#allocation2 + $0x78] sm:$0xff]
    %v119 = vld [vmem:[#allocation2 + $0x80] sm:$0xff]
    %v120 = vld [vmem:[#allocation2 + $0x88] sm:$0xff]
    %v121 = vld [vmem:[#allocation2 + $0x90] sm:$0xff]
    %v122 = vld [vmem:[#allocation2 + $0x98] sm:$0xff]
    %v123 = vld [vmem:[#allocation2 + $0xa0] sm:$0xff]
    %v124 = vld [vmem:[#allocation2 + $0xa8] sm:$0xff]
    %v125 = vld [vmem:[#allocation2 + $0xb0] sm:$0xff]
    %v126 = vld [vmem:[#allocation2 + $0xb8] sm:$0xff]
    %v127 = vld [vmem:[#allocation2 + $0xc0] sm:$0xff]
    %v128 = vld [vmem:[#allocation2 + $0xc8] sm:$0xff]
    %v129 = vld [vmem:[#allocation2 + $0xd0] sm:$0xff]
    %v130 = vld [vmem:[#allocation2 + $0xd8] sm:$0xff]
    %v131 = vld [vmem:[#allocation2 + $0xe0] sm:$0xff]
    %v132 = vld [vmem:[#allocation2 + $0xe8] sm:$0xff]
    %v133 = vld [vmem:[#allocation2 + $0xf0] sm:$0xff]
    %v134 = vld [vmem:[#allocation2 + $0xf8] sm:$0xff]
    %v135 = vld [vmem:[#allocation2 + $0x100] sm:$0xff]
    %v136 = vld [vmem:[#allocation2 + $0x108] sm:$0xff]
    %v137 = vld [vmem:[#allocation2 + $0x110] sm:$0xff]
    %v138 = vld [vmem:[#allocation2 + $0x118] sm:$0xff]
    %v139 = vld [vmem:[#allocation2 + $0x120] sm:$0xff]
    %v140 = vld [vmem:[#allocation2 + $0x128] sm:$0xff]
    %v141 = vld [vmem:[#allocation2 + $0x130] sm:$0xff]
    %v142 = vld [vmem:[#allocation2 + $0x138] sm:$0xff]
    %v143 = vld [vmem:[#allocation2 + $0x140] sm:$0xff]
    %v144 = vld [vmem:[#allocation2 + $0x148] sm:$0xff]
    %v145 = vld [vmem:[#allocation2 + $0x150] sm:$0xff]
    %v146 = vld [vmem:[#allocation2 + $0x158] sm:$0xff]
    %v147 = vld [vmem:[#allocation2 + $0x160] sm:$0xff]
    %v148 = vld [vmem:[#allocation2 + $0x168] sm:$0xff]
    %v149 = vld [vmem:[#allocation2 + $0x170] sm:$0xff]
    %v150 = vld [vmem:[#allocation2 + $0x178] sm:$0xff]
    %v151 = vld [vmem:[#allocation2 + $0x180] sm:$0xff]
    %v152 = vld [vmem:[#allocation2 + $0x188] sm:$0xff]
    %v153 = vld [vmem:[#allocation2 + $0x190] sm:$0xff]
    %v154 = vld [vmem:[#allocation2 + $0x198] sm:$0xff]
    %v155 = vld [vmem:[#allocation2 + $0x1a0] sm:$0xff]
    %v156 = vld [vmem:[#allocation2 + $0x1a8] sm:$0xff]
    %v157 = vld [vmem:[#allocation2 + $0x1b0] sm:$0xff]
    %v158 = vld [vmem:[#allocation2 + $0x1b8] sm:$0xff]
    %v159 = vld [vmem:[#allocation2 + $0x1c0] sm:$0xff]
    %v160 = vld [vmem:[#allocation2 + $0x1c8] sm:$0xff]
    %v161 = vld [vmem:[#allocation2 + $0x1d0] sm:$0xff]
    %v162 = vld [vmem:[#allocation2 + $0x1d8] sm:$0xff]
    %v163 = vld [vmem:[#allocation2 + $0x1e0] sm:$0xff]
    %v164 = vld [vmem:[#allocation2 + $0x1e8] sm:$0xff]
    %v165 = vld [vmem:[#allocation2 + $0x1f0] sm:$0xff]
    %v166 = vld [vmem:[#allocation2 + $0x1f8] sm:$0xff]
    %v167 = vld [vmem:[#allocation2 + $0x200] sm:$0xff]
    %v168 = vld [vmem:[#allocation2 + $0x208] sm:$0xff]
    %v169 = vld [vmem:[#allocation2 + $0x210] sm:$0xff]
    %v170 = vld [vmem:[#allocation2 + $0x218] sm:$0xff]
    %v171 = vld [vmem:[#allocation2 + $0x220] sm:$0xff]
    %v172 = vld [vmem:[#allocation2 + $0x228] sm:$0xff]
    %v173 = vld [vmem:[#allocation2 + $0x230] sm:$0xff]
    %v174 = vld [vmem:[#allocation2 + $0x238] sm:$0xff]
    %v175 = vld [vmem:[#allocation2 + $0x240] sm:$0xff]
    %v176 = vld [vmem:[#allocation2 + $0x248] sm:$0xff]
    %v177 = vld [vmem:[#allocation2 + $0x250] sm:$0xff]
    %v178 = vld [vmem:[#allocation2 + $0x258] sm:$0xff]
    %v179 = vld [vmem:[#allocation2 + $0x260] sm:$0xff]
    %v180 = vld [vmem:[#allocation2 + $0x268] sm:$0xff]
    %v181 = vld [vmem:[#allocation2 + $0x270] sm:$0xff]
    %v182 = vld [vmem:[#allocation2 + $0x278] sm:$0xff]
    %v183 = vld [vmem:[#allocation2 + $0x280] sm:$0xff]
    %v184 = vld [vmem:[#allocation2 + $0x288] sm:$0xff]
    %v185 = vld [vmem:[#allocation2 + $0x290] sm:$0xff]
    %v186 = vld [vmem:[#allocation2 + $0x298] sm:$0xff]
    %v187 = vld [vmem:[#allocation2 + $0x2a0] sm:$0xff]
    %v188 = vld [vmem:[#allocation2 + $0x2a8] sm:$0xff]
    %v189 = vld [vmem:[#allocation2 + $0x2b0] sm:$0xff]
    %v190 = vld [vmem:[#allocation2 + $0x2b8] sm:$0xff]
    %v191 = vld [vmem:[#allocation2 + $0x2c0] sm:$0xff]
    %v192 = vld [vmem:[#allocation2 + $0x2c8] sm:$0xff]
    %v193 = vld [vmem:[#allocation2 + $0x2d0] sm:$0xff]
    %v194 = vld [vmem:[#allocation2 + $0x2d8] sm:$0xff]
    %v195 = vld [vmem:[#allocation2 + $0x2e0] sm:$0xff]
    %v196 = vld [vmem:[#allocation2 + $0x2e8] sm:$0xff]
    %v197 = vld [vmem:[#allocation2 + $0x2f0] sm:$0xff]
    %v198 = vld [vmem:[#allocation2 + $0x2f8] sm:$0xff]
    %v199 = vld [vmem:[#allocation2 + $0x300] sm:$0xff]
    %v200 = vld [vmem:[#allocation2 + $0x308] sm:$0xff]
    %v201 = vld [vmem:[#allocation2 + $0x310] sm:$0xff]
    %v202 = vld [vmem:[#allocation2 + $0x318] sm:$0xff]
    %v203 = vld [vmem:[#allocation2 + $0x320] sm:$0xff]
    %v204 = vld [vmem:[#allocation2 + $0x328] sm:$0xff]
    %v205 = vld [vmem:[#allocation2 + $0x330] sm:$0xff]
    %v206 = vld [vmem:[#allocation2 + $0x338] sm:$0xff]
    %v207 = vld [vmem:[#allocation2 + $0x340] sm:$0xff]
    %v208 = vld [vmem:[#allocation2 + $0x348] sm:$0xff]
    %v209 = vld [vmem:[#allocation2 + $0x350] sm:$0xff]
    %v210 = vld [vmem:[#allocation2 + $0x358] sm:$0xff]
    %v211 = vld [vmem:[#allocation2 + $0x360] sm:$0xff]
    %v212 = vld [vmem:[#allocation2 + $0x368] sm:$0xff]
    %v213 = vld [vmem:[#allocation2 + $0x370] sm:$0xff]
    %v214 = vld [vmem:[#allocation2 + $0x378] sm:$0xff]
    %v215 = vld [vmem:[#allocation4] sm:$0xff]
    %v217 = vlaneseq
    %v218 = vshrl.u32 %v217, 7
    %v219 = vsub.s32 0, %v218
    %v220 = vrot.slane %v215, %v219
    %v221 = vlaneseq
    %v222 = vshrl.u32 %v221, 7
    %v223 = vsub.s32 1, %v222
    %v224 = vrot.slane %v215, %v223
    %v225 = vlaneseq
    %v226 = vshrl.u32 %v225, 7
    %v227 = vsub.s32 2, %v226
    %v228 = vrot.slane %v215, %v227
    %v229 = vlaneseq
    %v230 = vshrl.u32 %v229, 7
    %v231 = vsub.s32 3, %v230
    %v232 = vrot.slane %v215, %v231
    %v233 = vlaneseq
    %v234 = vshrl.u32 %v233, 7
    %v235 = vsub.s32 4, %v234
    %v236 = vrot.slane %v215, %v235
    %v237 = vlaneseq
    %v238 = vshrl.u32 %v237, 7
    %v239 = vsub.s32 5, %v238
    %v240 = vrot.slane %v215, %v239
    %v241 = vlaneseq
    %v242 = vshrl.u32 %v241, 7
    %v243 = vsub.s32 6, %v242
    %v244 = vrot.slane %v215, %v243
    %252 = vmatprep.subr.mxu0 %v104
    %253 = vmatpush1.msra.mxu0 %v103
    %254 = vmatprep.subr.mxu0 %v111
    %255 = vmatpush1.msra.mxu0 %v110
    %256 = vmatprep.subr.mxu0 %v118
    %257 = vmatpush1.msra.mxu0 %v117
    %258 = vmatprep.subr.mxu0 %v125
    %259 = vmatpush1.msra.mxu0 %v124
    %260 = vmatprep.subr.mxu0 %v132
    %261 = vmatpush1.msra.mxu0 %v131
    %262 = vmatprep.subr.mxu0 %v139
    %263 = vmatpush1.msra.mxu0 %v138
    %264 = vmatprep.subr.mxu0 %v146
    %265 = vmatpush1.msra.mxu0 %v145
    %266 = vmatprep.subr.mxu0 %v153
    %267 = vmatpush1.msra.mxu0 %v152
    %268 = vmatprep.subr.mxu0 %v160
    %269 = vmatpush1.msra.mxu0 %v159
    %270 = vmatprep.subr.mxu0 %v167
    %271 = vmatpush1.msra.mxu0 %v166
    %272 = vmatprep.subr.mxu0 %v174
    %273 = vmatpush1.msra.mxu0 %v173
    %274 = vmatprep.subr.mxu0 %v181
    %275 = vmatpush1.msra.mxu0 %v180
    %276 = vmatprep.subr.mxu0 %v188
    %277 = vmatpush1.msra.mxu0 %v187
    %278 = vmatprep.subr.mxu0 %v195
    %279 = vmatpush1.msra.mxu0 %v194
    %280 = vmatprep.subr.mxu0 %v202
    %281 = vmatpush1.msra.mxu0 %v201
    %282 = vmatprep.subr.mxu0 %v209
    %283 = vmatpush1.msra.mxu0 %v208
    %284 = vmatprep.subr.mxu0 0.0
    %285 = vmatpush1.msra.mxu0 0.0
    %286 = vmatprep.subr.mxu0 0.0
    %287 = vmatpush1.msra.mxu0 0.0
    %288 = vmatprep.subr.mxu0 0.0
    %289 = vmatpush1.msra.mxu0 0.0
    %290 = vmatprep.subr.mxu0 0.0
    %291 = vmatpush1.msra.mxu0 0.0
    %292 = vmatprep.subr.mxu0 0.0
    %293 = vmatpush1.msra.mxu0 0.0
    %294 = vmatprep.subr.mxu0 0.0
    %295 = vmatpush1.msra.mxu0 0.0
    %296 = vmatprep.subr.mxu0 0.0
    %297 = vmatpush1.msra.mxu0 0.0
    %298 = vmatprep.subr.mxu0 0.0
    %299 = vmatpush1.msra.mxu0 0.0
    %300 = vmatprep.subr.mxu0 0.0
    %301 = vmatpush1.msra.mxu0 0.0
    %302 = vmatprep.subr.mxu0 0.0
    %303 = vmatpush1.msra.mxu0 0.0
    %304 = vmatprep.subr.mxu0 0.0
    %305 = vmatpush1.msra.mxu0 0.0
    %306 = vmatprep.subr.mxu0 0.0
    %307 = vmatpush1.msra.mxu0 0.0
    %308 = vmatprep.subr.mxu0 0.0
    %309 = vmatpush1.msra.mxu0 0.0
    %310 = vmatprep.subr.mxu0 0.0
    %311 = vmatpush1.msra.mxu0 0.0
    %312 = vmatprep.subr.mxu0 0.0
    %313 = vmatpush1.msra.mxu0 0.0
    %314 = vmatprep.subr.mxu0 0.0
    %315 = vmatpush1.msra.mxu0 0.0
    %316 = vmatprep.mubr.f32.mxu0 0.0
    %317 = vmatmul.mubr.f32.gmra.mrb[0].mxu0 %v102
    %v318 = vpop.f32.mrb[0].mxu0
    %v319 = vadd.f32 %v220, %v318
    %v320 = vpop.f32.mrb[0].mxu0
    %v321 = vadd.f32 %v224, %v320
    %322 = vdwg.mxu0
    %323 = vmatprep.subr.mxu0 %v106
    %324 = vmatpush1.msra.mxu0 %v105
    %325 = vmatprep.subr.mxu0 %v113
    %326 = vmatpush1.msra.mxu0 %v112
    %327 = vmatprep.subr.mxu0 %v120
    %328 = vmatpush1.msra.mxu0 %v119
    %329 = vmatprep.subr.mxu0 %v127
    %330 = vmatpush1.msra.mxu0 %v126
    %331 = vmatprep.subr.mxu0 %v134
    %332 = vmatpush1.msra.mxu0 %v133
    %333 = vmatprep.subr.mxu0 %v141
    %334 = vmatpush1.msra.mxu0 %v140
    %335 = vmatprep.subr.mxu0 %v148
    %336 = vmatpush1.msra.mxu0 %v147
    %337 = vmatprep.subr.mxu0 %v155
    %338 = vmatpush1.msra.mxu0 %v154
    %339 = vmatprep.subr.mxu0 %v162
    %340 = vmatpush1.msra.mxu0 %v161
    %341 = vmatprep.subr.mxu0 %v169
    %342 = vmatpush1.msra.mxu0 %v168
    %343 = vmatprep.subr.mxu0 %v176
    %344 = vmatpush1.msra.mxu0 %v175
    %345 = vmatprep.subr.mxu0 %v183
    %346 = vmatpush1.msra.mxu0 %v182
    %347 = vmatprep.subr.mxu0 %v190
    %348 = vmatpush1.msra.mxu0 %v189
    %349 = vmatprep.subr.mxu0 %v197
    %350 = vmatpush1.msra.mxu0 %v196
    %351 = vmatprep.subr.mxu0 %v204
    %352 = vmatpush1.msra.mxu0 %v203
    %353 = vmatprep.subr.mxu0 %v211
    %354 = vmatpush1.msra.mxu0 %v210
    %355 = vmatprep.subr.mxu0 0.0
    %356 = vmatpush1.msra.mxu0 0.0
    %357 = vmatprep.subr.mxu0 0.0
    %358 = vmatpush1.msra.mxu0 0.0
    %359 = vmatprep.subr.mxu0 0.0
    %360 = vmatpush1.msra.mxu0 0.0
    %361 = vmatprep.subr.mxu0 0.0
    %362 = vmatpush1.msra.mxu0 0.0
    %363 = vmatprep.subr.mxu0 0.0
    %364 = vmatpush1.msra.mxu0 0.0
    %365 = vmatprep.subr.mxu0 0.0
    %366 = vmatpush1.msra.mxu0 0.0
    %367 = vmatprep.subr.mxu0 0.0
    %368 = vmatpush1.msra.mxu0 0.0
    %369 = vmatprep.subr.mxu0 0.0
    %370 = vmatpush1.msra.mxu0 0.0
    %371 = vmatprep.subr.mxu0 0.0
    %372 = vmatpush1.msra.mxu0 0.0
    %373 = vmatprep.subr.mxu0 0.0
    %374 = vmatpush1.msra.mxu0 0.0
    %375 = vmatprep.subr.mxu0 0.0
    %376 = vmatpush1.msra.mxu0 0.0
    %377 = vmatprep.subr.mxu0 0.0
    %378 = vmatpush1.msra.mxu0 0.0
    %379 = vmatprep.subr.mxu0 0.0
    %380 = vmatpush1.msra.mxu0 0.0
    %381 = vmatprep.subr.mxu0 0.0
    %382 = vmatpush1.msra.mxu0 0.0
    %383 = vmatprep.subr.mxu0 0.0
    %384 = vmatpush1.msra.mxu0 0.0
    %385 = vmatprep.subr.mxu0 0.0
    %386 = vmatpush1.msra.mxu0 0.0
    %387 = vmatprep.mubr.f32.mxu0 0.0
    %388 = vmatmul.mubr.f32.gmra.mrb[0].mxu0 %v102
    %v389 = vpop.f32.mrb[0].mxu0
    %v390 = vadd.f32 %v228, %v389
    %v391 = vpop.f32.mrb[0].mxu0
    %v392 = vadd.f32 %v232, %v391
    %393 = vdwg.mxu0
    %394 = vmatprep.subr.mxu0 %v108
    %395 = vmatpush1.msra.mxu0 %v107
    %396 = vmatprep.subr.mxu0 %v115
    %397 = vmatpush1.msra.mxu0 %v114
    %398 = vmatprep.subr.mxu0 %v122
    %399 = vmatpush1.msra.mxu0 %v121
    %400 = vmatprep.subr.mxu0 %v129
    %401 = vmatpush1.msra.mxu0 %v128
    %402 = vmatprep.subr.mxu0 %v136
    %403 = vmatpush1.msra.mxu0 %v135
    %404 = vmatprep.subr.mxu0 %v143
    %405 = vmatpush1.msra.mxu0 %v142
    %406 = vmatprep.subr.mxu0 %v150
    %407 = vmatpush1.msra.mxu0 %v149
    %408 = vmatprep.subr.mxu0 %v157
    %409 = vmatpush1.msra.mxu0 %v156
    %410 = vmatprep.subr.mxu0 %v164
    %411 = vmatpush1.msra.mxu0 %v163
    %412 = vmatprep.subr.mxu0 %v171
    %413 = vmatpush1.msra.mxu0 %v170
    %414 = vmatprep.subr.mxu0 %v178
    %415 = vmatpush1.msra.mxu0 %v177
    %416 = vmatprep.subr.mxu0 %v185
    %417 = vmatpush1.msra.mxu0 %v184
    %418 = vmatprep.subr.mxu0 %v192
    %419 = vmatpush1.msra.mxu0 %v191
    %420 = vmatprep.subr.mxu0 %v199
    %421 = vmatpush1.msra.mxu0 %v198
    %422 = vmatprep.subr.mxu0 %v206
    %423 = vmatpush1.msra.mxu0 %v205
    %424 = vmatprep.subr.mxu0 %v213
    %425 = vmatpush1.msra.mxu0 %v212
    %426 = vmatprep.subr.mxu0 0.0
    %427 = vmatpush1.msra.mxu0 0.0
    %428 = vmatprep.subr.mxu0 0.0
    %429 = vmatpush1.msra.mxu0 0.0
    %430 = vmatprep.subr.mxu0 0.0
    %431 = vmatpush1.msra.mxu0 0.0
    %432 = vmatprep.subr.mxu0 0.0
    %433 = vmatpush1.msra.mxu0 0.0
    %434 = vmatprep.subr.mxu0 0.0
    %435 = vmatpush1.msra.mxu0 0.0
    %436 = vmatprep.subr.mxu0 0.0
    %437 = vmatpush1.msra.mxu0 0.0
    %438 = vmatprep.subr.mxu0 0.0
    %439 = vmatpush1.msra.mxu0 0.0
    %440 = vmatprep.subr.mxu0 0.0
    %441 = vmatpush1.msra.mxu0 0.0
    %442 = vmatprep.subr.mxu0 0.0
    %443 = vmatpush1.msra.mxu0 0.0
    %444 = vmatprep.subr.mxu0 0.0
    %445 = vmatpush1.msra.mxu0 0.0
    %446 = vmatprep.subr.mxu0 0.0
    %447 = vmatpush1.msra.mxu0 0.0
    %448 = vmatprep.subr.mxu0 0.0
    %449 = vmatpush1.msra.mxu0 0.0
    %450 = vmatprep.subr.mxu0 0.0
    %451 = vmatpush1.msra.mxu0 0.0
    %452 = vmatprep.subr.mxu0 0.0
    %453 = vmatpush1.msra.mxu0 0.0
    %454 = vmatprep.subr.mxu0 0.0
    %455 = vmatpush1.msra.mxu0 0.0
    %456 = vmatprep.subr.mxu0 0.0
    %457 = vmatpush1.msra.mxu0 0.0
    %458 = vmatprep.mubr.f32.mxu0 0.0
    %459 = vmatmul.mubr.f32.gmra.mrb[0].mxu0 %v102
    %v460 = vpop.f32.mrb[0].mxu0
    %v461 = vadd.f32 %v236, %v460
    %v462 = vpop.f32.mrb[0].mxu0
    %v463 = vadd.f32 %v240, %v462
    %464 = vdwg.mxu0
    %465 = vmatprep.subr.mxu0 0.0
    %466 = vmatpush1.msra.mxu0 %v109
    %467 = vmatprep.subr.mxu0 0.0
    %468 = vmatpush1.msra.mxu0 %v116
    %469 = vmatprep.subr.mxu0 0.0
    %470 = vmatpush1.msra.mxu0 %v123
    %471 = vmatprep.subr.mxu0 0.0
    %472 = vmatpush1.msra.mxu0 %v130
    %473 = vmatprep.subr.mxu0 0.0
    %474 = vmatpush1.msra.mxu0 %v137
    %475 = vmatprep.subr.mxu0 0.0
    %476 = vmatpush1.msra.mxu0 %v144
    %477 = vmatprep.subr.mxu0 0.0
    %478 = vmatpush1.msra.mxu0 %v151
    %479 = vmatprep.subr.mxu0 0.0
    %480 = vmatpush1.msra.mxu0 %v158
    %481 = vmatprep.subr.mxu0 0.0
    %482 = vmatpush1.msra.mxu0 %v165
    %483 = vmatprep.subr.mxu0 0.0
    %484 = vmatpush1.msra.mxu0 %v172
    %485 = vmatprep.subr.mxu0 0.0
    %486 = vmatpush1.msra.mxu0 %v179
    %487 = vmatprep.subr.mxu0 0.0
    %488 = vmatpush1.msra.mxu0 %v186
    %489 = vmatprep.subr.mxu0 0.0
    %490 = vmatpush1.msra.mxu0 %v193
    %491 = vmatprep.subr.mxu0 0.0
    %492 = vmatpush1.msra.mxu0 %v200
    %493 = vmatprep.subr.mxu0 0.0
    %494 = vmatpush1.msra.mxu0 %v207
    %495 = vmatprep.subr.mxu0 0.0
    %496 = vmatpush1.msra.mxu0 %v214
    %497 = vmatprep.subr.mxu0 0.0
    %498 = vmatpush1.msra.mxu0 0.0
    %499 = vmatprep.subr.mxu0 0.0
    %500 = vmatpush1.msra.mxu0 0.0
    %501 = vmatprep.subr.mxu0 0.0
    %502 = vmatpush1.msra.mxu0 0.0
    %503 = vmatprep.subr.mxu0 0.0
    %504 = vmatpush1.msra.mxu0 0.0
    %505 = vmatprep.subr.mxu0 0.0
    %506 = vmatpush1.msra.mxu0 0.0
    %507 = vmatprep.subr.mxu0 0.0
    %508 = vmatpush1.msra.mxu0 0.0
    %509 = vmatprep.subr.mxu0 0.0
    %510 = vmatpush1.msra.mxu0 0.0
    %511 = vmatprep.subr.mxu0 0.0
    %512 = vmatpush1.msra.mxu0 0.0
    %513 = vmatprep.subr.mxu0 0.0
    %514 = vmatpush1.msra.mxu0 0.0
    %515 = vmatprep.subr.mxu0 0.0
    %516 = vmatpush1.msra.mxu0 0.0
    %517 = vmatprep.subr.mxu0 0.0
    %518 = vmatpush1.msra.mxu0 0.0
    %519 = vmatprep.subr.mxu0 0.0
    %520 = vmatpush1.msra.mxu0 0.0
    %521 = vmatprep.subr.mxu0 0.0
    %522 = vmatpush1.msra.mxu0 0.0
    %523 = vmatprep.subr.mxu0 0.0
    %524 = vmatpush1.msra.mxu0 0.0
    %525 = vmatprep.subr.mxu0 0.0
    %526 = vmatpush1.msra.mxu0 0.0
    %527 = vmatprep.subr.mxu0 0.0
    %528 = vmatpush1.msra.mxu0 0.0
    %529 = vmatprep.mubr.f32.mxu0 0.0
    %530 = vmatmul.mubr.f32.gmra.mrb[0].mxu0 %v102
    %v531 = vpop.f32.mrb[0].mxu0
    %v532 = vadd.f32 %v244, %v531
    %v533 = vpop.f32.mrb[0].mxu0
    %534 = vdwg.mxu0
    %v535 = vmax.f32 %v319, 0.0
    %v536 = vmax.f32 %v321, 0.0
    %v537 = vmax.f32 %v390, 0.0
    %v538 = vmax.f32 %v392, 0.0
    %v539 = vmax.f32 %v461, 0.0
    %v540 = vmax.f32 %v463, 0.0
    %v541 = vmax.f32 %v532, 0.0
    %v542 = vld [vmem:[#allocation6] sm:$0xff]
    %v543 = vld [vmem:[#allocation6 + $0x8] sm:$0xff]
    %v544 = vld [vmem:[#allocation6 + $0x10] sm:$0xff]
    %v545 = vld [vmem:[#allocation6 + $0x18] sm:$0xff]
    %v546 = vld [vmem:[#allocation6 + $0x20] sm:$0xff]
    %v547 = vld [vmem:[#allocation6 + $0x28] sm:$0xff]
    %v548 = vld [vmem:[#allocation6 + $0x30] sm:$0xff]
    %v549 = vld [vmem:[#allocation6 + $0x38] sm:$0xff]
    %v550 = vld [vmem:[#allocation6 + $0x40] sm:$0xff]
    %v551 = vld [vmem:[#allocation6 + $0x48] sm:$0xff]
    %v552 = vld [vmem:[#allocation6 + $0x50] sm:$0xff]
    %v553 = vld [vmem:[#allocation6 + $0x58] sm:$0xff]
    %v554 = vld [vmem:[#allocation6 + $0x60] sm:$0xff]
    %v555 = vld [vmem:[#allocation6 + $0x68] sm:$0xff]
    %v556 = vld [vmem:[#allocation6 + $0x70] sm:$0xff]
    %v557 = vld [vmem:[#allocation6 + $0x78] sm:$0xff]
    %v558 = vld [vmem:[#allocation6 + $0x80] sm:$0xff]
    %v559 = vld [vmem:[#allocation6 + $0x88] sm:$0xff]
    %v560 = vld [vmem:[#allocation6 + $0x90] sm:$0xff]
    %v561 = vld [vmem:[#allocation6 + $0x98] sm:$0xff]
    %v562 = vld [vmem:[#allocation6 + $0xa0] sm:$0xff]
    %v563 = vld [vmem:[#allocation6 + $0xa8] sm:$0xff]
    %v564 = vld [vmem:[#allocation6 + $0xb0] sm:$0xff]
    %v565 = vld [vmem:[#allocation6 + $0xb8] sm:$0xff]
    %v566 = vld [vmem:[#allocation6 + $0xc0] sm:$0xff]
    %v567 = vld [vmem:[#allocation6 + $0xc8] sm:$0xff]
    %v568 = vld [vmem:[#allocation6 + $0xd0] sm:$0xff]
    %v569 = vld [vmem:[#allocation6 + $0xd8] sm:$0xff]
    %v570 = vld [vmem:[#allocation6 + $0xe0] sm:$0xff]
    %v571 = vld [vmem:[#allocation6 + $0xe8] sm:$0xff]
    %v572 = vld [vmem:[#allocation6 + $0xf0] sm:$0xff]
    %v573 = vld [vmem:[#allocation6 + $0xf8] sm:$0xff]
    %v574 = vld [vmem:[#allocation6 + $0x100] sm:$0xff]
    %v575 = vld [vmem:[#allocation6 + $0x108] sm:$0xff]
    %v576 = vld [vmem:[#allocation6 + $0x110] sm:$0xff]
    %v577 = vld [vmem:[#allocation6 + $0x118] sm:$0xff]
    %v578 = vld [vmem:[#allocation6 + $0x120] sm:$0xff]
    %v579 = vld [vmem:[#allocation6 + $0x128] sm:$0xff]
    %v580 = vld [vmem:[#allocation6 + $0x130] sm:$0xff]
    %v581 = vld [vmem:[#allocation6 + $0x138] sm:$0xff]
    %v582 = vld [vmem:[#allocation6 + $0x140] sm:$0xff]
    %v583 = vld [vmem:[#allocation6 + $0x148] sm:$0xff]
    %v584 = vld [vmem:[#allocation6 + $0x150] sm:$0xff]
    %v585 = vld [vmem:[#allocation6 + $0x158] sm:$0xff]
    %v586 = vld [vmem:[#allocation6 + $0x160] sm:$0xff]
    %v587 = vld [vmem:[#allocation6 + $0x168] sm:$0xff]
    %v588 = vld [vmem:[#allocation6 + $0x170] sm:$0xff]
    %v589 = vld [vmem:[#allocation6 + $0x178] sm:$0xff]
    %v590 = vld [vmem:[#allocation6 + $0x180] sm:$0xff]
    %v591 = vld [vmem:[#allocation6 + $0x188] sm:$0xff]
    %v592 = vld [vmem:[#allocation6 + $0x190] sm:$0xff]
    %v593 = vld [vmem:[#allocation6 + $0x198] sm:$0xff]
    %v594 = vld [vmem:[#allocation6 + $0x1a0] sm:$0xff]
    %v595 = vld [vmem:[#allocation6 + $0x1a8] sm:$0xff]
    %v596 = vld [vmem:[#allocation6 + $0x1b0] sm:$0xff]
    %v597 = vld [vmem:[#allocation6 + $0x1b8] sm:$0xff]
    %v598 = vld [vmem:[#allocation6 + $0x1c0] sm:$0xff]
    %v599 = vld [vmem:[#allocation6 + $0x1c8] sm:$0xff]
    %v600 = vld [vmem:[#allocation6 + $0x1d0] sm:$0xff]
    %v601 = vld [vmem:[#allocation6 + $0x1d8] sm:$0xff]
    %v602 = vld [vmem:[#allocation6 + $0x1e0] sm:$0xff]
    %v603 = vld [vmem:[#allocation6 + $0x1e8] sm:$0xff]
    %v604 = vld [vmem:[#allocation6 + $0x1f0] sm:$0xff]
    %v605 = vld [vmem:[#allocation6 + $0x1f8] sm:$0xff]
    %v606 = vld [vmem:[#allocation6 + $0x200] sm:$0xff]
    %v607 = vld [vmem:[#allocation6 + $0x208] sm:$0xff]
    %v608 = vld [vmem:[#allocation6 + $0x210] sm:$0xff]
    %v609 = vld [vmem:[#allocation6 + $0x218] sm:$0xff]
    %v610 = vld [vmem:[#allocation6 + $0x220] sm:$0xff]
    %v611 = vld [vmem:[#allocation6 + $0x228] sm:$0xff]
    %v612 = vld [vmem:[#allocation6 + $0x230] sm:$0xff]
    %v613 = vld [vmem:[#allocation6 + $0x238] sm:$0xff]
    %v614 = vld [vmem:[#allocation6 + $0x240] sm:$0xff]
    %v615 = vld [vmem:[#allocation6 + $0x248] sm:$0xff]
    %v616 = vld [vmem:[#allocation6 + $0x250] sm:$0xff]
    %v617 = vld [vmem:[#allocation6 + $0x258] sm:$0xff]
    %v618 = vld [vmem:[#allocation6 + $0x260] sm:$0xff]
    %v619 = vld [vmem:[#allocation6 + $0x268] sm:$0xff]
    %v620 = vld [vmem:[#allocation6 + $0x270] sm:$0xff]
    %v621 = vld [vmem:[#allocation6 + $0x278] sm:$0xff]
    %v622 = vld [vmem:[#allocation6 + $0x280] sm:$0xff]
    %v623 = vld [vmem:[#allocation6 + $0x288] sm:$0xff]
    %v624 = vld [vmem:[#allocation6 + $0x290] sm:$0xff]
    %v625 = vld [vmem:[#allocation6 + $0x298] sm:$0xff]
    %v626 = vld [vmem:[#allocation6 + $0x2a0] sm:$0xff]
    %v627 = vld [vmem:[#allocation6 + $0x2a8] sm:$0xff]
    %v628 = vld [vmem:[#allocation6 + $0x2b0] sm:$0xff]
    %v629 = vld [vmem:[#allocation6 + $0x2b8] sm:$0xff]
    %v630 = vld [vmem:[#allocation6 + $0x2c0] sm:$0xff]
    %v631 = vld [vmem:[#allocation6 + $0x2c8] sm:$0xff]
    %v632 = vld [vmem:[#allocation6 + $0x2d0] sm:$0xff]
    %v633 = vld [vmem:[#allocation6 + $0x2d8] sm:$0xff]
    %v634 = vld [vmem:[#allocation6 + $0x2e0] sm:$0xff]
    %v635 = vld [vmem:[#allocation6 + $0x2e8] sm:$0xff]
    %v636 = vld [vmem:[#allocation6 + $0x2f0] sm:$0xff]
    %v637 = vld [vmem:[#allocation6 + $0x2f8] sm:$0xff]
    %v638 = vld [vmem:[#allocation6 + $0x300] sm:$0xff]
    %v639 = vld [vmem:[#allocation6 + $0x308] sm:$0xff]
    %v640 = vld [vmem:[#allocation6 + $0x310] sm:$0xff]
    %v641 = vld [vmem:[#allocation6 + $0x318] sm:$0xff]
    %v642 = vld [vmem:[#allocation6 + $0x320] sm:$0xff]
    %v643 = vld [vmem:[#allocation6 + $0x328] sm:$0xff]
    %v644 = vld [vmem:[#allocation6 + $0x330] sm:$0xff]
    %v645 = vld [vmem:[#allocation6 + $0x338] sm:$0xff]
    %v646 = vld [vmem:[#allocation6 + $0x340] sm:$0xff]
    %v647 = vld [vmem:[#allocation6 + $0x348] sm:$0xff]
    %v648 = vld [vmem:[#allocation6 + $0x350] sm:$0xff]
    %v649 = vld [vmem:[#allocation6 + $0x358] sm:$0xff]
    %v650 = vld [vmem:[#allocation6 + $0x360] sm:$0xff]
    %v651 = vld [vmem:[#allocation6 + $0x368] sm:$0xff]
    %v652 = vld [vmem:[#allocation6 + $0x370] sm:$0xff]
    %v653 = vld [vmem:[#allocation6 + $0x378] sm:$0xff]
    %v654 = vld [vmem:[#allocation6 + $0x380] sm:$0xff]
    %v655 = vld [vmem:[#allocation6 + $0x388] sm:$0xff]
    %v656 = vld [vmem:[#allocation6 + $0x390] sm:$0xff]
    %v657 = vld [vmem:[#allocation6 + $0x398] sm:$0xff]
    %v658 = vld [vmem:[#allocation6 + $0x3a0] sm:$0xff]
    %v659 = vld [vmem:[#allocation6 + $0x3a8] sm:$0xff]
    %v660 = vld [vmem:[#allocation6 + $0x3b0] sm:$0xff]
    %v661 = vld [vmem:[#allocation6 + $0x3b8] sm:$0xff]
    %v662 = vld [vmem:[#allocation6 + $0x3c0] sm:$0xff]
    %v663 = vld [vmem:[#allocation6 + $0x3c8] sm:$0xff]
    %v664 = vld [vmem:[#allocation6 + $0x3d0] sm:$0xff]
    %v665 = vld [vmem:[#allocation6 + $0x3d8] sm:$0xff]
    %v666 = vld [vmem:[#allocation6 + $0x3e0] sm:$0xff]
    %v667 = vld [vmem:[#allocation6 + $0x3e8] sm:$0xff]
    %v668 = vld [vmem:[#allocation6 + $0x3f0] sm:$0xff]
    %v669 = vld [vmem:[#allocation6 + $0x3f8] sm:$0xff]
    %v670 = vld [vmem:[#allocation6 + $0x400] sm:$0xff]
    %v671 = vld [vmem:[#allocation6 + $0x408] sm:$0xff]
    %v672 = vld [vmem:[#allocation6 + $0x410] sm:$0xff]
    %v673 = vld [vmem:[#allocation6 + $0x418] sm:$0xff]
    %v674 = vld [vmem:[#allocation6 + $0x420] sm:$0xff]
    %v675 = vld [vmem:[#allocation6 + $0x428] sm:$0xff]
    %v676 = vld [vmem:[#allocation6 + $0x430] sm:$0xff]
    %v677 = vld [vmem:[#allocation6 + $0x438] sm:$0xff]
    %v678 = vld [vmem:[#allocation6 + $0x440] sm:$0xff]
    %v679 = vld [vmem:[#allocation6 + $0x448] sm:$0xff]
    %v680 = vld [vmem:[#allocation6 + $0x450] sm:$0xff]
    %v681 = vld [vmem:[#allocation6 + $0x458] sm:$0xff]
    %v682 = vld [vmem:[#allocation6 + $0x460] sm:$0xff]
    %v683 = vld [vmem:[#allocation6 + $0x468] sm:$0xff]
    %v684 = vld [vmem:[#allocation6 + $0x470] sm:$0xff]
    %v685 = vld [vmem:[#allocation6 + $0x478] sm:$0xff]
    %v686 = vld [vmem:[#allocation6 + $0x480] sm:$0xff]
    %v687 = vld [vmem:[#allocation6 + $0x488] sm:$0xff]
    %v688 = vld [vmem:[#allocation6 + $0x490] sm:$0xff]
    %v689 = vld [vmem:[#allocation6 + $0x498] sm:$0xff]
    %v690 = vld [vmem:[#allocation6 + $0x4a0] sm:$0xff]
    %v691 = vld [vmem:[#allocation6 + $0x4a8] sm:$0xff]
    %v692 = vld [vmem:[#allocation6 + $0x4b0] sm:$0xff]
    %v693 = vld [vmem:[#allocation6 + $0x4b8] sm:$0xff]
    %v694 = vld [vmem:[#allocation6 + $0x4c0] sm:$0xff]
    %v695 = vld [vmem:[#allocation6 + $0x4c8] sm:$0xff]
    %v696 = vld [vmem:[#allocation6 + $0x4d0] sm:$0xff]
    %v697 = vld [vmem:[#allocation6 + $0x4d8] sm:$0xff]
    %v698 = vld [vmem:[#allocation6 + $0x4e0] sm:$0xff]
    %v699 = vld [vmem:[#allocation6 + $0x4e8] sm:$0xff]
    %v700 = vld [vmem:[#allocation6 + $0x4f0] sm:$0xff]
    %v701 = vld [vmem:[#allocation6 + $0x4f8] sm:$0xff]
    %v702 = vld [vmem:[#allocation6 + $0x500] sm:$0xff]
    %v703 = vld [vmem:[#allocation6 + $0x508] sm:$0xff]
    %v704 = vld [vmem:[#allocation6 + $0x510] sm:$0xff]
    %v705 = vld [vmem:[#allocation6 + $0x518] sm:$0xff]
    %v706 = vld [vmem:[#allocation6 + $0x520] sm:$0xff]
    %v707 = vld [vmem:[#allocation6 + $0x528] sm:$0xff]
    %v708 = vld [vmem:[#allocation6 + $0x530] sm:$0xff]
    %v709 = vld [vmem:[#allocation6 + $0x538] sm:$0xff]
    %v710 = vld [vmem:[#allocation6 + $0x540] sm:$0xff]
    %v711 = vld [vmem:[#allocation6 + $0x548] sm:$0xff]
    %v712 = vld [vmem:[#allocation6 + $0x550] sm:$0xff]
    %v713 = vld [vmem:[#allocation6 + $0x558] sm:$0xff]
    %v714 = vld [vmem:[#allocation6 + $0x560] sm:$0xff]
    %v715 = vld [vmem:[#allocation6 + $0x568] sm:$0xff]
    %v716 = vld [vmem:[#allocation6 + $0x570] sm:$0xff]
    %v717 = vld [vmem:[#allocation6 + $0x578] sm:$0xff]
    %v718 = vld [vmem:[#allocation6 + $0x580] sm:$0xff]
    %v719 = vld [vmem:[#allocation6 + $0x588] sm:$0xff]
    %v720 = vld [vmem:[#allocation6 + $0x590] sm:$0xff]
    %v721 = vld [vmem:[#allocation6 + $0x598] sm:$0xff]
    %v722 = vld [vmem:[#allocation6 + $0x5a0] sm:$0xff]
    %v723 = vld [vmem:[#allocation6 + $0x5a8] sm:$0xff]
    %v724 = vld [vmem:[#allocation6 + $0x5b0] sm:$0xff]
    %v725 = vld [vmem:[#allocation6 + $0x5b8] sm:$0xff]
    %v726 = vld [vmem:[#allocation6 + $0x5c0] sm:$0xff]
    %v727 = vld [vmem:[#allocation6 + $0x5c8] sm:$0xff]
    %v728 = vld [vmem:[#allocation6 + $0x5d0] sm:$0xff]
    %v729 = vld [vmem:[#allocation6 + $0x5d8] sm:$0xff]
    %v730 = vld [vmem:[#allocation6 + $0x5e0] sm:$0xff]
    %v731 = vld [vmem:[#allocation6 + $0x5e8] sm:$0xff]
    %v732 = vld [vmem:[#allocation6 + $0x5f0] sm:$0xff]
    %v733 = vld [vmem:[#allocation6 + $0x5f8] sm:$0xff]
    %v734 = vld [vmem:[#allocation6 + $0x600] sm:$0xff]
    %v735 = vld [vmem:[#allocation6 + $0x608] sm:$0xff]
    %v736 = vld [vmem:[#allocation6 + $0x610] sm:$0xff]
    %v737 = vld [vmem:[#allocation6 + $0x618] sm:$0xff]
    %v738 = vld [vmem:[#allocation6 + $0x620] sm:$0xff]
    %v739 = vld [vmem:[#allocation6 + $0x628] sm:$0xff]
    %v740 = vld [vmem:[#allocation6 + $0x630] sm:$0xff]
    %v741 = vld [vmem:[#allocation6 + $0x638] sm:$0xff]
    %v742 = vld [vmem:[#allocation6 + $0x640] sm:$0xff]
    %v743 = vld [vmem:[#allocation6 + $0x648] sm:$0xff]
    %v744 = vld [vmem:[#allocation6 + $0x650] sm:$0xff]
    %v745 = vld [vmem:[#allocation6 + $0x658] sm:$0xff]
    %v746 = vld [vmem:[#allocation6 + $0x660] sm:$0xff]
    %v747 = vld [vmem:[#allocation6 + $0x668] sm:$0xff]
    %v748 = vld [vmem:[#allocation6 + $0x670] sm:$0xff]
    %v749 = vld [vmem:[#allocation6 + $0x678] sm:$0xff]
    %v750 = vld [vmem:[#allocation6 + $0x680] sm:$0xff]
    %v751 = vld [vmem:[#allocation6 + $0x688] sm:$0xff]
    %v752 = vld [vmem:[#allocation6 + $0x690] sm:$0xff]
    %v753 = vld [vmem:[#allocation6 + $0x698] sm:$0xff]
    %v754 = vld [vmem:[#allocation6 + $0x6a0] sm:$0xff]
    %v755 = vld [vmem:[#allocation6 + $0x6a8] sm:$0xff]
    %v756 = vld [vmem:[#allocation6 + $0x6b0] sm:$0xff]
    %v757 = vld [vmem:[#allocation6 + $0x6b8] sm:$0xff]
    %v758 = vld [vmem:[#allocation6 + $0x6c0] sm:$0xff]
    %v759 = vld [vmem:[#allocation6 + $0x6c8] sm:$0xff]
    %v760 = vld [vmem:[#allocation6 + $0x6d0] sm:$0xff]
    %v761 = vld [vmem:[#allocation6 + $0x6d8] sm:$0xff]
    %v762 = vld [vmem:[#allocation6 + $0x6e0] sm:$0xff]
    %v763 = vld [vmem:[#allocation6 + $0x6e8] sm:$0xff]
    %v764 = vld [vmem:[#allocation6 + $0x6f0] sm:$0xff]
    %v765 = vld [vmem:[#allocation6 + $0x6f8] sm:$0xff]
    %v766 = vld [vmem:[#allocation6 + $0x700] sm:$0xff]
    %v767 = vld [vmem:[#allocation6 + $0x708] sm:$0xff]
    %v768 = vld [vmem:[#allocation6 + $0x710] sm:$0xff]
    %v769 = vld [vmem:[#allocation6 + $0x718] sm:$0xff]
    %v770 = vld [vmem:[#allocation6 + $0x720] sm:$0xff]
    %v771 = vld [vmem:[#allocation6 + $0x728] sm:$0xff]
    %v772 = vld [vmem:[#allocation6 + $0x730] sm:$0xff]
    %v773 = vld [vmem:[#allocation6 + $0x738] sm:$0xff]
    %v774 = vld [vmem:[#allocation6 + $0x740] sm:$0xff]
    %v775 = vld [vmem:[#allocation6 + $0x748] sm:$0xff]
    %v776 = vld [vmem:[#allocation6 + $0x750] sm:$0xff]
    %v777 = vld [vmem:[#allocation6 + $0x758] sm:$0xff]
    %v778 = vld [vmem:[#allocation6 + $0x760] sm:$0xff]
    %v779 = vld [vmem:[#allocation6 + $0x768] sm:$0xff]
    %v780 = vld [vmem:[#allocation6 + $0x770] sm:$0xff]
    %v781 = vld [vmem:[#allocation6 + $0x778] sm:$0xff]
    %v782 = vld [vmem:[#allocation6 + $0x780] sm:$0xff]
    %v783 = vld [vmem:[#allocation6 + $0x788] sm:$0xff]
    %v784 = vld [vmem:[#allocation6 + $0x790] sm:$0xff]
    %v785 = vld [vmem:[#allocation6 + $0x798] sm:$0xff]
    %v786 = vld [vmem:[#allocation6 + $0x7a0] sm:$0xff]
    %v787 = vld [vmem:[#allocation6 + $0x7a8] sm:$0xff]
    %v788 = vld [vmem:[#allocation6 + $0x7b0] sm:$0xff]
    %v789 = vld [vmem:[#allocation6 + $0x7b8] sm:$0xff]
    %v790 = vld [vmem:[#allocation6 + $0x7c0] sm:$0xff]
    %v791 = vld [vmem:[#allocation6 + $0x7c8] sm:$0xff]
    %v792 = vld [vmem:[#allocation6 + $0x7d0] sm:$0xff]
    %v793 = vld [vmem:[#allocation6 + $0x7d8] sm:$0xff]
    %v794 = vld [vmem:[#allocation6 + $0x7e0] sm:$0xff]
    %v795 = vld [vmem:[#allocation6 + $0x7e8] sm:$0xff]
    %v796 = vld [vmem:[#allocation6 + $0x7f0] sm:$0xff]
    %v797 = vld [vmem:[#allocation6 + $0x7f8] sm:$0xff]
    %v798 = vld [vmem:[#allocation6 + $0x800] sm:$0xff]
    %v799 = vld [vmem:[#allocation6 + $0x808] sm:$0xff]
    %v800 = vld [vmem:[#allocation6 + $0x810] sm:$0xff]
    %v801 = vld [vmem:[#allocation6 + $0x818] sm:$0xff]
    %v802 = vld [vmem:[#allocation6 + $0x820] sm:$0xff]
    %v803 = vld [vmem:[#allocation6 + $0x828] sm:$0xff]
    %v804 = vld [vmem:[#allocation6 + $0x830] sm:$0xff]
    %v805 = vld [vmem:[#allocation6 + $0x838] sm:$0xff]
    %v806 = vld [vmem:[#allocation6 + $0x840] sm:$0xff]
    %v807 = vld [vmem:[#allocation6 + $0x848] sm:$0xff]
    %v808 = vld [vmem:[#allocation6 + $0x850] sm:$0xff]
    %v809 = vld [vmem:[#allocation6 + $0x858] sm:$0xff]
    %v810 = vld [vmem:[#allocation6 + $0x860] sm:$0xff]
    %v811 = vld [vmem:[#allocation6 + $0x868] sm:$0xff]
    %v812 = vld [vmem:[#allocation6 + $0x870] sm:$0xff]
    %v813 = vld [vmem:[#allocation6 + $0x878] sm:$0xff]
    %v814 = vld [vmem:[#allocation6 + $0x880] sm:$0xff]
    %v815 = vld [vmem:[#allocation6 + $0x888] sm:$0xff]
    %v816 = vld [vmem:[#allocation6 + $0x890] sm:$0xff]
    %v817 = vld [vmem:[#allocation6 + $0x898] sm:$0xff]
    %v818 = vld [vmem:[#allocation6 + $0x8a0] sm:$0xff]
    %v819 = vld [vmem:[#allocation6 + $0x8a8] sm:$0xff]
    %v820 = vld [vmem:[#allocation6 + $0x8b0] sm:$0xff]
    %v821 = vld [vmem:[#allocation6 + $0x8b8] sm:$0xff]
    %v822 = vld [vmem:[#allocation6 + $0x8c0] sm:$0xff]
    %v823 = vld [vmem:[#allocation6 + $0x8c8] sm:$0xff]
    %v824 = vld [vmem:[#allocation6 + $0x8d0] sm:$0xff]
    %v825 = vld [vmem:[#allocation6 + $0x8d8] sm:$0xff]
    %v826 = vld [vmem:[#allocation6 + $0x8e0] sm:$0xff]
    %v827 = vld [vmem:[#allocation6 + $0x8e8] sm:$0xff]
    %v828 = vld [vmem:[#allocation6 + $0x8f0] sm:$0xff]
    %v829 = vld [vmem:[#allocation6 + $0x8f8] sm:$0xff]
    %v830 = vld [vmem:[#allocation6 + $0x900] sm:$0xff]
    %v831 = vld [vmem:[#allocation6 + $0x908] sm:$0xff]
    %v832 = vld [vmem:[#allocation6 + $0x910] sm:$0xff]
    %v833 = vld [vmem:[#allocation6 + $0x918] sm:$0xff]
    %v834 = vld [vmem:[#allocation6 + $0x920] sm:$0xff]
    %v835 = vld [vmem:[#allocation6 + $0x928] sm:$0xff]
    %v836 = vld [vmem:[#allocation6 + $0x930] sm:$0xff]
    %v837 = vld [vmem:[#allocation6 + $0x938] sm:$0xff]
    %v838 = vld [vmem:[#allocation6 + $0x940] sm:$0xff]
    %v839 = vld [vmem:[#allocation6 + $0x948] sm:$0xff]
    %v840 = vld [vmem:[#allocation6 + $0x950] sm:$0xff]
    %v841 = vld [vmem:[#allocation6 + $0x958] sm:$0xff]
    %v842 = vld [vmem:[#allocation6 + $0x960] sm:$0xff]
    %v843 = vld [vmem:[#allocation6 + $0x968] sm:$0xff]
    %v844 = vld [vmem:[#allocation6 + $0x970] sm:$0xff]
    %v845 = vld [vmem:[#allocation6 + $0x978] sm:$0xff]
    %v846 = vld [vmem:[#allocation6 + $0x980] sm:$0xff]
    %v847 = vld [vmem:[#allocation6 + $0x988] sm:$0xff]
    %v848 = vld [vmem:[#allocation6 + $0x990] sm:$0xff]
    %v849 = vld [vmem:[#allocation6 + $0x998] sm:$0xff]
    %v850 = vld [vmem:[#allocation6 + $0x9a0] sm:$0xff]
    %v851 = vld [vmem:[#allocation6 + $0x9a8] sm:$0xff]
    %v852 = vld [vmem:[#allocation6 + $0x9b0] sm:$0xff]
    %v853 = vld [vmem:[#allocation6 + $0x9b8] sm:$0xff]
    %v854 = vld [vmem:[#allocation6 + $0x9c0] sm:$0xff]
    %v855 = vld [vmem:[#allocation6 + $0x9c8] sm:$0xff]
    %v856 = vld [vmem:[#allocation6 + $0x9d0] sm:$0xff]
    %v857 = vld [vmem:[#allocation6 + $0x9d8] sm:$0xff]
    %v858 = vld [vmem:[#allocation6 + $0x9e0] sm:$0xff]
    %v859 = vld [vmem:[#allocation6 + $0x9e8] sm:$0xff]
    %v860 = vld [vmem:[#allocation6 + $0x9f0] sm:$0xff]
    %v861 = vld [vmem:[#allocation6 + $0x9f8] sm:$0xff]
    %v862 = vld [vmem:[#allocation6 + $0xa00] sm:$0xff]
    %v863 = vld [vmem:[#allocation6 + $0xa08] sm:$0xff]
    %v864 = vld [vmem:[#allocation6 + $0xa10] sm:$0xff]
    %v865 = vld [vmem:[#allocation6 + $0xa18] sm:$0xff]
    %v866 = vld [vmem:[#allocation6 + $0xa20] sm:$0xff]
    %v867 = vld [vmem:[#allocation6 + $0xa28] sm:$0xff]
    %v868 = vld [vmem:[#allocation6 + $0xa30] sm:$0xff]
    %v869 = vld [vmem:[#allocation6 + $0xa38] sm:$0xff]
    %v870 = vld [vmem:[#allocation6 + $0xa40] sm:$0xff]
    %v871 = vld [vmem:[#allocation6 + $0xa48] sm:$0xff]
    %v872 = vld [vmem:[#allocation6 + $0xa50] sm:$0xff]
    %v873 = vld [vmem:[#allocation6 + $0xa58] sm:$0xff]
    %v874 = vld [vmem:[#allocation6 + $0xa60] sm:$0xff]
    %v875 = vld [vmem:[#allocation6 + $0xa68] sm:$0xff]
    %v876 = vld [vmem:[#allocation6 + $0xa70] sm:$0xff]
    %v877 = vld [vmem:[#allocation6 + $0xa78] sm:$0xff]
    %v878 = vld [vmem:[#allocation6 + $0xa80] sm:$0xff]
    %v879 = vld [vmem:[#allocation6 + $0xa88] sm:$0xff]
    %v880 = vld [vmem:[#allocation6 + $0xa90] sm:$0xff]
    %v881 = vld [vmem:[#allocation6 + $0xa98] sm:$0xff]
    %v882 = vld [vmem:[#allocation6 + $0xaa0] sm:$0xff]
    %v883 = vld [vmem:[#allocation6 + $0xaa8] sm:$0xff]
    %v884 = vld [vmem:[#allocation6 + $0xab0] sm:$0xff]
    %v885 = vld [vmem:[#allocation6 + $0xab8] sm:$0xff]
    %v886 = vld [vmem:[#allocation6 + $0xac0] sm:$0xff]
    %v887 = vld [vmem:[#allocation6 + $0xac8] sm:$0xff]
    %v888 = vld [vmem:[#allocation6 + $0xad0] sm:$0xff]
    %v889 = vld [vmem:[#allocation6 + $0xad8] sm:$0xff]
    %v890 = vld [vmem:[#allocation6 + $0xae0] sm:$0xff]
    %v891 = vld [vmem:[#allocation6 + $0xae8] sm:$0xff]
    %v892 = vld [vmem:[#allocation6 + $0xaf0] sm:$0xff]
    %v893 = vld [vmem:[#allocation6 + $0xaf8] sm:$0xff]
    %v894 = vld [vmem:[#allocation6 + $0xb00] sm:$0xff]
    %v895 = vld [vmem:[#allocation6 + $0xb08] sm:$0xff]
    %v896 = vld [vmem:[#allocation6 + $0xb10] sm:$0xff]
    %v897 = vld [vmem:[#allocation6 + $0xb18] sm:$0xff]
    %v898 = vld [vmem:[#allocation6 + $0xb20] sm:$0xff]
    %v899 = vld [vmem:[#allocation6 + $0xb28] sm:$0xff]
    %v900 = vld [vmem:[#allocation6 + $0xb30] sm:$0xff]
    %v901 = vld [vmem:[#allocation6 + $0xb38] sm:$0xff]
    %v902 = vld [vmem:[#allocation6 + $0xb40] sm:$0xff]
    %v903 = vld [vmem:[#allocation6 + $0xb48] sm:$0xff]
    %v904 = vld [vmem:[#allocation6 + $0xb50] sm:$0xff]
    %v905 = vld [vmem:[#allocation6 + $0xb58] sm:$0xff]
    %v906 = vld [vmem:[#allocation6 + $0xb60] sm:$0xff]
    %v907 = vld [vmem:[#allocation6 + $0xb68] sm:$0xff]
    %v908 = vld [vmem:[#allocation6 + $0xb70] sm:$0xff]
    %v909 = vld [vmem:[#allocation6 + $0xb78] sm:$0xff]
    %v910 = vld [vmem:[#allocation6 + $0xb80] sm:$0xff]
    %v911 = vld [vmem:[#allocation6 + $0xb88] sm:$0xff]
    %v912 = vld [vmem:[#allocation6 + $0xb90] sm:$0xff]
    %v913 = vld [vmem:[#allocation6 + $0xb98] sm:$0xff]
    %v914 = vld [vmem:[#allocation6 + $0xba0] sm:$0xff]
    %v915 = vld [vmem:[#allocation6 + $0xba8] sm:$0xff]
    %v916 = vld [vmem:[#allocation6 + $0xbb0] sm:$0xff]
    %v917 = vld [vmem:[#allocation6 + $0xbb8] sm:$0xff]
    %v918 = vld [vmem:[#allocation6 + $0xbc0] sm:$0xff]
    %v919 = vld [vmem:[#allocation6 + $0xbc8] sm:$0xff]
    %v920 = vld [vmem:[#allocation6 + $0xbd0] sm:$0xff]
    %v921 = vld [vmem:[#allocation6 + $0xbd8] sm:$0xff]
    %v922 = vld [vmem:[#allocation6 + $0xbe0] sm:$0xff]
    %v923 = vld [vmem:[#allocation6 + $0xbe8] sm:$0xff]
    %v924 = vld [vmem:[#allocation6 + $0xbf0] sm:$0xff]
    %v925 = vld [vmem:[#allocation6 + $0xbf8] sm:$0xff]
    %v926 = vld [vmem:[#allocation6 + $0xc00] sm:$0xff]
    %v927 = vld [vmem:[#allocation6 + $0xc08] sm:$0xff]
    %v928 = vld [vmem:[#allocation6 + $0xc10] sm:$0xff]
    %v929 = vld [vmem:[#allocation6 + $0xc18] sm:$0xff]
    %v930 = vld [vmem:[#allocation6 + $0xc20] sm:$0xff]
    %v931 = vld [vmem:[#allocation6 + $0xc28] sm:$0xff]
    %v932 = vld [vmem:[#allocation6 + $0xc30] sm:$0xff]
    %v933 = vld [vmem:[#allocation6 + $0xc38] sm:$0xff]
    %v934 = vld [vmem:[#allocation6 + $0xc40] sm:$0xff]
    %v935 = vld [vmem:[#allocation6 + $0xc48] sm:$0xff]
    %v936 = vld [vmem:[#allocation6 + $0xc50] sm:$0xff]
    %v937 = vld [vmem:[#allocation6 + $0xc58] sm:$0xff]
    %v938 = vld [vmem:[#allocation6 + $0xc60] sm:$0xff]
    %v939 = vld [vmem:[#allocation6 + $0xc68] sm:$0xff]
    %v940 = vld [vmem:[#allocation6 + $0xc70] sm:$0xff]
    %v941 = vld [vmem:[#allocation6 + $0xc78] sm:$0xff]
    %v942 = vld [vmem:[#allocation6 + $0xc80] sm:$0xff]
    %v943 = vld [vmem:[#allocation6 + $0xc88] sm:$0xff]
    %v944 = vld [vmem:[#allocation6 + $0xc90] sm:$0xff]
    %v945 = vld [vmem:[#allocation6 + $0xc98] sm:$0xff]
    %v946 = vld [vmem:[#allocation6 + $0xca0] sm:$0xff]
    %v947 = vld [vmem:[#allocation6 + $0xca8] sm:$0xff]
    %v948 = vld [vmem:[#allocation6 + $0xcb0] sm:$0xff]
    %v949 = vld [vmem:[#allocation6 + $0xcb8] sm:$0xff]
    %v950 = vld [vmem:[#allocation6 + $0xcc0] sm:$0xff]
    %v951 = vld [vmem:[#allocation6 + $0xcc8] sm:$0xff]
    %v952 = vld [vmem:[#allocation6 + $0xcd0] sm:$0xff]
    %v953 = vld [vmem:[#allocation6 + $0xcd8] sm:$0xff]
    %v954 = vld [vmem:[#allocation6 + $0xce0] sm:$0xff]
    %v955 = vld [vmem:[#allocation6 + $0xce8] sm:$0xff]
    %v956 = vld [vmem:[#allocation6 + $0xcf0] sm:$0xff]
    %v957 = vld [vmem:[#allocation6 + $0xcf8] sm:$0xff]
    %v958 = vld [vmem:[#allocation6 + $0xd00] sm:$0xff]
    %v959 = vld [vmem:[#allocation6 + $0xd08] sm:$0xff]
    %v960 = vld [vmem:[#allocation6 + $0xd10] sm:$0xff]
    %v961 = vld [vmem:[#allocation6 + $0xd18] sm:$0xff]
    %v962 = vld [vmem:[#allocation6 + $0xd20] sm:$0xff]
    %v963 = vld [vmem:[#allocation6 + $0xd28] sm:$0xff]
    %v964 = vld [vmem:[#allocation6 + $0xd30] sm:$0xff]
    %v965 = vld [vmem:[#allocation6 + $0xd38] sm:$0xff]
    %v966 = vld [vmem:[#allocation6 + $0xd40] sm:$0xff]
    %v967 = vld [vmem:[#allocation6 + $0xd48] sm:$0xff]
    %v968 = vld [vmem:[#allocation6 + $0xd50] sm:$0xff]
    %v969 = vld [vmem:[#allocation6 + $0xd58] sm:$0xff]
    %v970 = vld [vmem:[#allocation6 + $0xd60] sm:$0xff]
    %v971 = vld [vmem:[#allocation6 + $0xd68] sm:$0xff]
    %v972 = vld [vmem:[#allocation6 + $0xd70] sm:$0xff]
    %v973 = vld [vmem:[#allocation6 + $0xd78] sm:$0xff]
    %v974 = vld [vmem:[#allocation6 + $0xd80] sm:$0xff]
    %v975 = vld [vmem:[#allocation6 + $0xd88] sm:$0xff]
    %v976 = vld [vmem:[#allocation6 + $0xd90] sm:$0xff]
    %v977 = vld [vmem:[#allocation6 + $0xd98] sm:$0xff]
    %v978 = vld [vmem:[#allocation6 + $0xda0] sm:$0xff]
    %v979 = vld [vmem:[#allocation6 + $0xda8] sm:$0xff]
    %v980 = vld [vmem:[#allocation6 + $0xdb0] sm:$0xff]
    %v981 = vld [vmem:[#allocation6 + $0xdb8] sm:$0xff]
    %v982 = vld [vmem:[#allocation6 + $0xdc0] sm:$0xff]
    %v983 = vld [vmem:[#allocation6 + $0xdc8] sm:$0xff]
    %v984 = vld [vmem:[#allocation6 + $0xdd0] sm:$0xff]
    %v985 = vld [vmem:[#allocation6 + $0xdd8] sm:$0xff]
    %v986 = vld [vmem:[#allocation6 + $0xde0] sm:$0xff]
    %v987 = vld [vmem:[#allocation6 + $0xde8] sm:$0xff]
    %v988 = vld [vmem:[#allocation6 + $0xdf0] sm:$0xff]
    %v989 = vld [vmem:[#allocation6 + $0xdf8] sm:$0xff]
    %v990 = vld [vmem:[#allocation6 + $0xe00] sm:$0xff]
    %v991 = vld [vmem:[#allocation6 + $0xe08] sm:$0xff]
    %v992 = vld [vmem:[#allocation6 + $0xe10] sm:$0xff]
    %v993 = vld [vmem:[#allocation6 + $0xe18] sm:$0xff]
    %v994 = vld [vmem:[#allocation6 + $0xe20] sm:$0xff]
    %v995 = vld [vmem:[#allocation6 + $0xe28] sm:$0xff]
    %v996 = vld [vmem:[#allocation6 + $0xe30] sm:$0xff]
    %v997 = vld [vmem:[#allocation6 + $0xe38] sm:$0xff]
    %v998 = vld [vmem:[#allocation6 + $0xe40] sm:$0xff]
    %v999 = vld [vmem:[#allocation6 + $0xe48] sm:$0xff]
    %v1000 = vld [vmem:[#allocation6 + $0xe50] sm:$0xff]
    %v1001 = vld [vmem:[#allocation6 + $0xe58] sm:$0xff]
    %v1002 = vld [vmem:[#allocation6 + $0xe60] sm:$0xff]
    %v1003 = vld [vmem:[#allocation6 + $0xe68] sm:$0xff]
    %v1004 = vld [vmem:[#allocation6 + $0xe70] sm:$0xff]
    %v1005 = vld [vmem:[#allocation6 + $0xe78] sm:$0xff]
    %v1006 = vld [vmem:[#allocation6 + $0xe80] sm:$0xff]
    %v1007 = vld [vmem:[#allocation6 + $0xe88] sm:$0xff]
    %v1008 = vld [vmem:[#allocation6 + $0xe90] sm:$0xff]
    %v1009 = vld [vmem:[#allocation6 + $0xe98] sm:$0xff]
    %v1010 = vld [vmem:[#allocation6 + $0xea0] sm:$0xff]
    %v1011 = vld [vmem:[#allocation6 + $0xea8] sm:$0xff]
    %v1012 = vld [vmem:[#allocation6 + $0xeb0] sm:$0xff]
    %v1013 = vld [vmem:[#allocation6 + $0xeb8] sm:$0xff]
    %v1014 = vld [vmem:[#allocation6 + $0xec0] sm:$0xff]
    %v1015 = vld [vmem:[#allocation6 + $0xec8] sm:$0xff]
    %v1016 = vld [vmem:[#allocation6 + $0xed0] sm:$0xff]
    %v1017 = vld [vmem:[#allocation6 + $0xed8] sm:$0xff]
    %v1018 = vld [vmem:[#allocation6 + $0xee0] sm:$0xff]
    %v1019 = vld [vmem:[#allocation6 + $0xee8] sm:$0xff]
    %v1020 = vld [vmem:[#allocation6 + $0xef0] sm:$0xff]
    %v1021 = vld [vmem:[#allocation6 + $0xef8] sm:$0xff]
    %v1022 = vld [vmem:[#allocation6 + $0xf00] sm:$0xff]
    %v1023 = vld [vmem:[#allocation6 + $0xf08] sm:$0xff]
    %v1024 = vld [vmem:[#allocation6 + $0xf10] sm:$0xff]
    %v1025 = vld [vmem:[#allocation6 + $0xf18] sm:$0xff]
    %v1026 = vld [vmem:[#allocation6 + $0xf20] sm:$0xff]
    %v1027 = vld [vmem:[#allocation6 + $0xf28] sm:$0xff]
    %v1028 = vld [vmem:[#allocation6 + $0xf30] sm:$0xff]
    %v1029 = vld [vmem:[#allocation6 + $0xf38] sm:$0xff]
    %v1030 = vld [vmem:[#allocation6 + $0xf40] sm:$0xff]
    %v1031 = vld [vmem:[#allocation6 + $0xf48] sm:$0xff]
    %v1032 = vld [vmem:[#allocation6 + $0xf50] sm:$0xff]
    %v1033 = vld [vmem:[#allocation6 + $0xf58] sm:$0xff]
    %v1034 = vld [vmem:[#allocation6 + $0xf60] sm:$0xff]
    %v1035 = vld [vmem:[#allocation6 + $0xf68] sm:$0xff]
    %v1036 = vld [vmem:[#allocation6 + $0xf70] sm:$0xff]
    %v1037 = vld [vmem:[#allocation6 + $0xf78] sm:$0xff]
    %v1038 = vld [vmem:[#allocation6 + $0xf80] sm:$0xff]
    %v1039 = vld [vmem:[#allocation6 + $0xf88] sm:$0xff]
    %v1040 = vld [vmem:[#allocation6 + $0xf90] sm:$0xff]
    %v1041 = vld [vmem:[#allocation6 + $0xf98] sm:$0xff]
    %v1042 = vld [vmem:[#allocation6 + $0xfa0] sm:$0xff]
    %v1043 = vld [vmem:[#allocation6 + $0xfa8] sm:$0xff]
    %v1044 = vld [vmem:[#allocation6 + $0xfb0] sm:$0xff]
    %v1045 = vld [vmem:[#allocation6 + $0xfb8] sm:$0xff]
    %v1046 = vld [vmem:[#allocation6 + $0xfc0] sm:$0xff]
    %v1047 = vld [vmem:[#allocation6 + $0xfc8] sm:$0xff]
    %v1048 = vld [vmem:[#allocation6 + $0xfd0] sm:$0xff]
    %v1049 = vld [vmem:[#allocation6 + $0xfd8] sm:$0xff]
    %v1050 = vld [vmem:[#allocation6 + $0xfe0] sm:$0xff]
    %v1051 = vld [vmem:[#allocation6 + $0xfe8] sm:$0xff]
    %v1052 = vld [vmem:[#allocation6 + $0xff0] sm:$0xff]
    %v1053 = vld [vmem:[#allocation6 + $0xff8] sm:$0xff]
    %v1054 = vld [vmem:[#allocation6 + $0x1000] sm:$0xff]
    %v1055 = vld [vmem:[#allocation6 + $0x1008] sm:$0xff]
    %v1056 = vld [vmem:[#allocation6 + $0x1010] sm:$0xff]
    %v1057 = vld [vmem:[#allocation6 + $0x1018] sm:$0xff]
    %v1058 = vld [vmem:[#allocation6 + $0x1020] sm:$0xff]
    %v1059 = vld [vmem:[#allocation6 + $0x1028] sm:$0xff]
    %v1060 = vld [vmem:[#allocation6 + $0x1030] sm:$0xff]
    %v1061 = vld [vmem:[#allocation6 + $0x1038] sm:$0xff]
    %v1062 = vld [vmem:[#allocation6 + $0x1040] sm:$0xff]
    %v1063 = vld [vmem:[#allocation6 + $0x1048] sm:$0xff]
    %v1064 = vld [vmem:[#allocation6 + $0x1050] sm:$0xff]
    %v1065 = vld [vmem:[#allocation6 + $0x1058] sm:$0xff]
    %v1066 = vld [vmem:[#allocation6 + $0x1060] sm:$0xff]
    %v1067 = vld [vmem:[#allocation6 + $0x1068] sm:$0xff]
    %v1068 = vld [vmem:[#allocation6 + $0x1070] sm:$0xff]
    %v1069 = vld [vmem:[#allocation6 + $0x1078] sm:$0xff]
    %v1070 = vld [vmem:[#allocation6 + $0x1080] sm:$0xff]
    %v1071 = vld [vmem:[#allocation6 + $0x1088] sm:$0xff]
    %v1072 = vld [vmem:[#allocation6 + $0x1090] sm:$0xff]
    %v1073 = vld [vmem:[#allocation6 + $0x1098] sm:$0xff]
    %v1074 = vld [vmem:[#allocation6 + $0x10a0] sm:$0xff]
    %v1075 = vld [vmem:[#allocation6 + $0x10a8] sm:$0xff]
    %v1076 = vld [vmem:[#allocation6 + $0x10b0] sm:$0xff]
    %v1077 = vld [vmem:[#allocation6 + $0x10b8] sm:$0xff]
    %v1078 = vld [vmem:[#allocation6 + $0x10c0] sm:$0xff]
    %v1079 = vld [vmem:[#allocation6 + $0x10c8] sm:$0xff]
    %v1080 = vld [vmem:[#allocation6 + $0x10d0] sm:$0xff]
    %v1081 = vld [vmem:[#allocation6 + $0x10d8] sm:$0xff]
    %v1082 = vld [vmem:[#allocation6 + $0x10e0] sm:$0xff]
    %v1083 = vld [vmem:[#allocation6 + $0x10e8] sm:$0xff]
    %v1084 = vld [vmem:[#allocation6 + $0x10f0] sm:$0xff]
    %v1085 = vld [vmem:[#allocation6 + $0x10f8] sm:$0xff]
    %v1086 = vld [vmem:[#allocation6 + $0x1100] sm:$0xff]
    %v1087 = vld [vmem:[#allocation6 + $0x1108] sm:$0xff]
    %v1088 = vld [vmem:[#allocation6 + $0x1110] sm:$0xff]
    %v1089 = vld [vmem:[#allocation6 + $0x1118] sm:$0xff]
    %v1090 = vld [vmem:[#allocation6 + $0x1120] sm:$0xff]
    %v1091 = vld [vmem:[#allocation6 + $0x1128] sm:$0xff]
    %v1092 = vld [vmem:[#allocation6 + $0x1130] sm:$0xff]
    %v1093 = vld [vmem:[#allocation6 + $0x1138] sm:$0xff]
    %v1094 = vld [vmem:[#allocation6 + $0x1140] sm:$0xff]
    %v1095 = vld [vmem:[#allocation6 + $0x1148] sm:$0xff]
    %v1096 = vld [vmem:[#allocation6 + $0x1150] sm:$0xff]
    %v1097 = vld [vmem:[#allocation6 + $0x1158] sm:$0xff]
    %v1098 = vld [vmem:[#allocation6 + $0x1160] sm:$0xff]
    %v1099 = vld [vmem:[#allocation6 + $0x1168] sm:$0xff]
    %v1100 = vld [vmem:[#allocation6 + $0x1170] sm:$0xff]
    %v1101 = vld [vmem:[#allocation6 + $0x1178] sm:$0xff]
    %v1102 = vld [vmem:[#allocation6 + $0x1180] sm:$0xff]
    %v1103 = vld [vmem:[#allocation6 + $0x1188] sm:$0xff]
    %v1104 = vld [vmem:[#allocation6 + $0x1190] sm:$0xff]
    %v1105 = vld [vmem:[#allocation6 + $0x1198] sm:$0xff]
    %v1106 = vld [vmem:[#allocation6 + $0x11a0] sm:$0xff]
    %v1107 = vld [vmem:[#allocation6 + $0x11a8] sm:$0xff]
    %v1108 = vld [vmem:[#allocation6 + $0x11b0] sm:$0xff]
    %v1109 = vld [vmem:[#allocation6 + $0x11b8] sm:$0xff]
    %v1110 = vld [vmem:[#allocation6 + $0x11c0] sm:$0xff]
    %v1111 = vld [vmem:[#allocation6 + $0x11c8] sm:$0xff]
    %v1112 = vld [vmem:[#allocation6 + $0x11d0] sm:$0xff]
    %v1113 = vld [vmem:[#allocation6 + $0x11d8] sm:$0xff]
    %v1114 = vld [vmem:[#allocation6 + $0x11e0] sm:$0xff]
    %v1115 = vld [vmem:[#allocation6 + $0x11e8] sm:$0xff]
    %v1116 = vld [vmem:[#allocation6 + $0x11f0] sm:$0xff]
    %v1117 = vld [vmem:[#allocation6 + $0x11f8] sm:$0xff]
    %v1118 = vld [vmem:[#allocation6 + $0x1200] sm:$0xff]
    %v1119 = vld [vmem:[#allocation6 + $0x1208] sm:$0xff]
    %v1120 = vld [vmem:[#allocation6 + $0x1210] sm:$0xff]
    %v1121 = vld [vmem:[#allocation6 + $0x1218] sm:$0xff]
    %v1122 = vld [vmem:[#allocation6 + $0x1220] sm:$0xff]
    %v1123 = vld [vmem:[#allocation6 + $0x1228] sm:$0xff]
    %v1124 = vld [vmem:[#allocation6 + $0x1230] sm:$0xff]
    %v1125 = vld [vmem:[#allocation6 + $0x1238] sm:$0xff]
    %v1126 = vld [vmem:[#allocation6 + $0x1240] sm:$0xff]
    %v1127 = vld [vmem:[#allocation6 + $0x1248] sm:$0xff]
    %v1128 = vld [vmem:[#allocation6 + $0x1250] sm:$0xff]
    %v1129 = vld [vmem:[#allocation6 + $0x1258] sm:$0xff]
    %v1130 = vld [vmem:[#allocation6 + $0x1260] sm:$0xff]
    %v1131 = vld [vmem:[#allocation6 + $0x1268] sm:$0xff]
    %v1132 = vld [vmem:[#allocation6 + $0x1270] sm:$0xff]
    %v1133 = vld [vmem:[#allocation6 + $0x1278] sm:$0xff]
    %v1134 = vld [vmem:[#allocation6 + $0x1280] sm:$0xff]
    %v1135 = vld [vmem:[#allocation6 + $0x1288] sm:$0xff]
    %v1136 = vld [vmem:[#allocation6 + $0x1290] sm:$0xff]
    %v1137 = vld [vmem:[#allocation6 + $0x1298] sm:$0xff]
    %v1138 = vld [vmem:[#allocation6 + $0x12a0] sm:$0xff]
    %v1139 = vld [vmem:[#allocation6 + $0x12a8] sm:$0xff]
    %v1140 = vld [vmem:[#allocation6 + $0x12b0] sm:$0xff]
    %v1141 = vld [vmem:[#allocation6 + $0x12b8] sm:$0xff]
    %v1142 = vld [vmem:[#allocation6 + $0x12c0] sm:$0xff]
    %v1143 = vld [vmem:[#allocation6 + $0x12c8] sm:$0xff]
    %v1144 = vld [vmem:[#allocation6 + $0x12d0] sm:$0xff]
    %v1145 = vld [vmem:[#allocation6 + $0x12d8] sm:$0xff]
    %v1146 = vld [vmem:[#allocation6 + $0x12e0] sm:$0xff]
    %v1147 = vld [vmem:[#allocation6 + $0x12e8] sm:$0xff]
    %v1148 = vld [vmem:[#allocation6 + $0x12f0] sm:$0xff]
    %v1149 = vld [vmem:[#allocation6 + $0x12f8] sm:$0xff]
    %v1150 = vld [vmem:[#allocation6 + $0x1300] sm:$0xff]
    %v1151 = vld [vmem:[#allocation6 + $0x1308] sm:$0xff]
    %v1152 = vld [vmem:[#allocation6 + $0x1310] sm:$0xff]
    %v1153 = vld [vmem:[#allocation6 + $0x1318] sm:$0xff]
    %v1154 = vld [vmem:[#allocation6 + $0x1320] sm:$0xff]
    %v1155 = vld [vmem:[#allocation6 + $0x1328] sm:$0xff]
    %v1156 = vld [vmem:[#allocation6 + $0x1330] sm:$0xff]
    %v1157 = vld [vmem:[#allocation6 + $0x1338] sm:$0xff]
    %v1158 = vld [vmem:[#allocation6 + $0x1340] sm:$0xff]
    %v1159 = vld [vmem:[#allocation6 + $0x1348] sm:$0xff]
    %v1160 = vld [vmem:[#allocation6 + $0x1350] sm:$0xff]
    %v1161 = vld [vmem:[#allocation6 + $0x1358] sm:$0xff]
    %v1162 = vld [vmem:[#allocation6 + $0x1360] sm:$0xff]
    %v1163 = vld [vmem:[#allocation6 + $0x1368] sm:$0xff]
    %v1164 = vld [vmem:[#allocation6 + $0x1370] sm:$0xff]
    %v1165 = vld [vmem:[#allocation6 + $0x1378] sm:$0xff]
    %v1166 = vld [vmem:[#allocation6 + $0x1380] sm:$0xff]
    %v1167 = vld [vmem:[#allocation6 + $0x1388] sm:$0xff]
    %v1168 = vld [vmem:[#allocation6 + $0x1390] sm:$0xff]
    %v1169 = vld [vmem:[#allocation6 + $0x1398] sm:$0xff]
    %v1170 = vld [vmem:[#allocation6 + $0x13a0] sm:$0xff]
    %v1171 = vld [vmem:[#allocation6 + $0x13a8] sm:$0xff]
    %v1172 = vld [vmem:[#allocation6 + $0x13b0] sm:$0xff]
    %v1173 = vld [vmem:[#allocation6 + $0x13b8] sm:$0xff]
    %v1174 = vld [vmem:[#allocation6 + $0x13c0] sm:$0xff]
    %v1175 = vld [vmem:[#allocation6 + $0x13c8] sm:$0xff]
    %v1176 = vld [vmem:[#allocation6 + $0x13d0] sm:$0xff]
    %v1177 = vld [vmem:[#allocation6 + $0x13d8] sm:$0xff]
    %v1178 = vld [vmem:[#allocation6 + $0x13e0] sm:$0xff]
    %v1179 = vld [vmem:[#allocation6 + $0x13e8] sm:$0xff]
    %v1180 = vld [vmem:[#allocation6 + $0x13f0] sm:$0xff]
    %v1181 = vld [vmem:[#allocation6 + $0x13f8] sm:$0xff]
    %v1182 = vld [vmem:[#allocation6 + $0x1400] sm:$0xff]
    %v1183 = vld [vmem:[#allocation6 + $0x1408] sm:$0xff]
    %v1184 = vld [vmem:[#allocation6 + $0x1410] sm:$0xff]
    %v1185 = vld [vmem:[#allocation6 + $0x1418] sm:$0xff]
    %v1186 = vld [vmem:[#allocation6 + $0x1420] sm:$0xff]
    %v1187 = vld [vmem:[#allocation6 + $0x1428] sm:$0xff]
    %v1188 = vld [vmem:[#allocation6 + $0x1430] sm:$0xff]
    %v1189 = vld [vmem:[#allocation6 + $0x1438] sm:$0xff]
    %v1190 = vld [vmem:[#allocation6 + $0x1440] sm:$0xff]
    %v1191 = vld [vmem:[#allocation6 + $0x1448] sm:$0xff]
    %v1192 = vld [vmem:[#allocation6 + $0x1450] sm:$0xff]
    %v1193 = vld [vmem:[#allocation6 + $0x1458] sm:$0xff]
    %v1194 = vld [vmem:[#allocation6 + $0x1460] sm:$0xff]
    %v1195 = vld [vmem:[#allocation6 + $0x1468] sm:$0xff]
    %v1196 = vld [vmem:[#allocation6 + $0x1470] sm:$0xff]
    %v1197 = vld [vmem:[#allocation6 + $0x1478] sm:$0xff]
    %v1198 = vld [vmem:[#allocation6 + $0x1480] sm:$0xff]
    %v1199 = vld [vmem:[#allocation6 + $0x1488] sm:$0xff]
    %v1200 = vld [vmem:[#allocation6 + $0x1490] sm:$0xff]
    %v1201 = vld [vmem:[#allocation6 + $0x1498] sm:$0xff]
    %v1202 = vld [vmem:[#allocation6 + $0x14a0] sm:$0xff]
    %v1203 = vld [vmem:[#allocation6 + $0x14a8] sm:$0xff]
    %v1204 = vld [vmem:[#allocation6 + $0x14b0] sm:$0xff]
    %v1205 = vld [vmem:[#allocation6 + $0x14b8] sm:$0xff]
    %v1206 = vld [vmem:[#allocation6 + $0x14c0] sm:$0xff]
    %v1207 = vld [vmem:[#allocation6 + $0x14c8] sm:$0xff]
    %v1208 = vld [vmem:[#allocation6 + $0x14d0] sm:$0xff]
    %v1209 = vld [vmem:[#allocation6 + $0x14d8] sm:$0xff]
    %v1210 = vld [vmem:[#allocation6 + $0x14e0] sm:$0xff]
    %v1211 = vld [vmem:[#allocation6 + $0x14e8] sm:$0xff]
    %v1212 = vld [vmem:[#allocation6 + $0x14f0] sm:$0xff]
    %v1213 = vld [vmem:[#allocation6 + $0x14f8] sm:$0xff]
    %v1214 = vld [vmem:[#allocation6 + $0x1500] sm:$0xff]
    %v1215 = vld [vmem:[#allocation6 + $0x1508] sm:$0xff]
    %v1216 = vld [vmem:[#allocation6 + $0x1510] sm:$0xff]
    %v1217 = vld [vmem:[#allocation6 + $0x1518] sm:$0xff]
    %v1218 = vld [vmem:[#allocation6 + $0x1520] sm:$0xff]
    %v1219 = vld [vmem:[#allocation6 + $0x1528] sm:$0xff]
    %v1220 = vld [vmem:[#allocation6 + $0x1530] sm:$0xff]
    %v1221 = vld [vmem:[#allocation6 + $0x1538] sm:$0xff]
    %v1222 = vld [vmem:[#allocation6 + $0x1540] sm:$0xff]
    %v1223 = vld [vmem:[#allocation6 + $0x1548] sm:$0xff]
    %v1224 = vld [vmem:[#allocation6 + $0x1550] sm:$0xff]
    %v1225 = vld [vmem:[#allocation6 + $0x1558] sm:$0xff]
    %v1226 = vld [vmem:[#allocation6 + $0x1560] sm:$0xff]
    %v1227 = vld [vmem:[#allocation6 + $0x1568] sm:$0xff]
    %v1228 = vld [vmem:[#allocation6 + $0x1570] sm:$0xff]
    %v1229 = vld [vmem:[#allocation6 + $0x1578] sm:$0xff]
    %v1230 = vld [vmem:[#allocation6 + $0x1580] sm:$0xff]
    %v1231 = vld [vmem:[#allocation6 + $0x1588] sm:$0xff]
    %v1232 = vld [vmem:[#allocation6 + $0x1590] sm:$0xff]
    %v1233 = vld [vmem:[#allocation6 + $0x1598] sm:$0xff]
    %v1234 = vld [vmem:[#allocation6 + $0x15a0] sm:$0xff]
    %v1235 = vld [vmem:[#allocation6 + $0x15a8] sm:$0xff]
    %v1236 = vld [vmem:[#allocation6 + $0x15b0] sm:$0xff]
    %v1237 = vld [vmem:[#allocation6 + $0x15b8] sm:$0xff]
    %v1238 = vld [vmem:[#allocation6 + $0x15c0] sm:$0xff]
    %v1239 = vld [vmem:[#allocation6 + $0x15c8] sm:$0xff]
    %v1240 = vld [vmem:[#allocation6 + $0x15d0] sm:$0xff]
    %v1241 = vld [vmem:[#allocation6 + $0x15d8] sm:$0xff]
    %v1242 = vld [vmem:[#allocation6 + $0x15e0] sm:$0xff]
    %v1243 = vld [vmem:[#allocation6 + $0x15e8] sm:$0xff]
    %v1244 = vld [vmem:[#allocation6 + $0x15f0] sm:$0xff]
    %v1245 = vld [vmem:[#allocation6 + $0x15f8] sm:$0xff]
    %v1246 = vld [vmem:[#allocation6 + $0x1600] sm:$0xff]
    %v1247 = vld [vmem:[#allocation6 + $0x1608] sm:$0xff]
    %v1248 = vld [vmem:[#allocation6 + $0x1610] sm:$0xff]
    %v1249 = vld [vmem:[#allocation6 + $0x1618] sm:$0xff]
    %v1250 = vld [vmem:[#allocation6 + $0x1620] sm:$0xff]
    %v1251 = vld [vmem:[#allocation6 + $0x1628] sm:$0xff]
    %v1252 = vld [vmem:[#allocation6 + $0x1630] sm:$0xff]
    %v1253 = vld [vmem:[#allocation6 + $0x1638] sm:$0xff]
    %v1254 = vld [vmem:[#allocation6 + $0x1640] sm:$0xff]
    %v1255 = vld [vmem:[#allocation6 + $0x1648] sm:$0xff]
    %v1256 = vld [vmem:[#allocation6 + $0x1650] sm:$0xff]
    %v1257 = vld [vmem:[#allocation6 + $0x1658] sm:$0xff]
    %v1258 = vld [vmem:[#allocation6 + $0x1660] sm:$0xff]
    %v1259 = vld [vmem:[#allocation6 + $0x1668] sm:$0xff]
    %v1260 = vld [vmem:[#allocation6 + $0x1670] sm:$0xff]
    %v1261 = vld [vmem:[#allocation6 + $0x1678] sm:$0xff]
    %v1262 = vld [vmem:[#allocation6 + $0x1680] sm:$0xff]
    %v1263 = vld [vmem:[#allocation6 + $0x1688] sm:$0xff]
    %v1264 = vld [vmem:[#allocation6 + $0x1690] sm:$0xff]
    %v1265 = vld [vmem:[#allocation6 + $0x1698] sm:$0xff]
    %v1266 = vld [vmem:[#allocation6 + $0x16a0] sm:$0xff]
    %v1267 = vld [vmem:[#allocation6 + $0x16a8] sm:$0xff]
    %v1268 = vld [vmem:[#allocation6 + $0x16b0] sm:$0xff]
    %v1269 = vld [vmem:[#allocation6 + $0x16b8] sm:$0xff]
    %v1270 = vld [vmem:[#allocation6 + $0x16c0] sm:$0xff]
    %v1271 = vld [vmem:[#allocation6 + $0x16c8] sm:$0xff]
    %v1272 = vld [vmem:[#allocation6 + $0x16d0] sm:$0xff]
    %v1273 = vld [vmem:[#allocation6 + $0x16d8] sm:$0xff]
    %v1274 = vld [vmem:[#allocation6 + $0x16e0] sm:$0xff]
    %v1275 = vld [vmem:[#allocation6 + $0x16e8] sm:$0xff]
    %v1276 = vld [vmem:[#allocation6 + $0x16f0] sm:$0xff]
    %v1277 = vld [vmem:[#allocation6 + $0x16f8] sm:$0xff]
    %v1278 = vld [vmem:[#allocation6 + $0x1700] sm:$0xff]
    %v1279 = vld [vmem:[#allocation6 + $0x1708] sm:$0xff]
    %v1280 = vld [vmem:[#allocation6 + $0x1710] sm:$0xff]
    %v1281 = vld [vmem:[#allocation6 + $0x1718] sm:$0xff]
    %v1282 = vld [vmem:[#allocation6 + $0x1720] sm:$0xff]
    %v1283 = vld [vmem:[#allocation6 + $0x1728] sm:$0xff]
    %v1284 = vld [vmem:[#allocation6 + $0x1730] sm:$0xff]
    %v1285 = vld [vmem:[#allocation6 + $0x1738] sm:$0xff]
    %v1286 = vld [vmem:[#allocation6 + $0x1740] sm:$0xff]
    %v1287 = vld [vmem:[#allocation6 + $0x1748] sm:$0xff]
    %v1288 = vld [vmem:[#allocation6 + $0x1750] sm:$0xff]
    %v1289 = vld [vmem:[#allocation6 + $0x1758] sm:$0xff]
    %v1290 = vld [vmem:[#allocation6 + $0x1760] sm:$0xff]
    %v1291 = vld [vmem:[#allocation6 + $0x1768] sm:$0xff]
    %v1292 = vld [vmem:[#allocation6 + $0x1770] sm:$0xff]
    %v1293 = vld [vmem:[#allocation6 + $0x1778] sm:$0xff]
    %v1294 = vld [vmem:[#allocation6 + $0x1780] sm:$0xff]
    %v1295 = vld [vmem:[#allocation6 + $0x1788] sm:$0xff]
    %v1296 = vld [vmem:[#allocation6 + $0x1790] sm:$0xff]
    %v1297 = vld [vmem:[#allocation6 + $0x1798] sm:$0xff]
    %v1298 = vld [vmem:[#allocation6 + $0x17a0] sm:$0xff]
    %v1299 = vld [vmem:[#allocation6 + $0x17a8] sm:$0xff]
    %v1300 = vld [vmem:[#allocation6 + $0x17b0] sm:$0xff]
    %v1301 = vld [vmem:[#allocation6 + $0x17b8] sm:$0xff]
    %v1302 = vld [vmem:[#allocation6 + $0x17c0] sm:$0xff]
    %v1303 = vld [vmem:[#allocation6 + $0x17c8] sm:$0xff]
    %v1304 = vld [vmem:[#allocation6 + $0x17d0] sm:$0xff]
    %v1305 = vld [vmem:[#allocation6 + $0x17d8] sm:$0xff]
    %v1306 = vld [vmem:[#allocation6 + $0x17e0] sm:$0xff]
    %v1307 = vld [vmem:[#allocation6 + $0x17e8] sm:$0xff]
    %v1308 = vld [vmem:[#allocation6 + $0x17f0] sm:$0xff]
    %v1309 = vld [vmem:[#allocation6 + $0x17f8] sm:$0xff]
    %v1310 = vld [vmem:[#allocation6 + $0x1800] sm:$0xff]
    %v1311 = vld [vmem:[#allocation6 + $0x1808] sm:$0xff]
    %v1312 = vld [vmem:[#allocation6 + $0x1810] sm:$0xff]
    %v1313 = vld [vmem:[#allocation6 + $0x1818] sm:$0xff]
    %v1314 = vld [vmem:[#allocation6 + $0x1820] sm:$0xff]
    %v1315 = vld [vmem:[#allocation6 + $0x1828] sm:$0xff]
    %v1316 = vld [vmem:[#allocation6 + $0x1830] sm:$0xff]
    %v1317 = vld [vmem:[#allocation6 + $0x1838] sm:$0xff]
    %v1318 = vld [vmem:[#allocation6 + $0x1840] sm:$0xff]
    %v1319 = vld [vmem:[#allocation6 + $0x1848] sm:$0xff]
    %v1320 = vld [vmem:[#allocation6 + $0x1850] sm:$0xff]
    %v1321 = vld [vmem:[#allocation6 + $0x1858] sm:$0xff]
    %v1322 = vld [vmem:[#allocation6 + $0x1860] sm:$0xff]
    %v1323 = vld [vmem:[#allocation6 + $0x1868] sm:$0xff]
    %v1324 = vld [vmem:[#allocation6 + $0x1870] sm:$0xff]
    %v1325 = vld [vmem:[#allocation6 + $0x1878] sm:$0xff]
    %v1326 = vld [vmem:[#allocation7] sm:$0xff]
    %v1328 = vlaneseq
    %v1329 = vshrl.u32 %v1328, 7
    %v1330 = vsub.s32 0, %v1329
    %v1331 = vrot.slane %v1326, %v1330
    %v1332 = vlaneseq
    %v1333 = vshrl.u32 %v1332, 7
    %v1334 = vsub.s32 1, %v1333
    %v1335 = vrot.slane %v1326, %v1334
    %v1336 = vlaneseq
    %v1337 = vshrl.u32 %v1336, 7
    %v1338 = vsub.s32 2, %v1337
    %v1339 = vrot.slane %v1326, %v1338
    %v1340 = vlaneseq
    %v1341 = vshrl.u32 %v1340, 7
    %v1342 = vsub.s32 3, %v1341
    %v1343 = vrot.slane %v1326, %v1342
    %v1344 = vlaneseq
    %v1345 = vshrl.u32 %v1344, 7
    %v1346 = vsub.s32 4, %v1345
    %v1347 = vrot.slane %v1326, %v1346
    %v1348 = vlaneseq
    %v1349 = vshrl.u32 %v1348, 7
    %v1350 = vsub.s32 5, %v1349
    %v1351 = vrot.slane %v1326, %v1350
    %v1352 = vlaneseq
    %v1353 = vshrl.u32 %v1352, 7
    %v1354 = vsub.s32 6, %v1353
    %v1355 = vrot.slane %v1326, %v1354
    %1363 = vmatprep.subr.mxu0 %v543
    %1364 = vmatpush1.msra.mxu0 %v542
    %1365 = vmatprep.subr.mxu0 %v550
    %1366 = vmatpush1.msra.mxu0 %v549
    %1367 = vmatprep.subr.mxu0 %v557
    %1368 = vmatpush1.msra.mxu0 %v556
    %1369 = vmatprep.subr.mxu0 %v564
    %1370 = vmatpush1.msra.mxu0 %v563
    %1371 = vmatprep.subr.mxu0 %v571
    %1372 = vmatpush1.msra.mxu0 %v570
    %1373 = vmatprep.subr.mxu0 %v578
    %1374 = vmatpush1.msra.mxu0 %v577
    %1375 = vmatprep.subr.mxu0 %v585
    %1376 = vmatpush1.msra.mxu0 %v584
    %1377 = vmatprep.subr.mxu0 %v592
    %1378 = vmatpush1.msra.mxu0 %v591
    %1379 = vmatprep.subr.mxu0 %v599
    %1380 = vmatpush1.msra.mxu0 %v598
    %1381 = vmatprep.subr.mxu0 %v606
    %1382 = vmatpush1.msra.mxu0 %v605
    %1383 = vmatprep.subr.mxu0 %v613
    %1384 = vmatpush1.msra.mxu0 %v612
    %1385 = vmatprep.subr.mxu0 %v620
    %1386 = vmatpush1.msra.mxu0 %v619
    %1387 = vmatprep.subr.mxu0 %v627
    %1388 = vmatpush1.msra.mxu0 %v626
    %1389 = vmatprep.subr.mxu0 %v634
    %1390 = vmatpush1.msra.mxu0 %v633
    %1391 = vmatprep.subr.mxu0 %v641
    %1392 = vmatpush1.msra.mxu0 %v640
    %1393 = vmatprep.subr.mxu0 %v648
    %1394 = vmatpush1.msra.mxu0 %v647
    %1395 = vmatprep.subr.mxu0 %v655
    %1396 = vmatpush1.msra.mxu0 %v654
    %1397 = vmatprep.subr.mxu0 %v662
    %1398 = vmatpush1.msra.mxu0 %v661
    %1399 = vmatprep.subr.mxu0 %v669
    %1400 = vmatpush1.msra.mxu0 %v668
    %1401 = vmatprep.subr.mxu0 %v676
    %1402 = vmatpush1.msra.mxu0 %v675
    %1403 = vmatprep.subr.mxu0 %v683
    %1404 = vmatpush1.msra.mxu0 %v682
    %1405 = vmatprep.subr.mxu0 %v690
    %1406 = vmatpush1.msra.mxu0 %v689
    %1407 = vmatprep.subr.mxu0 %v697
    %1408 = vmatpush1.msra.mxu0 %v696
    %1409 = vmatprep.subr.mxu0 %v704
    %1410 = vmatpush1.msra.mxu0 %v703
    %1411 = vmatprep.subr.mxu0 %v711
    %1412 = vmatpush1.msra.mxu0 %v710
    %1413 = vmatprep.subr.mxu0 %v718
    %1414 = vmatpush1.msra.mxu0 %v717
    %1415 = vmatprep.subr.mxu0 %v725
    %1416 = vmatpush1.msra.mxu0 %v724
    %1417 = vmatprep.subr.mxu0 %v732
    %1418 = vmatpush1.msra.mxu0 %v731
    %1419 = vmatprep.subr.mxu0 %v739
    %1420 = vmatpush1.msra.mxu0 %v738
    %1421 = vmatprep.subr.mxu0 %v746
    %1422 = vmatpush1.msra.mxu0 %v745
    %1423 = vmatprep.subr.mxu0 %v753
    %1424 = vmatpush1.msra.mxu0 %v752
    %1425 = vmatprep.subr.mxu0 %v760
    %1426 = vmatpush1.msra.mxu0 %v759
    %1427 = vmatprep.mubr.f32.mxu0 %v536
    %1428 = vmatmul.mubr.f32.gmra.mrb[0].mxu0 %v535
    %v1429 = vpop.f32.mrb[0].mxu0
    %v1430 = vadd.f32 %v1331, %v1429
    %v1431 = vpop.f32.mrb[0].mxu0
    %v1432 = vadd.f32 %v1335, %v1431
    %1433 = vdwg.mxu0
    %1434 = vmatprep.subr.mxu0 %v767
    %1435 = vmatpush1.msra.mxu0 %v766
    %1436 = vmatprep.subr.mxu0 %v774
    %1437 = vmatpush1.msra.mxu0 %v773
    %1438 = vmatprep.subr.mxu0 %v781
    %1439 = vmatpush1.msra.mxu0 %v780
    %1440 = vmatprep.subr.mxu0 %v788
    %1441 = vmatpush1.msra.mxu0 %v787
    %1442 = vmatprep.subr.mxu0 %v795
    %1443 = vmatpush1.msra.mxu0 %v794
    %1444 = vmatprep.subr.mxu0 %v802
    %1445 = vmatpush1.msra.mxu0 %v801
    %1446 = vmatprep.subr.mxu0 %v809
    %1447 = vmatpush1.msra.mxu0 %v808
    %1448 = vmatprep.subr.mxu0 %v816
    %1449 = vmatpush1.msra.mxu0 %v815
    %1450 = vmatprep.subr.mxu0 %v823
    %1451 = vmatpush1.msra.mxu0 %v822
    %1452 = vmatprep.subr.mxu0 %v830
    %1453 = vmatpush1.msra.mxu0 %v829
    %1454 = vmatprep.subr.mxu0 %v837
    %1455 = vmatpush1.msra.mxu0 %v836
    %1456 = vmatprep.subr.mxu0 %v844
    %1457 = vmatpush1.msra.mxu0 %v843
    %1458 = vmatprep.subr.mxu0 %v851
    %1459 = vmatpush1.msra.mxu0 %v850
    %1460 = vmatprep.subr.mxu0 %v858
    %1461 = vmatpush1.msra.mxu0 %v857
    %1462 = vmatprep.subr.mxu0 %v865
    %1463 = vmatpush1.msra.mxu0 %v864
    %1464 = vmatprep.subr.mxu0 %v872
    %1465 = vmatpush1.msra.mxu0 %v871
    %1466 = vmatprep.subr.mxu0 %v879
    %1467 = vmatpush1.msra.mxu0 %v878
    %1468 = vmatprep.subr.mxu0 %v886
    %1469 = vmatpush1.msra.mxu0 %v885
    %1470 = vmatprep.subr.mxu0 %v893
    %1471 = vmatpush1.msra.mxu0 %v892
    %1472 = vmatprep.subr.mxu0 %v900
    %1473 = vmatpush1.msra.mxu0 %v899
    %1474 = vmatprep.subr.mxu0 %v907
    %1475 = vmatpush1.msra.mxu0 %v906
    %1476 = vmatprep.subr.mxu0 %v914
    %1477 = vmatpush1.msra.mxu0 %v913
    %1478 = vmatprep.subr.mxu0 %v921
    %1479 = vmatpush1.msra.mxu0 %v920
    %1480 = vmatprep.subr.mxu0 %v928
    %1481 = vmatpush1.msra.mxu0 %v927
    %1482 = vmatprep.subr.mxu0 %v935
    %1483 = vmatpush1.msra.mxu0 %v934
    %1484 = vmatprep.subr.mxu0 %v942
    %1485 = vmatpush1.msra.mxu0 %v941
    %1486 = vmatprep.subr.mxu0 %v949
    %1487 = vmatpush1.msra.mxu0 %v948
    %1488 = vmatprep.subr.mxu0 %v956
    %1489 = vmatpush1.msra.mxu0 %v955
    %1490 = vmatprep.subr.mxu0 %v963
    %1491 = vmatpush1.msra.mxu0 %v962
    %1492 = vmatprep.subr.mxu0 %v970
    %1493 = vmatpush1.msra.mxu0 %v969
    %1494 = vmatprep.subr.mxu0 %v977
    %1495 = vmatpush1.msra.mxu0 %v976
    %1496 = vmatprep.subr.mxu0 %v984
    %1497 = vmatpush1.msra.mxu0 %v983
    %1498 = vmatprep.mubr.f32.mxu0 %v538
    %1499 = vmatmul.mubr.f32.gmra.mrb[0].mxu0 %v537
    %v1500 = vpop.f32.mrb[0].mxu0
    %v1501 = vadd.f32 %v1430, %v1500
    %v1502 = vpop.f32.mrb[0].mxu0
    %v1503 = vadd.f32 %v1432, %v1502
    %1504 = vdwg.mxu0
    %1505 = vmatprep.subr.mxu0 %v991
    %1506 = vmatpush1.msra.mxu0 %v990
    %1507 = vmatprep.subr.mxu0 %v998
    %1508 = vmatpush1.msra.mxu0 %v997
    %1509 = vmatprep.subr.mxu0 %v1005
    %1510 = vmatpush1.msra.mxu0 %v1004
    %1511 = vmatprep.subr.mxu0 %v1012
    %1512 = vmatpush1.msra.mxu0 %v1011
    %1513 = vmatprep.subr.mxu0 %v1019
    %1514 = vmatpush1.msra.mxu0 %v1018
    %1515 = vmatprep.subr.mxu0 %v1026
    %1516 = vmatpush1.msra.mxu0 %v1025
    %1517 = vmatprep.subr.mxu0 %v1033
    %1518 = vmatpush1.msra.mxu0 %v1032
    %1519 = vmatprep.subr.mxu0 %v1040
    %1520 = vmatpush1.msra.mxu0 %v1039
    %1521 = vmatprep.subr.mxu0 %v1047
    %1522 = vmatpush1.msra.mxu0 %v1046
    %1523 = vmatprep.subr.mxu0 %v1054
    %1524 = vmatpush1.msra.mxu0 %v1053
    %1525 = vmatprep.subr.mxu0 %v1061
    %1526 = vmatpush1.msra.mxu0 %v1060
    %1527 = vmatprep.subr.mxu0 %v1068
    %1528 = vmatpush1.msra.mxu0 %v1067
    %1529 = vmatprep.subr.mxu0 %v1075
    %1530 = vmatpush1.msra.mxu0 %v1074
    %1531 = vmatprep.subr.mxu0 %v1082
    %1532 = vmatpush1.msra.mxu0 %v1081
    %1533 = vmatprep.subr.mxu0 %v1089
    %1534 = vmatpush1.msra.mxu0 %v1088
    %1535 = vmatprep.subr.mxu0 %v1096
    %1536 = vmatpush1.msra.mxu0 %v1095
    %1537 = vmatprep.subr.mxu0 %v1103
    %1538 = vmatpush1.msra.mxu0 %v1102
    %1539 = vmatprep.subr.mxu0 %v1110
    %1540 = vmatpush1.msra.mxu0 %v1109
    %1541 = vmatprep.subr.mxu0 %v1117
    %1542 = vmatpush1.msra.mxu0 %v1116
    %1543 = vmatprep.subr.mxu0 %v1124
    %1544 = vmatpush1.msra.mxu0 %v1123
    %1545 = vmatprep.subr.mxu0 %v1131
    %1546 = vmatpush1.msra.mxu0 %v1130
    %1547 = vmatprep.subr.mxu0 %v1138
    %1548 = vmatpush1.msra.mxu0 %v1137
    %1549 = vmatprep.subr.mxu0 %v1145
    %1550 = vmatpush1.msra.mxu0 %v1144
    %1551 = vmatprep.subr.mxu0 %v1152
    %1552 = vmatpush1.msra.mxu0 %v1151
    %1553 = vmatprep.subr.mxu0 %v1159
    %1554 = vmatpush1.msra.mxu0 %v1158
    %1555 = vmatprep.subr.mxu0 %v1166
    %1556 = vmatpush1.msra.mxu0 %v1165
    %1557 = vmatprep.subr.mxu0 %v1173
    %1558 = vmatpush1.msra.mxu0 %v1172
    %1559 = vmatprep.subr.mxu0 %v1180
    %1560 = vmatpush1.msra.mxu0 %v1179
    %1561 = vmatprep.subr.mxu0 %v1187
    %1562 = vmatpush1.msra.mxu0 %v1186
    %1563 = vmatprep.subr.mxu0 %v1194
    %1564 = vmatpush1.msra.mxu0 %v1193
    %1565 = vmatprep.subr.mxu0 %v1201
    %1566 = vmatpush1.msra.mxu0 %v1200
    %1567 = vmatprep.subr.mxu0 %v1208
    %1568 = vmatpush1.msra.mxu0 %v1207
    %1569 = vmatprep.mubr.f32.mxu0 %v540
    %1570 = vmatmul.mubr.f32.gmra.mrb[0].mxu0 %v539
    %v1571 = vpop.f32.mrb[0].mxu0
    %v1572 = vadd.f32 %v1501, %v1571
    %v1573 = vpop.f32.mrb[0].mxu0
    %v1574 = vadd.f32 %v1503, %v1573
    %1575 = vdwg.mxu0
    %1576 = vmatprep.subr.mxu0 %v1215
    %1577 = vmatpush1.msra.mxu0 %v1214
    %1578 = vmatprep.subr.mxu0 %v1222
    %1579 = vmatpush1.msra.mxu0 %v1221
    %1580 = vmatprep.subr.mxu0 %v1229
    %1581 = vmatpush1.msra.mxu0 %v1228
    %1582 = vmatprep.subr.mxu0 %v1236
    %1583 = vmatpush1.msra.mxu0 %v1235
    %1584 = vmatprep.subr.mxu0 %v1243
    %1585 = vmatpush1.msra.mxu0 %v1242
    %1586 = vmatprep.subr.mxu0 %v1250
    %1587 = vmatpush1.msra.mxu0 %v1249
    %1588 = vmatprep.subr.mxu0 %v1257
    %1589 = vmatpush1.msra.mxu0 %v1256
    %1590 = vmatprep.subr.mxu0 %v1264
    %1591 = vmatpush1.msra.mxu0 %v1263
    %1592 = vmatprep.subr.mxu0 %v1271
    %1593 = vmatpush1.msra.mxu0 %v1270
    %1594 = vmatprep.subr.mxu0 %v1278
    %1595 = vmatpush1.msra.mxu0 %v1277
    %1596 = vmatprep.subr.mxu0 %v1285
    %1597 = vmatpush1.msra.mxu0 %v1284
    %1598 = vmatprep.subr.mxu0 %v1292
    %1599 = vmatpush1.msra.mxu0 %v1291
    %1600 = vmatprep.subr.mxu0 %v1299
    %1601 = vmatpush1.msra.mxu0 %v1298
    %1602 = vmatprep.subr.mxu0 %v1306
    %1603 = vmatpush1.msra.mxu0 %v1305
    %1604 = vmatprep.subr.mxu0 %v1313
    %1605 = vmatpush1.msra.mxu0 %v1312
    %1606 = vmatprep.subr.mxu0 %v1320
    %1607 = vmatpush1.msra.mxu0 %v1319
    %1608 = vmatprep.subr.mxu0 0.0
    %1609 = vmatpush1.msra.mxu0 0.0
    %1610 = vmatprep.subr.mxu0 0.0
    %1611 = vmatpush1.msra.mxu0 0.0
    %1612 = vmatprep.subr.mxu0 0.0
    %1613 = vmatpush1.msra.mxu0 0.0
    %1614 = vmatprep.subr.mxu0 0.0
    %1615 = vmatpush1.msra.mxu0 0.0
    %1616 = vmatprep.subr.mxu0 0.0
    %1617 = vmatpush1.msra.mxu0 0.0
    %1618 = vmatprep.subr.mxu0 0.0
    %1619 = vmatpush1.msra.mxu0 0.0
    %1620 = vmatprep.subr.mxu0 0.0
    %1621 = vmatpush1.msra.mxu0 0.0
    %1622 = vmatprep.subr.mxu0 0.0
    %1623 = vmatpush1.msra.mxu0 0.0
    %1624 = vmatprep.subr.mxu0 0.0
    %1625 = vmatpush1.msra.mxu0 0.0
    %1626 = vmatprep.subr.mxu0 0.0
    %1627 = vmatpush1.msra.mxu0 0.0
    %1628 = vmatprep.subr.mxu0 0.0
    %1629 = vmatpush1.msra.mxu0 0.0
    %1630 = vmatprep.subr.mxu0 0.0
    %1631 = vmatpush1.msra.mxu0 0.0
    %1632 = vmatprep.subr.mxu0 0.0
    %1633 = vmatpush1.msra.mxu0 0.0
    %1634 = vmatprep.subr.mxu0 0.0
    %1635 = vmatpush1.msra.mxu0 0.0
    %1636 = vmatprep.subr.mxu0 0.0
    %1637 = vmatpush1.msra.mxu0 0.0
    %1638 = vmatprep.subr.mxu0 0.0
    %1639 = vmatpush1.msra.mxu0 0.0
    %1640 = vmatprep.mubr.f32.mxu0 0.0
    %1641 = vmatmul.mubr.f32.gmra.mrb[0].mxu0 %v541
    %v1642 = vpop.f32.mrb[0].mxu0
    %v1643 = vadd.f32 %v1572, %v1642
    %v1644 = vpop.f32.mrb[0].mxu0
    %v1645 = vadd.f32 %v1574, %v1644
    %1646 = vdwg.mxu0
    %1647 = vmatprep.subr.mxu0 %v545
    %1648 = vmatpush1.msra.mxu0 %v544
    %1649 = vmatprep.subr.mxu0 %v552
    %1650 = vmatpush1.msra.mxu0 %v551
    %1651 = vmatprep.subr.mxu0 %v559
    %1652 = vmatpush1.msra.mxu0 %v558
    %1653 = vmatprep.subr.mxu0 %v566
    %1654 = vmatpush1.msra.mxu0 %v565
    %1655 = vmatprep.subr.mxu0 %v573
    %1656 = vmatpush1.msra.mxu0 %v572
    %1657 = vmatprep.subr.mxu0 %v580
    %1658 = vmatpush1.msra.mxu0 %v579
    %1659 = vmatprep.subr.mxu0 %v587
    %1660 = vmatpush1.msra.mxu0 %v586
    %1661 = vmatprep.subr.mxu0 %v594
    %1662 = vmatpush1.msra.mxu0 %v593
    %1663 = vmatprep.subr.mxu0 %v601
    %1664 = vmatpush1.msra.mxu0 %v600
    %1665 = vmatprep.subr.mxu0 %v608
    %1666 = vmatpush1.msra.mxu0 %v607
    %1667 = vmatprep.subr.mxu0 %v615
    %1668 = vmatpush1.msra.mxu0 %v614
    %1669 = vmatprep.subr.mxu0 %v622
    %1670 = vmatpush1.msra.mxu0 %v621
    %1671 = vmatprep.subr.mxu0 %v629
    %1672 = vmatpush1.msra.mxu0 %v628
    %1673 = vmatprep.subr.mxu0 %v636
    %1674 = vmatpush1.msra.mxu0 %v635
    %1675 = vmatprep.subr.mxu0 %v643
    %1676 = vmatpush1.msra.mxu0 %v642
    %1677 = vmatprep.subr.mxu0 %v650
    %1678 = vmatpush1.msra.mxu0 %v649
    %1679 = vmatprep.subr.mxu0 %v657
    %1680 = vmatpush1.msra.mxu0 %v656
    %1681 = vmatprep.subr.mxu0 %v664
    %1682 = vmatpush1.msra.mxu0 %v663
    %1683 = vmatprep.subr.mxu0 %v671
    %1684 = vmatpush1.msra.mxu0 %v670
    %1685 = vmatprep.subr.mxu0 %v678
    %1686 = vmatpush1.msra.mxu0 %v677
    %1687 = vmatprep.subr.mxu0 %v685
    %1688 = vmatpush1.msra.mxu0 %v684
    %1689 = vmatprep.subr.mxu0 %v692
    %1690 = vmatpush1.msra.mxu0 %v691
    %1691 = vmatprep.subr.mxu0 %v699
    %1692 = vmatpush1.msra.mxu0 %v698
    %1693 = vmatprep.subr.mxu0 %v706
    %1694 = vmatpush1.msra.mxu0 %v705
    %1695 = vmatprep.subr.mxu0 %v713
    %1696 = vmatpush1.msra.mxu0 %v712
    %1697 = vmatprep.subr.mxu0 %v720
    %1698 = vmatpush1.msra.mxu0 %v719
    %1699 = vmatprep.subr.mxu0 %v727
    %1700 = vmatpush1.msra.mxu0 %v726
    %1701 = vmatprep.subr.mxu0 %v734
    %1702 = vmatpush1.msra.mxu0 %v733
    %1703 = vmatprep.subr.mxu0 %v741
    %1704 = vmatpush1.msra.mxu0 %v740
    %1705 = vmatprep.subr.mxu0 %v748
    %1706 = vmatpush1.msra.mxu0 %v747
    %1707 = vmatprep.subr.mxu0 %v755
    %1708 = vmatpush1.msra.mxu0 %v754
    %1709 = vmatprep.subr.mxu0 %v762
    %1710 = vmatpush1.msra.mxu0 %v761
    %1711 = vmatprep.mubr.f32.mxu0 %v536
    %1712 = vmatmul.mubr.f32.gmra.mrb[0].mxu0 %v535
    %v1713 = vpop.f32.mrb[0].mxu0
    %v1714 = vadd.f32 %v1339, %v1713
    %v1715 = vpop.f32.mrb[0].mxu0
    %v1716 = vadd.f32 %v1343, %v1715
    %1717 = vdwg.mxu0
    %1718 = vmatprep.subr.mxu0 %v769
    %1719 = vmatpush1.msra.mxu0 %v768
    %1720 = vmatprep.subr.mxu0 %v776
    %1721 = vmatpush1.msra.mxu0 %v775
    %1722 = vmatprep.subr.mxu0 %v783
    %1723 = vmatpush1.msra.mxu0 %v782
    %1724 = vmatprep.subr.mxu0 %v790
    %1725 = vmatpush1.msra.mxu0 %v789
    %1726 = vmatprep.subr.mxu0 %v797
    %1727 = vmatpush1.msra.mxu0 %v796
    %1728 = vmatprep.subr.mxu0 %v804
    %1729 = vmatpush1.msra.mxu0 %v803
    %1730 = vmatprep.subr.mxu0 %v811
    %1731 = vmatpush1.msra.mxu0 %v810
    %1732 = vmatprep.subr.mxu0 %v818
    %1733 = vmatpush1.msra.mxu0 %v817
    %1734 = vmatprep.subr.mxu0 %v825
    %1735 = vmatpush1.msra.mxu0 %v824
    %1736 = vmatprep.subr.mxu0 %v832
    %1737 = vmatpush1.msra.mxu0 %v831
    %1738 = vmatprep.subr.mxu0 %v839
    %1739 = vmatpush1.msra.mxu0 %v838
    %1740 = vmatprep.subr.mxu0 %v846
    %1741 = vmatpush1.msra.mxu0 %v845
    %1742 = vmatprep.subr.mxu0 %v853
    %1743 = vmatpush1.msra.mxu0 %v852
    %1744 = vmatprep.subr.mxu0 %v860
    %1745 = vmatpush1.msra.mxu0 %v859
    %1746 = vmatprep.subr.mxu0 %v867
    %1747 = vmatpush1.msra.mxu0 %v866
    %1748 = vmatprep.subr.mxu0 %v874
    %1749 = vmatpush1.msra.mxu0 %v873
    %1750 = vmatprep.subr.mxu0 %v881
    %1751 = vmatpush1.msra.mxu0 %v880
    %1752 = vmatprep.subr.mxu0 %v888
    %1753 = vmatpush1.msra.mxu0 %v887
    %1754 = vmatprep.subr.mxu0 %v895
    %1755 = vmatpush1.msra.mxu0 %v894
    %1756 = vmatprep.subr.mxu0 %v902
    %1757 = vmatpush1.msra.mxu0 %v901
    %1758 = vmatprep.subr.mxu0 %v909
    %1759 = vmatpush1.msra.mxu0 %v908
    %1760 = vmatprep.subr.mxu0 %v916
    %1761 = vmatpush1.msra.mxu0 %v915
    %1762 = vmatprep.subr.mxu0 %v923
    %1763 = vmatpush1.msra.mxu0 %v922
    %1764 = vmatprep.subr.mxu0 %v930
    %1765 = vmatpush1.msra.mxu0 %v929
    %1766 = vmatprep.subr.mxu0 %v937
    %1767 = vmatpush1.msra.mxu0 %v936
    %1768 = vmatprep.subr.mxu0 %v944
    %1769 = vmatpush1.msra.mxu0 %v943
    %1770 = vmatprep.subr.mxu0 %v951
    %1771 = vmatpush1.msra.mxu0 %v950
    %1772 = vmatprep.subr.mxu0 %v958
    %1773 = vmatpush1.msra.mxu0 %v957
    %1774 = vmatprep.subr.mxu0 %v965
    %1775 = vmatpush1.msra.mxu0 %v964
    %1776 = vmatprep.subr.mxu0 %v972
    %1777 = vmatpush1.msra.mxu0 %v971
    %1778 = vmatprep.subr.mxu0 %v979
    %1779 = vmatpush1.msra.mxu0 %v978
    %1780 = vmatprep.subr.mxu0 %v986
    %1781 = vmatpush1.msra.mxu0 %v985
    %1782 = vmatprep.mubr.f32.mxu0 %v538
    %1783 = vmatmul.mubr.f32.gmra.mrb[0].mxu0 %v537
    %v1784 = vpop.f32.mrb[0].mxu0
    %v1785 = vadd.f32 %v1714, %v1784
    %v1786 = vpop.f32.mrb[0].mxu0
    %v1787 = vadd.f32 %v1716, %v1786
    %1788 = vdwg.mxu0
    %1789 = vmatprep.subr.mxu0 %v993
    %1790 = vmatpush1.msra.mxu0 %v992
    %1791 = vmatprep.subr.mxu0 %v1000
    %1792 = vmatpush1.msra.mxu0 %v999
    %1793 = vmatprep.subr.mxu0 %v1007
    %1794 = vmatpush1.msra.mxu0 %v1006
    %1795 = vmatprep.subr.mxu0 %v1014
    %1796 = vmatpush1.msra.mxu0 %v1013
    %1797 = vmatprep.subr.mxu0 %v1021
    %1798 = vmatpush1.msra.mxu0 %v1020
    %1799 = vmatprep.subr.mxu0 %v1028
    %1800 = vmatpush1.msra.mxu0 %v1027
    %1801 = vmatprep.subr.mxu0 %v1035
    %1802 = vmatpush1.msra.mxu0 %v1034
    %1803 = vmatprep.subr.mxu0 %v1042
    %1804 = vmatpush1.msra.mxu0 %v1041
    %1805 = vmatprep.subr.mxu0 %v1049
    %1806 = vmatpush1.msra.mxu0 %v1048
    %1807 = vmatprep.subr.mxu0 %v1056
    %1808 = vmatpush1.msra.mxu0 %v1055
    %1809 = vmatprep.subr.mxu0 %v1063
    %1810 = vmatpush1.msra.mxu0 %v1062
    %1811 = vmatprep.subr.mxu0 %v1070
    %1812 = vmatpush1.msra.mxu0 %v1069
    %1813 = vmatprep.subr.mxu0 %v1077
    %1814 = vmatpush1.msra.mxu0 %v1076
    %1815 = vmatprep.subr.mxu0 %v1084
    %1816 = vmatpush1.msra.mxu0 %v1083
    %1817 = vmatprep.subr.mxu0 %v1091
    %1818 = vmatpush1.msra.mxu0 %v1090
    %1819 = vmatprep.subr.mxu0 %v1098
    %1820 = vmatpush1.msra.mxu0 %v1097
    %1821 = vmatprep.subr.mxu0 %v1105
    %1822 = vmatpush1.msra.mxu0 %v1104
    %1823 = vmatprep.subr.mxu0 %v1112
    %1824 = vmatpush1.msra.mxu0 %v1111
    %1825 = vmatprep.subr.mxu0 %v1119
    %1826 = vmatpush1.msra.mxu0 %v1118
    %1827 = vmatprep.subr.mxu0 %v1126
    %1828 = vmatpush1.msra.mxu0 %v1125
    %1829 = vmatprep.subr.mxu0 %v1133
    %1830 = vmatpush1.msra.mxu0 %v1132
    %1831 = vmatprep.subr.mxu0 %v1140
    %1832 = vmatpush1.msra.mxu0 %v1139
    %1833 = vmatprep.subr.mxu0 %v1147
    %1834 = vmatpush1.msra.mxu0 %v1146
    %1835 = vmatprep.subr.mxu0 %v1154
    %1836 = vmatpush1.msra.mxu0 %v1153
    %1837 = vmatprep.subr.mxu0 %v1161
    %1838 = vmatpush1.msra.mxu0 %v1160
    %1839 = vmatprep.subr.mxu0 %v1168
    %1840 = vmatpush1.msra.mxu0 %v1167
    %1841 = vmatprep.subr.mxu0 %v1175
    %1842 = vmatpush1.msra.mxu0 %v1174
    %1843 = vmatprep.subr.mxu0 %v1182
    %1844 = vmatpush1.msra.mxu0 %v1181
    %1845 = vmatprep.subr.mxu0 %v1189
    %1846 = vmatpush1.msra.mxu0 %v1188
    %1847 = vmatprep.subr.mxu0 %v1196
    %1848 = vmatpush1.msra.mxu0 %v1195
    %1849 = vmatprep.subr.mxu0 %v1203
    %1850 = vmatpush1.msra.mxu0 %v1202
    %1851 = vmatprep.subr.mxu0 %v1210
    %1852 = vmatpush1.msra.mxu0 %v1209
    %1853 = vmatprep.mubr.f32.mxu0 %v540
    %1854 = vmatmul.mubr.f32.gmra.mrb[0].mxu0 %v539
    %v1855 = vpop.f32.mrb[0].mxu0
    %v1856 = vadd.f32 %v1785, %v1855
    %v1857 = vpop.f32.mrb[0].mxu0
    %v1858 = vadd.f32 %v1787, %v1857
    %1859 = vdwg.mxu0
    %1860 = vmatprep.subr.mxu0 %v1217
    %1861 = vmatpush1.msra.mxu0 %v1216
    %1862 = vmatprep.subr.mxu0 %v1224
    %1863 = vmatpush1.msra.mxu0 %v1223
    %1864 = vmatprep.subr.mxu0 %v1231
    %1865 = vmatpush1.msra.mxu0 %v1230
    %1866 = vmatprep.subr.mxu0 %v1238
    %1867 = vmatpush1.msra.mxu0 %v1237
    %1868 = vmatprep.subr.mxu0 %v1245
    %1869 = vmatpush1.msra.mxu0 %v1244
    %1870 = vmatprep.subr.mxu0 %v1252
    %1871 = vmatpush1.msra.mxu0 %v1251
    %1872 = vmatprep.subr.mxu0 %v1259
    %1873 = vmatpush1.msra.mxu0 %v1258
    %1874 = vmatprep.subr.mxu0 %v1266
    %1875 = vmatpush1.msra.mxu0 %v1265
    %1876 = vmatprep.subr.mxu0 %v1273
    %1877 = vmatpush1.msra.mxu0 %v1272
    %1878 = vmatprep.subr.mxu0 %v1280
    %1879 = vmatpush1.msra.mxu0 %v1279
    %1880 = vmatprep.subr.mxu0 %v1287
    %1881 = vmatpush1.msra.mxu0 %v1286
    %1882 = vmatprep.subr.mxu0 %v1294
    %1883 = vmatpush1.msra.mxu0 %v1293
    %1884 = vmatprep.subr.mxu0 %v1301
    %1885 = vmatpush1.msra.mxu0 %v1300
    %1886 = vmatprep.subr.mxu0 %v1308
    %1887 = vmatpush1.msra.mxu0 %v1307
    %1888 = vmatprep.subr.mxu0 %v1315
    %1889 = vmatpush1.msra.mxu0 %v1314
    %1890 = vmatprep.subr.mxu0 %v1322
    %1891 = vmatpush1.msra.mxu0 %v1321
    %1892 = vmatprep.subr.mxu0 0.0
    %1893 = vmatpush1.msra.mxu0 0.0
    %1894 = vmatprep.subr.mxu0 0.0
    %1895 = vmatpush1.msra.mxu0 0.0
    %1896 = vmatprep.subr.mxu0 0.0
    %1897 = vmatpush1.msra.mxu0 0.0
    %1898 = vmatprep.subr.mxu0 0.0
    %1899 = vmatpush1.msra.mxu0 0.0
    %1900 = vmatprep.subr.mxu0 0.0
    %1901 = vmatpush1.msra.mxu0 0.0
    %1902 = vmatprep.subr.mxu0 0.0
    %1903 = vmatpush1.msra.mxu0 0.0
    %1904 = vmatprep.subr.mxu0 0.0
    %1905 = vmatpush1.msra.mxu0 0.0
    %1906 = vmatprep.subr.mxu0 0.0
    %1907 = vmatpush1.msra.mxu0 0.0
    %1908 = vmatprep.subr.mxu0 0.0
    %1909 = vmatpush1.msra.mxu0 0.0
    %1910 = vmatprep.subr.mxu0 0.0
    %1911 = vmatpush1.msra.mxu0 0.0
    %1912 = vmatprep.subr.mxu0 0.0
    %1913 = vmatpush1.msra.mxu0 0.0
    %1914 = vmatprep.subr.mxu0 0.0
    %1915 = vmatpush1.msra.mxu0 0.0
    %1916 = vmatprep.subr.mxu0 0.0
    %1917 = vmatpush1.msra.mxu0 0.0
    %1918 = vmatprep.subr.mxu0 0.0
    %1919 = vmatpush1.msra.mxu0 0.0
    %1920 = vmatprep.subr.mxu0 0.0
    %1921 = vmatpush1.msra.mxu0 0.0
    %1922 = vmatprep.subr.mxu0 0.0
    %1923 = vmatpush1.msra.mxu0 0.0
    %1924 = vmatprep.mubr.f32.mxu0 0.0
    %1925 = vmatmul.mubr.f32.gmra.mrb[0].mxu0 %v541
    %v1926 = vpop.f32.mrb[0].mxu0
    %v1927 = vadd.f32 %v1856, %v1926
    %v1928 = vpop.f32.mrb[0].mxu0
    %v1929 = vadd.f32 %v1858, %v1928
    %1930 = vdwg.mxu0
    %1931 = vmatprep.subr.mxu0 %v547
    %1932 = vmatpush1.msra.mxu0 %v546
    %1933 = vmatprep.subr.mxu0 %v554
    %1934 = vmatpush1.msra.mxu0 %v553
    %1935 = vmatprep.subr.mxu0 %v561
    %1936 = vmatpush1.msra.mxu0 %v560
    %1937 = vmatprep.subr.mxu0 %v568
    %1938 = vmatpush1.msra.mxu0 %v567
    %1939 = vmatprep.subr.mxu0 %v575
    %1940 = vmatpush1.msra.mxu0 %v574
    %1941 = vmatprep.subr.mxu0 %v582
    %1942 = vmatpush1.msra.mxu0 %v581
    %1943 = vmatprep.subr.mxu0 %v589
    %1944 = vmatpush1.msra.mxu0 %v588
    %1945 = vmatprep.subr.mxu0 %v596
    %1946 = vmatpush1.msra.mxu0 %v595
    %1947 = vmatprep.subr.mxu0 %v603
    %1948 = vmatpush1.msra.mxu0 %v602
    %1949 = vmatprep.subr.mxu0 %v610
    %1950 = vmatpush1.msra.mxu0 %v609
    %1951 = vmatprep.subr.mxu0 %v617
    %1952 = vmatpush1.msra.mxu0 %v616
    %1953 = vmatprep.subr.mxu0 %v624
    %1954 = vmatpush1.msra.mxu0 %v623
    %1955 = vmatprep.subr.mxu0 %v631
    %1956 = vmatpush1.msra.mxu0 %v630
    %1957 = vmatprep.subr.mxu0 %v638
    %1958 = vmatpush1.msra.mxu0 %v637
    %1959 = vmatprep.subr.mxu0 %v645
    %1960 = vmatpush1.msra.mxu0 %v644
    %1961 = vmatprep.subr.mxu0 %v652
    %1962 = vmatpush1.msra.mxu0 %v651
    %1963 = vmatprep.subr.mxu0 %v659
    %1964 = vmatpush1.msra.mxu0 %v658
    %1965 = vmatprep.subr.mxu0 %v666
    %1966 = vmatpush1.msra.mxu0 %v665
    %1967 = vmatprep.subr.mxu0 %v673
    %1968 = vmatpush1.msra.mxu0 %v672
    %1969 = vmatprep.subr.mxu0 %v680
    %1970 = vmatpush1.msra.mxu0 %v679
    %1971 = vmatprep.subr.mxu0 %v687
    %1972 = vmatpush1.msra.mxu0 %v686
    %1973 = vmatprep.subr.mxu0 %v694
    %1974 = vmatpush1.msra.mxu0 %v693
    %1975 = vmatprep.subr.mxu0 %v701
    %1976 = vmatpush1.msra.mxu0 %v700
    %1977 = vmatprep.subr.mxu0 %v708
    %1978 = vmatpush1.msra.mxu0 %v707
    %1979 = vmatprep.subr.mxu0 %v715
    %1980 = vmatpush1.msra.mxu0 %v714
    %1981 = vmatprep.subr.mxu0 %v722
    %1982 = vmatpush1.msra.mxu0 %v721
    %1983 = vmatprep.subr.mxu0 %v729
    %1984 = vmatpush1.msra.mxu0 %v728
    %1985 = vmatprep.subr.mxu0 %v736
    %1986 = vmatpush1.msra.mxu0 %v735
    %1987 = vmatprep.subr.mxu0 %v743
    %1988 = vmatpush1.msra.mxu0 %v742
    %1989 = vmatprep.subr.mxu0 %v750
    %1990 = vmatpush1.msra.mxu0 %v749
    %1991 = vmatprep.subr.mxu0 %v757
    %1992 = vmatpush1.msra.mxu0 %v756
    %1993 = vmatprep.subr.mxu0 %v764
    %1994 = vmatpush1.msra.mxu0 %v763
    %1995 = vmatprep.mubr.f32.mxu0 %v536
    %1996 = vmatmul.mubr.f32.gmra.mrb[0].mxu0 %v535
    %v1997 = vpop.f32.mrb[0].mxu0
    %v1998 = vadd.f32 %v1347, %v1997
    %v1999 = vpop.f32.mrb[0].mxu0
    %v2000 = vadd.f32 %v1351, %v1999
    %2001 = vdwg.mxu0
    %2002 = vmatprep.subr.mxu0 %v771
    %2003 = vmatpush1.msra.mxu0 %v770
    %2004 = vmatprep.subr.mxu0 %v778
    %2005 = vmatpush1.msra.mxu0 %v777
    %2006 = vmatprep.subr.mxu0 %v785
    %2007 = vmatpush1.msra.mxu0 %v784
    %2008 = vmatprep.subr.mxu0 %v792
    %2009 = vmatpush1.msra.mxu0 %v791
    %2010 = vmatprep.subr.mxu0 %v799
    %2011 = vmatpush1.msra.mxu0 %v798
    %2012 = vmatprep.subr.mxu0 %v806
    %2013 = vmatpush1.msra.mxu0 %v805
    %2014 = vmatprep.subr.mxu0 %v813
    %2015 = vmatpush1.msra.mxu0 %v812
    %2016 = vmatprep.subr.mxu0 %v820
    %2017 = vmatpush1.msra.mxu0 %v819
    %2018 = vmatprep.subr.mxu0 %v827
    %2019 = vmatpush1.msra.mxu0 %v826
    %2020 = vmatprep.subr.mxu0 %v834
    %2021 = vmatpush1.msra.mxu0 %v833
    %2022 = vmatprep.subr.mxu0 %v841
    %2023 = vmatpush1.msra.mxu0 %v840
    %2024 = vmatprep.subr.mxu0 %v848
    %2025 = vmatpush1.msra.mxu0 %v847
    %2026 = vmatprep.subr.mxu0 %v855
    %2027 = vmatpush1.msra.mxu0 %v854
    %2028 = vmatprep.subr.mxu0 %v862
    %2029 = vmatpush1.msra.mxu0 %v861
    %2030 = vmatprep.subr.mxu0 %v869
    %2031 = vmatpush1.msra.mxu0 %v868
    %2032 = vmatprep.subr.mxu0 %v876
    %2033 = vmatpush1.msra.mxu0 %v875
    %2034 = vmatprep.subr.mxu0 %v883
    %2035 = vmatpush1.msra.mxu0 %v882
    %2036 = vmatprep.subr.mxu0 %v890
    %2037 = vmatpush1.msra.mxu0 %v889
    %2038 = vmatprep.subr.mxu0 %v897
    %2039 = vmatpush1.msra.mxu0 %v896
    %2040 = vmatprep.subr.mxu0 %v904
    %2041 = vmatpush1.msra.mxu0 %v903
    %2042 = vmatprep.subr.mxu0 %v911
    %2043 = vmatpush1.msra.mxu0 %v910
    %2044 = vmatprep.subr.mxu0 %v918
    %2045 = vmatpush1.msra.mxu0 %v917
    %2046 = vmatprep.subr.mxu0 %v925
    %2047 = vmatpush1.msra.mxu0 %v924
    %2048 = vmatprep.subr.mxu0 %v932
    %2049 = vmatpush1.msra.mxu0 %v931
    %2050 = vmatprep.subr.mxu0 %v939
    %2051 = vmatpush1.msra.mxu0 %v938
    %2052 = vmatprep.subr.mxu0 %v946
    %2053 = vmatpush1.msra.mxu0 %v945
    %2054 = vmatprep.subr.mxu0 %v953
    %2055 = vmatpush1.msra.mxu0 %v952
    %2056 = vmatprep.subr.mxu0 %v960
    %2057 = vmatpush1.msra.mxu0 %v959
    %2058 = vmatprep.subr.mxu0 %v967
    %2059 = vmatpush1.msra.mxu0 %v966
    %2060 = vmatprep.subr.mxu0 %v974
    %2061 = vmatpush1.msra.mxu0 %v973
    %2062 = vmatprep.subr.mxu0 %v981
    %2063 = vmatpush1.msra.mxu0 %v980
    %2064 = vmatprep.subr.mxu0 %v988
    %2065 = vmatpush1.msra.mxu0 %v987
    %2066 = vmatprep.mubr.f32.mxu0 %v538
    %2067 = vmatmul.mubr.f32.gmra.mrb[0].mxu0 %v537
    %v2068 = vpop.f32.mrb[0].mxu0
    %v2069 = vadd.f32 %v1998, %v2068
    %v2070 = vpop.f32.mrb[0].mxu0
    %v2071 = vadd.f32 %v2000, %v2070
    %2072 = vdwg.mxu0
    %2073 = vmatprep.subr.mxu0 %v995
    %2074 = vmatpush1.msra.mxu0 %v994
    %2075 = vmatprep.subr.mxu0 %v1002
    %2076 = vmatpush1.msra.mxu0 %v1001
    %2077 = vmatprep.subr.mxu0 %v1009
    %2078 = vmatpush1.msra.mxu0 %v1008
    %2079 = vmatprep.subr.mxu0 %v1016
    %2080 = vmatpush1.msra.mxu0 %v1015
    %2081 = vmatprep.subr.mxu0 %v1023
    %2082 = vmatpush1.msra.mxu0 %v1022
    %2083 = vmatprep.subr.mxu0 %v1030
    %2084 = vmatpush1.msra.mxu0 %v1029
    %2085 = vmatprep.subr.mxu0 %v1037
    %2086 = vmatpush1.msra.mxu0 %v1036
    %2087 = vmatprep.subr.mxu0 %v1044
    %2088 = vmatpush1.msra.mxu0 %v1043
    %2089 = vmatprep.subr.mxu0 %v1051
    %2090 = vmatpush1.msra.mxu0 %v1050
    %2091 = vmatprep.subr.mxu0 %v1058
    %2092 = vmatpush1.msra.mxu0 %v1057
    %2093 = vmatprep.subr.mxu0 %v1065
    %2094 = vmatpush1.msra.mxu0 %v1064
    %2095 = vmatprep.subr.mxu0 %v1072
    %2096 = vmatpush1.msra.mxu0 %v1071
    %2097 = vmatprep.subr.mxu0 %v1079
    %2098 = vmatpush1.msra.mxu0 %v1078
    %2099 = vmatprep.subr.mxu0 %v1086
    %2100 = vmatpush1.msra.mxu0 %v1085
    %2101 = vmatprep.subr.mxu0 %v1093
    %2102 = vmatpush1.msra.mxu0 %v1092
    %2103 = vmatprep.subr.mxu0 %v1100
    %2104 = vmatpush1.msra.mxu0 %v1099
    %2105 = vmatprep.subr.mxu0 %v1107
    %2106 = vmatpush1.msra.mxu0 %v1106
    %2107 = vmatprep.subr.mxu0 %v1114
    %2108 = vmatpush1.msra.mxu0 %v1113
    %2109 = vmatprep.subr.mxu0 %v1121
    %2110 = vmatpush1.msra.mxu0 %v1120
    %2111 = vmatprep.subr.mxu0 %v1128
    %2112 = vmatpush1.msra.mxu0 %v1127
    %2113 = vmatprep.subr.mxu0 %v1135
    %2114 = vmatpush1.msra.mxu0 %v1134
    %2115 = vmatprep.subr.mxu0 %v1142
    %2116 = vmatpush1.msra.mxu0 %v1141
    %2117 = vmatprep.subr.mxu0 %v1149
    %2118 = vmatpush1.msra.mxu0 %v1148
    %2119 = vmatprep.subr.mxu0 %v1156
    %2120 = vmatpush1.msra.mxu0 %v1155
    %2121 = vmatprep.subr.mxu0 %v1163
    %2122 = vmatpush1.msra.mxu0 %v1162
    %2123 = vmatprep.subr.mxu0 %v1170
    %2124 = vmatpush1.msra.mxu0 %v1169
    %2125 = vmatprep.subr.mxu0 %v1177
    %2126 = vmatpush1.msra.mxu0 %v1176
    %2127 = vmatprep.subr.mxu0 %v1184
    %2128 = vmatpush1.msra.mxu0 %v1183
    %2129 = vmatprep.subr.mxu0 %v1191
    %2130 = vmatpush1.msra.mxu0 %v1190
    %2131 = vmatprep.subr.mxu0 %v1198
    %2132 = vmatpush1.msra.mxu0 %v1197
    %2133 = vmatprep.subr.mxu0 %v1205
    %2134 = vmatpush1.msra.mxu0 %v1204
    %2135 = vmatprep.subr.mxu0 %v1212
    %2136 = vmatpush1.msra.mxu0 %v1211
    %2137 = vmatprep.mubr.f32.mxu0 %v540
    %2138 = vmatmul.mubr.f32.gmra.mrb[0].mxu0 %v539
    %v2139 = vpop.f32.mrb[0].mxu0
    %v2140 = vadd.f32 %v2069, %v2139
    %v2141 = vpop.f32.mrb[0].mxu0
    %v2142 = vadd.f32 %v2071, %v2141
    %2143 = vdwg.mxu0
    %2144 = vmatprep.subr.mxu0 %v1219
    %2145 = vmatpush1.msra.mxu0 %v1218
    %2146 = vmatprep.subr.mxu0 %v1226
    %2147 = vmatpush1.msra.mxu0 %v1225
    %2148 = vmatprep.subr.mxu0 %v1233
    %2149 = vmatpush1.msra.mxu0 %v1232
    %2150 = vmatprep.subr.mxu0 %v1240
    %2151 = vmatpush1.msra.mxu0 %v1239
    %2152 = vmatprep.subr.mxu0 %v1247
    %2153 = vmatpush1.msra.mxu0 %v1246
    %2154 = vmatprep.subr.mxu0 %v1254
    %2155 = vmatpush1.msra.mxu0 %v1253
    %2156 = vmatprep.subr.mxu0 %v1261
    %2157 = vmatpush1.msra.mxu0 %v1260
    %2158 = vmatprep.subr.mxu0 %v1268
    %2159 = vmatpush1.msra.mxu0 %v1267
    %2160 = vmatprep.subr.mxu0 %v1275
    %2161 = vmatpush1.msra.mxu0 %v1274
    %2162 = vmatprep.subr.mxu0 %v1282
    %2163 = vmatpush1.msra.mxu0 %v1281
    %2164 = vmatprep.subr.mxu0 %v1289
    %2165 = vmatpush1.msra.mxu0 %v1288
    %2166 = vmatprep.subr.mxu0 %v1296
    %2167 = vmatpush1.msra.mxu0 %v1295
    %2168 = vmatprep.subr.mxu0 %v1303
    %2169 = vmatpush1.msra.mxu0 %v1302
    %2170 = vmatprep.subr.mxu0 %v1310
    %2171 = vmatpush1.msra.mxu0 %v1309
    %2172 = vmatprep.subr.mxu0 %v1317
    %2173 = vmatpush1.msra.mxu0 %v1316
    %2174 = vmatprep.subr.mxu0 %v1324
    %2175 = vmatpush1.msra.mxu0 %v1323
    %2176 = vmatprep.subr.mxu0 0.0
    %2177 = vmatpush1.msra.mxu0 0.0
    %2178 = vmatprep.subr.mxu0 0.0
    %2179 = vmatpush1.msra.mxu0 0.0
    %2180 = vmatprep.subr.mxu0 0.0
    %2181 = vmatpush1.msra.mxu0 0.0
    %2182 = vmatprep.subr.mxu0 0.0
    %2183 = vmatpush1.msra.mxu0 0.0
    %2184 = vmatprep.subr.mxu0 0.0
    %2185 = vmatpush1.msra.mxu0 0.0
    %2186 = vmatprep.subr.mxu0 0.0
    %2187 = vmatpush1.msra.mxu0 0.0
    %2188 = vmatprep.subr.mxu0 0.0
    %2189 = vmatpush1.msra.mxu0 0.0
    %2190 = vmatprep.subr.mxu0 0.0
    %2191 = vmatpush1.msra.mxu0 0.0
    %2192 = vmatprep.subr.mxu0 0.0
    %2193 = vmatpush1.msra.mxu0 0.0
    %2194 = vmatprep.subr.mxu0 0.0
    %2195 = vmatpush1.msra.mxu0 0.0
    %2196 = vmatprep.subr.mxu0 0.0
    %2197 = vmatpush1.msra.mxu0 0.0
    %2198 = vmatprep.subr.mxu0 0.0
    %2199 = vmatpush1.msra.mxu0 0.0
    %2200 = vmatprep.subr.mxu0 0.0
    %2201 = vmatpush1.msra.mxu0 0.0
    %2202 = vmatprep.subr.mxu0 0.0
    %2203 = vmatpush1.msra.mxu0 0.0
    %2204 = vmatprep.subr.mxu0 0.0
    %2205 = vmatpush1.msra.mxu0 0.0
    %2206 = vmatprep.subr.mxu0 0.0
    %2207 = vmatpush1.msra.mxu0 0.0
    %2208 = vmatprep.mubr.f32.mxu0 0.0
    %2209 = vmatmul.mubr.f32.gmra.mrb[0].mxu0 %v541
    %v2210 = vpop.f32.mrb[0].mxu0
    %v2211 = vadd.f32 %v2140, %v2210
    %v2212 = vpop.f32.mrb[0].mxu0
    %v2213 = vadd.f32 %v2142, %v2212
    %2214 = vdwg.mxu0
    %2215 = vmatprep.subr.mxu0 0.0
    %2216 = vmatpush1.msra.mxu0 %v548
    %2217 = vmatprep.subr.mxu0 0.0
    %2218 = vmatpush1.msra.mxu0 %v555
    %2219 = vmatprep.subr.mxu0 0.0
    %2220 = vmatpush1.msra.mxu0 %v562
    %2221 = vmatprep.subr.mxu0 0.0
    %2222 = vmatpush1.msra.mxu0 %v569
    %2223 = vmatprep.subr.mxu0 0.0
    %2224 = vmatpush1.msra.mxu0 %v576
    %2225 = vmatprep.subr.mxu0 0.0
    %2226 = vmatpush1.msra.mxu0 %v583
    %2227 = vmatprep.subr.mxu0 0.0
    %2228 = vmatpush1.msra.mxu0 %v590
    %2229 = vmatprep.subr.mxu0 0.0
    %2230 = vmatpush1.msra.mxu0 %v597
    %2231 = vmatprep.subr.mxu0 0.0
    %2232 = vmatpush1.msra.mxu0 %v604
    %2233 = vmatprep.subr.mxu0 0.0
    %2234 = vmatpush1.msra.mxu0 %v611
    %2235 = vmatprep.subr.mxu0 0.0
    %2236 = vmatpush1.msra.mxu0 %v618
    %2237 = vmatprep.subr.mxu0 0.0
    %2238 = vmatpush1.msra.mxu0 %v625
    %2239 = vmatprep.subr.mxu0 0.0
    %2240 = vmatpush1.msra.mxu0 %v632
    %2241 = vmatprep.subr.mxu0 0.0
    %2242 = vmatpush1.msra.mxu0 %v639
    %2243 = vmatprep.subr.mxu0 0.0
    %2244 = vmatpush1.msra.mxu0 %v646
    %2245 = vmatprep.subr.mxu0 0.0
    %2246 = vmatpush1.msra.mxu0 %v653
    %2247 = vmatprep.subr.mxu0 0.0
    %2248 = vmatpush1.msra.mxu0 %v660
    %2249 = vmatprep.subr.mxu0 0.0
    %2250 = vmatpush1.msra.mxu0 %v667
    %2251 = vmatprep.subr.mxu0 0.0
    %2252 = vmatpush1.msra.mxu0 %v674
    %2253 = vmatprep.subr.mxu0 0.0
    %2254 = vmatpush1.msra.mxu0 %v681
    %2255 = vmatprep.subr.mxu0 0.0
    %2256 = vmatpush1.msra.mxu0 %v688
    %2257 = vmatprep.subr.mxu0 0.0
    %2258 = vmatpush1.msra.mxu0 %v695
    %2259 = vmatprep.subr.mxu0 0.0
    %2260 = vmatpush1.msra.mxu0 %v702
    %2261 = vmatprep.subr.mxu0 0.0
    %2262 = vmatpush1.msra.mxu0 %v709
    %2263 = vmatprep.subr.mxu0 0.0
    %2264 = vmatpush1.msra.mxu0 %v716
    %2265 = vmatprep.subr.mxu0 0.0
    %2266 = vmatpush1.msra.mxu0 %v723
    %2267 = vmatprep.subr.mxu0 0.0
    %2268 = vmatpush1.msra.mxu0 %v730
    %2269 = vmatprep.subr.mxu0 0.0
    %2270 = vmatpush1.msra.mxu0 %v737
    %2271 = vmatprep.subr.mxu0 0.0
    %2272 = vmatpush1.msra.mxu0 %v744
    %2273 = vmatprep.subr.mxu0 0.0
    %2274 = vmatpush1.msra.mxu0 %v751
    %2275 = vmatprep.subr.mxu0 0.0
    %2276 = vmatpush1.msra.mxu0 %v758
    %2277 = vmatprep.subr.mxu0 0.0
    %2278 = vmatpush1.msra.mxu0 %v765
    %2279 = vmatprep.mubr.f32.mxu0 %v536
    %2280 = vmatmul.mubr.f32.gmra.mrb[0].mxu0 %v535
    %v2281 = vpop.f32.mrb[0].mxu0
    %v2282 = vadd.f32 %v1355, %v2281
    %v2283 = vpop.f32.mrb[0].mxu0
    %2284 = vdwg.mxu0
    %2285 = vmatprep.subr.mxu0 0.0
    %2286 = vmatpush1.msra.mxu0 %v772
    %2287 = vmatprep.subr.mxu0 0.0
    %2288 = vmatpush1.msra.mxu0 %v779
    %2289 = vmatprep.subr.mxu0 0.0
    %2290 = vmatpush1.msra.mxu0 %v786
    %2291 = vmatprep.subr.mxu0 0.0
    %2292 = vmatpush1.msra.mxu0 %v793
    %2293 = vmatprep.subr.mxu0 0.0
    %2294 = vmatpush1.msra.mxu0 %v800
    %2295 = vmatprep.subr.mxu0 0.0
    %2296 = vmatpush1.msra.mxu0 %v807
    %2297 = vmatprep.subr.mxu0 0.0
    %2298 = vmatpush1.msra.mxu0 %v814
    %2299 = vmatprep.subr.mxu0 0.0
    %2300 = vmatpush1.msra.mxu0 %v821
    %2301 = vmatprep.subr.mxu0 0.0
    %2302 = vmatpush1.msra.mxu0 %v828
    %2303 = vmatprep.subr.mxu0 0.0
    %2304 = vmatpush1.msra.mxu0 %v835
    %2305 = vmatprep.subr.mxu0 0.0
    %2306 = vmatpush1.msra.mxu0 %v842
    %2307 = vmatprep.subr.mxu0 0.0
    %2308 = vmatpush1.msra.mxu0 %v849
    %2309 = vmatprep.subr.mxu0 0.0
    %2310 = vmatpush1.msra.mxu0 %v856
    %2311 = vmatprep.subr.mxu0 0.0
    %2312 = vmatpush1.msra.mxu0 %v863
    %2313 = vmatprep.subr.mxu0 0.0
    %2314 = vmatpush1.msra.mxu0 %v870
    %2315 = vmatprep.subr.mxu0 0.0
    %2316 = vmatpush1.msra.mxu0 %v877
    %2317 = vmatprep.subr.mxu0 0.0
    %2318 = vmatpush1.msra.mxu0 %v884
    %2319 = vmatprep.subr.mxu0 0.0
    %2320 = vmatpush1.msra.mxu0 %v891
    %2321 = vmatprep.subr.mxu0 0.0
    %2322 = vmatpush1.msra.mxu0 %v898
    %2323 = vmatprep.subr.mxu0 0.0
    %2324 = vmatpush1.msra.mxu0 %v905
    %2325 = vmatprep.subr.mxu0 0.0
    %2326 = vmatpush1.msra.mxu0 %v912
    %2327 = vmatprep.subr.mxu0 0.0
    %2328 = vmatpush1.msra.mxu0 %v919
    %2329 = vmatprep.subr.mxu0 0.0
    %2330 = vmatpush1.msra.mxu0 %v926
    %2331 = vmatprep.subr.mxu0 0.0
    %2332 = vmatpush1.msra.mxu0 %v933
    %2333 = vmatprep.subr.mxu0 0.0
    %2334 = vmatpush1.msra.mxu0 %v940
    %2335 = vmatprep.subr.mxu0 0.0
    %2336 = vmatpush1.msra.mxu0 %v947
    %2337 = vmatprep.subr.mxu0 0.0
    %2338 = vmatpush1.msra.mxu0 %v954
    %2339 = vmatprep.subr.mxu0 0.0
    %2340 = vmatpush1.msra.mxu0 %v961
    %2341 = vmatprep.subr.mxu0 0.0
    %2342 = vmatpush1.msra.mxu0 %v968
    %2343 = vmatprep.subr.mxu0 0.0
    %2344 = vmatpush1.msra.mxu0 %v975
    %2345 = vmatprep.subr.mxu0 0.0
    %2346 = vmatpush1.msra.mxu0 %v982
    %2347 = vmatprep.subr.mxu0 0.0
    %2348 = vmatpush1.msra.mxu0 %v989
    %2349 = vmatprep.mubr.f32.mxu0 %v538
    %2350 = vmatmul.mubr.f32.gmra.mrb[0].mxu0 %v537
    %v2351 = vpop.f32.mrb[0].mxu0
    %v2352 = vadd.f32 %v2282, %v2351
    %v2353 = vpop.f32.mrb[0].mxu0
    %2354 = vdwg.mxu0
    %2355 = vmatprep.subr.mxu0 0.0
    %2356 = vmatpush1.msra.mxu0 %v996
    %2357 = vmatprep.subr.mxu0 0.0
    %2358 = vmatpush1.msra.mxu0 %v1003
    %2359 = vmatprep.subr.mxu0 0.0
    %2360 = vmatpush1.msra.mxu0 %v1010
    %2361 = vmatprep.subr.mxu0 0.0
    %2362 = vmatpush1.msra.mxu0 %v1017
    %2363 = vmatprep.subr.mxu0 0.0
    %2364 = vmatpush1.msra.mxu0 %v1024
    %2365 = vmatprep.subr.mxu0 0.0
    %2366 = vmatpush1.msra.mxu0 %v1031
    %2367 = vmatprep.subr.mxu0 0.0
    %2368 = vmatpush1.msra.mxu0 %v1038
    %2369 = vmatprep.subr.mxu0 0.0
    %2370 = vmatpush1.msra.mxu0 %v1045
    %2371 = vmatprep.subr.mxu0 0.0
    %2372 = vmatpush1.msra.mxu0 %v1052
    %2373 = vmatprep.subr.mxu0 0.0
    %2374 = vmatpush1.msra.mxu0 %v1059
    %2375 = vmatprep.subr.mxu0 0.0
    %2376 = vmatpush1.msra.mxu0 %v1066
    %2377 = vmatprep.subr.mxu0 0.0
    %2378 = vmatpush1.msra.mxu0 %v1073
    %2379 = vmatprep.subr.mxu0 0.0
    %2380 = vmatpush1.msra.mxu0 %v1080
    %2381 = vmatprep.subr.mxu0 0.0
    %2382 = vmatpush1.msra.mxu0 %v1087
    %2383 = vmatprep.subr.mxu0 0.0
    %2384 = vmatpush1.msra.mxu0 %v1094
    %2385 = vmatprep.subr.mxu0 0.0
    %2386 = vmatpush1.msra.mxu0 %v1101
    %2387 = vmatprep.subr.mxu0 0.0
    %2388 = vmatpush1.msra.mxu0 %v1108
    %2389 = vmatprep.subr.mxu0 0.0
    %2390 = vmatpush1.msra.mxu0 %v1115
    %2391 = vmatprep.subr.mxu0 0.0
    %2392 = vmatpush1.msra.mxu0 %v1122
    %2393 = vmatprep.subr.mxu0 0.0
    %2394 = vmatpush1.msra.mxu0 %v1129
    %2395 = vmatprep.subr.mxu0 0.0
    %2396 = vmatpush1.msra.mxu0 %v1136
    %2397 = vmatprep.subr.mxu0 0.0
    %2398 = vmatpush1.msra.mxu0 %v1143
    %2399 = vmatprep.subr.mxu0 0.0
    %2400 = vmatpush1.msra.mxu0 %v1150
    %2401 = vmatprep.subr.mxu0 0.0
    %2402 = vmatpush1.msra.mxu0 %v1157
    %2403 = vmatprep.subr.mxu0 0.0
    %2404 = vmatpush1.msra.mxu0 %v1164
    %2405 = vmatprep.subr.mxu0 0.0
    %2406 = vmatpush1.msra.mxu0 %v1171
    %2407 = vmatprep.subr.mxu0 0.0
    %2408 = vmatpush1.msra.mxu0 %v1178
    %2409 = vmatprep.subr.mxu0 0.0
    %2410 = vmatpush1.msra.mxu0 %v1185
    %2411 = vmatprep.subr.mxu0 0.0
    %2412 = vmatpush1.msra.mxu0 %v1192
    %2413 = vmatprep.subr.mxu0 0.0
    %2414 = vmatpush1.msra.mxu0 %v1199
    %2415 = vmatprep.subr.mxu0 0.0
    %2416 = vmatpush1.msra.mxu0 %v1206
    %2417 = vmatprep.subr.mxu0 0.0
    %2418 = vmatpush1.msra.mxu0 %v1213
    %2419 = vmatprep.mubr.f32.mxu0 %v540
    %2420 = vmatmul.mubr.f32.gmra.mrb[0].mxu0 %v539
    %v2421 = vpop.f32.mrb[0].mxu0
    %v2422 = vadd.f32 %v2352, %v2421
    %v2423 = vpop.f32.mrb[0].mxu0
    %2424 = vdwg.mxu0
    %2425 = vmatprep.subr.mxu0 0.0
    %2426 = vmatpush1.msra.mxu0 %v1220
    %2427 = vmatprep.subr.mxu0 0.0
    %2428 = vmatpush1.msra.mxu0 %v1227
    %2429 = vmatprep.subr.mxu0 0.0
    %2430 = vmatpush1.msra.mxu0 %v1234
    %2431 = vmatprep.subr.mxu0 0.0
    %2432 = vmatpush1.msra.mxu0 %v1241
    %2433 = vmatprep.subr.mxu0 0.0
    %2434 = vmatpush1.msra.mxu0 %v1248
    %2435 = vmatprep.subr.mxu0 0.0
    %2436 = vmatpush1.msra.mxu0 %v1255
    %2437 = vmatprep.subr.mxu0 0.0
    %2438 = vmatpush1.msra.mxu0 %v1262
    %2439 = vmatprep.subr.mxu0 0.0
    %2440 = vmatpush1.msra.mxu0 %v1269
    %2441 = vmatprep.subr.mxu0 0.0
    %2442 = vmatpush1.msra.mxu0 %v1276
    %2443 = vmatprep.subr.mxu0 0.0
    %2444 = vmatpush1.msra.mxu0 %v1283
    %2445 = vmatprep.subr.mxu0 0.0
    %2446 = vmatpush1.msra.mxu0 %v1290
    %2447 = vmatprep.subr.mxu0 0.0
    %2448 = vmatpush1.msra.mxu0 %v1297
    %2449 = vmatprep.subr.mxu0 0.0
    %2450 = vmatpush1.msra.mxu0 %v1304
    %2451 = vmatprep.subr.mxu0 0.0
    %2452 = vmatpush1.msra.mxu0 %v1311
    %2453 = vmatprep.subr.mxu0 0.0
    %2454 = vmatpush1.msra.mxu0 %v1318
    %2455 = vmatprep.subr.mxu0 0.0
    %2456 = vmatpush1.msra.mxu0 %v1325
    %2457 = vmatprep.subr.mxu0 0.0
    %2458 = vmatpush1.msra.mxu0 0.0
    %2459 = vmatprep.subr.mxu0 0.0
    %2460 = vmatpush1.msra.mxu0 0.0
    %2461 = vmatprep.subr.mxu0 0.0
    %2462 = vmatpush1.msra.mxu0 0.0
    %2463 = vmatprep.subr.mxu0 0.0
    %2464 = vmatpush1.msra.mxu0 0.0
    %2465 = vmatprep.subr.mxu0 0.0
    %2466 = vmatpush1.msra.mxu0 0.0
    %2467 = vmatprep.subr.mxu0 0.0
    %2468 = vmatpush1.msra.mxu0 0.0
    %2469 = vmatprep.subr.mxu0 0.0
    %2470 = vmatpush1.msra.mxu0 0.0
    %2471 = vmatprep.subr.mxu0 0.0
    %2472 = vmatpush1.msra.mxu0 0.0
    %2473 = vmatprep.subr.mxu0 0.0
    %2474 = vmatpush1.msra.mxu0 0.0
    %2475 = vmatprep.subr.mxu0 0.0
    %2476 = vmatpush1.msra.mxu0 0.0
    %2477 = vmatprep.subr.mxu0 0.0
    %2478 = vmatpush1.msra.mxu0 0.0
    %2479 = vmatprep.subr.mxu0 0.0
    %2480 = vmatpush1.msra.mxu0 0.0
    %2481 = vmatprep.subr.mxu0 0.0
    %2482 = vmatpush1.msra.mxu0 0.0
    %2483 = vmatprep.subr.mxu0 0.0
    %2484 = vmatpush1.msra.mxu0 0.0
    %2485 = vmatprep.subr.mxu0 0.0
    %2486 = vmatpush1.msra.mxu0 0.0
    %2487 = vmatprep.subr.mxu0 0.0
    %2488 = vmatpush1.msra.mxu0 0.0
    %2489 = vmatprep.mubr.f32.mxu0 0.0
    %2490 = vmatmul.mubr.f32.gmra.mrb[0].mxu0 %v541
    %v2491 = vpop.f32.mrb[0].mxu0
    %v2492 = vadd.f32 %v2422, %v2491
    %v2493 = vpop.f32.mrb[0].mxu0
    %2494 = vdwg.mxu0
    %v2495 = vmax.f32 %v1643, 0.0
    %v2496 = vmax.f32 %v1645, 0.0
    %v2497 = vmax.f32 %v1927, 0.0
    %v2498 = vmax.f32 %v1929, 0.0
    %v2499 = vmax.f32 %v2211, 0.0
    %v2500 = vmax.f32 %v2213, 0.0
    %v2501 = vmax.f32 %v2492, 0.0
    %v2502 = vld [vmem:[#allocation9] sm:$0xff]
    %v2503 = vld [vmem:[#allocation9 + $0x8] sm:$0xff]
    %v2504 = vld [vmem:[#allocation9 + $0x10] sm:$0xff]
    %v2505 = vld [vmem:[#allocation9 + $0x18] sm:$0xff]
    %v2506 = vld [vmem:[#allocation9 + $0x20] sm:$0xff]
    %v2507 = vld [vmem:[#allocation9 + $0x28] sm:$0xff]
    %v2508 = vld [vmem:[#allocation9 + $0x30] sm:$0xff]
    %v2509 = vld [vmem:[#allocation9 + $0x38] sm:$0xff]
    %v2510 = vld [vmem:[#allocation9 + $0x40] sm:$0xff]
    %v2511 = vld [vmem:[#allocation9 + $0x48] sm:$0xff]
    %v2512 = vld [vmem:[#allocation9 + $0x50] sm:$0xff]
    %v2513 = vld [vmem:[#allocation9 + $0x58] sm:$0xff]
    %v2514 = vld [vmem:[#allocation9 + $0x60] sm:$0xff]
    %v2515 = vld [vmem:[#allocation9 + $0x68] sm:$0xff]
    %v2516 = vld [vmem:[#allocation9 + $0x70] sm:$0xff]
    %v2517 = vld [vmem:[#allocation9 + $0x78] sm:$0xff]
    %v2518 = vld [vmem:[#allocation9 + $0x80] sm:$0xff]
    %v2519 = vld [vmem:[#allocation9 + $0x88] sm:$0xff]
    %v2520 = vld [vmem:[#allocation9 + $0x90] sm:$0xff]
    %v2521 = vld [vmem:[#allocation9 + $0x98] sm:$0xff]
    %v2522 = vld [vmem:[#allocation9 + $0xa0] sm:$0xff]
    %v2523 = vld [vmem:[#allocation9 + $0xa8] sm:$0xff]
    %v2524 = vld [vmem:[#allocation9 + $0xb0] sm:$0xff]
    %v2525 = vld [vmem:[#allocation9 + $0xb8] sm:$0xff]
    %v2526 = vld [vmem:[#allocation9 + $0xc0] sm:$0xff]
    %v2527 = vld [vmem:[#allocation9 + $0xc8] sm:$0xff]
    %v2528 = vld [vmem:[#allocation9 + $0xd0] sm:$0xff]
    %v2529 = vld [vmem:[#allocation9 + $0xd8] sm:$0xff]
    %v2530 = vld [vmem:[#allocation9 + $0xe0] sm:$0xff]
    %v2531 = vld [vmem:[#allocation9 + $0xe8] sm:$0xff]
    %v2532 = vld [vmem:[#allocation9 + $0xf0] sm:$0xff]
    %v2533 = vld [vmem:[#allocation9 + $0xf8] sm:$0xff]
    %v2534 = vld [vmem:[#allocation9 + $0x100] sm:$0xff]
    %v2535 = vld [vmem:[#allocation9 + $0x108] sm:$0xff]
    %v2536 = vld [vmem:[#allocation9 + $0x110] sm:$0xff]
    %v2537 = vld [vmem:[#allocation9 + $0x118] sm:$0xff]
    %v2538 = vld [vmem:[#allocation9 + $0x120] sm:$0xff]
    %v2539 = vld [vmem:[#allocation9 + $0x128] sm:$0xff]
    %v2540 = vld [vmem:[#allocation9 + $0x130] sm:$0xff]
    %v2541 = vld [vmem:[#allocation9 + $0x138] sm:$0xff]
    %v2542 = vld [vmem:[#allocation9 + $0x140] sm:$0xff]
    %v2543 = vld [vmem:[#allocation9 + $0x148] sm:$0xff]
    %v2544 = vld [vmem:[#allocation9 + $0x150] sm:$0xff]
    %v2545 = vld [vmem:[#allocation9 + $0x158] sm:$0xff]
    %v2546 = vld [vmem:[#allocation9 + $0x160] sm:$0xff]
    %v2547 = vld [vmem:[#allocation9 + $0x168] sm:$0xff]
    %v2548 = vld [vmem:[#allocation9 + $0x170] sm:$0xff]
    %v2549 = vld [vmem:[#allocation9 + $0x178] sm:$0xff]
    %v2550 = vld [vmem:[#allocation9 + $0x180] sm:$0xff]
    %v2551 = vld [vmem:[#allocation9 + $0x188] sm:$0xff]
    %v2552 = vld [vmem:[#allocation9 + $0x190] sm:$0xff]
    %v2553 = vld [vmem:[#allocation9 + $0x198] sm:$0xff]
    %v2554 = vld [vmem:[#allocation9 + $0x1a0] sm:$0xff]
    %v2555 = vld [vmem:[#allocation9 + $0x1a8] sm:$0xff]
    %v2556 = vld [vmem:[#allocation9 + $0x1b0] sm:$0xff]
    %v2557 = vld [vmem:[#allocation9 + $0x1b8] sm:$0xff]
    %v2558 = vld [vmem:[#allocation9 + $0x1c0] sm:$0xff]
    %v2559 = vld [vmem:[#allocation9 + $0x1c8] sm:$0xff]
    %v2560 = vld [vmem:[#allocation9 + $0x1d0] sm:$0xff]
    %v2561 = vld [vmem:[#allocation9 + $0x1d8] sm:$0xff]
    %v2562 = vld [vmem:[#allocation9 + $0x1e0] sm:$0xff]
    %v2563 = vld [vmem:[#allocation9 + $0x1e8] sm:$0xff]
    %v2564 = vld [vmem:[#allocation9 + $0x1f0] sm:$0xff]
    %v2565 = vld [vmem:[#allocation9 + $0x1f8] sm:$0xff]
    %v2566 = vld [vmem:[#allocation9 + $0x200] sm:$0xff]
    %v2567 = vld [vmem:[#allocation9 + $0x208] sm:$0xff]
    %v2568 = vld [vmem:[#allocation9 + $0x210] sm:$0xff]
    %v2569 = vld [vmem:[#allocation9 + $0x218] sm:$0xff]
    %v2570 = vld [vmem:[#allocation9 + $0x220] sm:$0xff]
    %v2571 = vld [vmem:[#allocation9 + $0x228] sm:$0xff]
    %v2572 = vld [vmem:[#allocation9 + $0x230] sm:$0xff]
    %v2573 = vld [vmem:[#allocation9 + $0x238] sm:$0xff]
    %v2574 = vld [vmem:[#allocation9 + $0x240] sm:$0xff]
    %v2575 = vld [vmem:[#allocation9 + $0x248] sm:$0xff]
    %v2576 = vld [vmem:[#allocation9 + $0x250] sm:$0xff]
    %v2577 = vld [vmem:[#allocation9 + $0x258] sm:$0xff]
    %v2578 = vld [vmem:[#allocation9 + $0x260] sm:$0xff]
    %v2579 = vld [vmem:[#allocation9 + $0x268] sm:$0xff]
    %v2580 = vld [vmem:[#allocation9 + $0x270] sm:$0xff]
    %v2581 = vld [vmem:[#allocation9 + $0x278] sm:$0xff]
    %v2582 = vld [vmem:[#allocation9 + $0x280] sm:$0xff]
    %v2583 = vld [vmem:[#allocation9 + $0x288] sm:$0xff]
    %v2584 = vld [vmem:[#allocation9 + $0x290] sm:$0xff]
    %v2585 = vld [vmem:[#allocation9 + $0x298] sm:$0xff]
    %v2586 = vld [vmem:[#allocation9 + $0x2a0] sm:$0xff]
    %v2587 = vld [vmem:[#allocation9 + $0x2a8] sm:$0xff]
    %v2588 = vld [vmem:[#allocation9 + $0x2b0] sm:$0xff]
    %v2589 = vld [vmem:[#allocation9 + $0x2b8] sm:$0xff]
    %v2590 = vld [vmem:[#allocation9 + $0x2c0] sm:$0xff]
    %v2591 = vld [vmem:[#allocation9 + $0x2c8] sm:$0xff]
    %v2592 = vld [vmem:[#allocation9 + $0x2d0] sm:$0xff]
    %v2593 = vld [vmem:[#allocation9 + $0x2d8] sm:$0xff]
    %v2594 = vld [vmem:[#allocation9 + $0x2e0] sm:$0xff]
    %v2595 = vld [vmem:[#allocation9 + $0x2e8] sm:$0xff]
    %v2596 = vld [vmem:[#allocation9 + $0x2f0] sm:$0xff]
    %v2597 = vld [vmem:[#allocation9 + $0x2f8] sm:$0xff]
    %v2598 = vld [vmem:[#allocation9 + $0x300] sm:$0xff]
    %v2599 = vld [vmem:[#allocation9 + $0x308] sm:$0xff]
    %v2600 = vld [vmem:[#allocation9 + $0x310] sm:$0xff]
    %v2601 = vld [vmem:[#allocation9 + $0x318] sm:$0xff]
    %v2602 = vld [vmem:[#allocation9 + $0x320] sm:$0xff]
    %v2603 = vld [vmem:[#allocation9 + $0x328] sm:$0xff]
    %v2604 = vld [vmem:[#allocation9 + $0x330] sm:$0xff]
    %v2605 = vld [vmem:[#allocation9 + $0x338] sm:$0xff]
    %v2606 = vld [vmem:[#allocation9 + $0x340] sm:$0xff]
    %v2607 = vld [vmem:[#allocation9 + $0x348] sm:$0xff]
    %v2608 = vld [vmem:[#allocation9 + $0x350] sm:$0xff]
    %v2609 = vld [vmem:[#allocation9 + $0x358] sm:$0xff]
    %v2610 = vld [vmem:[#allocation9 + $0x360] sm:$0xff]
    %v2611 = vld [vmem:[#allocation9 + $0x368] sm:$0xff]
    %v2612 = vld [vmem:[#allocation9 + $0x370] sm:$0xff]
    %v2613 = vld [vmem:[#allocation9 + $0x378] sm:$0xff]
    %v2614 = vld [vmem:[#allocation9 + $0x380] sm:$0xff]
    %v2615 = vld [vmem:[#allocation9 + $0x388] sm:$0xff]
    %v2616 = vld [vmem:[#allocation9 + $0x390] sm:$0xff]
    %v2617 = vld [vmem:[#allocation9 + $0x398] sm:$0xff]
    %v2618 = vld [vmem:[#allocation9 + $0x3a0] sm:$0xff]
    %v2619 = vld [vmem:[#allocation9 + $0x3a8] sm:$0xff]
    %v2620 = vld [vmem:[#allocation9 + $0x3b0] sm:$0xff]
    %v2621 = vld [vmem:[#allocation9 + $0x3b8] sm:$0xff]
    %v2622 = vld [vmem:[#allocation9 + $0x3c0] sm:$0xff]
    %v2623 = vld [vmem:[#allocation9 + $0x3c8] sm:$0xff]
    %v2624 = vld [vmem:[#allocation9 + $0x3d0] sm:$0xff]
    %v2625 = vld [vmem:[#allocation9 + $0x3d8] sm:$0xff]
    %v2626 = vld [vmem:[#allocation9 + $0x3e0] sm:$0xff]
    %v2627 = vld [vmem:[#allocation9 + $0x3e8] sm:$0xff]
    %v2628 = vld [vmem:[#allocation9 + $0x3f0] sm:$0xff]
    %v2629 = vld [vmem:[#allocation9 + $0x3f8] sm:$0xff]
    %v2630 = vld [vmem:[#allocation9 + $0x400] sm:$0xff]
    %v2631 = vld [vmem:[#allocation9 + $0x408] sm:$0xff]
    %v2632 = vld [vmem:[#allocation9 + $0x410] sm:$0xff]
    %v2633 = vld [vmem:[#allocation9 + $0x418] sm:$0xff]
    %v2634 = vld [vmem:[#allocation9 + $0x420] sm:$0xff]
    %v2635 = vld [vmem:[#allocation9 + $0x428] sm:$0xff]
    %v2636 = vld [vmem:[#allocation9 + $0x430] sm:$0xff]
    %v2637 = vld [vmem:[#allocation9 + $0x438] sm:$0xff]
    %v2638 = vld [vmem:[#allocation9 + $0x440] sm:$0xff]
    %v2639 = vld [vmem:[#allocation9 + $0x448] sm:$0xff]
    %v2640 = vld [vmem:[#allocation9 + $0x450] sm:$0xff]
    %v2641 = vld [vmem:[#allocation9 + $0x458] sm:$0xff]
    %v2642 = vld [vmem:[#allocation9 + $0x460] sm:$0xff]
    %v2643 = vld [vmem:[#allocation9 + $0x468] sm:$0xff]
    %v2644 = vld [vmem:[#allocation9 + $0x470] sm:$0xff]
    %v2645 = vld [vmem:[#allocation9 + $0x478] sm:$0xff]
    %v2646 = vld [vmem:[#allocation9 + $0x480] sm:$0xff]
    %v2647 = vld [vmem:[#allocation9 + $0x488] sm:$0xff]
    %v2648 = vld [vmem:[#allocation9 + $0x490] sm:$0xff]
    %v2649 = vld [vmem:[#allocation9 + $0x498] sm:$0xff]
    %v2650 = vld [vmem:[#allocation9 + $0x4a0] sm:$0xff]
    %v2651 = vld [vmem:[#allocation9 + $0x4a8] sm:$0xff]
    %v2652 = vld [vmem:[#allocation9 + $0x4b0] sm:$0xff]
    %v2653 = vld [vmem:[#allocation9 + $0x4b8] sm:$0xff]
    %v2654 = vld [vmem:[#allocation9 + $0x4c0] sm:$0xff]
    %v2655 = vld [vmem:[#allocation9 + $0x4c8] sm:$0xff]
    %v2656 = vld [vmem:[#allocation9 + $0x4d0] sm:$0xff]
    %v2657 = vld [vmem:[#allocation9 + $0x4d8] sm:$0xff]
    %v2658 = vld [vmem:[#allocation9 + $0x4e0] sm:$0xff]
    %v2659 = vld [vmem:[#allocation9 + $0x4e8] sm:$0xff]
    %v2660 = vld [vmem:[#allocation9 + $0x4f0] sm:$0xff]
    %v2661 = vld [vmem:[#allocation9 + $0x4f8] sm:$0xff]
    %v2662 = vld [vmem:[#allocation9 + $0x500] sm:$0xff]
    %v2663 = vld [vmem:[#allocation9 + $0x508] sm:$0xff]
    %v2664 = vld [vmem:[#allocation9 + $0x510] sm:$0xff]
    %v2665 = vld [vmem:[#allocation9 + $0x518] sm:$0xff]
    %v2666 = vld [vmem:[#allocation9 + $0x520] sm:$0xff]
    %v2667 = vld [vmem:[#allocation9 + $0x528] sm:$0xff]
    %v2668 = vld [vmem:[#allocation9 + $0x530] sm:$0xff]
    %v2669 = vld [vmem:[#allocation9 + $0x538] sm:$0xff]
    %v2670 = vld [vmem:[#allocation9 + $0x540] sm:$0xff]
    %v2671 = vld [vmem:[#allocation9 + $0x548] sm:$0xff]
    %v2672 = vld [vmem:[#allocation9 + $0x550] sm:$0xff]
    %v2673 = vld [vmem:[#allocation9 + $0x558] sm:$0xff]
    %v2674 = vld [vmem:[#allocation9 + $0x560] sm:$0xff]
    %v2675 = vld [vmem:[#allocation9 + $0x568] sm:$0xff]
    %v2676 = vld [vmem:[#allocation9 + $0x570] sm:$0xff]
    %v2677 = vld [vmem:[#allocation9 + $0x578] sm:$0xff]
    %v2678 = vld [vmem:[#allocation9 + $0x580] sm:$0xff]
    %v2679 = vld [vmem:[#allocation9 + $0x588] sm:$0xff]
    %v2680 = vld [vmem:[#allocation9 + $0x590] sm:$0xff]
    %v2681 = vld [vmem:[#allocation9 + $0x598] sm:$0xff]
    %v2682 = vld [vmem:[#allocation9 + $0x5a0] sm:$0xff]
    %v2683 = vld [vmem:[#allocation9 + $0x5a8] sm:$0xff]
    %v2684 = vld [vmem:[#allocation9 + $0x5b0] sm:$0xff]
    %v2685 = vld [vmem:[#allocation9 + $0x5b8] sm:$0xff]
    %v2686 = vld [vmem:[#allocation9 + $0x5c0] sm:$0xff]
    %v2687 = vld [vmem:[#allocation9 + $0x5c8] sm:$0xff]
    %v2688 = vld [vmem:[#allocation9 + $0x5d0] sm:$0xff]
    %v2689 = vld [vmem:[#allocation9 + $0x5d8] sm:$0xff]
    %v2690 = vld [vmem:[#allocation9 + $0x5e0] sm:$0xff]
    %v2691 = vld [vmem:[#allocation9 + $0x5e8] sm:$0xff]
    %v2692 = vld [vmem:[#allocation9 + $0x5f0] sm:$0xff]
    %v2693 = vld [vmem:[#allocation9 + $0x5f8] sm:$0xff]
    %v2694 = vld [vmem:[#allocation9 + $0x600] sm:$0xff]
    %v2695 = vld [vmem:[#allocation9 + $0x608] sm:$0xff]
    %v2696 = vld [vmem:[#allocation9 + $0x610] sm:$0xff]
    %v2697 = vld [vmem:[#allocation9 + $0x618] sm:$0xff]
    %v2698 = vld [vmem:[#allocation9 + $0x620] sm:$0xff]
    %v2699 = vld [vmem:[#allocation9 + $0x628] sm:$0xff]
    %v2700 = vld [vmem:[#allocation9 + $0x630] sm:$0xff]
    %v2701 = vld [vmem:[#allocation9 + $0x638] sm:$0xff]
    %v2702 = vld [vmem:[#allocation9 + $0x640] sm:$0xff]
    %v2703 = vld [vmem:[#allocation9 + $0x648] sm:$0xff]
    %v2704 = vld [vmem:[#allocation9 + $0x650] sm:$0xff]
    %v2705 = vld [vmem:[#allocation9 + $0x658] sm:$0xff]
    %v2706 = vld [vmem:[#allocation9 + $0x660] sm:$0xff]
    %v2707 = vld [vmem:[#allocation9 + $0x668] sm:$0xff]
    %v2708 = vld [vmem:[#allocation9 + $0x670] sm:$0xff]
    %v2709 = vld [vmem:[#allocation9 + $0x678] sm:$0xff]
    %v2710 = vld [vmem:[#allocation9 + $0x680] sm:$0xff]
    %v2711 = vld [vmem:[#allocation9 + $0x688] sm:$0xff]
    %v2712 = vld [vmem:[#allocation9 + $0x690] sm:$0xff]
    %v2713 = vld [vmem:[#allocation9 + $0x698] sm:$0xff]
    %v2714 = vld [vmem:[#allocation9 + $0x6a0] sm:$0xff]
    %v2715 = vld [vmem:[#allocation9 + $0x6a8] sm:$0xff]
    %v2716 = vld [vmem:[#allocation9 + $0x6b0] sm:$0xff]
    %v2717 = vld [vmem:[#allocation9 + $0x6b8] sm:$0xff]
    %v2718 = vld [vmem:[#allocation9 + $0x6c0] sm:$0xff]
    %v2719 = vld [vmem:[#allocation9 + $0x6c8] sm:$0xff]
    %v2720 = vld [vmem:[#allocation9 + $0x6d0] sm:$0xff]
    %v2721 = vld [vmem:[#allocation9 + $0x6d8] sm:$0xff]
    %v2722 = vld [vmem:[#allocation9 + $0x6e0] sm:$0xff]
    %v2723 = vld [vmem:[#allocation9 + $0x6e8] sm:$0xff]
    %v2724 = vld [vmem:[#allocation9 + $0x6f0] sm:$0xff]
    %v2725 = vld [vmem:[#allocation9 + $0x6f8] sm:$0xff]
    %v2726 = vld [vmem:[#allocation9 + $0x700] sm:$0xff]
    %v2727 = vld [vmem:[#allocation9 + $0x708] sm:$0xff]
    %v2728 = vld [vmem:[#allocation9 + $0x710] sm:$0xff]
    %v2729 = vld [vmem:[#allocation9 + $0x718] sm:$0xff]
    %v2730 = vld [vmem:[#allocation9 + $0x720] sm:$0xff]
    %v2731 = vld [vmem:[#allocation9 + $0x728] sm:$0xff]
    %v2732 = vld [vmem:[#allocation9 + $0x730] sm:$0xff]
    %v2733 = vld [vmem:[#allocation9 + $0x738] sm:$0xff]
    %v2734 = vld [vmem:[#allocation9 + $0x740] sm:$0xff]
    %v2735 = vld [vmem:[#allocation9 + $0x748] sm:$0xff]
    %v2736 = vld [vmem:[#allocation9 + $0x750] sm:$0xff]
    %v2737 = vld [vmem:[#allocation9 + $0x758] sm:$0xff]
    %v2738 = vld [vmem:[#allocation9 + $0x760] sm:$0xff]
    %v2739 = vld [vmem:[#allocation9 + $0x768] sm:$0xff]
    %v2740 = vld [vmem:[#allocation9 + $0x770] sm:$0xff]
    %v2741 = vld [vmem:[#allocation9 + $0x778] sm:$0xff]
    %v2742 = vld [vmem:[#allocation9 + $0x780] sm:$0xff]
    %v2743 = vld [vmem:[#allocation9 + $0x788] sm:$0xff]
    %v2744 = vld [vmem:[#allocation9 + $0x790] sm:$0xff]
    %v2745 = vld [vmem:[#allocation9 + $0x798] sm:$0xff]
    %v2746 = vld [vmem:[#allocation9 + $0x7a0] sm:$0xff]
    %v2747 = vld [vmem:[#allocation9 + $0x7a8] sm:$0xff]
    %v2748 = vld [vmem:[#allocation9 + $0x7b0] sm:$0xff]
    %v2749 = vld [vmem:[#allocation9 + $0x7b8] sm:$0xff]
    %v2750 = vld [vmem:[#allocation9 + $0x7c0] sm:$0xff]
    %v2751 = vld [vmem:[#allocation9 + $0x7c8] sm:$0xff]
    %v2752 = vld [vmem:[#allocation9 + $0x7d0] sm:$0xff]
    %v2753 = vld [vmem:[#allocation9 + $0x7d8] sm:$0xff]
    %v2754 = vld [vmem:[#allocation9 + $0x7e0] sm:$0xff]
    %v2755 = vld [vmem:[#allocation9 + $0x7e8] sm:$0xff]
    %v2756 = vld [vmem:[#allocation9 + $0x7f0] sm:$0xff]
    %v2757 = vld [vmem:[#allocation9 + $0x7f8] sm:$0xff]
    %v2758 = vld [vmem:[#allocation9 + $0x800] sm:$0xff]
    %v2759 = vld [vmem:[#allocation9 + $0x808] sm:$0xff]
    %v2760 = vld [vmem:[#allocation9 + $0x810] sm:$0xff]
    %v2761 = vld [vmem:[#allocation9 + $0x818] sm:$0xff]
    %v2762 = vld [vmem:[#allocation9 + $0x820] sm:$0xff]
    %v2763 = vld [vmem:[#allocation9 + $0x828] sm:$0xff]
    %v2764 = vld [vmem:[#allocation9 + $0x830] sm:$0xff]
    %v2765 = vld [vmem:[#allocation9 + $0x838] sm:$0xff]
    %v2766 = vld [vmem:[#allocation9 + $0x840] sm:$0xff]
    %v2767 = vld [vmem:[#allocation9 + $0x848] sm:$0xff]
    %v2768 = vld [vmem:[#allocation9 + $0x850] sm:$0xff]
    %v2769 = vld [vmem:[#allocation9 + $0x858] sm:$0xff]
    %v2770 = vld [vmem:[#allocation9 + $0x860] sm:$0xff]
    %v2771 = vld [vmem:[#allocation9 + $0x868] sm:$0xff]
    %v2772 = vld [vmem:[#allocation9 + $0x870] sm:$0xff]
    %v2773 = vld [vmem:[#allocation9 + $0x878] sm:$0xff]
    %v2774 = vld [vmem:[#allocation9 + $0x880] sm:$0xff]
    %v2775 = vld [vmem:[#allocation9 + $0x888] sm:$0xff]
    %v2776 = vld [vmem:[#allocation9 + $0x890] sm:$0xff]
    %v2777 = vld [vmem:[#allocation9 + $0x898] sm:$0xff]
    %v2778 = vld [vmem:[#allocation9 + $0x8a0] sm:$0xff]
    %v2779 = vld [vmem:[#allocation9 + $0x8a8] sm:$0xff]
    %v2780 = vld [vmem:[#allocation9 + $0x8b0] sm:$0xff]
    %v2781 = vld [vmem:[#allocation9 + $0x8b8] sm:$0xff]
    %v2782 = vld [vmem:[#allocation9 + $0x8c0] sm:$0xff]
    %v2783 = vld [vmem:[#allocation9 + $0x8c8] sm:$0xff]
    %v2784 = vld [vmem:[#allocation9 + $0x8d0] sm:$0xff]
    %v2785 = vld [vmem:[#allocation9 + $0x8d8] sm:$0xff]
    %v2786 = vld [vmem:[#allocation9 + $0x8e0] sm:$0xff]
    %v2787 = vld [vmem:[#allocation9 + $0x8e8] sm:$0xff]
    %v2788 = vld [vmem:[#allocation9 + $0x8f0] sm:$0xff]
    %v2789 = vld [vmem:[#allocation9 + $0x8f8] sm:$0xff]
    %v2790 = vld [vmem:[#allocation9 + $0x900] sm:$0xff]
    %v2791 = vld [vmem:[#allocation9 + $0x908] sm:$0xff]
    %v2792 = vld [vmem:[#allocation9 + $0x910] sm:$0xff]
    %v2793 = vld [vmem:[#allocation9 + $0x918] sm:$0xff]
    %v2794 = vld [vmem:[#allocation9 + $0x920] sm:$0xff]
    %v2795 = vld [vmem:[#allocation9 + $0x928] sm:$0xff]
    %v2796 = vld [vmem:[#allocation9 + $0x930] sm:$0xff]
    %v2797 = vld [vmem:[#allocation9 + $0x938] sm:$0xff]
    %v2798 = vld [vmem:[#allocation9 + $0x940] sm:$0xff]
    %v2799 = vld [vmem:[#allocation9 + $0x948] sm:$0xff]
    %v2800 = vld [vmem:[#allocation9 + $0x950] sm:$0xff]
    %v2801 = vld [vmem:[#allocation9 + $0x958] sm:$0xff]
    %v2802 = vld [vmem:[#allocation9 + $0x960] sm:$0xff]
    %v2803 = vld [vmem:[#allocation9 + $0x968] sm:$0xff]
    %v2804 = vld [vmem:[#allocation9 + $0x970] sm:$0xff]
    %v2805 = vld [vmem:[#allocation9 + $0x978] sm:$0xff]
    %v2806 = vld [vmem:[#allocation9 + $0x980] sm:$0xff]
    %v2807 = vld [vmem:[#allocation9 + $0x988] sm:$0xff]
    %v2808 = vld [vmem:[#allocation9 + $0x990] sm:$0xff]
    %v2809 = vld [vmem:[#allocation9 + $0x998] sm:$0xff]
    %v2810 = vld [vmem:[#allocation9 + $0x9a0] sm:$0xff]
    %v2811 = vld [vmem:[#allocation9 + $0x9a8] sm:$0xff]
    %v2812 = vld [vmem:[#allocation9 + $0x9b0] sm:$0xff]
    %v2813 = vld [vmem:[#allocation9 + $0x9b8] sm:$0xff]
    %v2814 = vld [vmem:[#allocation9 + $0x9c0] sm:$0xff]
    %v2815 = vld [vmem:[#allocation9 + $0x9c8] sm:$0xff]
    %v2816 = vld [vmem:[#allocation9 + $0x9d0] sm:$0xff]
    %v2817 = vld [vmem:[#allocation9 + $0x9d8] sm:$0xff]
    %v2818 = vld [vmem:[#allocation9 + $0x9e0] sm:$0xff]
    %v2819 = vld [vmem:[#allocation9 + $0x9e8] sm:$0xff]
    %v2820 = vld [vmem:[#allocation9 + $0x9f0] sm:$0xff]
    %v2821 = vld [vmem:[#allocation9 + $0x9f8] sm:$0xff]
    %v2822 = vld [vmem:[#allocation9 + $0xa00] sm:$0xff]
    %v2823 = vld [vmem:[#allocation9 + $0xa08] sm:$0xff]
    %v2824 = vld [vmem:[#allocation9 + $0xa10] sm:$0xff]
    %v2825 = vld [vmem:[#allocation9 + $0xa18] sm:$0xff]
    %v2826 = vld [vmem:[#allocation9 + $0xa20] sm:$0xff]
    %v2827 = vld [vmem:[#allocation9 + $0xa28] sm:$0xff]
    %v2828 = vld [vmem:[#allocation9 + $0xa30] sm:$0xff]
    %v2829 = vld [vmem:[#allocation9 + $0xa38] sm:$0xff]
    %v2830 = vld [vmem:[#allocation9 + $0xa40] sm:$0xff]
    %v2831 = vld [vmem:[#allocation9 + $0xa48] sm:$0xff]
    %v2832 = vld [vmem:[#allocation9 + $0xa50] sm:$0xff]
    %v2833 = vld [vmem:[#allocation9 + $0xa58] sm:$0xff]
    %v2834 = vld [vmem:[#allocation9 + $0xa60] sm:$0xff]
    %v2835 = vld [vmem:[#allocation9 + $0xa68] sm:$0xff]
    %v2836 = vld [vmem:[#allocation9 + $0xa70] sm:$0xff]
    %v2837 = vld [vmem:[#allocation9 + $0xa78] sm:$0xff]
    %v2838 = vld [vmem:[#allocation9 + $0xa80] sm:$0xff]
    %v2839 = vld [vmem:[#allocation9 + $0xa88] sm:$0xff]
    %v2840 = vld [vmem:[#allocation9 + $0xa90] sm:$0xff]
    %v2841 = vld [vmem:[#allocation9 + $0xa98] sm:$0xff]
    %v2842 = vld [vmem:[#allocation9 + $0xaa0] sm:$0xff]
    %v2843 = vld [vmem:[#allocation9 + $0xaa8] sm:$0xff]
    %v2844 = vld [vmem:[#allocation9 + $0xab0] sm:$0xff]
    %v2845 = vld [vmem:[#allocation9 + $0xab8] sm:$0xff]
    %v2846 = vld [vmem:[#allocation9 + $0xac0] sm:$0xff]
    %v2847 = vld [vmem:[#allocation9 + $0xac8] sm:$0xff]
    %v2848 = vld [vmem:[#allocation9 + $0xad0] sm:$0xff]
    %v2849 = vld [vmem:[#allocation9 + $0xad8] sm:$0xff]
    %v2850 = vld [vmem:[#allocation9 + $0xae0] sm:$0xff]
    %v2851 = vld [vmem:[#allocation9 + $0xae8] sm:$0xff]
    %v2852 = vld [vmem:[#allocation9 + $0xaf0] sm:$0xff]
    %v2853 = vld [vmem:[#allocation9 + $0xaf8] sm:$0xff]
    %v2854 = vld [vmem:[#allocation9 + $0xb00] sm:$0xff]
    %v2855 = vld [vmem:[#allocation9 + $0xb08] sm:$0xff]
    %v2856 = vld [vmem:[#allocation9 + $0xb10] sm:$0xff]
    %v2857 = vld [vmem:[#allocation9 + $0xb18] sm:$0xff]
    %v2858 = vld [vmem:[#allocation9 + $0xb20] sm:$0xff]
    %v2859 = vld [vmem:[#allocation9 + $0xb28] sm:$0xff]
    %v2860 = vld [vmem:[#allocation9 + $0xb30] sm:$0xff]
    %v2861 = vld [vmem:[#allocation9 + $0xb38] sm:$0xff]
    %v2862 = vld [vmem:[#allocation9 + $0xb40] sm:$0xff]
    %v2863 = vld [vmem:[#allocation9 + $0xb48] sm:$0xff]
    %v2864 = vld [vmem:[#allocation9 + $0xb50] sm:$0xff]
    %v2865 = vld [vmem:[#allocation9 + $0xb58] sm:$0xff]
    %v2866 = vld [vmem:[#allocation9 + $0xb60] sm:$0xff]
    %v2867 = vld [vmem:[#allocation9 + $0xb68] sm:$0xff]
    %v2868 = vld [vmem:[#allocation9 + $0xb70] sm:$0xff]
    %v2869 = vld [vmem:[#allocation9 + $0xb78] sm:$0xff]
    %v2870 = vld [vmem:[#allocation9 + $0xb80] sm:$0xff]
    %v2871 = vld [vmem:[#allocation9 + $0xb88] sm:$0xff]
    %v2872 = vld [vmem:[#allocation9 + $0xb90] sm:$0xff]
    %v2873 = vld [vmem:[#allocation9 + $0xb98] sm:$0xff]
    %v2874 = vld [vmem:[#allocation9 + $0xba0] sm:$0xff]
    %v2875 = vld [vmem:[#allocation9 + $0xba8] sm:$0xff]
    %v2876 = vld [vmem:[#allocation9 + $0xbb0] sm:$0xff]
    %v2877 = vld [vmem:[#allocation9 + $0xbb8] sm:$0xff]
    %v2878 = vld [vmem:[#allocation9 + $0xbc0] sm:$0xff]
    %v2879 = vld [vmem:[#allocation9 + $0xbc8] sm:$0xff]
    %v2880 = vld [vmem:[#allocation9 + $0xbd0] sm:$0xff]
    %v2881 = vld [vmem:[#allocation9 + $0xbd8] sm:$0xff]
    %v2882 = vld [vmem:[#allocation9 + $0xbe0] sm:$0xff]
    %v2883 = vld [vmem:[#allocation9 + $0xbe8] sm:$0xff]
    %v2884 = vld [vmem:[#allocation9 + $0xbf0] sm:$0xff]
    %v2885 = vld [vmem:[#allocation9 + $0xbf8] sm:$0xff]
    %v2886 = vld [vmem:[#allocation9 + $0xc00] sm:$0xff]
    %v2887 = vld [vmem:[#allocation9 + $0xc08] sm:$0xff]
    %v2888 = vld [vmem:[#allocation9 + $0xc10] sm:$0xff]
    %v2889 = vld [vmem:[#allocation9 + $0xc18] sm:$0xff]
    %v2890 = vld [vmem:[#allocation9 + $0xc20] sm:$0xff]
    %v2891 = vld [vmem:[#allocation9 + $0xc28] sm:$0xff]
    %v2892 = vld [vmem:[#allocation9 + $0xc30] sm:$0xff]
    %v2893 = vld [vmem:[#allocation9 + $0xc38] sm:$0xff]
    %v2894 = vld [vmem:[#allocation9 + $0xc40] sm:$0xff]
    %v2895 = vld [vmem:[#allocation9 + $0xc48] sm:$0xff]
    %v2896 = vld [vmem:[#allocation9 + $0xc50] sm:$0xff]
    %v2897 = vld [vmem:[#allocation9 + $0xc58] sm:$0xff]
    %v2898 = vld [vmem:[#allocation9 + $0xc60] sm:$0xff]
    %v2899 = vld [vmem:[#allocation9 + $0xc68] sm:$0xff]
    %v2900 = vld [vmem:[#allocation9 + $0xc70] sm:$0xff]
    %v2901 = vld [vmem:[#allocation9 + $0xc78] sm:$0xff]
    %v2902 = vld [vmem:[#allocation9 + $0xc80] sm:$0xff]
    %v2903 = vld [vmem:[#allocation9 + $0xc88] sm:$0xff]
    %v2904 = vld [vmem:[#allocation9 + $0xc90] sm:$0xff]
    %v2905 = vld [vmem:[#allocation9 + $0xc98] sm:$0xff]
    %v2906 = vld [vmem:[#allocation9 + $0xca0] sm:$0xff]
    %v2907 = vld [vmem:[#allocation9 + $0xca8] sm:$0xff]
    %v2908 = vld [vmem:[#allocation9 + $0xcb0] sm:$0xff]
    %v2909 = vld [vmem:[#allocation9 + $0xcb8] sm:$0xff]
    %v2910 = vld [vmem:[#allocation9 + $0xcc0] sm:$0xff]
    %v2911 = vld [vmem:[#allocation9 + $0xcc8] sm:$0xff]
    %v2912 = vld [vmem:[#allocation9 + $0xcd0] sm:$0xff]
    %v2913 = vld [vmem:[#allocation9 + $0xcd8] sm:$0xff]
    %v2914 = vld [vmem:[#allocation9 + $0xce0] sm:$0xff]
    %v2915 = vld [vmem:[#allocation9 + $0xce8] sm:$0xff]
    %v2916 = vld [vmem:[#allocation9 + $0xcf0] sm:$0xff]
    %v2917 = vld [vmem:[#allocation9 + $0xcf8] sm:$0xff]
    %v2918 = vld [vmem:[#allocation9 + $0xd00] sm:$0xff]
    %v2919 = vld [vmem:[#allocation9 + $0xd08] sm:$0xff]
    %v2920 = vld [vmem:[#allocation9 + $0xd10] sm:$0xff]
    %v2921 = vld [vmem:[#allocation9 + $0xd18] sm:$0xff]
    %v2922 = vld [vmem:[#allocation9 + $0xd20] sm:$0xff]
    %v2923 = vld [vmem:[#allocation9 + $0xd28] sm:$0xff]
    %v2924 = vld [vmem:[#allocation9 + $0xd30] sm:$0xff]
    %v2925 = vld [vmem:[#allocation9 + $0xd38] sm:$0xff]
    %v2926 = vld [vmem:[#allocation9 + $0xd40] sm:$0xff]
    %v2927 = vld [vmem:[#allocation9 + $0xd48] sm:$0xff]
    %v2928 = vld [vmem:[#allocation9 + $0xd50] sm:$0xff]
    %v2929 = vld [vmem:[#allocation9 + $0xd58] sm:$0xff]
    %v2930 = vld [vmem:[#allocation9 + $0xd60] sm:$0xff]
    %v2931 = vld [vmem:[#allocation9 + $0xd68] sm:$0xff]
    %v2932 = vld [vmem:[#allocation9 + $0xd70] sm:$0xff]
    %v2933 = vld [vmem:[#allocation9 + $0xd78] sm:$0xff]
    %v2934 = vld [vmem:[#allocation9 + $0xd80] sm:$0xff]
    %v2935 = vld [vmem:[#allocation9 + $0xd88] sm:$0xff]
    %v2936 = vld [vmem:[#allocation9 + $0xd90] sm:$0xff]
    %v2937 = vld [vmem:[#allocation9 + $0xd98] sm:$0xff]
    %v2938 = vld [vmem:[#allocation9 + $0xda0] sm:$0xff]
    %v2939 = vld [vmem:[#allocation9 + $0xda8] sm:$0xff]
    %v2940 = vld [vmem:[#allocation9 + $0xdb0] sm:$0xff]
    %v2941 = vld [vmem:[#allocation9 + $0xdb8] sm:$0xff]
    %v2942 = vld [vmem:[#allocation9 + $0xdc0] sm:$0xff]
    %v2943 = vld [vmem:[#allocation9 + $0xdc8] sm:$0xff]
    %v2944 = vld [vmem:[#allocation9 + $0xdd0] sm:$0xff]
    %v2945 = vld [vmem:[#allocation9 + $0xdd8] sm:$0xff]
    %v2946 = vld [vmem:[#allocation9 + $0xde0] sm:$0xff]
    %v2947 = vld [vmem:[#allocation9 + $0xde8] sm:$0xff]
    %v2948 = vld [vmem:[#allocation9 + $0xdf0] sm:$0xff]
    %v2949 = vld [vmem:[#allocation9 + $0xdf8] sm:$0xff]
    %v2950 = vld [vmem:[#allocation9 + $0xe00] sm:$0xff]
    %v2951 = vld [vmem:[#allocation9 + $0xe08] sm:$0xff]
    %v2952 = vld [vmem:[#allocation9 + $0xe10] sm:$0xff]
    %v2953 = vld [vmem:[#allocation9 + $0xe18] sm:$0xff]
    %v2954 = vld [vmem:[#allocation9 + $0xe20] sm:$0xff]
    %v2955 = vld [vmem:[#allocation9 + $0xe28] sm:$0xff]
    %v2956 = vld [vmem:[#allocation9 + $0xe30] sm:$0xff]
    %v2957 = vld [vmem:[#allocation9 + $0xe38] sm:$0xff]
    %v2958 = vld [vmem:[#allocation9 + $0xe40] sm:$0xff]
    %v2959 = vld [vmem:[#allocation9 + $0xe48] sm:$0xff]
    %v2960 = vld [vmem:[#allocation9 + $0xe50] sm:$0xff]
    %v2961 = vld [vmem:[#allocation9 + $0xe58] sm:$0xff]
    %v2962 = vld [vmem:[#allocation9 + $0xe60] sm:$0xff]
    %v2963 = vld [vmem:[#allocation9 + $0xe68] sm:$0xff]
    %v2964 = vld [vmem:[#allocation9 + $0xe70] sm:$0xff]
    %v2965 = vld [vmem:[#allocation9 + $0xe78] sm:$0xff]
    %v2966 = vld [vmem:[#allocation9 + $0xe80] sm:$0xff]
    %v2967 = vld [vmem:[#allocation9 + $0xe88] sm:$0xff]
    %v2968 = vld [vmem:[#allocation9 + $0xe90] sm:$0xff]
    %v2969 = vld [vmem:[#allocation9 + $0xe98] sm:$0xff]
    %v2970 = vld [vmem:[#allocation9 + $0xea0] sm:$0xff]
    %v2971 = vld [vmem:[#allocation9 + $0xea8] sm:$0xff]
    %v2972 = vld [vmem:[#allocation9 + $0xeb0] sm:$0xff]
    %v2973 = vld [vmem:[#allocation9 + $0xeb8] sm:$0xff]
    %v2974 = vld [vmem:[#allocation9 + $0xec0] sm:$0xff]
    %v2975 = vld [vmem:[#allocation9 + $0xec8] sm:$0xff]
    %v2976 = vld [vmem:[#allocation9 + $0xed0] sm:$0xff]
    %v2977 = vld [vmem:[#allocation9 + $0xed8] sm:$0xff]
    %v2978 = vld [vmem:[#allocation9 + $0xee0] sm:$0xff]
    %v2979 = vld [vmem:[#allocation9 + $0xee8] sm:$0xff]
    %v2980 = vld [vmem:[#allocation9 + $0xef0] sm:$0xff]
    %v2981 = vld [vmem:[#allocation9 + $0xef8] sm:$0xff]
    %v2982 = vld [vmem:[#allocation9 + $0xf00] sm:$0xff]
    %v2983 = vld [vmem:[#allocation9 + $0xf08] sm:$0xff]
    %v2984 = vld [vmem:[#allocation9 + $0xf10] sm:$0xff]
    %v2985 = vld [vmem:[#allocation9 + $0xf18] sm:$0xff]
    %v2986 = vld [vmem:[#allocation9 + $0xf20] sm:$0xff]
    %v2987 = vld [vmem:[#allocation9 + $0xf28] sm:$0xff]
    %v2988 = vld [vmem:[#allocation9 + $0xf30] sm:$0xff]
    %v2989 = vld [vmem:[#allocation9 + $0xf38] sm:$0xff]
    %v2990 = vld [vmem:[#allocation9 + $0xf40] sm:$0xff]
    %v2991 = vld [vmem:[#allocation9 + $0xf48] sm:$0xff]
    %v2992 = vld [vmem:[#allocation9 + $0xf50] sm:$0xff]
    %v2993 = vld [vmem:[#allocation9 + $0xf58] sm:$0xff]
    %v2994 = vld [vmem:[#allocation9 + $0xf60] sm:$0xff]
    %v2995 = vld [vmem:[#allocation9 + $0xf68] sm:$0xff]
    %v2996 = vld [vmem:[#allocation9 + $0xf70] sm:$0xff]
    %v2997 = vld [vmem:[#allocation9 + $0xf78] sm:$0xff]
    %v2998 = vld [vmem:[#allocation9 + $0xf80] sm:$0xff]
    %v2999 = vld [vmem:[#allocation9 + $0xf88] sm:$0xff]
    %v3000 = vld [vmem:[#allocation9 + $0xf90] sm:$0xff]
    %v3001 = vld [vmem:[#allocation9 + $0xf98] sm:$0xff]
    %v3002 = vld [vmem:[#allocation9 + $0xfa0] sm:$0xff]
    %v3003 = vld [vmem:[#allocation9 + $0xfa8] sm:$0xff]
    %v3004 = vld [vmem:[#allocation9 + $0xfb0] sm:$0xff]
    %v3005 = vld [vmem:[#allocation9 + $0xfb8] sm:$0xff]
    %v3006 = vld [vmem:[#allocation9 + $0xfc0] sm:$0xff]
    %v3007 = vld [vmem:[#allocation9 + $0xfc8] sm:$0xff]
    %v3008 = vld [vmem:[#allocation9 + $0xfd0] sm:$0xff]
    %v3009 = vld [vmem:[#allocation9 + $0xfd8] sm:$0xff]
    %v3010 = vld [vmem:[#allocation9 + $0xfe0] sm:$0xff]
    %v3011 = vld [vmem:[#allocation9 + $0xfe8] sm:$0xff]
    %v3012 = vld [vmem:[#allocation9 + $0xff0] sm:$0xff]
    %v3013 = vld [vmem:[#allocation9 + $0xff8] sm:$0xff]
    %v3014 = vld [vmem:[#allocation9 + $0x1000] sm:$0xff]
    %v3015 = vld [vmem:[#allocation9 + $0x1008] sm:$0xff]
    %v3016 = vld [vmem:[#allocation9 + $0x1010] sm:$0xff]
    %v3017 = vld [vmem:[#allocation9 + $0x1018] sm:$0xff]
    %v3018 = vld [vmem:[#allocation9 + $0x1020] sm:$0xff]
    %v3019 = vld [vmem:[#allocation9 + $0x1028] sm:$0xff]
    %v3020 = vld [vmem:[#allocation9 + $0x1030] sm:$0xff]
    %v3021 = vld [vmem:[#allocation9 + $0x1038] sm:$0xff]
    %v3022 = vld [vmem:[#allocation9 + $0x1040] sm:$0xff]
    %v3023 = vld [vmem:[#allocation9 + $0x1048] sm:$0xff]
    %v3024 = vld [vmem:[#allocation9 + $0x1050] sm:$0xff]
    %v3025 = vld [vmem:[#allocation9 + $0x1058] sm:$0xff]
    %v3026 = vld [vmem:[#allocation9 + $0x1060] sm:$0xff]
    %v3027 = vld [vmem:[#allocation9 + $0x1068] sm:$0xff]
    %v3028 = vld [vmem:[#allocation9 + $0x1070] sm:$0xff]
    %v3029 = vld [vmem:[#allocation9 + $0x1078] sm:$0xff]
    %v3030 = vld [vmem:[#allocation9 + $0x1080] sm:$0xff]
    %v3031 = vld [vmem:[#allocation9 + $0x1088] sm:$0xff]
    %v3032 = vld [vmem:[#allocation9 + $0x1090] sm:$0xff]
    %v3033 = vld [vmem:[#allocation9 + $0x1098] sm:$0xff]
    %v3034 = vld [vmem:[#allocation9 + $0x10a0] sm:$0xff]
    %v3035 = vld [vmem:[#allocation9 + $0x10a8] sm:$0xff]
    %v3036 = vld [vmem:[#allocation9 + $0x10b0] sm:$0xff]
    %v3037 = vld [vmem:[#allocation9 + $0x10b8] sm:$0xff]
    %v3038 = vld [vmem:[#allocation9 + $0x10c0] sm:$0xff]
    %v3039 = vld [vmem:[#allocation9 + $0x10c8] sm:$0xff]
    %v3040 = vld [vmem:[#allocation9 + $0x10d0] sm:$0xff]
    %v3041 = vld [vmem:[#allocation9 + $0x10d8] sm:$0xff]
    %v3042 = vld [vmem:[#allocation9 + $0x10e0] sm:$0xff]
    %v3043 = vld [vmem:[#allocation9 + $0x10e8] sm:$0xff]
    %v3044 = vld [vmem:[#allocation9 + $0x10f0] sm:$0xff]
    %v3045 = vld [vmem:[#allocation9 + $0x10f8] sm:$0xff]
    %v3046 = vld [vmem:[#allocation9 + $0x1100] sm:$0xff]
    %v3047 = vld [vmem:[#allocation9 + $0x1108] sm:$0xff]
    %v3048 = vld [vmem:[#allocation9 + $0x1110] sm:$0xff]
    %v3049 = vld [vmem:[#allocation9 + $0x1118] sm:$0xff]
    %v3050 = vld [vmem:[#allocation9 + $0x1120] sm:$0xff]
    %v3051 = vld [vmem:[#allocation9 + $0x1128] sm:$0xff]
    %v3052 = vld [vmem:[#allocation9 + $0x1130] sm:$0xff]
    %v3053 = vld [vmem:[#allocation9 + $0x1138] sm:$0xff]
    %v3054 = vld [vmem:[#allocation9 + $0x1140] sm:$0xff]
    %v3055 = vld [vmem:[#allocation9 + $0x1148] sm:$0xff]
    %v3056 = vld [vmem:[#allocation9 + $0x1150] sm:$0xff]
    %v3057 = vld [vmem:[#allocation9 + $0x1158] sm:$0xff]
    %v3058 = vld [vmem:[#allocation9 + $0x1160] sm:$0xff]
    %v3059 = vld [vmem:[#allocation9 + $0x1168] sm:$0xff]
    %v3060 = vld [vmem:[#allocation9 + $0x1170] sm:$0xff]
    %v3061 = vld [vmem:[#allocation9 + $0x1178] sm:$0xff]
    %v3062 = vld [vmem:[#allocation9 + $0x1180] sm:$0xff]
    %v3063 = vld [vmem:[#allocation9 + $0x1188] sm:$0xff]
    %v3064 = vld [vmem:[#allocation9 + $0x1190] sm:$0xff]
    %v3065 = vld [vmem:[#allocation9 + $0x1198] sm:$0xff]
    %v3066 = vld [vmem:[#allocation9 + $0x11a0] sm:$0xff]
    %v3067 = vld [vmem:[#allocation9 + $0x11a8] sm:$0xff]
    %v3068 = vld [vmem:[#allocation9 + $0x11b0] sm:$0xff]
    %v3069 = vld [vmem:[#allocation9 + $0x11b8] sm:$0xff]
    %v3070 = vld [vmem:[#allocation9 + $0x11c0] sm:$0xff]
    %v3071 = vld [vmem:[#allocation9 + $0x11c8] sm:$0xff]
    %v3072 = vld [vmem:[#allocation9 + $0x11d0] sm:$0xff]
    %v3073 = vld [vmem:[#allocation9 + $0x11d8] sm:$0xff]
    %v3074 = vld [vmem:[#allocation9 + $0x11e0] sm:$0xff]
    %v3075 = vld [vmem:[#allocation9 + $0x11e8] sm:$0xff]
    %v3076 = vld [vmem:[#allocation9 + $0x11f0] sm:$0xff]
    %v3077 = vld [vmem:[#allocation9 + $0x11f8] sm:$0xff]
    %v3078 = vld [vmem:[#allocation9 + $0x1200] sm:$0xff]
    %v3079 = vld [vmem:[#allocation9 + $0x1208] sm:$0xff]
    %v3080 = vld [vmem:[#allocation9 + $0x1210] sm:$0xff]
    %v3081 = vld [vmem:[#allocation9 + $0x1218] sm:$0xff]
    %v3082 = vld [vmem:[#allocation9 + $0x1220] sm:$0xff]
    %v3083 = vld [vmem:[#allocation9 + $0x1228] sm:$0xff]
    %v3084 = vld [vmem:[#allocation9 + $0x1230] sm:$0xff]
    %v3085 = vld [vmem:[#allocation9 + $0x1238] sm:$0xff]
    %v3086 = vld [vmem:[#allocation9 + $0x1240] sm:$0xff]
    %v3087 = vld [vmem:[#allocation9 + $0x1248] sm:$0xff]
    %v3088 = vld [vmem:[#allocation9 + $0x1250] sm:$0xff]
    %v3089 = vld [vmem:[#allocation9 + $0x1258] sm:$0xff]
    %v3090 = vld [vmem:[#allocation9 + $0x1260] sm:$0xff]
    %v3091 = vld [vmem:[#allocation9 + $0x1268] sm:$0xff]
    %v3092 = vld [vmem:[#allocation9 + $0x1270] sm:$0xff]
    %v3093 = vld [vmem:[#allocation9 + $0x1278] sm:$0xff]
    %v3094 = vld [vmem:[#allocation9 + $0x1280] sm:$0xff]
    %v3095 = vld [vmem:[#allocation9 + $0x1288] sm:$0xff]
    %v3096 = vld [vmem:[#allocation9 + $0x1290] sm:$0xff]
    %v3097 = vld [vmem:[#allocation9 + $0x1298] sm:$0xff]
    %v3098 = vld [vmem:[#allocation9 + $0x12a0] sm:$0xff]
    %v3099 = vld [vmem:[#allocation9 + $0x12a8] sm:$0xff]
    %v3100 = vld [vmem:[#allocation9 + $0x12b0] sm:$0xff]
    %v3101 = vld [vmem:[#allocation9 + $0x12b8] sm:$0xff]
    %v3102 = vld [vmem:[#allocation9 + $0x12c0] sm:$0xff]
    %v3103 = vld [vmem:[#allocation9 + $0x12c8] sm:$0xff]
    %v3104 = vld [vmem:[#allocation9 + $0x12d0] sm:$0xff]
    %v3105 = vld [vmem:[#allocation9 + $0x12d8] sm:$0xff]
    %v3106 = vld [vmem:[#allocation9 + $0x12e0] sm:$0xff]
    %v3107 = vld [vmem:[#allocation9 + $0x12e8] sm:$0xff]
    %v3108 = vld [vmem:[#allocation9 + $0x12f0] sm:$0xff]
    %v3109 = vld [vmem:[#allocation9 + $0x12f8] sm:$0xff]
    %v3110 = vld [vmem:[#allocation9 + $0x1300] sm:$0xff]
    %v3111 = vld [vmem:[#allocation9 + $0x1308] sm:$0xff]
    %v3112 = vld [vmem:[#allocation9 + $0x1310] sm:$0xff]
    %v3113 = vld [vmem:[#allocation9 + $0x1318] sm:$0xff]
    %v3114 = vld [vmem:[#allocation9 + $0x1320] sm:$0xff]
    %v3115 = vld [vmem:[#allocation9 + $0x1328] sm:$0xff]
    %v3116 = vld [vmem:[#allocation9 + $0x1330] sm:$0xff]
    %v3117 = vld [vmem:[#allocation9 + $0x1338] sm:$0xff]
    %v3118 = vld [vmem:[#allocation9 + $0x1340] sm:$0xff]
    %v3119 = vld [vmem:[#allocation9 + $0x1348] sm:$0xff]
    %v3120 = vld [vmem:[#allocation9 + $0x1350] sm:$0xff]
    %v3121 = vld [vmem:[#allocation9 + $0x1358] sm:$0xff]
    %v3122 = vld [vmem:[#allocation9 + $0x1360] sm:$0xff]
    %v3123 = vld [vmem:[#allocation9 + $0x1368] sm:$0xff]
    %v3124 = vld [vmem:[#allocation9 + $0x1370] sm:$0xff]
    %v3125 = vld [vmem:[#allocation9 + $0x1378] sm:$0xff]
    %v3126 = vld [vmem:[#allocation9 + $0x1380] sm:$0xff]
    %v3127 = vld [vmem:[#allocation9 + $0x1388] sm:$0xff]
    %v3128 = vld [vmem:[#allocation9 + $0x1390] sm:$0xff]
    %v3129 = vld [vmem:[#allocation9 + $0x1398] sm:$0xff]
    %v3130 = vld [vmem:[#allocation9 + $0x13a0] sm:$0xff]
    %v3131 = vld [vmem:[#allocation9 + $0x13a8] sm:$0xff]
    %v3132 = vld [vmem:[#allocation9 + $0x13b0] sm:$0xff]
    %v3133 = vld [vmem:[#allocation9 + $0x13b8] sm:$0xff]
    %v3134 = vld [vmem:[#allocation9 + $0x13c0] sm:$0xff]
    %v3135 = vld [vmem:[#allocation9 + $0x13c8] sm:$0xff]
    %v3136 = vld [vmem:[#allocation9 + $0x13d0] sm:$0xff]
    %v3137 = vld [vmem:[#allocation9 + $0x13d8] sm:$0xff]
    %v3138 = vld [vmem:[#allocation9 + $0x13e0] sm:$0xff]
    %v3139 = vld [vmem:[#allocation9 + $0x13e8] sm:$0xff]
    %v3140 = vld [vmem:[#allocation9 + $0x13f0] sm:$0xff]
    %v3141 = vld [vmem:[#allocation9 + $0x13f8] sm:$0xff]
    %v3142 = vld [vmem:[#allocation9 + $0x1400] sm:$0xff]
    %v3143 = vld [vmem:[#allocation9 + $0x1408] sm:$0xff]
    %v3144 = vld [vmem:[#allocation9 + $0x1410] sm:$0xff]
    %v3145 = vld [vmem:[#allocation9 + $0x1418] sm:$0xff]
    %v3146 = vld [vmem:[#allocation9 + $0x1420] sm:$0xff]
    %v3147 = vld [vmem:[#allocation9 + $0x1428] sm:$0xff]
    %v3148 = vld [vmem:[#allocation9 + $0x1430] sm:$0xff]
    %v3149 = vld [vmem:[#allocation9 + $0x1438] sm:$0xff]
    %v3150 = vld [vmem:[#allocation9 + $0x1440] sm:$0xff]
    %v3151 = vld [vmem:[#allocation9 + $0x1448] sm:$0xff]
    %v3152 = vld [vmem:[#allocation9 + $0x1450] sm:$0xff]
    %v3153 = vld [vmem:[#allocation9 + $0x1458] sm:$0xff]
    %v3154 = vld [vmem:[#allocation9 + $0x1460] sm:$0xff]
    %v3155 = vld [vmem:[#allocation9 + $0x1468] sm:$0xff]
    %v3156 = vld [vmem:[#allocation9 + $0x1470] sm:$0xff]
    %v3157 = vld [vmem:[#allocation9 + $0x1478] sm:$0xff]
    %v3158 = vld [vmem:[#allocation9 + $0x1480] sm:$0xff]
    %v3159 = vld [vmem:[#allocation9 + $0x1488] sm:$0xff]
    %v3160 = vld [vmem:[#allocation9 + $0x1490] sm:$0xff]
    %v3161 = vld [vmem:[#allocation9 + $0x1498] sm:$0xff]
    %v3162 = vld [vmem:[#allocation9 + $0x14a0] sm:$0xff]
    %v3163 = vld [vmem:[#allocation9 + $0x14a8] sm:$0xff]
    %v3164 = vld [vmem:[#allocation9 + $0x14b0] sm:$0xff]
    %v3165 = vld [vmem:[#allocation9 + $0x14b8] sm:$0xff]
    %v3166 = vld [vmem:[#allocation9 + $0x14c0] sm:$0xff]
    %v3167 = vld [vmem:[#allocation9 + $0x14c8] sm:$0xff]
    %v3168 = vld [vmem:[#allocation9 + $0x14d0] sm:$0xff]
    %v3169 = vld [vmem:[#allocation9 + $0x14d8] sm:$0xff]
    %v3170 = vld [vmem:[#allocation9 + $0x14e0] sm:$0xff]
    %v3171 = vld [vmem:[#allocation9 + $0x14e8] sm:$0xff]
    %v3172 = vld [vmem:[#allocation9 + $0x14f0] sm:$0xff]
    %v3173 = vld [vmem:[#allocation9 + $0x14f8] sm:$0xff]
    %v3174 = vld [vmem:[#allocation9 + $0x1500] sm:$0xff]
    %v3175 = vld [vmem:[#allocation9 + $0x1508] sm:$0xff]
    %v3176 = vld [vmem:[#allocation9 + $0x1510] sm:$0xff]
    %v3177 = vld [vmem:[#allocation9 + $0x1518] sm:$0xff]
    %v3178 = vld [vmem:[#allocation9 + $0x1520] sm:$0xff]
    %v3179 = vld [vmem:[#allocation9 + $0x1528] sm:$0xff]
    %v3180 = vld [vmem:[#allocation9 + $0x1530] sm:$0xff]
    %v3181 = vld [vmem:[#allocation9 + $0x1538] sm:$0xff]
    %v3182 = vld [vmem:[#allocation9 + $0x1540] sm:$0xff]
    %v3183 = vld [vmem:[#allocation9 + $0x1548] sm:$0xff]
    %v3184 = vld [vmem:[#allocation9 + $0x1550] sm:$0xff]
    %v3185 = vld [vmem:[#allocation9 + $0x1558] sm:$0xff]
    %v3186 = vld [vmem:[#allocation9 + $0x1560] sm:$0xff]
    %v3187 = vld [vmem:[#allocation9 + $0x1568] sm:$0xff]
    %v3188 = vld [vmem:[#allocation9 + $0x1570] sm:$0xff]
    %v3189 = vld [vmem:[#allocation9 + $0x1578] sm:$0xff]
    %v3190 = vld [vmem:[#allocation9 + $0x1580] sm:$0xff]
    %v3191 = vld [vmem:[#allocation9 + $0x1588] sm:$0xff]
    %v3192 = vld [vmem:[#allocation9 + $0x1590] sm:$0xff]
    %v3193 = vld [vmem:[#allocation9 + $0x1598] sm:$0xff]
    %v3194 = vld [vmem:[#allocation9 + $0x15a0] sm:$0xff]
    %v3195 = vld [vmem:[#allocation9 + $0x15a8] sm:$0xff]
    %v3196 = vld [vmem:[#allocation9 + $0x15b0] sm:$0xff]
    %v3197 = vld [vmem:[#allocation9 + $0x15b8] sm:$0xff]
    %v3198 = vld [vmem:[#allocation9 + $0x15c0] sm:$0xff]
    %v3199 = vld [vmem:[#allocation9 + $0x15c8] sm:$0xff]
    %v3200 = vld [vmem:[#allocation9 + $0x15d0] sm:$0xff]
    %v3201 = vld [vmem:[#allocation9 + $0x15d8] sm:$0xff]
    %v3202 = vld [vmem:[#allocation9 + $0x15e0] sm:$0xff]
    %v3203 = vld [vmem:[#allocation9 + $0x15e8] sm:$0xff]
    %v3204 = vld [vmem:[#allocation9 + $0x15f0] sm:$0xff]
    %v3205 = vld [vmem:[#allocation9 + $0x15f8] sm:$0xff]
    %v3206 = vld [vmem:[#allocation9 + $0x1600] sm:$0xff]
    %v3207 = vld [vmem:[#allocation9 + $0x1608] sm:$0xff]
    %v3208 = vld [vmem:[#allocation9 + $0x1610] sm:$0xff]
    %v3209 = vld [vmem:[#allocation9 + $0x1618] sm:$0xff]
    %v3210 = vld [vmem:[#allocation9 + $0x1620] sm:$0xff]
    %v3211 = vld [vmem:[#allocation9 + $0x1628] sm:$0xff]
    %v3212 = vld [vmem:[#allocation9 + $0x1630] sm:$0xff]
    %v3213 = vld [vmem:[#allocation9 + $0x1638] sm:$0xff]
    %v3214 = vld [vmem:[#allocation9 + $0x1640] sm:$0xff]
    %v3215 = vld [vmem:[#allocation9 + $0x1648] sm:$0xff]
    %v3216 = vld [vmem:[#allocation9 + $0x1650] sm:$0xff]
    %v3217 = vld [vmem:[#allocation9 + $0x1658] sm:$0xff]
    %v3218 = vld [vmem:[#allocation9 + $0x1660] sm:$0xff]
    %v3219 = vld [vmem:[#allocation9 + $0x1668] sm:$0xff]
    %v3220 = vld [vmem:[#allocation9 + $0x1670] sm:$0xff]
    %v3221 = vld [vmem:[#allocation9 + $0x1678] sm:$0xff]
    %v3222 = vld [vmem:[#allocation9 + $0x1680] sm:$0xff]
    %v3223 = vld [vmem:[#allocation9 + $0x1688] sm:$0xff]
    %v3224 = vld [vmem:[#allocation9 + $0x1690] sm:$0xff]
    %v3225 = vld [vmem:[#allocation9 + $0x1698] sm:$0xff]
    %v3226 = vld [vmem:[#allocation9 + $0x16a0] sm:$0xff]
    %v3227 = vld [vmem:[#allocation9 + $0x16a8] sm:$0xff]
    %v3228 = vld [vmem:[#allocation9 + $0x16b0] sm:$0xff]
    %v3229 = vld [vmem:[#allocation9 + $0x16b8] sm:$0xff]
    %v3230 = vld [vmem:[#allocation9 + $0x16c0] sm:$0xff]
    %v3231 = vld [vmem:[#allocation9 + $0x16c8] sm:$0xff]
    %v3232 = vld [vmem:[#allocation9 + $0x16d0] sm:$0xff]
    %v3233 = vld [vmem:[#allocation9 + $0x16d8] sm:$0xff]
    %v3234 = vld [vmem:[#allocation9 + $0x16e0] sm:$0xff]
    %v3235 = vld [vmem:[#allocation9 + $0x16e8] sm:$0xff]
    %v3236 = vld [vmem:[#allocation9 + $0x16f0] sm:$0xff]
    %v3237 = vld [vmem:[#allocation9 + $0x16f8] sm:$0xff]
    %v3238 = vld [vmem:[#allocation9 + $0x1700] sm:$0xff]
    %v3239 = vld [vmem:[#allocation9 + $0x1708] sm:$0xff]
    %v3240 = vld [vmem:[#allocation9 + $0x1710] sm:$0xff]
    %v3241 = vld [vmem:[#allocation9 + $0x1718] sm:$0xff]
    %v3242 = vld [vmem:[#allocation9 + $0x1720] sm:$0xff]
    %v3243 = vld [vmem:[#allocation9 + $0x1728] sm:$0xff]
    %v3244 = vld [vmem:[#allocation9 + $0x1730] sm:$0xff]
    %v3245 = vld [vmem:[#allocation9 + $0x1738] sm:$0xff]
    %v3246 = vld [vmem:[#allocation9 + $0x1740] sm:$0xff]
    %v3247 = vld [vmem:[#allocation9 + $0x1748] sm:$0xff]
    %v3248 = vld [vmem:[#allocation9 + $0x1750] sm:$0xff]
    %v3249 = vld [vmem:[#allocation9 + $0x1758] sm:$0xff]
    %v3250 = vld [vmem:[#allocation9 + $0x1760] sm:$0xff]
    %v3251 = vld [vmem:[#allocation9 + $0x1768] sm:$0xff]
    %v3252 = vld [vmem:[#allocation9 + $0x1770] sm:$0xff]
    %v3253 = vld [vmem:[#allocation9 + $0x1778] sm:$0xff]
    %v3254 = vld [vmem:[#allocation9 + $0x1780] sm:$0xff]
    %v3255 = vld [vmem:[#allocation9 + $0x1788] sm:$0xff]
    %v3256 = vld [vmem:[#allocation9 + $0x1790] sm:$0xff]
    %v3257 = vld [vmem:[#allocation9 + $0x1798] sm:$0xff]
    %v3258 = vld [vmem:[#allocation9 + $0x17a0] sm:$0xff]
    %v3259 = vld [vmem:[#allocation9 + $0x17a8] sm:$0xff]
    %v3260 = vld [vmem:[#allocation9 + $0x17b0] sm:$0xff]
    %v3261 = vld [vmem:[#allocation9 + $0x17b8] sm:$0xff]
    %v3262 = vld [vmem:[#allocation9 + $0x17c0] sm:$0xff]
    %v3263 = vld [vmem:[#allocation9 + $0x17c8] sm:$0xff]
    %v3264 = vld [vmem:[#allocation9 + $0x17d0] sm:$0xff]
    %v3265 = vld [vmem:[#allocation9 + $0x17d8] sm:$0xff]
    %v3266 = vld [vmem:[#allocation9 + $0x17e0] sm:$0xff]
    %v3267 = vld [vmem:[#allocation9 + $0x17e8] sm:$0xff]
    %v3268 = vld [vmem:[#allocation9 + $0x17f0] sm:$0xff]
    %v3269 = vld [vmem:[#allocation9 + $0x17f8] sm:$0xff]
    %v3270 = vld [vmem:[#allocation9 + $0x1800] sm:$0xff]
    %v3271 = vld [vmem:[#allocation9 + $0x1808] sm:$0xff]
    %v3272 = vld [vmem:[#allocation9 + $0x1810] sm:$0xff]
    %v3273 = vld [vmem:[#allocation9 + $0x1818] sm:$0xff]
    %v3274 = vld [vmem:[#allocation9 + $0x1820] sm:$0xff]
    %v3275 = vld [vmem:[#allocation9 + $0x1828] sm:$0xff]
    %v3276 = vld [vmem:[#allocation9 + $0x1830] sm:$0xff]
    %v3277 = vld [vmem:[#allocation9 + $0x1838] sm:$0xff]
    %v3278 = vld [vmem:[#allocation9 + $0x1840] sm:$0xff]
    %v3279 = vld [vmem:[#allocation9 + $0x1848] sm:$0xff]
    %v3280 = vld [vmem:[#allocation9 + $0x1850] sm:$0xff]
    %v3281 = vld [vmem:[#allocation9 + $0x1858] sm:$0xff]
    %v3282 = vld [vmem:[#allocation9 + $0x1860] sm:$0xff]
    %v3283 = vld [vmem:[#allocation9 + $0x1868] sm:$0xff]
    %v3284 = vld [vmem:[#allocation9 + $0x1870] sm:$0xff]
    %v3285 = vld [vmem:[#allocation9 + $0x1878] sm:$0xff]
    %v3286 = vld [vmem:[#allocation10] sm:$0xff]
    %v3288 = vlaneseq
    %v3289 = vshrl.u32 %v3288, 7
    %v3290 = vsub.s32 0, %v3289
    %v3291 = vrot.slane %v3286, %v3290
    %v3292 = vlaneseq
    %v3293 = vshrl.u32 %v3292, 7
    %v3294 = vsub.s32 1, %v3293
    %v3295 = vrot.slane %v3286, %v3294
    %v3296 = vlaneseq
    %v3297 = vshrl.u32 %v3296, 7
    %v3298 = vsub.s32 2, %v3297
    %v3299 = vrot.slane %v3286, %v3298
    %v3300 = vlaneseq
    %v3301 = vshrl.u32 %v3300, 7
    %v3302 = vsub.s32 3, %v3301
    %v3303 = vrot.slane %v3286, %v3302
    %v3304 = vlaneseq
    %v3305 = vshrl.u32 %v3304, 7
    %v3306 = vsub.s32 4, %v3305
    %v3307 = vrot.slane %v3286, %v3306
    %v3308 = vlaneseq
    %v3309 = vshrl.u32 %v3308, 7
    %v3310 = vsub.s32 5, %v3309
    %v3311 = vrot.slane %v3286, %v3310
    %v3312 = vlaneseq
    %v3313 = vshrl.u32 %v3312, 7
    %v3314 = vsub.s32 6, %v3313
    %v3315 = vrot.slane %v3286, %v3314
    %3323 = vmatprep.subr.mxu0 %v2503
    %3324 = vmatpush1.msra.mxu0 %v2502
    %3325 = vmatprep.subr.mxu0 %v2510
    %3326 = vmatpush1.msra.mxu0 %v2509
    %3327 = vmatprep.subr.mxu0 %v2517
    %3328 = vmatpush1.msra.mxu0 %v2516
    %3329 = vmatprep.subr.mxu0 %v2524
    %3330 = vmatpush1.msra.mxu0 %v2523
    %3331 = vmatprep.subr.mxu0 %v2531
    %3332 = vmatpush1.msra.mxu0 %v2530
    %3333 = vmatprep.subr.mxu0 %v2538
    %3334 = vmatpush1.msra.mxu0 %v2537
    %3335 = vmatprep.subr.mxu0 %v2545
    %3336 = vmatpush1.msra.mxu0 %v2544
    %3337 = vmatprep.subr.mxu0 %v2552
    %3338 = vmatpush1.msra.mxu0 %v2551
    %3339 = vmatprep.subr.mxu0 %v2559
    %3340 = vmatpush1.msra.mxu0 %v2558
    %3341 = vmatprep.subr.mxu0 %v2566
    %3342 = vmatpush1.msra.mxu0 %v2565
    %3343 = vmatprep.subr.mxu0 %v2573
    %3344 = vmatpush1.msra.mxu0 %v2572
    %3345 = vmatprep.subr.mxu0 %v2580
    %3346 = vmatpush1.msra.mxu0 %v2579
    %3347 = vmatprep.subr.mxu0 %v2587
    %3348 = vmatpush1.msra.mxu0 %v2586
    %3349 = vmatprep.subr.mxu0 %v2594
    %3350 = vmatpush1.msra.mxu0 %v2593
    %3351 = vmatprep.subr.mxu0 %v2601
    %3352 = vmatpush1.msra.mxu0 %v2600
    %3353 = vmatprep.subr.mxu0 %v2608
    %3354 = vmatpush1.msra.mxu0 %v2607
    %3355 = vmatprep.subr.mxu0 %v2615
    %3356 = vmatpush1.msra.mxu0 %v2614
    %3357 = vmatprep.subr.mxu0 %v2622
    %3358 = vmatpush1.msra.mxu0 %v2621
    %3359 = vmatprep.subr.mxu0 %v2629
    %3360 = vmatpush1.msra.mxu0 %v2628
    %3361 = vmatprep.subr.mxu0 %v2636
    %3362 = vmatpush1.msra.mxu0 %v2635
    %3363 = vmatprep.subr.mxu0 %v2643
    %3364 = vmatpush1.msra.mxu0 %v2642
    %3365 = vmatprep.subr.mxu0 %v2650
    %3366 = vmatpush1.msra.mxu0 %v2649
    %3367 = vmatprep.subr.mxu0 %v2657
    %3368 = vmatpush1.msra.mxu0 %v2656
    %3369 = vmatprep.subr.mxu0 %v2664
    %3370 = vmatpush1.msra.mxu0 %v2663
    %3371 = vmatprep.subr.mxu0 %v2671
    %3372 = vmatpush1.msra.mxu0 %v2670
    %3373 = vmatprep.subr.mxu0 %v2678
    %3374 = vmatpush1.msra.mxu0 %v2677
    %3375 = vmatprep.subr.mxu0 %v2685
    %3376 = vmatpush1.msra.mxu0 %v2684
    %3377 = vmatprep.subr.mxu0 %v2692
    %3378 = vmatpush1.msra.mxu0 %v2691
    %3379 = vmatprep.subr.mxu0 %v2699
    %3380 = vmatpush1.msra.mxu0 %v2698
    %3381 = vmatprep.subr.mxu0 %v2706
    %3382 = vmatpush1.msra.mxu0 %v2705
    %3383 = vmatprep.subr.mxu0 %v2713
    %3384 = vmatpush1.msra.mxu0 %v2712
    %3385 = vmatprep.subr.mxu0 %v2720
    %3386 = vmatpush1.msra.mxu0 %v2719
    %3387 = vmatprep.mubr.f32.mxu0 %v2496
    %3388 = vmatmul.mubr.f32.gmra.mrb[0].mxu0 %v2495
    %v3389 = vpop.f32.mrb[0].mxu0
    %v3390 = vadd.f32 %v3291, %v3389
    %v3391 = vpop.f32.mrb[0].mxu0
    %v3392 = vadd.f32 %v3295, %v3391
    %3393 = vdwg.mxu0
    %3394 = vmatprep.subr.mxu0 %v2727
    %3395 = vmatpush1.msra.mxu0 %v2726
    %3396 = vmatprep.subr.mxu0 %v2734
    %3397 = vmatpush1.msra.mxu0 %v2733
    %3398 = vmatprep.subr.mxu0 %v2741
    %3399 = vmatpush1.msra.mxu0 %v2740
    %3400 = vmatprep.subr.mxu0 %v2748
    %3401 = vmatpush1.msra.mxu0 %v2747
    %3402 = vmatprep.subr.mxu0 %v2755
    %3403 = vmatpush1.msra.mxu0 %v2754
    %3404 = vmatprep.subr.mxu0 %v2762
    %3405 = vmatpush1.msra.mxu0 %v2761
    %3406 = vmatprep.subr.mxu0 %v2769
    %3407 = vmatpush1.msra.mxu0 %v2768
    %3408 = vmatprep.subr.mxu0 %v2776
    %3409 = vmatpush1.msra.mxu0 %v2775
    %3410 = vmatprep.subr.mxu0 %v2783
    %3411 = vmatpush1.msra.mxu0 %v2782
    %3412 = vmatprep.subr.mxu0 %v2790
    %3413 = vmatpush1.msra.mxu0 %v2789
    %3414 = vmatprep.subr.mxu0 %v2797
    %3415 = vmatpush1.msra.mxu0 %v2796
    %3416 = vmatprep.subr.mxu0 %v2804
    %3417 = vmatpush1.msra.mxu0 %v2803
    %3418 = vmatprep.subr.mxu0 %v2811
    %3419 = vmatpush1.msra.mxu0 %v2810
    %3420 = vmatprep.subr.mxu0 %v2818
    %3421 = vmatpush1.msra.mxu0 %v2817
    %3422 = vmatprep.subr.mxu0 %v2825
    %3423 = vmatpush1.msra.mxu0 %v2824
    %3424 = vmatprep.subr.mxu0 %v2832
    %3425 = vmatpush1.msra.mxu0 %v2831
    %3426 = vmatprep.subr.mxu0 %v2839
    %3427 = vmatpush1.msra.mxu0 %v2838
    %3428 = vmatprep.subr.mxu0 %v2846
    %3429 = vmatpush1.msra.mxu0 %v2845
    %3430 = vmatprep.subr.mxu0 %v2853
    %3431 = vmatpush1.msra.mxu0 %v2852
    %3432 = vmatprep.subr.mxu0 %v2860
    %3433 = vmatpush1.msra.mxu0 %v2859
    %3434 = vmatprep.subr.mxu0 %v2867
    %3435 = vmatpush1.msra.mxu0 %v2866
    %3436 = vmatprep.subr.mxu0 %v2874
    %3437 = vmatpush1.msra.mxu0 %v2873
    %3438 = vmatprep.subr.mxu0 %v2881
    %3439 = vmatpush1.msra.mxu0 %v2880
    %3440 = vmatprep.subr.mxu0 %v2888
    %3441 = vmatpush1.msra.mxu0 %v2887
    %3442 = vmatprep.subr.mxu0 %v2895
    %3443 = vmatpush1.msra.mxu0 %v2894
    %3444 = vmatprep.subr.mxu0 %v2902
    %3445 = vmatpush1.msra.mxu0 %v2901
    %3446 = vmatprep.subr.mxu0 %v2909
    %3447 = vmatpush1.msra.mxu0 %v2908
    %3448 = vmatprep.subr.mxu0 %v2916
    %3449 = vmatpush1.msra.mxu0 %v2915
    %3450 = vmatprep.subr.mxu0 %v2923
    %3451 = vmatpush1.msra.mxu0 %v2922
    %3452 = vmatprep.subr.mxu0 %v2930
    %3453 = vmatpush1.msra.mxu0 %v2929
    %3454 = vmatprep.subr.mxu0 %v2937
    %3455 = vmatpush1.msra.mxu0 %v2936
    %3456 = vmatprep.subr.mxu0 %v2944
    %3457 = vmatpush1.msra.mxu0 %v2943
    %3458 = vmatprep.mubr.f32.mxu0 %v2498
    %3459 = vmatmul.mubr.f32.gmra.mrb[0].mxu0 %v2497
    %v3460 = vpop.f32.mrb[0].mxu0
    %v3461 = vadd.f32 %v3390, %v3460
    %v3462 = vpop.f32.mrb[0].mxu0
    %v3463 = vadd.f32 %v3392, %v3462
    %3464 = vdwg.mxu0
    %3465 = vmatprep.subr.mxu0 %v2951
    %3466 = vmatpush1.msra.mxu0 %v2950
    %3467 = vmatprep.subr.mxu0 %v2958
    %3468 = vmatpush1.msra.mxu0 %v2957
    %3469 = vmatprep.subr.mxu0 %v2965
    %3470 = vmatpush1.msra.mxu0 %v2964
    %3471 = vmatprep.subr.mxu0 %v2972
    %3472 = vmatpush1.msra.mxu0 %v2971
    %3473 = vmatprep.subr.mxu0 %v2979
    %3474 = vmatpush1.msra.mxu0 %v2978
    %3475 = vmatprep.subr.mxu0 %v2986
    %3476 = vmatpush1.msra.mxu0 %v2985
    %3477 = vmatprep.subr.mxu0 %v2993
    %3478 = vmatpush1.msra.mxu0 %v2992
    %3479 = vmatprep.subr.mxu0 %v3000
    %3480 = vmatpush1.msra.mxu0 %v2999
    %3481 = vmatprep.subr.mxu0 %v3007
    %3482 = vmatpush1.msra.mxu0 %v3006
    %3483 = vmatprep.subr.mxu0 %v3014
    %3484 = vmatpush1.msra.mxu0 %v3013
    %3485 = vmatprep.subr.mxu0 %v3021
    %3486 = vmatpush1.msra.mxu0 %v3020
    %3487 = vmatprep.subr.mxu0 %v3028
    %3488 = vmatpush1.msra.mxu0 %v3027
    %3489 = vmatprep.subr.mxu0 %v3035
    %3490 = vmatpush1.msra.mxu0 %v3034
    %3491 = vmatprep.subr.mxu0 %v3042
    %3492 = vmatpush1.msra.mxu0 %v3041
    %3493 = vmatprep.subr.mxu0 %v3049
    %3494 = vmatpush1.msra.mxu0 %v3048
    %3495 = vmatprep.subr.mxu0 %v3056
    %3496 = vmatpush1.msra.mxu0 %v3055
    %3497 = vmatprep.subr.mxu0 %v3063
    %3498 = vmatpush1.msra.mxu0 %v3062
    %3499 = vmatprep.subr.mxu0 %v3070
    %3500 = vmatpush1.msra.mxu0 %v3069
    %3501 = vmatprep.subr.mxu0 %v3077
    %3502 = vmatpush1.msra.mxu0 %v3076
    %3503 = vmatprep.subr.mxu0 %v3084
    %3504 = vmatpush1.msra.mxu0 %v3083
    %3505 = vmatprep.subr.mxu0 %v3091
    %3506 = vmatpush1.msra.mxu0 %v3090
    %3507 = vmatprep.subr.mxu0 %v3098
    %3508 = vmatpush1.msra.mxu0 %v3097
    %3509 = vmatprep.subr.mxu0 %v3105
    %3510 = vmatpush1.msra.mxu0 %v3104
    %3511 = vmatprep.subr.mxu0 %v3112
    %3512 = vmatpush1.msra.mxu0 %v3111
    %3513 = vmatprep.subr.mxu0 %v3119
    %3514 = vmatpush1.msra.mxu0 %v3118
    %3515 = vmatprep.subr.mxu0 %v3126
    %3516 = vmatpush1.msra.mxu0 %v3125
    %3517 = vmatprep.subr.mxu0 %v3133
    %3518 = vmatpush1.msra.mxu0 %v3132
    %3519 = vmatprep.subr.mxu0 %v3140
    %3520 = vmatpush1.msra.mxu0 %v3139
    %3521 = vmatprep.subr.mxu0 %v3147
    %3522 = vmatpush1.msra.mxu0 %v3146
    %3523 = vmatprep.subr.mxu0 %v3154
    %3524 = vmatpush1.msra.mxu0 %v3153
    %3525 = vmatprep.subr.mxu0 %v3161
    %3526 = vmatpush1.msra.mxu0 %v3160
    %3527 = vmatprep.subr.mxu0 %v3168
    %3528 = vmatpush1.msra.mxu0 %v3167
    %3529 = vmatprep.mubr.f32.mxu0 %v2500
    %3530 = vmatmul.mubr.f32.gmra.mrb[0].mxu0 %v2499
    %v3531 = vpop.f32.mrb[0].mxu0
    %v3532 = vadd.f32 %v3461, %v3531
    %v3533 = vpop.f32.mrb[0].mxu0
    %v3534 = vadd.f32 %v3463, %v3533
    %3535 = vdwg.mxu0
    %3536 = vmatprep.subr.mxu0 %v3175
    %3537 = vmatpush1.msra.mxu0 %v3174
    %3538 = vmatprep.subr.mxu0 %v3182
    %3539 = vmatpush1.msra.mxu0 %v3181
    %3540 = vmatprep.subr.mxu0 %v3189
    %3541 = vmatpush1.msra.mxu0 %v3188
    %3542 = vmatprep.subr.mxu0 %v3196
    %3543 = vmatpush1.msra.mxu0 %v3195
    %3544 = vmatprep.subr.mxu0 %v3203
    %3545 = vmatpush1.msra.mxu0 %v3202
    %3546 = vmatprep.subr.mxu0 %v3210
    %3547 = vmatpush1.msra.mxu0 %v3209
    %3548 = vmatprep.subr.mxu0 %v3217
    %3549 = vmatpush1.msra.mxu0 %v3216
    %3550 = vmatprep.subr.mxu0 %v3224
    %3551 = vmatpush1.msra.mxu0 %v3223
    %3552 = vmatprep.subr.mxu0 %v3231
    %3553 = vmatpush1.msra.mxu0 %v3230
    %3554 = vmatprep.subr.mxu0 %v3238
    %3555 = vmatpush1.msra.mxu0 %v3237
    %3556 = vmatprep.subr.mxu0 %v3245
    %3557 = vmatpush1.msra.mxu0 %v3244
    %3558 = vmatprep.subr.mxu0 %v3252
    %3559 = vmatpush1.msra.mxu0 %v3251
    %3560 = vmatprep.subr.mxu0 %v3259
    %3561 = vmatpush1.msra.mxu0 %v3258
    %3562 = vmatprep.subr.mxu0 %v3266
    %3563 = vmatpush1.msra.mxu0 %v3265
    %3564 = vmatprep.subr.mxu0 %v3273
    %3565 = vmatpush1.msra.mxu0 %v3272
    %3566 = vmatprep.subr.mxu0 %v3280
    %3567 = vmatpush1.msra.mxu0 %v3279
    %3568 = vmatprep.subr.mxu0 0.0
    %3569 = vmatpush1.msra.mxu0 0.0
    %3570 = vmatprep.subr.mxu0 0.0
    %3571 = vmatpush1.msra.mxu0 0.0
    %3572 = vmatprep.subr.mxu0 0.0
    %3573 = vmatpush1.msra.mxu0 0.0
    %3574 = vmatprep.subr.mxu0 0.0
    %3575 = vmatpush1.msra.mxu0 0.0
    %3576 = vmatprep.subr.mxu0 0.0
    %3577 = vmatpush1.msra.mxu0 0.0
    %3578 = vmatprep.subr.mxu0 0.0
    %3579 = vmatpush1.msra.mxu0 0.0
    %3580 = vmatprep.subr.mxu0 0.0
    %3581 = vmatpush1.msra.mxu0 0.0
    %3582 = vmatprep.subr.mxu0 0.0
    %3583 = vmatpush1.msra.mxu0 0.0
    %3584 = vmatprep.subr.mxu0 0.0
    %3585 = vmatpush1.msra.mxu0 0.0
    %3586 = vmatprep.subr.mxu0 0.0
    %3587 = vmatpush1.msra.mxu0 0.0
    %3588 = vmatprep.subr.mxu0 0.0
    %3589 = vmatpush1.msra.mxu0 0.0
    %3590 = vmatprep.subr.mxu0 0.0
    %3591 = vmatpush1.msra.mxu0 0.0
    %3592 = vmatprep.subr.mxu0 0.0
    %3593 = vmatpush1.msra.mxu0 0.0
    %3594 = vmatprep.subr.mxu0 0.0
    %3595 = vmatpush1.msra.mxu0 0.0
    %3596 = vmatprep.subr.mxu0 0.0
    %3597 = vmatpush1.msra.mxu0 0.0
    %3598 = vmatprep.subr.mxu0 0.0
    %3599 = vmatpush1.msra.mxu0 0.0
    %3600 = vmatprep.mubr.f32.mxu0 0.0
    %3601 = vmatmul.mubr.f32.gmra.mrb[0].mxu0 %v2501
    %v3602 = vpop.f32.mrb[0].mxu0
    %v3603 = vadd.f32 %v3532, %v3602
    %v3604 = vpop.f32.mrb[0].mxu0
    %v3605 = vadd.f32 %v3534, %v3604
    %3606 = vdwg.mxu0
    %3607 = vmatprep.subr.mxu0 %v2505
    %3608 = vmatpush1.msra.mxu0 %v2504
    %3609 = vmatprep.subr.mxu0 %v2512
    %3610 = vmatpush1.msra.mxu0 %v2511
    %3611 = vmatprep.subr.mxu0 %v2519
    %3612 = vmatpush1.msra.mxu0 %v2518
    %3613 = vmatprep.subr.mxu0 %v2526
    %3614 = vmatpush1.msra.mxu0 %v2525
    %3615 = vmatprep.subr.mxu0 %v2533
    %3616 = vmatpush1.msra.mxu0 %v2532
    %3617 = vmatprep.subr.mxu0 %v2540
    %3618 = vmatpush1.msra.mxu0 %v2539
    %3619 = vmatprep.subr.mxu0 %v2547
    %3620 = vmatpush1.msra.mxu0 %v2546
    %3621 = vmatprep.subr.mxu0 %v2554
    %3622 = vmatpush1.msra.mxu0 %v2553
    %3623 = vmatprep.subr.mxu0 %v2561
    %3624 = vmatpush1.msra.mxu0 %v2560
    %3625 = vmatprep.subr.mxu0 %v2568
    %3626 = vmatpush1.msra.mxu0 %v2567
    %3627 = vmatprep.subr.mxu0 %v2575
    %3628 = vmatpush1.msra.mxu0 %v2574
    %3629 = vmatprep.subr.mxu0 %v2582
    %3630 = vmatpush1.msra.mxu0 %v2581
    %3631 = vmatprep.subr.mxu0 %v2589
    %3632 = vmatpush1.msra.mxu0 %v2588
    %3633 = vmatprep.subr.mxu0 %v2596
    %3634 = vmatpush1.msra.mxu0 %v2595
    %3635 = vmatprep.subr.mxu0 %v2603
    %3636 = vmatpush1.msra.mxu0 %v2602
    %3637 = vmatprep.subr.mxu0 %v2610
    %3638 = vmatpush1.msra.mxu0 %v2609
    %3639 = vmatprep.subr.mxu0 %v2617
    %3640 = vmatpush1.msra.mxu0 %v2616
    %3641 = vmatprep.subr.mxu0 %v2624
    %3642 = vmatpush1.msra.mxu0 %v2623
    %3643 = vmatprep.subr.mxu0 %v2631
    %3644 = vmatpush1.msra.mxu0 %v2630
    %3645 = vmatprep.subr.mxu0 %v2638
    %3646 = vmatpush1.msra.mxu0 %v2637
    %3647 = vmatprep.subr.mxu0 %v2645
    %3648 = vmatpush1.msra.mxu0 %v2644
    %3649 = vmatprep.subr.mxu0 %v2652
    %3650 = vmatpush1.msra.mxu0 %v2651
    %3651 = vmatprep.subr.mxu0 %v2659
    %3652 = vmatpush1.msra.mxu0 %v2658
    %3653 = vmatprep.subr.mxu0 %v2666
    %3654 = vmatpush1.msra.mxu0 %v2665
    %3655 = vmatprep.subr.mxu0 %v2673
    %3656 = vmatpush1.msra.mxu0 %v2672
    %3657 = vmatprep.subr.mxu0 %v2680
    %3658 = vmatpush1.msra.mxu0 %v2679
    %3659 = vmatprep.subr.mxu0 %v2687
    %3660 = vmatpush1.msra.mxu0 %v2686
    %3661 = vmatprep.subr.mxu0 %v2694
    %3662 = vmatpush1.msra.mxu0 %v2693
    %3663 = vmatprep.subr.mxu0 %v2701
    %3664 = vmatpush1.msra.mxu0 %v2700
    %3665 = vmatprep.subr.mxu0 %v2708
    %3666 = vmatpush1.msra.mxu0 %v2707
    %3667 = vmatprep.subr.mxu0 %v2715
    %3668 = vmatpush1.msra.mxu0 %v2714
    %3669 = vmatprep.subr.mxu0 %v2722
    %3670 = vmatpush1.msra.mxu0 %v2721
    %3671 = vmatprep.mubr.f32.mxu0 %v2496
    %3672 = vmatmul.mubr.f32.gmra.mrb[0].mxu0 %v2495
    %v3673 = vpop.f32.mrb[0].mxu0
    %v3674 = vadd.f32 %v3299, %v3673
    %v3675 = vpop.f32.mrb[0].mxu0
    %v3676 = vadd.f32 %v3303, %v3675
    %3677 = vdwg.mxu0
    %3678 = vmatprep.subr.mxu0 %v2729
    %3679 = vmatpush1.msra.mxu0 %v2728
    %3680 = vmatprep.subr.mxu0 %v2736
    %3681 = vmatpush1.msra.mxu0 %v2735
    %3682 = vmatprep.subr.mxu0 %v2743
    %3683 = vmatpush1.msra.mxu0 %v2742
    %3684 = vmatprep.subr.mxu0 %v2750
    %3685 = vmatpush1.msra.mxu0 %v2749
    %3686 = vmatprep.subr.mxu0 %v2757
    %3687 = vmatpush1.msra.mxu0 %v2756
    %3688 = vmatprep.subr.mxu0 %v2764
    %3689 = vmatpush1.msra.mxu0 %v2763
    %3690 = vmatprep.subr.mxu0 %v2771
    %3691 = vmatpush1.msra.mxu0 %v2770
    %3692 = vmatprep.subr.mxu0 %v2778
    %3693 = vmatpush1.msra.mxu0 %v2777
    %3694 = vmatprep.subr.mxu0 %v2785
    %3695 = vmatpush1.msra.mxu0 %v2784
    %3696 = vmatprep.subr.mxu0 %v2792
    %3697 = vmatpush1.msra.mxu0 %v2791
    %3698 = vmatprep.subr.mxu0 %v2799
    %3699 = vmatpush1.msra.mxu0 %v2798
    %3700 = vmatprep.subr.mxu0 %v2806
    %3701 = vmatpush1.msra.mxu0 %v2805
    %3702 = vmatprep.subr.mxu0 %v2813
    %3703 = vmatpush1.msra.mxu0 %v2812
    %3704 = vmatprep.subr.mxu0 %v2820
    %3705 = vmatpush1.msra.mxu0 %v2819
    %3706 = vmatprep.subr.mxu0 %v2827
    %3707 = vmatpush1.msra.mxu0 %v2826
    %3708 = vmatprep.subr.mxu0 %v2834
    %3709 = vmatpush1.msra.mxu0 %v2833
    %3710 = vmatprep.subr.mxu0 %v2841
    %3711 = vmatpush1.msra.mxu0 %v2840
    %3712 = vmatprep.subr.mxu0 %v2848
    %3713 = vmatpush1.msra.mxu0 %v2847
    %3714 = vmatprep.subr.mxu0 %v2855
    %3715 = vmatpush1.msra.mxu0 %v2854
    %3716 = vmatprep.subr.mxu0 %v2862
    %3717 = vmatpush1.msra.mxu0 %v2861
    %3718 = vmatprep.subr.mxu0 %v2869
    %3719 = vmatpush1.msra.mxu0 %v2868
    %3720 = vmatprep.subr.mxu0 %v2876
    %3721 = vmatpush1.msra.mxu0 %v2875
    %3722 = vmatprep.subr.mxu0 %v2883
    %3723 = vmatpush1.msra.mxu0 %v2882
    %3724 = vmatprep.subr.mxu0 %v2890
    %3725 = vmatpush1.msra.mxu0 %v2889
    %3726 = vmatprep.subr.mxu0 %v2897
    %3727 = vmatpush1.msra.mxu0 %v2896
    %3728 = vmatprep.subr.mxu0 %v2904
    %3729 = vmatpush1.msra.mxu0 %v2903
    %3730 = vmatprep.subr.mxu0 %v2911
    %3731 = vmatpush1.msra.mxu0 %v2910
    %3732 = vmatprep.subr.mxu0 %v2918
    %3733 = vmatpush1.msra.mxu0 %v2917
    %3734 = vmatprep.subr.mxu0 %v2925
    %3735 = vmatpush1.msra.mxu0 %v2924
    %3736 = vmatprep.subr.mxu0 %v2932
    %3737 = vmatpush1.msra.mxu0 %v2931
    %3738 = vmatprep.subr.mxu0 %v2939
    %3739 = vmatpush1.msra.mxu0 %v2938
    %3740 = vmatprep.subr.mxu0 %v2946
    %3741 = vmatpush1.msra.mxu0 %v2945
    %3742 = vmatprep.mubr.f32.mxu0 %v2498
    %3743 = vmatmul.mubr.f32.gmra.mrb[0].mxu0 %v2497
    %v3744 = vpop.f32.mrb[0].mxu0
    %v3745 = vadd.f32 %v3674, %v3744
    %v3746 = vpop.f32.mrb[0].mxu0
    %v3747 = vadd.f32 %v3676, %v3746
    %3748 = vdwg.mxu0
    %3749 = vmatprep.subr.mxu0 %v2953
    %3750 = vmatpush1.msra.mxu0 %v2952
    %3751 = vmatprep.subr.mxu0 %v2960
    %3752 = vmatpush1.msra.mxu0 %v2959
    %3753 = vmatprep.subr.mxu0 %v2967
    %3754 = vmatpush1.msra.mxu0 %v2966
    %3755 = vmatprep.subr.mxu0 %v2974
    %3756 = vmatpush1.msra.mxu0 %v2973
    %3757 = vmatprep.subr.mxu0 %v2981
    %3758 = vmatpush1.msra.mxu0 %v2980
    %3759 = vmatprep.subr.mxu0 %v2988
    %3760 = vmatpush1.msra.mxu0 %v2987
    %3761 = vmatprep.subr.mxu0 %v2995
    %3762 = vmatpush1.msra.mxu0 %v2994
    %3763 = vmatprep.subr.mxu0 %v3002
    %3764 = vmatpush1.msra.mxu0 %v3001
    %3765 = vmatprep.subr.mxu0 %v3009
    %3766 = vmatpush1.msra.mxu0 %v3008
    %3767 = vmatprep.subr.mxu0 %v3016
    %3768 = vmatpush1.msra.mxu0 %v3015
    %3769 = vmatprep.subr.mxu0 %v3023
    %3770 = vmatpush1.msra.mxu0 %v3022
    %3771 = vmatprep.subr.mxu0 %v3030
    %3772 = vmatpush1.msra.mxu0 %v3029
    %3773 = vmatprep.subr.mxu0 %v3037
    %3774 = vmatpush1.msra.mxu0 %v3036
    %3775 = vmatprep.subr.mxu0 %v3044
    %3776 = vmatpush1.msra.mxu0 %v3043
    %3777 = vmatprep.subr.mxu0 %v3051
    %3778 = vmatpush1.msra.mxu0 %v3050
    %3779 = vmatprep.subr.mxu0 %v3058
    %3780 = vmatpush1.msra.mxu0 %v3057
    %3781 = vmatprep.subr.mxu0 %v3065
    %3782 = vmatpush1.msra.mxu0 %v3064
    %3783 = vmatprep.subr.mxu0 %v3072
    %3784 = vmatpush1.msra.mxu0 %v3071
    %3785 = vmatprep.subr.mxu0 %v3079
    %3786 = vmatpush1.msra.mxu0 %v3078
    %3787 = vmatprep.subr.mxu0 %v3086
    %3788 = vmatpush1.msra.mxu0 %v3085
    %3789 = vmatprep.subr.mxu0 %v3093
    %3790 = vmatpush1.msra.mxu0 %v3092
    %3791 = vmatprep.subr.mxu0 %v3100
    %3792 = vmatpush1.msra.mxu0 %v3099
    %3793 = vmatprep.subr.mxu0 %v3107
    %3794 = vmatpush1.msra.mxu0 %v3106
    %3795 = vmatprep.subr.mxu0 %v3114
    %3796 = vmatpush1.msra.mxu0 %v3113
    %3797 = vmatprep.subr.mxu0 %v3121
    %3798 = vmatpush1.msra.mxu0 %v3120
    %3799 = vmatprep.subr.mxu0 %v3128
    %3800 = vmatpush1.msra.mxu0 %v3127
    %3801 = vmatprep.subr.mxu0 %v3135
    %3802 = vmatpush1.msra.mxu0 %v3134
    %3803 = vmatprep.subr.mxu0 %v3142
    %3804 = vmatpush1.msra.mxu0 %v3141
    %3805 = vmatprep.subr.mxu0 %v3149
    %3806 = vmatpush1.msra.mxu0 %v3148
    %3807 = vmatprep.subr.mxu0 %v3156
    %3808 = vmatpush1.msra.mxu0 %v3155
    %3809 = vmatprep.subr.mxu0 %v3163
    %3810 = vmatpush1.msra.mxu0 %v3162
    %3811 = vmatprep.subr.mxu0 %v3170
    %3812 = vmatpush1.msra.mxu0 %v3169
    %3813 = vmatprep.mubr.f32.mxu0 %v2500
    %3814 = vmatmul.mubr.f32.gmra.mrb[0].mxu0 %v2499
    %v3815 = vpop.f32.mrb[0].mxu0
    %v3816 = vadd.f32 %v3745, %v3815
    %v3817 = vpop.f32.mrb[0].mxu0
    %v3818 = vadd.f32 %v3747, %v3817
    %3819 = vdwg.mxu0
    %3820 = vmatprep.subr.mxu0 %v3177
    %3821 = vmatpush1.msra.mxu0 %v3176
    %3822 = vmatprep.subr.mxu0 %v3184
    %3823 = vmatpush1.msra.mxu0 %v3183
    %3824 = vmatprep.subr.mxu0 %v3191
    %3825 = vmatpush1.msra.mxu0 %v3190
    %3826 = vmatprep.subr.mxu0 %v3198
    %3827 = vmatpush1.msra.mxu0 %v3197
    %3828 = vmatprep.subr.mxu0 %v3205
    %3829 = vmatpush1.msra.mxu0 %v3204
    %3830 = vmatprep.subr.mxu0 %v3212
    %3831 = vmatpush1.msra.mxu0 %v3211
    %3832 = vmatprep.subr.mxu0 %v3219
    %3833 = vmatpush1.msra.mxu0 %v3218
    %3834 = vmatprep.subr.mxu0 %v3226
    %3835 = vmatpush1.msra.mxu0 %v3225
    %3836 = vmatprep.subr.mxu0 %v3233
    %3837 = vmatpush1.msra.mxu0 %v3232
    %3838 = vmatprep.subr.mxu0 %v3240
    %3839 = vmatpush1.msra.mxu0 %v3239
    %3840 = vmatprep.subr.mxu0 %v3247
    %3841 = vmatpush1.msra.mxu0 %v3246
    %3842 = vmatprep.subr.mxu0 %v3254
    %3843 = vmatpush1.msra.mxu0 %v3253
    %3844 = vmatprep.subr.mxu0 %v3261
    %3845 = vmatpush1.msra.mxu0 %v3260
    %3846 = vmatprep.subr.mxu0 %v3268
    %3847 = vmatpush1.msra.mxu0 %v3267
    %3848 = vmatprep.subr.mxu0 %v3275
    %3849 = vmatpush1.msra.mxu0 %v3274
    %3850 = vmatprep.subr.mxu0 %v3282
    %3851 = vmatpush1.msra.mxu0 %v3281
    %3852 = vmatprep.subr.mxu0 0.0
    %3853 = vmatpush1.msra.mxu0 0.0
    %3854 = vmatprep.subr.mxu0 0.0
    %3855 = vmatpush1.msra.mxu0 0.0
    %3856 = vmatprep.subr.mxu0 0.0
    %3857 = vmatpush1.msra.mxu0 0.0
    %3858 = vmatprep.subr.mxu0 0.0
    %3859 = vmatpush1.msra.mxu0 0.0
    %3860 = vmatprep.subr.mxu0 0.0
    %3861 = vmatpush1.msra.mxu0 0.0
    %3862 = vmatprep.subr.mxu0 0.0
    %3863 = vmatpush1.msra.mxu0 0.0
    %3864 = vmatprep.subr.mxu0 0.0
    %3865 = vmatpush1.msra.mxu0 0.0
    %3866 = vmatprep.subr.mxu0 0.0
    %3867 = vmatpush1.msra.mxu0 0.0
    %3868 = vmatprep.subr.mxu0 0.0
    %3869 = vmatpush1.msra.mxu0 0.0
    %3870 = vmatprep.subr.mxu0 0.0
    %3871 = vmatpush1.msra.mxu0 0.0
    %3872 = vmatprep.subr.mxu0 0.0
    %3873 = vmatpush1.msra.mxu0 0.0
    %3874 = vmatprep.subr.mxu0 0.0
    %3875 = vmatpush1.msra.mxu0 0.0
    %3876 = vmatprep.subr.mxu0 0.0
    %3877 = vmatpush1.msra.mxu0 0.0
    %3878 = vmatprep.subr.mxu0 0.0
    %3879 = vmatpush1.msra.mxu0 0.0
    %3880 = vmatprep.subr.mxu0 0.0
    %3881 = vmatpush1.msra.mxu0 0.0
    %3882 = vmatprep.subr.mxu0 0.0
    %3883 = vmatpush1.msra.mxu0 0.0
    %3884 = vmatprep.mubr.f32.mxu0 0.0
    %3885 = vmatmul.mubr.f32.gmra.mrb[0].mxu0 %v2501
    %v3886 = vpop.f32.mrb[0].mxu0
    %v3887 = vadd.f32 %v3816, %v3886
    %v3888 = vpop.f32.mrb[0].mxu0
    %v3889 = vadd.f32 %v3818, %v3888
    %3890 = vdwg.mxu0
    %3891 = vmatprep.subr.mxu0 %v2507
    %3892 = vmatpush1.msra.mxu0 %v2506
    %3893 = vmatprep.subr.mxu0 %v2514
    %3894 = vmatpush1.msra.mxu0 %v2513
    %3895 = vmatprep.subr.mxu0 %v2521
    %3896 = vmatpush1.msra.mxu0 %v2520
    %3897 = vmatprep.subr.mxu0 %v2528
    %3898 = vmatpush1.msra.mxu0 %v2527
    %3899 = vmatprep.subr.mxu0 %v2535
    %3900 = vmatpush1.msra.mxu0 %v2534
    %3901 = vmatprep.subr.mxu0 %v2542
    %3902 = vmatpush1.msra.mxu0 %v2541
    %3903 = vmatprep.subr.mxu0 %v2549
    %3904 = vmatpush1.msra.mxu0 %v2548
    %3905 = vmatprep.subr.mxu0 %v2556
    %3906 = vmatpush1.msra.mxu0 %v2555
    %3907 = vmatprep.subr.mxu0 %v2563
    %3908 = vmatpush1.msra.mxu0 %v2562
    %3909 = vmatprep.subr.mxu0 %v2570
    %3910 = vmatpush1.msra.mxu0 %v2569
    %3911 = vmatprep.subr.mxu0 %v2577
    %3912 = vmatpush1.msra.mxu0 %v2576
    %3913 = vmatprep.subr.mxu0 %v2584
    %3914 = vmatpush1.msra.mxu0 %v2583
    %3915 = vmatprep.subr.mxu0 %v2591
    %3916 = vmatpush1.msra.mxu0 %v2590
    %3917 = vmatprep.subr.mxu0 %v2598
    %3918 = vmatpush1.msra.mxu0 %v2597
    %3919 = vmatprep.subr.mxu0 %v2605
    %3920 = vmatpush1.msra.mxu0 %v2604
    %3921 = vmatprep.subr.mxu0 %v2612
    %3922 = vmatpush1.msra.mxu0 %v2611
    %3923 = vmatprep.subr.mxu0 %v2619
    %3924 = vmatpush1.msra.mxu0 %v2618
    %3925 = vmatprep.subr.mxu0 %v2626
    %3926 = vmatpush1.msra.mxu0 %v2625
    %3927 = vmatprep.subr.mxu0 %v2633
    %3928 = vmatpush1.msra.mxu0 %v2632
    %3929 = vmatprep.subr.mxu0 %v2640
    %3930 = vmatpush1.msra.mxu0 %v2639
    %3931 = vmatprep.subr.mxu0 %v2647
    %3932 = vmatpush1.msra.mxu0 %v2646
    %3933 = vmatprep.subr.mxu0 %v2654
    %3934 = vmatpush1.msra.mxu0 %v2653
    %3935 = vmatprep.subr.mxu0 %v2661
    %3936 = vmatpush1.msra.mxu0 %v2660
    %3937 = vmatprep.subr.mxu0 %v2668
    %3938 = vmatpush1.msra.mxu0 %v2667
    %3939 = vmatprep.subr.mxu0 %v2675
    %3940 = vmatpush1.msra.mxu0 %v2674
    %3941 = vmatprep.subr.mxu0 %v2682
    %3942 = vmatpush1.msra.mxu0 %v2681
    %3943 = vmatprep.subr.mxu0 %v2689
    %3944 = vmatpush1.msra.mxu0 %v2688
    %3945 = vmatprep.subr.mxu0 %v2696
    %3946 = vmatpush1.msra.mxu0 %v2695
    %3947 = vmatprep.subr.mxu0 %v2703
    %3948 = vmatpush1.msra.mxu0 %v2702
    %3949 = vmatprep.subr.mxu0 %v2710
    %3950 = vmatpush1.msra.mxu0 %v2709
    %3951 = vmatprep.subr.mxu0 %v2717
    %3952 = vmatpush1.msra.mxu0 %v2716
    %3953 = vmatprep.subr.mxu0 %v2724
    %3954 = vmatpush1.msra.mxu0 %v2723
    %3955 = vmatprep.mubr.f32.mxu0 %v2496
    %3956 = vmatmul.mubr.f32.gmra.mrb[0].mxu0 %v2495
    %v3957 = vpop.f32.mrb[0].mxu0
    %v3958 = vadd.f32 %v3307, %v3957
    %v3959 = vpop.f32.mrb[0].mxu0
    %v3960 = vadd.f32 %v3311, %v3959
    %3961 = vdwg.mxu0
    %3962 = vmatprep.subr.mxu0 %v2731
    %3963 = vmatpush1.msra.mxu0 %v2730
    %3964 = vmatprep.subr.mxu0 %v2738
    %3965 = vmatpush1.msra.mxu0 %v2737
    %3966 = vmatprep.subr.mxu0 %v2745
    %3967 = vmatpush1.msra.mxu0 %v2744
    %3968 = vmatprep.subr.mxu0 %v2752
    %3969 = vmatpush1.msra.mxu0 %v2751
    %3970 = vmatprep.subr.mxu0 %v2759
    %3971 = vmatpush1.msra.mxu0 %v2758
    %3972 = vmatprep.subr.mxu0 %v2766
    %3973 = vmatpush1.msra.mxu0 %v2765
    %3974 = vmatprep.subr.mxu0 %v2773
    %3975 = vmatpush1.msra.mxu0 %v2772
    %3976 = vmatprep.subr.mxu0 %v2780
    %3977 = vmatpush1.msra.mxu0 %v2779
    %3978 = vmatprep.subr.mxu0 %v2787
    %3979 = vmatpush1.msra.mxu0 %v2786
    %3980 = vmatprep.subr.mxu0 %v2794
    %3981 = vmatpush1.msra.mxu0 %v2793
    %3982 = vmatprep.subr.mxu0 %v2801
    %3983 = vmatpush1.msra.mxu0 %v2800
    %3984 = vmatprep.subr.mxu0 %v2808
    %3985 = vmatpush1.msra.mxu0 %v2807
    %3986 = vmatprep.subr.mxu0 %v2815
    %3987 = vmatpush1.msra.mxu0 %v2814
    %3988 = vmatprep.subr.mxu0 %v2822
    %3989 = vmatpush1.msra.mxu0 %v2821
    %3990 = vmatprep.subr.mxu0 %v2829
    %3991 = vmatpush1.msra.mxu0 %v2828
    %3992 = vmatprep.subr.mxu0 %v2836
    %3993 = vmatpush1.msra.mxu0 %v2835
    %3994 = vmatprep.subr.mxu0 %v2843
    %3995 = vmatpush1.msra.mxu0 %v2842
    %3996 = vmatprep.subr.mxu0 %v2850
    %3997 = vmatpush1.msra.mxu0 %v2849
    %3998 = vmatprep.subr.mxu0 %v2857
    %3999 = vmatpush1.msra.mxu0 %v2856
    %4000 = vmatprep.subr.mxu0 %v2864
    %4001 = vmatpush1.msra.mxu0 %v2863
    %4002 = vmatprep.subr.mxu0 %v2871
    %4003 = vmatpush1.msra.mxu0 %v2870
    %4004 = vmatprep.subr.mxu0 %v2878
    %4005 = vmatpush1.msra.mxu0 %v2877
    %4006 = vmatprep.subr.mxu0 %v2885
    %4007 = vmatpush1.msra.mxu0 %v2884
    %4008 = vmatprep.subr.mxu0 %v2892
    %4009 = vmatpush1.msra.mxu0 %v2891
    %4010 = vmatprep.subr.mxu0 %v2899
    %4011 = vmatpush1.msra.mxu0 %v2898
    %4012 = vmatprep.subr.mxu0 %v2906
    %4013 = vmatpush1.msra.mxu0 %v2905
    %4014 = vmatprep.subr.mxu0 %v2913
    %4015 = vmatpush1.msra.mxu0 %v2912
    %4016 = vmatprep.subr.mxu0 %v2920
    %4017 = vmatpush1.msra.mxu0 %v2919
    %4018 = vmatprep.subr.mxu0 %v2927
    %4019 = vmatpush1.msra.mxu0 %v2926
    %4020 = vmatprep.subr.mxu0 %v2934
    %4021 = vmatpush1.msra.mxu0 %v2933
    %4022 = vmatprep.subr.mxu0 %v2941
    %4023 = vmatpush1.msra.mxu0 %v2940
    %4024 = vmatprep.subr.mxu0 %v2948
    %4025 = vmatpush1.msra.mxu0 %v2947
    %4026 = vmatprep.mubr.f32.mxu0 %v2498
    %4027 = vmatmul.mubr.f32.gmra.mrb[0].mxu0 %v2497
    %v4028 = vpop.f32.mrb[0].mxu0
    %v4029 = vadd.f32 %v3958, %v4028
    %v4030 = vpop.f32.mrb[0].mxu0
    %v4031 = vadd.f32 %v3960, %v4030
    %4032 = vdwg.mxu0
    %4033 = vmatprep.subr.mxu0 %v2955
    %4034 = vmatpush1.msra.mxu0 %v2954
    %4035 = vmatprep.subr.mxu0 %v2962
    %4036 = vmatpush1.msra.mxu0 %v2961
    %4037 = vmatprep.subr.mxu0 %v2969
    %4038 = vmatpush1.msra.mxu0 %v2968
    %4039 = vmatprep.subr.mxu0 %v2976
    %4040 = vmatpush1.msra.mxu0 %v2975
    %4041 = vmatprep.subr.mxu0 %v2983
    %4042 = vmatpush1.msra.mxu0 %v2982
    %4043 = vmatprep.subr.mxu0 %v2990
    %4044 = vmatpush1.msra.mxu0 %v2989
    %4045 = vmatprep.subr.mxu0 %v2997
    %4046 = vmatpush1.msra.mxu0 %v2996
    %4047 = vmatprep.subr.mxu0 %v3004
    %4048 = vmatpush1.msra.mxu0 %v3003
    %4049 = vmatprep.subr.mxu0 %v3011
    %4050 = vmatpush1.msra.mxu0 %v3010
    %4051 = vmatprep.subr.mxu0 %v3018
    %4052 = vmatpush1.msra.mxu0 %v3017
    %4053 = vmatprep.subr.mxu0 %v3025
    %4054 = vmatpush1.msra.mxu0 %v3024
    %4055 = vmatprep.subr.mxu0 %v3032
    %4056 = vmatpush1.msra.mxu0 %v3031
    %4057 = vmatprep.subr.mxu0 %v3039
    %4058 = vmatpush1.msra.mxu0 %v3038
    %4059 = vmatprep.subr.mxu0 %v3046
    %4060 = vmatpush1.msra.mxu0 %v3045
    %4061 = vmatprep.subr.mxu0 %v3053
    %4062 = vmatpush1.msra.mxu0 %v3052
    %4063 = vmatprep.subr.mxu0 %v3060
    %4064 = vmatpush1.msra.mxu0 %v3059
    %4065 = vmatprep.subr.mxu0 %v3067
    %4066 = vmatpush1.msra.mxu0 %v3066
    %4067 = vmatprep.subr.mxu0 %v3074
    %4068 = vmatpush1.msra.mxu0 %v3073
    %4069 = vmatprep.subr.mxu0 %v3081
    %4070 = vmatpush1.msra.mxu0 %v3080
    %4071 = vmatprep.subr.mxu0 %v3088
    %4072 = vmatpush1.msra.mxu0 %v3087
    %4073 = vmatprep.subr.mxu0 %v3095
    %4074 = vmatpush1.msra.mxu0 %v3094
    %4075 = vmatprep.subr.mxu0 %v3102
    %4076 = vmatpush1.msra.mxu0 %v3101
    %4077 = vmatprep.subr.mxu0 %v3109
    %4078 = vmatpush1.msra.mxu0 %v3108
    %4079 = vmatprep.subr.mxu0 %v3116
    %4080 = vmatpush1.msra.mxu0 %v3115
    %4081 = vmatprep.subr.mxu0 %v3123
    %4082 = vmatpush1.msra.mxu0 %v3122
    %4083 = vmatprep.subr.mxu0 %v3130
    %4084 = vmatpush1.msra.mxu0 %v3129
    %4085 = vmatprep.subr.mxu0 %v3137
    %4086 = vmatpush1.msra.mxu0 %v3136
    %4087 = vmatprep.subr.mxu0 %v3144
    %4088 = vmatpush1.msra.mxu0 %v3143
    %4089 = vmatprep.subr.mxu0 %v3151
    %4090 = vmatpush1.msra.mxu0 %v3150
    %4091 = vmatprep.subr.mxu0 %v3158
    %4092 = vmatpush1.msra.mxu0 %v3157
    %4093 = vmatprep.subr.mxu0 %v3165
    %4094 = vmatpush1.msra.mxu0 %v3164
    %4095 = vmatprep.subr.mxu0 %v3172
    %4096 = vmatpush1.msra.mxu0 %v3171
    %4097 = vmatprep.mubr.f32.mxu0 %v2500
    %4098 = vmatmul.mubr.f32.gmra.mrb[0].mxu0 %v2499
    %v4099 = vpop.f32.mrb[0].mxu0
    %v4100 = vadd.f32 %v4029, %v4099
    %v4101 = vpop.f32.mrb[0].mxu0
    %v4102 = vadd.f32 %v4031, %v4101
    %4103 = vdwg.mxu0
    %4104 = vmatprep.subr.mxu0 %v3179
    %4105 = vmatpush1.msra.mxu0 %v3178
    %4106 = vmatprep.subr.mxu0 %v3186
    %4107 = vmatpush1.msra.mxu0 %v3185
    %4108 = vmatprep.subr.mxu0 %v3193
    %4109 = vmatpush1.msra.mxu0 %v3192
    %4110 = vmatprep.subr.mxu0 %v3200
    %4111 = vmatpush1.msra.mxu0 %v3199
    %4112 = vmatprep.subr.mxu0 %v3207
    %4113 = vmatpush1.msra.mxu0 %v3206
    %4114 = vmatprep.subr.mxu0 %v3214
    %4115 = vmatpush1.msra.mxu0 %v3213
    %4116 = vmatprep.subr.mxu0 %v3221
    %4117 = vmatpush1.msra.mxu0 %v3220
    %4118 = vmatprep.subr.mxu0 %v3228
    %4119 = vmatpush1.msra.mxu0 %v3227
    %4120 = vmatprep.subr.mxu0 %v3235
    %4121 = vmatpush1.msra.mxu0 %v3234
    %4122 = vmatprep.subr.mxu0 %v3242
    %4123 = vmatpush1.msra.mxu0 %v3241
    %4124 = vmatprep.subr.mxu0 %v3249
    %4125 = vmatpush1.msra.mxu0 %v3248
    %4126 = vmatprep.subr.mxu0 %v3256
    %4127 = vmatpush1.msra.mxu0 %v3255
    %4128 = vmatprep.subr.mxu0 %v3263
    %4129 = vmatpush1.msra.mxu0 %v3262
    %4130 = vmatprep.subr.mxu0 %v3270
    %4131 = vmatpush1.msra.mxu0 %v3269
    %4132 = vmatprep.subr.mxu0 %v3277
    %4133 = vmatpush1.msra.mxu0 %v3276
    %4134 = vmatprep.subr.mxu0 %v3284
    %4135 = vmatpush1.msra.mxu0 %v3283
    %4136 = vmatprep.subr.mxu0 0.0
    %4137 = vmatpush1.msra.mxu0 0.0
    %4138 = vmatprep.subr.mxu0 0.0
    %4139 = vmatpush1.msra.mxu0 0.0
    %4140 = vmatprep.subr.mxu0 0.0
    %4141 = vmatpush1.msra.mxu0 0.0
    %4142 = vmatprep.subr.mxu0 0.0
    %4143 = vmatpush1.msra.mxu0 0.0
    %4144 = vmatprep.subr.mxu0 0.0
    %4145 = vmatpush1.msra.mxu0 0.0
    %4146 = vmatprep.subr.mxu0 0.0
    %4147 = vmatpush1.msra.mxu0 0.0
    %4148 = vmatprep.subr.mxu0 0.0
    %4149 = vmatpush1.msra.mxu0 0.0
    %4150 = vmatprep.subr.mxu0 0.0
    %4151 = vmatpush1.msra.mxu0 0.0
    %4152 = vmatprep.subr.mxu0 0.0
    %4153 = vmatpush1.msra.mxu0 0.0
    %4154 = vmatprep.subr.mxu0 0.0
    %4155 = vmatpush1.msra.mxu0 0.0
    %4156 = vmatprep.subr.mxu0 0.0
    %4157 = vmatpush1.msra.mxu0 0.0
    %4158 = vmatprep.subr.mxu0 0.0
    %4159 = vmatpush1.msra.mxu0 0.0
    %4160 = vmatprep.subr.mxu0 0.0
    %4161 = vmatpush1.msra.mxu0 0.0
    %4162 = vmatprep.subr.mxu0 0.0
    %4163 = vmatpush1.msra.mxu0 0.0
    %4164 = vmatprep.subr.mxu0 0.0
    %4165 = vmatpush1.msra.mxu0 0.0
    %4166 = vmatprep.subr.mxu0 0.0
    %4167 = vmatpush1.msra.mxu0 0.0
    %4168 = vmatprep.mubr.f32.mxu0 0.0
    %4169 = vmatmul.mubr.f32.gmra.mrb[0].mxu0 %v2501
    %v4170 = vpop.f32.mrb[0].mxu0
    %v4171 = vadd.f32 %v4100, %v4170
    %v4172 = vpop.f32.mrb[0].mxu0
    %v4173 = vadd.f32 %v4102, %v4172
    %4174 = vdwg.mxu0
    %4175 = vmatprep.subr.mxu0 0.0
    %4176 = vmatpush1.msra.mxu0 %v2508
    %4177 = vmatprep.subr.mxu0 0.0
    %4178 = vmatpush1.msra.mxu0 %v2515
    %4179 = vmatprep.subr.mxu0 0.0
    %4180 = vmatpush1.msra.mxu0 %v2522
    %4181 = vmatprep.subr.mxu0 0.0
    %4182 = vmatpush1.msra.mxu0 %v2529
    %4183 = vmatprep.subr.mxu0 0.0
    %4184 = vmatpush1.msra.mxu0 %v2536
    %4185 = vmatprep.subr.mxu0 0.0
    %4186 = vmatpush1.msra.mxu0 %v2543
    %4187 = vmatprep.subr.mxu0 0.0
    %4188 = vmatpush1.msra.mxu0 %v2550
    %4189 = vmatprep.subr.mxu0 0.0
    %4190 = vmatpush1.msra.mxu0 %v2557
    %4191 = vmatprep.subr.mxu0 0.0
    %4192 = vmatpush1.msra.mxu0 %v2564
    %4193 = vmatprep.subr.mxu0 0.0
    %4194 = vmatpush1.msra.mxu0 %v2571
    %4195 = vmatprep.subr.mxu0 0.0
    %4196 = vmatpush1.msra.mxu0 %v2578
    %4197 = vmatprep.subr.mxu0 0.0
    %4198 = vmatpush1.msra.mxu0 %v2585
    %4199 = vmatprep.subr.mxu0 0.0
    %4200 = vmatpush1.msra.mxu0 %v2592
    %4201 = vmatprep.subr.mxu0 0.0
    %4202 = vmatpush1.msra.mxu0 %v2599
    %4203 = vmatprep.subr.mxu0 0.0
    %4204 = vmatpush1.msra.mxu0 %v2606
    %4205 = vmatprep.subr.mxu0 0.0
    %4206 = vmatpush1.msra.mxu0 %v2613
    %4207 = vmatprep.subr.mxu0 0.0
    %4208 = vmatpush1.msra.mxu0 %v2620
    %4209 = vmatprep.subr.mxu0 0.0
    %4210 = vmatpush1.msra.mxu0 %v2627
    %4211 = vmatprep.subr.mxu0 0.0
    %4212 = vmatpush1.msra.mxu0 %v2634
    %4213 = vmatprep.subr.mxu0 0.0
    %4214 = vmatpush1.msra.mxu0 %v2641
    %4215 = vmatprep.subr.mxu0 0.0
    %4216 = vmatpush1.msra.mxu0 %v2648
    %4217 = vmatprep.subr.mxu0 0.0
    %4218 = vmatpush1.msra.mxu0 %v2655
    %4219 = vmatprep.subr.mxu0 0.0
    %4220 = vmatpush1.msra.mxu0 %v2662
    %4221 = vmatprep.subr.mxu0 0.0
    %4222 = vmatpush1.msra.mxu0 %v2669
    %4223 = vmatprep.subr.mxu0 0.0
    %4224 = vmatpush1.msra.mxu0 %v2676
    %4225 = vmatprep.subr.mxu0 0.0
    %4226 = vmatpush1.msra.mxu0 %v2683
    %4227 = vmatprep.subr.mxu0 0.0
    %4228 = vmatpush1.msra.mxu0 %v2690
    %4229 = vmatprep.subr.mxu0 0.0
    %4230 = vmatpush1.msra.mxu0 %v2697
    %4231 = vmatprep.subr.mxu0 0.0
    %4232 = vmatpush1.msra.mxu0 %v2704
    %4233 = vmatprep.subr.mxu0 0.0
    %4234 = vmatpush1.msra.mxu0 %v2711
    %4235 = vmatprep.subr.mxu0 0.0
    %4236 = vmatpush1.msra.mxu0 %v2718
    %4237 = vmatprep.subr.mxu0 0.0
    %4238 = vmatpush1.msra.mxu0 %v2725
    %4239 = vmatprep.mubr.f32.mxu0 %v2496
    %4240 = vmatmul.mubr.f32.gmra.mrb[0].mxu0 %v2495
    %v4241 = vpop.f32.mrb[0].mxu0
    %v4242 = vadd.f32 %v3315, %v4241
    %v4243 = vpop.f32.mrb[0].mxu0
    %4244 = vdwg.mxu0
    %4245 = vmatprep.subr.mxu0 0.0
    %4246 = vmatpush1.msra.mxu0 %v2732
    %4247 = vmatprep.subr.mxu0 0.0
    %4248 = vmatpush1.msra.mxu0 %v2739
    %4249 = vmatprep.subr.mxu0 0.0
    %4250 = vmatpush1.msra.mxu0 %v2746
    %4251 = vmatprep.subr.mxu0 0.0
    %4252 = vmatpush1.msra.mxu0 %v2753
    %4253 = vmatprep.subr.mxu0 0.0
    %4254 = vmatpush1.msra.mxu0 %v2760
    %4255 = vmatprep.subr.mxu0 0.0
    %4256 = vmatpush1.msra.mxu0 %v2767
    %4257 = vmatprep.subr.mxu0 0.0
    %4258 = vmatpush1.msra.mxu0 %v2774
    %4259 = vmatprep.subr.mxu0 0.0
    %4260 = vmatpush1.msra.mxu0 %v2781
    %4261 = vmatprep.subr.mxu0 0.0
    %4262 = vmatpush1.msra.mxu0 %v2788
    %4263 = vmatprep.subr.mxu0 0.0
    %4264 = vmatpush1.msra.mxu0 %v2795
    %4265 = vmatprep.subr.mxu0 0.0
    %4266 = vmatpush1.msra.mxu0 %v2802
    %4267 = vmatprep.subr.mxu0 0.0
    %4268 = vmatpush1.msra.mxu0 %v2809
    %4269 = vmatprep.subr.mxu0 0.0
    %4270 = vmatpush1.msra.mxu0 %v2816
    %4271 = vmatprep.subr.mxu0 0.0
    %4272 = vmatpush1.msra.mxu0 %v2823
    %4273 = vmatprep.subr.mxu0 0.0
    %4274 = vmatpush1.msra.mxu0 %v2830
    %4275 = vmatprep.subr.mxu0 0.0
    %4276 = vmatpush1.msra.mxu0 %v2837
    %4277 = vmatprep.subr.mxu0 0.0
    %4278 = vmatpush1.msra.mxu0 %v2844
    %4279 = vmatprep.subr.mxu0 0.0
    %4280 = vmatpush1.msra.mxu0 %v2851
    %4281 = vmatprep.subr.mxu0 0.0
    %4282 = vmatpush1.msra.mxu0 %v2858
    %4283 = vmatprep.subr.mxu0 0.0
    %4284 = vmatpush1.msra.mxu0 %v2865
    %4285 = vmatprep.subr.mxu0 0.0
    %4286 = vmatpush1.msra.mxu0 %v2872
    %4287 = vmatprep.subr.mxu0 0.0
    %4288 = vmatpush1.msra.mxu0 %v2879
    %4289 = vmatprep.subr.mxu0 0.0
    %4290 = vmatpush1.msra.mxu0 %v2886
    %4291 = vmatprep.subr.mxu0 0.0
    %4292 = vmatpush1.msra.mxu0 %v2893
    %4293 = vmatprep.subr.mxu0 0.0
    %4294 = vmatpush1.msra.mxu0 %v2900
    %4295 = vmatprep.subr.mxu0 0.0
    %4296 = vmatpush1.msra.mxu0 %v2907
    %4297 = vmatprep.subr.mxu0 0.0
    %4298 = vmatpush1.msra.mxu0 %v2914
    %4299 = vmatprep.subr.mxu0 0.0
    %4300 = vmatpush1.msra.mxu0 %v2921
    %4301 = vmatprep.subr.mxu0 0.0
    %4302 = vmatpush1.msra.mxu0 %v2928
    %4303 = vmatprep.subr.mxu0 0.0
    %4304 = vmatpush1.msra.mxu0 %v2935
    %4305 = vmatprep.subr.mxu0 0.0
    %4306 = vmatpush1.msra.mxu0 %v2942
    %4307 = vmatprep.subr.mxu0 0.0
    %4308 = vmatpush1.msra.mxu0 %v2949
    %4309 = vmatprep.mubr.f32.mxu0 %v2498
    %4310 = vmatmul.mubr.f32.gmra.mrb[0].mxu0 %v2497
    %v4311 = vpop.f32.mrb[0].mxu0
    %v4312 = vadd.f32 %v4242, %v4311
    %v4313 = vpop.f32.mrb[0].mxu0
    %4314 = vdwg.mxu0
    %4315 = vmatprep.subr.mxu0 0.0
    %4316 = vmatpush1.msra.mxu0 %v2956
    %4317 = vmatprep.subr.mxu0 0.0
    %4318 = vmatpush1.msra.mxu0 %v2963
    %4319 = vmatprep.subr.mxu0 0.0
    %4320 = vmatpush1.msra.mxu0 %v2970
    %4321 = vmatprep.subr.mxu0 0.0
    %4322 = vmatpush1.msra.mxu0 %v2977
    %4323 = vmatprep.subr.mxu0 0.0
    %4324 = vmatpush1.msra.mxu0 %v2984
    %4325 = vmatprep.subr.mxu0 0.0
    %4326 = vmatpush1.msra.mxu0 %v2991
    %4327 = vmatprep.subr.mxu0 0.0
    %4328 = vmatpush1.msra.mxu0 %v2998
    %4329 = vmatprep.subr.mxu0 0.0
    %4330 = vmatpush1.msra.mxu0 %v3005
    %4331 = vmatprep.subr.mxu0 0.0
    %4332 = vmatpush1.msra.mxu0 %v3012
    %4333 = vmatprep.subr.mxu0 0.0
    %4334 = vmatpush1.msra.mxu0 %v3019
    %4335 = vmatprep.subr.mxu0 0.0
    %4336 = vmatpush1.msra.mxu0 %v3026
    %4337 = vmatprep.subr.mxu0 0.0
    %4338 = vmatpush1.msra.mxu0 %v3033
    %4339 = vmatprep.subr.mxu0 0.0
    %4340 = vmatpush1.msra.mxu0 %v3040
    %4341 = vmatprep.subr.mxu0 0.0
    %4342 = vmatpush1.msra.mxu0 %v3047
    %4343 = vmatprep.subr.mxu0 0.0
    %4344 = vmatpush1.msra.mxu0 %v3054
    %4345 = vmatprep.subr.mxu0 0.0
    %4346 = vmatpush1.msra.mxu0 %v3061
    %4347 = vmatprep.subr.mxu0 0.0
    %4348 = vmatpush1.msra.mxu0 %v3068
    %4349 = vmatprep.subr.mxu0 0.0
    %4350 = vmatpush1.msra.mxu0 %v3075
    %4351 = vmatprep.subr.mxu0 0.0
    %4352 = vmatpush1.msra.mxu0 %v3082
    %4353 = vmatprep.subr.mxu0 0.0
    %4354 = vmatpush1.msra.mxu0 %v3089
    %4355 = vmatprep.subr.mxu0 0.0
    %4356 = vmatpush1.msra.mxu0 %v3096
    %4357 = vmatprep.subr.mxu0 0.0
    %4358 = vmatpush1.msra.mxu0 %v3103
    %4359 = vmatprep.subr.mxu0 0.0
    %4360 = vmatpush1.msra.mxu0 %v3110
    %4361 = vmatprep.subr.mxu0 0.0
    %4362 = vmatpush1.msra.mxu0 %v3117
    %4363 = vmatprep.subr.mxu0 0.0
    %4364 = vmatpush1.msra.mxu0 %v3124
    %4365 = vmatprep.subr.mxu0 0.0
    %4366 = vmatpush1.msra.mxu0 %v3131
    %4367 = vmatprep.subr.mxu0 0.0
    %4368 = vmatpush1.msra.mxu0 %v3138
    %4369 = vmatprep.subr.mxu0 0.0
    %4370 = vmatpush1.msra.mxu0 %v3145
    %4371 = vmatprep.subr.mxu0 0.0
    %4372 = vmatpush1.msra.mxu0 %v3152
    %4373 = vmatprep.subr.mxu0 0.0
    %4374 = vmatpush1.msra.mxu0 %v3159
    %4375 = vmatprep.subr.mxu0 0.0
    %4376 = vmatpush1.msra.mxu0 %v3166
    %4377 = vmatprep.subr.mxu0 0.0
    %4378 = vmatpush1.msra.mxu0 %v3173
    %4379 = vmatprep.mubr.f32.mxu0 %v2500
    %4380 = vmatmul.mubr.f32.gmra.mrb[0].mxu0 %v2499
    %v4381 = vpop.f32.mrb[0].mxu0
    %v4382 = vadd.f32 %v4312, %v4381
    %v4383 = vpop.f32.mrb[0].mxu0
    %4384 = vdwg.mxu0
    %4385 = vmatprep.subr.mxu0 0.0
    %4386 = vmatpush1.msra.mxu0 %v3180
    %4387 = vmatprep.subr.mxu0 0.0
    %4388 = vmatpush1.msra.mxu0 %v3187
    %4389 = vmatprep.subr.mxu0 0.0
    %4390 = vmatpush1.msra.mxu0 %v3194
    %4391 = vmatprep.subr.mxu0 0.0
    %4392 = vmatpush1.msra.mxu0 %v3201
    %4393 = vmatprep.subr.mxu0 0.0
    %4394 = vmatpush1.msra.mxu0 %v3208
    %4395 = vmatprep.subr.mxu0 0.0
    %4396 = vmatpush1.msra.mxu0 %v3215
    %4397 = vmatprep.subr.mxu0 0.0
    %4398 = vmatpush1.msra.mxu0 %v3222
    %4399 = vmatprep.subr.mxu0 0.0
    %4400 = vmatpush1.msra.mxu0 %v3229
    %4401 = vmatprep.subr.mxu0 0.0
    %4402 = vmatpush1.msra.mxu0 %v3236
    %4403 = vmatprep.subr.mxu0 0.0
    %4404 = vmatpush1.msra.mxu0 %v3243
    %4405 = vmatprep.subr.mxu0 0.0
    %4406 = vmatpush1.msra.mxu0 %v3250
    %4407 = vmatprep.subr.mxu0 0.0
    %4408 = vmatpush1.msra.mxu0 %v3257
    %4409 = vmatprep.subr.mxu0 0.0
    %4410 = vmatpush1.msra.mxu0 %v3264
    %4411 = vmatprep.subr.mxu0 0.0
    %4412 = vmatpush1.msra.mxu0 %v3271
    %4413 = vmatprep.subr.mxu0 0.0
    %4414 = vmatpush1.msra.mxu0 %v3278
    %4415 = vmatprep.subr.mxu0 0.0
    %4416 = vmatpush1.msra.mxu0 %v3285
    %4417 = vmatprep.subr.mxu0 0.0
    %4418 = vmatpush1.msra.mxu0 0.0
    %4419 = vmatprep.subr.mxu0 0.0
    %4420 = vmatpush1.msra.mxu0 0.0
    %4421 = vmatprep.subr.mxu0 0.0
    %4422 = vmatpush1.msra.mxu0 0.0
    %4423 = vmatprep.subr.mxu0 0.0
    %4424 = vmatpush1.msra.mxu0 0.0
    %4425 = vmatprep.subr.mxu0 0.0
    %4426 = vmatpush1.msra.mxu0 0.0
    %4427 = vmatprep.subr.mxu0 0.0
    %4428 = vmatpush1.msra.mxu0 0.0
    %4429 = vmatprep.subr.mxu0 0.0
    %4430 = vmatpush1.msra.mxu0 0.0
    %4431 = vmatprep.subr.mxu0 0.0
    %4432 = vmatpush1.msra.mxu0 0.0
    %4433 = vmatprep.subr.mxu0 0.0
    %4434 = vmatpush1.msra.mxu0 0.0
    %4435 = vmatprep.subr.mxu0 0.0
    %4436 = vmatpush1.msra.mxu0 0.0
    %4437 = vmatprep.subr.mxu0 0.0
    %4438 = vmatpush1.msra.mxu0 0.0
    %4439 = vmatprep.subr.mxu0 0.0
    %4440 = vmatpush1.msra.mxu0 0.0
    %4441 = vmatprep.subr.mxu0 0.0
    %4442 = vmatpush1.msra.mxu0 0.0
    %4443 = vmatprep.subr.mxu0 0.0
    %4444 = vmatpush1.msra.mxu0 0.0
    %4445 = vmatprep.subr.mxu0 0.0
    %4446 = vmatpush1.msra.mxu0 0.0
    %4447 = vmatprep.subr.mxu0 0.0
    %4448 = vmatpush1.msra.mxu0 0.0
    %4449 = vmatprep.mubr.f32.mxu0 0.0
    %4450 = vmatmul.mubr.f32.gmra.mrb[0].mxu0 %v2501
    %v4451 = vpop.f32.mrb[0].mxu0
    %v4452 = vadd.f32 %v4382, %v4451
    %v4453 = vpop.f32.mrb[0].mxu0
    %4454 = vdwg.mxu0
    %v4455 = vtanh.pop %v3603
    %v4456 = vtanh.pop %v3605
    %v4457 = vtanh.pop %v3887
    %v4458 = vtanh.pop %v3889
    %v4459 = vtanh.pop %v4171
    %v4460 = vtanh.pop %v4173
    %v4461 = vtanh.pop %v4452
    %4462 = vst [vmem:[%s7] sm:$0xff] %v4455
    %4463 = vst [vmem:[%s7 + $0x8] sm:$0xff] %v4456
    %4464 = vst [vmem:[%s7 + $0x10] sm:$0xff] %v4457
    %4465 = vst [vmem:[%s7 + $0x18] sm:$0xff] %v4458
    %4466 = vst [vmem:[%s7 + $0x20] sm:$0xff] %v4459
    %4467 = vst [vmem:[%s7 + $0x28] sm:$0xff] %v4460
    %4468 = vst [vmem:[%s7 + $0x30] sm:$0xff] %v4461
    // Predicated region
    $region54: #{forward.1} parent=1 // pred_check
      _
    $region55: #{forward.1} parent=1 // pred_check_branch
      %4470 = sbr.rel (0) target = $region57
    $region56: #{forward.1} parent=1 // pred_region
      _
    $region57: #{forward.1} parent=1 // pred_fallthru
      _
    // Predicated region
    $region58: #{forward.1} parent=1 // pred_check
      _
    $region59: #{forward.1} parent=1 // pred_check_branch
      %4472 = sbr.rel (0) target = $region61
    $region60: #{forward.1} parent=1 // pred_region
      _
    $region61: #{forward.1} parent=1 // pred_fallthru
      _
    %4473 = vsyncpa [#allocation3], 1
    %4474 = vsyncpa [#allocation5], 1
    %4475 = vsyncpa [#allocation8], 1
    %4476 = vsyncpa [#allocation11], 1

</llo_original>
